<compile_context>
chip_gen: v7x
topology: tpu7x:2x2x1
jax: 0.10.0
libtpu: 0.0.40
codegen_flags: <defaults>
</compile_context>

<pallas_src>
import jax
import jax.numpy as jnp
from jax.experimental import pallas as pl
from jax.experimental.pallas import tpu as pltpu

_EPS = 1e-5
_CPARAMS = pltpu.CompilerParams(dimension_semantics=("parallel",))


# ------------------------------ kernel helpers -------------------------------

def _im2col_conv(a_bf16, w_ref, xpad_ref, col_ref):
    """3x3 same-padding conv of a (BT,H,W,Cin) bf16 value via a single MXU matmul.

    a_bf16:   (BT, H, W, Cin)        bf16 value (already in VMEM)
    w_ref:    (9*Cin, Cout)          bf16 ref   (tap-major, channel-minor rows)
    xpad_ref: (BT, H+2, W+2, Cin)    bf16 scratch (zero-padded activation)
    col_ref:  (BT*H*W, 9*Cin)        bf16 scratch (im2col slab, contiguous matmul LHS)
    returns:  (BT*H*W, Cout) f32 accumulator (no bias: cancelled by the following BN)
    """
    bt, h, w, cin = a_bf16.shape
    m = bt * h * w
    dt = xpad_ref.dtype

    # Re-zero only the 1-pixel border (interior is fully overwritten each step).
    xpad_ref[:, 0:1, :, :] = jnp.zeros((bt, 1, w + 2, cin), dt)
    xpad_ref[:, h + 1:h + 2, :, :] = jnp.zeros((bt, 1, w + 2, cin), dt)
    xpad_ref[:, 1:h + 1, 0:1, :] = jnp.zeros((bt, h, 1, cin), dt)
    xpad_ref[:, 1:h + 1, w + 1:w + 2, :] = jnp.zeros((bt, h, 1, cin), dt)
    xpad_ref[:, 1:h + 1, 1:w + 1, :] = a_bf16

    # im2col: the 9 window copies are paid once; then one K=9*Cin contraction.
    for di in range(3):
        for dj in range(3):
            t = di * 3 + dj
            col_ref[:, t * cin:(t + 1) * cin] = (
                xpad_ref[:, di:di + h, dj:dj + w, :].reshape(m, cin))

    return jnp.dot(col_ref[...], w_ref[...], preferred_element_type=jnp.float32)


def _emit_conv_outputs(acc, bt, h, w, y_ref, ps_ref, pss_ref):
    cout = acc.shape[-1]
    y_ref[...] = acc.reshape(bt, h, w, cout).astype(y_ref.dtype)
    ps_ref[...] = jnp.sum(acc, axis=0, keepdims=True).reshape(1, 1, cout)
    pss_ref[...] = jnp.sum(acc * acc, axis=0, keepdims=True).reshape(1, 1, cout)


# ------------------------------ kernel bodies --------------------------------

def _conv_stats_kernel(x_ref, w_ref, y_ref, ps_ref, pss_ref, xpad_ref, col_ref):
    """conv3x3(pad=1); also emits per-step channel sum / sum-of-squares for BN."""
    bt, h, w, _ = x_ref.shape
    acc = _im2col_conv(x_ref[...], w_ref, xpad_ref, col_ref)
    _emit_conv_outputs(acc, bt, h, w, y_ref, ps_ref, pss_ref)


def _bnrelu_conv_stats_kernel(x_ref, scale_ref, shift_ref, w_ref,
                              y_ref, ps_ref, pss_ref, xpad_ref, col_ref):
    """Fused BN(prev layer)+ReLU on the input (bf16), then conv3x3(pad=1) + stats."""
    bt, h, w, _ = x_ref.shape
    sc = scale_ref[...].astype(x_ref.dtype)   # tiny (1, Cprev) casts
    sh = shift_ref[...].astype(x_ref.dtype)
    a = jnp.maximum(x_ref[...] * sc + sh, 0)  # bf16 affine + ReLU
    acc = _im2col_conv(a, w_ref, xpad_ref, col_ref)
    _emit_conv_outputs(acc, bt, h, w, y_ref, ps_ref, pss_ref)


def _bn_relu_t_kernel(x_ref, scale_ref, shift_ref, o_ref):
    """Final BN+ReLU epilogue; writes (BT, Cout, H*W) so the HBM store is lane-dense
    and the NCHW result needs only a free reshape (no XLA transpose pass)."""
    bt, h, w, c = x_ref.shape
    xin = x_ref[...].reshape(bt, h * w, c).astype(jnp.float32)
    y = jnp.maximum(xin * scale_ref[...] + shift_ref[...], 0.0)
    for b in range(bt):                       # per-image 2-D transpose in VMEM
        o_ref[b] = y[b].T


# ----------------------------- pallas_call glue ------------------------------

def _pick_batch_tile(n, h, w):
    """~1024 im2col rows per step feeds the MXU well; keep >=2 grid steps when possible
    so v7x megacore / the pipeline have work to split."""
    bt = max(1, min(max(1, 1024 // (h * w)), n // 2 if n > 1 else 1, n))
    while n % bt:
        bt -= 1
    return bt


def _conv_bn_stats(x, w2d, scale=None, shift=None, *, bt):
    """x: (N,H,W,Cin) bf16; w2d: (9*Cin,Cout) bf16.  If scale/shift are given, the
    previous layer's BN+ReLU is fused on the input."""
    n, h, wdt, cin = x.shape
    cout = w2d.shape[-1]
    steps = n // bt

    x_spec = pl.BlockSpec((bt, h, wdt, cin), lambda i: (i, 0, 0, 0))
    w_spec = pl.BlockSpec((9 * cin, cout), lambda i: (0, 0))
    y_spec = pl.BlockSpec((bt, h, wdt, cout), lambda i: (i, 0, 0, 0))
    st_spec = pl.BlockSpec((1, 1, cout), lambda i: (i, 0, 0))

    if scale is not None:
        kernel = _bnrelu_conv_stats_kernel
        in_specs = [x_spec,
                    pl.BlockSpec((1, cin), lambda i: (0, 0)),   # scale (prev-layer C)
                    pl.BlockSpec((1, cin), lambda i: (0, 0)),   # shift
                    w_spec]
        args = (x, scale, shift, w2d)
    else:
        kernel = _conv_stats_kernel
        in_specs = [x_spec, w_spec]
        args = (x, w2d)

    return pl.pallas_call(
        kernel,
        grid=(steps,),
        in_specs=in_specs,
        out_specs=(y_spec, st_spec, st_spec),
        out_shape=(jax.ShapeDtypeStruct((n, h, wdt, cout), jnp.bfloat16),
                   jax.ShapeDtypeStruct((steps, 1, cout), jnp.float32),
                   jax.ShapeDtypeStruct((steps, 1, cout), jnp.float32)),
        scratch_shapes=[pltpu.VMEM((bt, h + 2, wdt + 2, cin), jnp.bfloat16),
                        pltpu.VMEM((bt * h * wdt, 9 * cin), jnp.bfloat16)],
        compiler_params=_CPARAMS,
    )(*args)


def _apply_bn_relu_nchw(y, scale, shift, *, bt):
    """BN+ReLU epilogue producing an (N, C, H*W) f32 tensor (lane-dense stores)."""
    n, h, w, c = y.shape
    steps = n // bt
    return pl.pallas_call(
        _bn_relu_t_kernel,
        grid=(steps,),
        in_specs=[pl.BlockSpec((bt, h, w, c), lambda i: (i, 0, 0, 0)),
                  pl.BlockSpec((1, c), lambda i: (0, 0)),
                  pl.BlockSpec((1, c), lambda i: (0, 0))],
        out_specs=pl.BlockSpec((bt, c, h * w), lambda i: (i, 0, 0)),
        out_shape=jax.ShapeDtypeStruct((n, c, h * w), jnp.float32),
        compiler_params=_CPARAMS,
    )(y, scale, shift)


def _finalize_bn(psum, psumsq, gamma, beta, rows):
    """Tiny per-channel finalize of the cross-step BN reduction (stays in XLA)."""
    total = jnp.sum(psum, axis=(0, 1))          # (C,)
    totalsq = jnp.sum(psumsq, axis=(0, 1))      # (C,)
    mean = total / rows
    # E[x^2]-mean^2 with a clamp; fine in f32 at these sizes (Welford for huge N*H*W).
    var = jnp.maximum(totalsq / rows - mean * mean, 0.0)
    inv = jax.lax.rsqrt(var + _EPS)
    scale = gamma * inv
    shift = beta - mean * scale
    return scale.reshape(1, -1), shift.reshape(1, -1)


@jax.jit
def double_conv_forward(x_nchw, params):
    n, _, h, w = x_nchw.shape
    rows = n * h * w
    bt = _pick_batch_tile(n, h, w)

    # Input layout pass kept in XLA: it only touches the Cin-channel input (smallest
    # tensor in the op).  A full NHWC UNet would drop it entirely.
    x = jnp.transpose(x_nchw, (0, 2, 3, 1)).astype(jnp.bfloat16)      # NHWC bf16

    # conv1 + BN1 partial stats, fused (bias dropped: cancelled by BN mean subtraction)
    y1, ps1, pss1 = _conv_bn_stats(x, params['w1'], bt=bt)
    scale1, shift1 = _finalize_bn(ps1, pss1, params['bn1_g'], params['bn1_b'], rows)

    # BN1+ReLU fused into conv2's load stage; conv2 + BN2 partial stats
    y2, ps2, pss2 = _conv_bn_stats(y1, params['w2'], scale=scale1, shift=shift1, bt=bt)
    scale2, shift2 = _finalize_bn(ps2, pss2, params['bn2_g'], params['bn2_b'], rows)

    out = _apply_bn_relu_nchw(y2, scale2, shift2, bt=bt)              # (N, Cout, H*W)
    return out.reshape(n, -1, h, w)                                   # free: already NCHW order


# ---------------------- deterministic parameter init ------------------------

def init_double_conv(key, in_channels, out_channels, mid_channels=None):
    """PyTorch-style init (Conv2d kaiming_uniform + uniform bias, BN gamma=1/beta=0).
    Prepared conv weights are reshaped OIHW -> (9*Cin, Cout) bf16 once, outside the
    forward, matching the im2col column order (tap-major, channel-minor)."""
    mid = mid_channels or out_channels
    k1, k2, k3, k4 = jax.random.split(key, 4)

    def conv_init(kw_, kb_, cout, cin):
        fan_in = cin * 9
        bound = 1.0 / (fan_in ** 0.5)
        wgt = jax.random.uniform(kw_, (cout, cin, 3, 3), jnp.float32, -bound, bound)
        bia = jax.random.uniform(kb_, (cout,), jnp.float32, -bound, bound)
        return wgt, bia

    w1, b1 = conv_init(k1, k2, mid, in_channels)
    w2, b2 = conv_init(k3, k4, out_channels, mid)

    def prep(wgt):                                  # OIHW -> (9*Cin, Cout) bf16
        cout, cin = wgt.shape[0], wgt.shape[1]
        return (jnp.transpose(wgt, (2, 3, 1, 0))    # (3,3,Cin,Cout)
                .reshape(9 * cin, cout).astype(jnp.bfloat16))

    prepared = {
        'w1': prep(w1),
        'bn1_g': jnp.ones((mid,), jnp.float32),
        'bn1_b': jnp.zeros((mid,), jnp.float32),
        'w2': prep(w2),
        'bn2_g': jnp.ones((out_channels,), jnp.float32),
        'bn2_b': jnp.zeros((out_channels,), jnp.float32),
    }
    # Conv biases are intentionally absent from `prepared`: with train-mode BatchNorm
    # right after each conv they cancel exactly post-normalization.  They stay in `raw`
    # so the pure-JAX reference mirrors the PyTorch module bit-for-bit semantically.
    raw = {'w1': w1, 'b1': b1, 'g1': prepared['bn1_g'], 'beta1': prepared['bn1_b'],
           'w2': w2, 'b2': b2, 'g2': prepared['bn2_g'], 'beta2': prepared['bn2_b']}
    return prepared, raw


# ----------------------------- pure-JAX reference ----------------------------

def _reference(x, raw):
    def conv_bn_relu(xv, wgt, bia, gam, bet):
        y = jax.lax.conv_general_dilated(
            xv, wgt, window_strides=(1, 1), padding=((1, 1), (1, 1)),
            dimension_numbers=('NCHW', 'OIHW', 'NCHW'))
        y = y + bia.reshape(1, -1, 1, 1)
        mean = jnp.mean(y, axis=(0, 2, 3), keepdims=True)
        var = jnp.mean((y - mean) ** 2, axis=(0, 2, 3), keepdims=True)
        y = (y - mean) * jax.lax.rsqrt(var + _EPS)
        y = y * gam.reshape(1, -1, 1, 1) + bet.reshape(1, -1, 1, 1)
        return jnp.maximum(y, 0.0)

    y = conv_bn_relu(x, raw['w1'], raw['b1'], raw['g1'], raw['beta1'])
    return conv_bn_relu(y, raw['w2'], raw['b2'], raw['g2'], raw['beta2'])


if __name__ == "__main__":
    key = jax.random.PRNGKey(0)
    k_p, k_x = jax.random.split(key)

    batch, in_ch, hgt, wdt = 2, 4, 16, 16
    out_ch = 32                                  # mid_channels defaults to out_channels

    params, raw = init_double_conv(k_p, in_ch, out_ch)
    x = jax.random.normal(k_x, (batch, in_ch, hgt, wdt), jnp.float32)

    out = jax.block_until_ready(double_conv_forward(x, params))
    assert out.shape == (batch, out_ch, hgt, wdt)
    assert bool(jnp.all(jnp.isfinite(out)))
    assert bool(jnp.all(out >= 0.0))             # ReLU output is non-negative

    # loose tolerance: kernel path uses bf16 weights/activations with f32 accumulation
    ref = _reference(x, raw)
    max_err = float(jnp.max(jnp.abs(out - ref)))
    assert max_err < 0.3, f"mismatch vs pure-JAX reference: {max_err}"

    print("KERNEL_OK")
</pallas_src>

<mosaic_0001>
module attributes {stable_mosaic.version = 11 : i64} {
  func.func @_conv_stats_kernel(%arg0: i32, %arg1: memref<1x16x16x4xbf16, #tpu.memory_space<vmem>>, %arg2: memref<36x32xbf16, #tpu.memory_space<vmem>>, %arg3: memref<1x16x16x32xbf16, #tpu.memory_space<vmem>>, %arg4: memref<1x1x32xf32, #tpu.memory_space<vmem>>, %arg5: memref<1x1x32xf32, #tpu.memory_space<vmem>>, %arg6: memref<1x18x18x4xbf16, #tpu.memory_space<vmem>>, %arg7: memref<256x36xbf16, #tpu.memory_space<vmem>>) attributes {dimension_semantics = [#tpu.dimension_semantics<parallel>], iteration_bounds = array<i64: 2>, scalar_prefetch = 0 : i64, scratch_operands = 2 : i64, tpu.core_type = #tpu.core_type<tc>, window_params = [{transform_indices = @transform_0, window_bounds = array<i64: 1, 16, 16, 4>}, {pipeline_mode = #tpu.pipeline_mode<synchronous>, transform_indices = @transform_1, window_bounds = array<i64: 36, 32>}, {transform_indices = @transform_2, window_bounds = array<i64: 1, 16, 16, 32>}, {transform_indices = @transform_3, window_bounds = array<i64: 1, 1, 32>}, {transform_indices = @transform_4, window_bounds = array<i64: 1, 1, 32>}]} {
    %c0 = arith.constant 0 : index
    %c0_0 = arith.constant 0 : index
    %c0_1 = arith.constant 0 : index
    %c0_2 = arith.constant 0 : index
    %0 = vector.load %arg1[%c0, %c0_0, %c0_1, %c0_2] : memref<1x16x16x4xbf16, #tpu.memory_space<vmem>>, vector<1x16x16x4xbf16>
    %cst = arith.constant 0.000000e+00 : bf16
    %1 = vector.broadcast %cst : bf16 to vector<1x1x18x4xbf16>
    %c0_3 = arith.constant 0 : index
    %c0_4 = arith.constant 0 : index
    %c0_5 = arith.constant 0 : index
    %c0_6 = arith.constant 0 : index
    %2 = vector.load %arg6[%c0_3, %c0_4, %c0_5, %c0_6] : memref<1x18x18x4xbf16, #tpu.memory_space<vmem>>, vector<1x1x18x4xbf16>
    tpu.vector_store %arg6[%c0_3, %c0_4, %c0_5, %c0_6], %1 {strides = array<i32>} : memref<1x18x18x4xbf16, #tpu.memory_space<vmem>>, vector<1x1x18x4xbf16>,
    %cst_7 = arith.constant 0.000000e+00 : bf16
    %3 = vector.broadcast %cst_7 : bf16 to vector<1x1x18x4xbf16>
    %c0_8 = arith.constant 0 : index
    %c17 = arith.constant 17 : index
    %c0_9 = arith.constant 0 : index
    %c0_10 = arith.constant 0 : index
    %4 = vector.load %arg6[%c0_8, %c17, %c0_9, %c0_10] : memref<1x18x18x4xbf16, #tpu.memory_space<vmem>>, vector<1x1x18x4xbf16>
    tpu.vector_store %arg6[%c0_8, %c17, %c0_9, %c0_10], %3 {strides = array<i32>} : memref<1x18x18x4xbf16, #tpu.memory_space<vmem>>, vector<1x1x18x4xbf16>,
    %cst_11 = arith.constant 0.000000e+00 : bf16
    %5 = vector.broadcast %cst_11 : bf16 to vector<1x16x1x4xbf16>
    %c0_12 = arith.constant 0 : index
    %c1 = arith.constant 1 : index
    %c0_13 = arith.constant 0 : index
    %c0_14 = arith.constant 0 : index
    %6 = vector.load %arg6[%c0_12, %c1, %c0_13, %c0_14] : memref<1x18x18x4xbf16, #tpu.memory_space<vmem>>, vector<1x16x1x4xbf16>
    tpu.vector_store %arg6[%c0_12, %c1, %c0_13, %c0_14], %5 {strides = array<i32>} : memref<1x18x18x4xbf16, #tpu.memory_space<vmem>>, vector<1x16x1x4xbf16>,
    %cst_15 = arith.constant 0.000000e+00 : bf16
    %7 = vector.broadcast %cst_15 : bf16 to vector<1x16x1x4xbf16>
    %c0_16 = arith.constant 0 : index
    %c1_17 = arith.constant 1 : index
    %c17_18 = arith.constant 17 : index
    %c0_19 = arith.constant 0 : index
    %8 = vector.load %arg6[%c0_16, %c1_17, %c17_18, %c0_19] : memref<1x18x18x4xbf16, #tpu.memory_space<vmem>>, vector<1x16x1x4xbf16>
    tpu.vector_store %arg6[%c0_16, %c1_17, %c17_18, %c0_19], %7 {strides = array<i32>} : memref<1x18x18x4xbf16, #tpu.memory_space<vmem>>, vector<1x16x1x4xbf16>,
    %c0_20 = arith.constant 0 : index
    %c1_21 = arith.constant 1 : index
    %c1_22 = arith.constant 1 : index
    %c0_23 = arith.constant 0 : index
    %9 = vector.load %arg6[%c0_20, %c1_21, %c1_22, %c0_23] : memref<1x18x18x4xbf16, #tpu.memory_space<vmem>>, vector<1x16x16x4xbf16>
    tpu.vector_store %arg6[%c0_20, %c1_21, %c1_22, %c0_23], %0 {strides = array<i32>} : memref<1x18x18x4xbf16, #tpu.memory_space<vmem>>, vector<1x16x16x4xbf16>,
    %c0_24 = arith.constant 0 : index
    %c0_25 = arith.constant 0 : index
    %c0_26 = arith.constant 0 : index
    %c0_27 = arith.constant 0 : index
    %10 = vector.load %arg6[%c0_24, %c0_25, %c0_26, %c0_27] : memref<1x18x18x4xbf16, #tpu.memory_space<vmem>>, vector<1x16x16x4xbf16>
    %11 = vector.shape_cast %10 : vector<1x16x16x4xbf16> to vector<256x4xbf16>
    %c0_28 = arith.constant 0 : index
    %c0_29 = arith.constant 0 : index
    %12 = vector.load %arg7[%c0_28, %c0_29] : memref<256x36xbf16, #tpu.memory_space<vmem>>, vector<256x4xbf16>
    tpu.vector_store %arg7[%c0_28, %c0_29], %11 {strides = array<i32>} : memref<256x36xbf16, #tpu.memory_space<vmem>>, vector<256x4xbf16>,
    %c0_30 = arith.constant 0 : index
    %c0_31 = arith.constant 0 : index
    %c1_32 = arith.constant 1 : index
    %c0_33 = arith.constant 0 : index
    %13 = vector.load %arg6[%c0_30, %c0_31, %c1_32, %c0_33] : memref<1x18x18x4xbf16, #tpu.memory_space<vmem>>, vector<1x16x16x4xbf16>
    %14 = vector.shape_cast %13 : vector<1x16x16x4xbf16> to vector<256x4xbf16>
    %c0_34 = arith.constant 0 : index
    %c4 = arith.constant 4 : index
    %15 = vector.load %arg7[%c0_34, %c4] : memref<256x36xbf16, #tpu.memory_space<vmem>>, vector<256x4xbf16>
    tpu.vector_store %arg7[%c0_34, %c4], %14 {strides = array<i32>} : memref<256x36xbf16, #tpu.memory_space<vmem>>, vector<256x4xbf16>,
    %c0_35 = arith.constant 0 : index
    %c0_36 = arith.constant 0 : index
    %c2 = arith.constant 2 : index
    %c0_37 = arith.constant 0 : index
    %16 = vector.load %arg6[%c0_35, %c0_36, %c2, %c0_37] : memref<1x18x18x4xbf16, #tpu.memory_space<vmem>>, vector<1x16x16x4xbf16>
    %17 = vector.shape_cast %16 : vector<1x16x16x4xbf16> to vector<256x4xbf16>
    %c0_38 = arith.constant 0 : index
    %c8 = arith.constant 8 : index
    %18 = vector.load %arg7[%c0_38, %c8] : memref<256x36xbf16, #tpu.memory_space<vmem>>, vector<256x4xbf16>
    tpu.vector_store %arg7[%c0_38, %c8], %17 {strides = array<i32>} : memref<256x36xbf16, #tpu.memory_space<vmem>>, vector<256x4xbf16>,
    %c0_39 = arith.constant 0 : index
    %c1_40 = arith.constant 1 : index
    %c0_41 = arith.constant 0 : index
    %c0_42 = arith.constant 0 : index
    %19 = vector.load %arg6[%c0_39, %c1_40, %c0_41, %c0_42] : memref<1x18x18x4xbf16, #tpu.memory_space<vmem>>, vector<1x16x16x4xbf16>
    %20 = vector.shape_cast %19 : vector<1x16x16x4xbf16> to vector<256x4xbf16>
    %c0_43 = arith.constant 0 : index
    %c12 = arith.constant 12 : index
    %21 = vector.load %arg7[%c0_43, %c12] : memref<256x36xbf16, #tpu.memory_space<vmem>>, vector<256x4xbf16>
    tpu.vector_store %arg7[%c0_43, %c12], %20 {strides = array<i32>} : memref<256x36xbf16, #tpu.memory_space<vmem>>, vector<256x4xbf16>,
    %c0_44 = arith.constant 0 : index
    %c1_45 = arith.constant 1 : index
    %c1_46 = arith.constant 1 : index
    %c0_47 = arith.constant 0 : index
    %22 = vector.load %arg6[%c0_44, %c1_45, %c1_46, %c0_47] : memref<1x18x18x4xbf16, #tpu.memory_space<vmem>>, vector<1x16x16x4xbf16>
    %23 = vector.shape_cast %22 : vector<1x16x16x4xbf16> to vector<256x4xbf16>
    %c0_48 = arith.constant 0 : index
    %c16 = arith.constant 16 : index
    %24 = vector.load %arg7[%c0_48, %c16] : memref<256x36xbf16, #tpu.memory_space<vmem>>, vector<256x4xbf16>
    tpu.vector_store %arg7[%c0_48, %c16], %23 {strides = array<i32>} : memref<256x36xbf16, #tpu.memory_space<vmem>>, vector<256x4xbf16>,
    %c0_49 = arith.constant 0 : index
    %c1_50 = arith.constant 1 : index
    %c2_51 = arith.constant 2 : index
    %c0_52 = arith.constant 0 : index
    %25 = vector.load %arg6[%c0_49, %c1_50, %c2_51, %c0_52] : memref<1x18x18x4xbf16, #tpu.memory_space<vmem>>, vector<1x16x16x4xbf16>
    %26 = vector.shape_cast %25 : vector<1x16x16x4xbf16> to vector<256x4xbf16>
    %c0_53 = arith.constant 0 : index
    %c20 = arith.constant 20 : index
    %27 = vector.load %arg7[%c0_53, %c20] : memref<256x36xbf16, #tpu.memory_space<vmem>>, vector<256x4xbf16>
    tpu.vector_store %arg7[%c0_53, %c20], %26 {strides = array<i32>} : memref<256x36xbf16, #tpu.memory_space<vmem>>, vector<256x4xbf16>,
    %c0_54 = arith.constant 0 : index
    %c2_55 = arith.constant 2 : index
    %c0_56 = arith.constant 0 : index
    %c0_57 = arith.constant 0 : index
    %28 = vector.load %arg6[%c0_54, %c2_55, %c0_56, %c0_57] : memref<1x18x18x4xbf16, #tpu.memory_space<vmem>>, vector<1x16x16x4xbf16>
    %29 = vector.shape_cast %28 : vector<1x16x16x4xbf16> to vector<256x4xbf16>
    %c0_58 = arith.constant 0 : index
    %c24 = arith.constant 24 : index
    %30 = vector.load %arg7[%c0_58, %c24] : memref<256x36xbf16, #tpu.memory_space<vmem>>, vector<256x4xbf16>
    tpu.vector_store %arg7[%c0_58, %c24], %29 {strides = array<i32>} : memref<256x36xbf16, #tpu.memory_space<vmem>>, vector<256x4xbf16>,
    %c0_59 = arith.constant 0 : index
    %c2_60 = arith.constant 2 : index
    %c1_61 = arith.constant 1 : index
    %c0_62 = arith.constant 0 : index
    %31 = vector.load %arg6[%c0_59, %c2_60, %c1_61, %c0_62] : memref<1x18x18x4xbf16, #tpu.memory_space<vmem>>, vector<1x16x16x4xbf16>
    %32 = vector.shape_cast %31 : vector<1x16x16x4xbf16> to vector<256x4xbf16>
    %c0_63 = arith.constant 0 : index
    %c28 = arith.constant 28 : index
    %33 = vector.load %arg7[%c0_63, %c28] : memref<256x36xbf16, #tpu.memory_space<vmem>>, vector<256x4xbf16>
    tpu.vector_store %arg7[%c0_63, %c28], %32 {strides = array<i32>} : memref<256x36xbf16, #tpu.memory_space<vmem>>, vector<256x4xbf16>,
    %c0_64 = arith.constant 0 : index
    %c2_65 = arith.constant 2 : index
    %c2_66 = arith.constant 2 : index
    %c0_67 = arith.constant 0 : index
    %34 = vector.load %arg6[%c0_64, %c2_65, %c2_66, %c0_67] : memref<1x18x18x4xbf16, #tpu.memory_space<vmem>>, vector<1x16x16x4xbf16>
    %35 = vector.shape_cast %34 : vector<1x16x16x4xbf16> to vector<256x4xbf16>
    %c0_68 = arith.constant 0 : index
    %c32 = arith.constant 32 : index
    %36 = vector.load %arg7[%c0_68, %c32] : memref<256x36xbf16, #tpu.memory_space<vmem>>, vector<256x4xbf16>
    tpu.vector_store %arg7[%c0_68, %c32], %35 {strides = array<i32>} : memref<256x36xbf16, #tpu.memory_space<vmem>>, vector<256x4xbf16>,
    %c0_69 = arith.constant 0 : index
    %c0_70 = arith.constant 0 : index
    %37 = vector.load %arg7[%c0_69, %c0_70] : memref<256x36xbf16, #tpu.memory_space<vmem>>, vector<256x36xbf16>
    %c0_71 = arith.constant 0 : index
    %c0_72 = arith.constant 0 : index
    %38 = vector.load %arg2[%c0_71, %c0_72] : memref<36x32xbf16, #tpu.memory_space<vmem>>, vector<36x32xbf16>
    %cst_73 = arith.constant dense<0.000000e+00> : vector<256x32xf32>
    %39 = tpu.matmul %37, %38, %cst_73 {dimension_numbers = #tpu.dot_dimension_numbers<[1], [0], [0], [1], [0, 0, 1, 1], [], []>} : vector<256x36xbf16>, vector<36x32xbf16>, vector<256x32xf32> -> vector<256x32xf32>
    %40 = vector.shape_cast %39 : vector<256x32xf32> to vector<1x16x16x32xf32>
    %41 = arith.truncf %40 : vector<1x16x16x32xf32> to vector<1x16x16x32xbf16>
    %c0_74 = arith.constant 0 : index
    %c0_75 = arith.constant 0 : index
    %c0_76 = arith.constant 0 : index
    %c0_77 = arith.constant 0 : index
    %42 = vector.load %arg3[%c0_74, %c0_75, %c0_76, %c0_77] : memref<1x16x16x32xbf16, #tpu.memory_space<vmem>>, vector<1x16x16x32xbf16>
    tpu.vector_store %arg3[%c0_74, %c0_75, %c0_76, %c0_77], %41 {strides = array<i32>} : memref<1x16x16x32xbf16, #tpu.memory_space<vmem>>, vector<1x16x16x32xbf16>,
    %cst_78 = arith.constant dense<0.000000e+00> : vector<32xf32>
    %43 = vector.multi_reduction <add>, %39, %cst_78 [0] : vector<256x32xf32> to vector<32xf32>
    %44 = vector.shape_cast %43 : vector<32xf32> to vector<1x32xf32>
    %45 = vector.shape_cast %44 : vector<1x32xf32> to vector<1x1x32xf32>
    %c0_79 = arith.constant 0 : index
    %c0_80 = arith.constant 0 : index
    %c0_81 = arith.constant 0 : index
    %46 = vector.load %arg4[%c0_79, %c0_80, %c0_81] : memref<1x1x32xf32, #tpu.memory_space<vmem>>, vector<1x1x32xf32>
    tpu.vector_store %arg4[%c0_79, %c0_80, %c0_81], %45 {strides = array<i32>} : memref<1x1x32xf32, #tpu.memory_space<vmem>>, vector<1x1x32xf32>,
    %47 = arith.mulf %39, %39 : vector<256x32xf32>
    %cst_82 = arith.constant dense<0.000000e+00> : vector<32xf32>
    %48 = vector.multi_reduction <add>, %47, %cst_82 [0] : vector<256x32xf32> to vector<32xf32>
    %49 = vector.shape_cast %48 : vector<32xf32> to vector<1x32xf32>
    %50 = vector.shape_cast %49 : vector<1x32xf32> to vector<1x1x32xf32>
    %c0_83 = arith.constant 0 : index
    %c0_84 = arith.constant 0 : index
    %c0_85 = arith.constant 0 : index
    %51 = vector.load %arg5[%c0_83, %c0_84, %c0_85] : memref<1x1x32xf32, #tpu.memory_space<vmem>>, vector<1x1x32xf32>
    tpu.vector_store %arg5[%c0_83, %c0_84, %c0_85], %50 {strides = array<i32>} : memref<1x1x32xf32, #tpu.memory_space<vmem>>, vector<1x1x32xf32>,
    return
  }
  func.func @transform_0(%arg0: i32) -> (i32, i32, i32, i32) {
    %c0_i32 = arith.constant 0 : i32
    %c0_i32_0 = arith.constant 0 : i32
    %c0_i32_1 = arith.constant 0 : i32
    %c0_i32_2 = arith.constant 0 : i32
    return %arg0, %c0_i32, %c0_i32_0, %c0_i32_1 : i32, i32, i32, i32
  }
  func.func @transform_1(%arg0: i32) -> (i32, i32) {
    %c0_i32 = arith.constant 0 : i32
    %c0_i32_0 = arith.constant 0 : i32
    %c0_i32_1 = arith.constant 0 : i32
    return %c0_i32, %c0_i32_0 : i32, i32
  }
  func.func @transform_2(%arg0: i32) -> (i32, i32, i32, i32) {
    %c0_i32 = arith.constant 0 : i32
    %c0_i32_0 = arith.constant 0 : i32
    %c0_i32_1 = arith.constant 0 : i32
    %c0_i32_2 = arith.constant 0 : i32
    return %arg0, %c0_i32, %c0_i32_0, %c0_i32_1 : i32, i32, i32, i32
  }
  func.func @transform_3(%arg0: i32) -> (i32, i32, i32) {
    %c0_i32 = arith.constant 0 : i32
    %c0_i32_0 = arith.constant 0 : i32
    %c0_i32_1 = arith.constant 0 : i32
    return %arg0, %c0_i32, %c0_i32_0 : i32, i32, i32
  }
  func.func @transform_4(%arg0: i32) -> (i32, i32, i32) {
    %c0_i32 = arith.constant 0 : i32
    %c0_i32_0 = arith.constant 0 : i32
    %c0_i32_1 = arith.constant 0 : i32
    return %arg0, %c0_i32, %c0_i32_0 : i32, i32, i32
  }
}

module attributes {stable_mosaic.version = 11 : i64} {
  func.func @_bnrelu_conv_stats_kernel(%arg0: i32, %arg1: memref<1x16x16x32xbf16, #tpu.memory_space<vmem>>, %arg2: memref<1x32xf32, #tpu.memory_space<vmem>>, %arg3: memref<1x32xf32, #tpu.memory_space<vmem>>, %arg4: memref<288x32xbf16, #tpu.memory_space<vmem>>, %arg5: memref<1x16x16x32xbf16, #tpu.memory_space<vmem>>, %arg6: memref<1x1x32xf32, #tpu.memory_space<vmem>>, %arg7: memref<1x1x32xf32, #tpu.memory_space<vmem>>, %arg8: memref<1x18x18x32xbf16, #tpu.memory_space<vmem>>, %arg9: memref<256x288xbf16, #tpu.memory_space<vmem>>) attributes {dimension_semantics = [#tpu.dimension_semantics<parallel>], iteration_bounds = array<i64: 2>, scalar_prefetch = 0 : i64, scratch_operands = 2 : i64, tpu.core_type = #tpu.core_type<tc>, window_params = [{transform_indices = @transform_0, window_bounds = array<i64: 1, 16, 16, 32>}, {pipeline_mode = #tpu.pipeline_mode<synchronous>, transform_indices = @transform_1, window_bounds = array<i64: 1, 32>}, {pipeline_mode = #tpu.pipeline_mode<synchronous>, transform_indices = @transform_2, window_bounds = array<i64: 1, 32>}, {pipeline_mode = #tpu.pipeline_mode<synchronous>, transform_indices = @transform_3, window_bounds = array<i64: 288, 32>}, {transform_indices = @transform_4, window_bounds = array<i64: 1, 16, 16, 32>}, {transform_indices = @transform_5, window_bounds = array<i64: 1, 1, 32>}, {transform_indices = @transform_6, window_bounds = array<i64: 1, 1, 32>}]} {
    %c0 = arith.constant 0 : index
    %c0_0 = arith.constant 0 : index
    %0 = vector.load %arg2[%c0, %c0_0] : memref<1x32xf32, #tpu.memory_space<vmem>>, vector<1x32xf32>
    %1 = arith.truncf %0 : vector<1x32xf32> to vector<1x32xbf16>
    %c0_1 = arith.constant 0 : index
    %c0_2 = arith.constant 0 : index
    %2 = vector.load %arg3[%c0_1, %c0_2] : memref<1x32xf32, #tpu.memory_space<vmem>>, vector<1x32xf32>
    %3 = arith.truncf %2 : vector<1x32xf32> to vector<1x32xbf16>
    %c0_3 = arith.constant 0 : index
    %c0_4 = arith.constant 0 : index
    %c0_5 = arith.constant 0 : index
    %c0_6 = arith.constant 0 : index
    %4 = vector.load %arg1[%c0_3, %c0_4, %c0_5, %c0_6] : memref<1x16x16x32xbf16, #tpu.memory_space<vmem>>, vector<1x16x16x32xbf16>
    %5 = vector.shape_cast %1 : vector<1x32xbf16> to vector<1x1x1x32xbf16>
    %6 = vector.broadcast %5 : vector<1x1x1x32xbf16> to vector<1x16x16x32xbf16>
    %7 = arith.mulf %4, %6 : vector<1x16x16x32xbf16>
    %8 = vector.shape_cast %3 : vector<1x32xbf16> to vector<1x1x1x32xbf16>
    %9 = vector.broadcast %8 : vector<1x1x1x32xbf16> to vector<1x16x16x32xbf16>
    %10 = arith.addf %7, %9 : vector<1x16x16x32xbf16>
    %cst = arith.constant 0.000000e+00 : bf16
    %11 = vector.broadcast %cst : bf16 to vector<1x16x16x32xbf16>
    %12 = arith.maximumf %10, %11 : vector<1x16x16x32xbf16>
    %cst_7 = arith.constant 0.000000e+00 : bf16
    %13 = vector.broadcast %cst_7 : bf16 to vector<1x1x18x32xbf16>
    %c0_8 = arith.constant 0 : index
    %c0_9 = arith.constant 0 : index
    %c0_10 = arith.constant 0 : index
    %c0_11 = arith.constant 0 : index
    %14 = vector.load %arg8[%c0_8, %c0_9, %c0_10, %c0_11] : memref<1x18x18x32xbf16, #tpu.memory_space<vmem>>, vector<1x1x18x32xbf16>
    tpu.vector_store %arg8[%c0_8, %c0_9, %c0_10, %c0_11], %13 {strides = array<i32>} : memref<1x18x18x32xbf16, #tpu.memory_space<vmem>>, vector<1x1x18x32xbf16>,
    %cst_12 = arith.constant 0.000000e+00 : bf16
    %15 = vector.broadcast %cst_12 : bf16 to vector<1x1x18x32xbf16>
    %c0_13 = arith.constant 0 : index
    %c17 = arith.constant 17 : index
    %c0_14 = arith.constant 0 : index
    %c0_15 = arith.constant 0 : index
    %16 = vector.load %arg8[%c0_13, %c17, %c0_14, %c0_15] : memref<1x18x18x32xbf16, #tpu.memory_space<vmem>>, vector<1x1x18x32xbf16>
    tpu.vector_store %arg8[%c0_13, %c17, %c0_14, %c0_15], %15 {strides = array<i32>} : memref<1x18x18x32xbf16, #tpu.memory_space<vmem>>, vector<1x1x18x32xbf16>,
    %cst_16 = arith.constant 0.000000e+00 : bf16
    %17 = vector.broadcast %cst_16 : bf16 to vector<1x16x1x32xbf16>
    %c0_17 = arith.constant 0 : index
    %c1 = arith.constant 1 : index
    %c0_18 = arith.constant 0 : index
    %c0_19 = arith.constant 0 : index
    %18 = vector.load %arg8[%c0_17, %c1, %c0_18, %c0_19] : memref<1x18x18x32xbf16, #tpu.memory_space<vmem>>, vector<1x16x1x32xbf16>
    tpu.vector_store %arg8[%c0_17, %c1, %c0_18, %c0_19], %17 {strides = array<i32>} : memref<1x18x18x32xbf16, #tpu.memory_space<vmem>>, vector<1x16x1x32xbf16>,
    %cst_20 = arith.constant 0.000000e+00 : bf16
    %19 = vector.broadcast %cst_20 : bf16 to vector<1x16x1x32xbf16>
    %c0_21 = arith.constant 0 : index
    %c1_22 = arith.constant 1 : index
    %c17_23 = arith.constant 17 : index
    %c0_24 = arith.constant 0 : index
    %20 = vector.load %arg8[%c0_21, %c1_22, %c17_23, %c0_24] : memref<1x18x18x32xbf16, #tpu.memory_space<vmem>>, vector<1x16x1x32xbf16>
    tpu.vector_store %arg8[%c0_21, %c1_22, %c17_23, %c0_24], %19 {strides = array<i32>} : memref<1x18x18x32xbf16, #tpu.memory_space<vmem>>, vector<1x16x1x32xbf16>,
    %c0_25 = arith.constant 0 : index
    %c1_26 = arith.constant 1 : index
    %c1_27 = arith.constant 1 : index
    %c0_28 = arith.constant 0 : index
    %21 = vector.load %arg8[%c0_25, %c1_26, %c1_27, %c0_28] : memref<1x18x18x32xbf16, #tpu.memory_space<vmem>>, vector<1x16x16x32xbf16>
    tpu.vector_store %arg8[%c0_25, %c1_26, %c1_27, %c0_28], %12 {strides = array<i32>} : memref<1x18x18x32xbf16, #tpu.memory_space<vmem>>, vector<1x16x16x32xbf16>,
    %c0_29 = arith.constant 0 : index
    %c0_30 = arith.constant 0 : index
    %c0_31 = arith.constant 0 : index
    %c0_32 = arith.constant 0 : index
    %22 = vector.load %arg8[%c0_29, %c0_30, %c0_31, %c0_32] : memref<1x18x18x32xbf16, #tpu.memory_space<vmem>>, vector<1x16x16x32xbf16>
    %23 = vector.shape_cast %22 : vector<1x16x16x32xbf16> to vector<256x32xbf16>
    %c0_33 = arith.constant 0 : index
    %c0_34 = arith.constant 0 : index
    %24 = vector.load %arg9[%c0_33, %c0_34] : memref<256x288xbf16, #tpu.memory_space<vmem>>, vector<256x32xbf16>
    tpu.vector_store %arg9[%c0_33, %c0_34], %23 {strides = array<i32>} : memref<256x288xbf16, #tpu.memory_space<vmem>>, vector<256x32xbf16>,
    %c0_35 = arith.constant 0 : index
    %c0_36 = arith.constant 0 : index
    %c1_37 = arith.constant 1 : index
    %c0_38 = arith.constant 0 : index
    %25 = vector.load %arg8[%c0_35, %c0_36, %c1_37, %c0_38] : memref<1x18x18x32xbf16, #tpu.memory_space<vmem>>, vector<1x16x16x32xbf16>
    %26 = vector.shape_cast %25 : vector<1x16x16x32xbf16> to vector<256x32xbf16>
    %c0_39 = arith.constant 0 : index
    %c32 = arith.constant 32 : index
    %27 = vector.load %arg9[%c0_39, %c32] : memref<256x288xbf16, #tpu.memory_space<vmem>>, vector<256x32xbf16>
    tpu.vector_store %arg9[%c0_39, %c32], %26 {strides = array<i32>} : memref<256x288xbf16, #tpu.memory_space<vmem>>, vector<256x32xbf16>,
    %c0_40 = arith.constant 0 : index
    %c0_41 = arith.constant 0 : index
    %c2 = arith.constant 2 : index
    %c0_42 = arith.constant 0 : index
    %28 = vector.load %arg8[%c0_40, %c0_41, %c2, %c0_42] : memref<1x18x18x32xbf16, #tpu.memory_space<vmem>>, vector<1x16x16x32xbf16>
    %29 = vector.shape_cast %28 : vector<1x16x16x32xbf16> to vector<256x32xbf16>
    %c0_43 = arith.constant 0 : index
    %c64 = arith.constant 64 : index
    %30 = vector.load %arg9[%c0_43, %c64] : memref<256x288xbf16, #tpu.memory_space<vmem>>, vector<256x32xbf16>
    tpu.vector_store %arg9[%c0_43, %c64], %29 {strides = array<i32>} : memref<256x288xbf16, #tpu.memory_space<vmem>>, vector<256x32xbf16>,
    %c0_44 = arith.constant 0 : index
    %c1_45 = arith.constant 1 : index
    %c0_46 = arith.constant 0 : index
    %c0_47 = arith.constant 0 : index
    %31 = vector.load %arg8[%c0_44, %c1_45, %c0_46, %c0_47] : memref<1x18x18x32xbf16, #tpu.memory_space<vmem>>, vector<1x16x16x32xbf16>
    %32 = vector.shape_cast %31 : vector<1x16x16x32xbf16> to vector<256x32xbf16>
    %c0_48 = arith.constant 0 : index
    %c96 = arith.constant 96 : index
    %33 = vector.load %arg9[%c0_48, %c96] : memref<256x288xbf16, #tpu.memory_space<vmem>>, vector<256x32xbf16>
    tpu.vector_store %arg9[%c0_48, %c96], %32 {strides = array<i32>} : memref<256x288xbf16, #tpu.memory_space<vmem>>, vector<256x32xbf16>,
    %c0_49 = arith.constant 0 : index
    %c1_50 = arith.constant 1 : index
    %c1_51 = arith.constant 1 : index
    %c0_52 = arith.constant 0 : index
    %34 = vector.load %arg8[%c0_49, %c1_50, %c1_51, %c0_52] : memref<1x18x18x32xbf16, #tpu.memory_space<vmem>>, vector<1x16x16x32xbf16>
    %35 = vector.shape_cast %34 : vector<1x16x16x32xbf16> to vector<256x32xbf16>
    %c0_53 = arith.constant 0 : index
    %c128 = arith.constant 128 : index
    %36 = vector.load %arg9[%c0_53, %c128] : memref<256x288xbf16, #tpu.memory_space<vmem>>, vector<256x32xbf16>
    tpu.vector_store %arg9[%c0_53, %c128], %35 {strides = array<i32>} : memref<256x288xbf16, #tpu.memory_space<vmem>>, vector<256x32xbf16>,
    %c0_54 = arith.constant 0 : index
    %c1_55 = arith.constant 1 : index
    %c2_56 = arith.constant 2 : index
    %c0_57 = arith.constant 0 : index
    %37 = vector.load %arg8[%c0_54, %c1_55, %c2_56, %c0_57] : memref<1x18x18x32xbf16, #tpu.memory_space<vmem>>, vector<1x16x16x32xbf16>
    %38 = vector.shape_cast %37 : vector<1x16x16x32xbf16> to vector<256x32xbf16>
    %c0_58 = arith.constant 0 : index
    %c160 = arith.constant 160 : index
    %39 = vector.load %arg9[%c0_58, %c160] : memref<256x288xbf16, #tpu.memory_space<vmem>>, vector<256x32xbf16>
    tpu.vector_store %arg9[%c0_58, %c160], %38 {strides = array<i32>} : memref<256x288xbf16, #tpu.memory_space<vmem>>, vector<256x32xbf16>,
    %c0_59 = arith.constant 0 : index
    %c2_60 = arith.constant 2 : index
    %c0_61 = arith.constant 0 : index
    %c0_62 = arith.constant 0 : index
    %40 = vector.load %arg8[%c0_59, %c2_60, %c0_61, %c0_62] : memref<1x18x18x32xbf16, #tpu.memory_space<vmem>>, vector<1x16x16x32xbf16>
    %41 = vector.shape_cast %40 : vector<1x16x16x32xbf16> to vector<256x32xbf16>
    %c0_63 = arith.constant 0 : index
    %c192 = arith.constant 192 : index
    %42 = vector.load %arg9[%c0_63, %c192] : memref<256x288xbf16, #tpu.memory_space<vmem>>, vector<256x32xbf16>
    tpu.vector_store %arg9[%c0_63, %c192], %41 {strides = array<i32>} : memref<256x288xbf16, #tpu.memory_space<vmem>>, vector<256x32xbf16>,
    %c0_64 = arith.constant 0 : index
    %c2_65 = arith.constant 2 : index
    %c1_66 = arith.constant 1 : index
    %c0_67 = arith.constant 0 : index
    %43 = vector.load %arg8[%c0_64, %c2_65, %c1_66, %c0_67] : memref<1x18x18x32xbf16, #tpu.memory_space<vmem>>, vector<1x16x16x32xbf16>
    %44 = vector.shape_cast %43 : vector<1x16x16x32xbf16> to vector<256x32xbf16>
    %c0_68 = arith.constant 0 : index
    %c224 = arith.constant 224 : index
    %45 = vector.load %arg9[%c0_68, %c224] : memref<256x288xbf16, #tpu.memory_space<vmem>>, vector<256x32xbf16>
    tpu.vector_store %arg9[%c0_68, %c224], %44 {strides = array<i32>} : memref<256x288xbf16, #tpu.memory_space<vmem>>, vector<256x32xbf16>,
    %c0_69 = arith.constant 0 : index
    %c2_70 = arith.constant 2 : index
    %c2_71 = arith.constant 2 : index
    %c0_72 = arith.constant 0 : index
    %46 = vector.load %arg8[%c0_69, %c2_70, %c2_71, %c0_72] : memref<1x18x18x32xbf16, #tpu.memory_space<vmem>>, vector<1x16x16x32xbf16>
    %47 = vector.shape_cast %46 : vector<1x16x16x32xbf16> to vector<256x32xbf16>
    %c0_73 = arith.constant 0 : index
    %c256 = arith.constant 256 : index
    %48 = vector.load %arg9[%c0_73, %c256] : memref<256x288xbf16, #tpu.memory_space<vmem>>, vector<256x32xbf16>
    tpu.vector_store %arg9[%c0_73, %c256], %47 {strides = array<i32>} : memref<256x288xbf16, #tpu.memory_space<vmem>>, vector<256x32xbf16>,
    %c0_74 = arith.constant 0 : index
    %c0_75 = arith.constant 0 : index
    %49 = vector.load %arg9[%c0_74, %c0_75] : memref<256x288xbf16, #tpu.memory_space<vmem>>, vector<256x288xbf16>
    %c0_76 = arith.constant 0 : index
    %c0_77 = arith.constant 0 : index
    %50 = vector.load %arg4[%c0_76, %c0_77] : memref<288x32xbf16, #tpu.memory_space<vmem>>, vector<288x32xbf16>
    %cst_78 = arith.constant dense<0.000000e+00> : vector<256x32xf32>
    %51 = tpu.matmul %49, %50, %cst_78 {dimension_numbers = #tpu.dot_dimension_numbers<[1], [0], [0], [1], [0, 0, 1, 1], [], []>} : vector<256x288xbf16>, vector<288x32xbf16>, vector<256x32xf32> -> vector<256x32xf32>
    %52 = vector.shape_cast %51 : vector<256x32xf32> to vector<1x16x16x32xf32>
    %53 = arith.truncf %52 : vector<1x16x16x32xf32> to vector<1x16x16x32xbf16>
    %c0_79 = arith.constant 0 : index
    %c0_80 = arith.constant 0 : index
    %c0_81 = arith.constant 0 : index
    %c0_82 = arith.constant 0 : index
    %54 = vector.load %arg5[%c0_79, %c0_80, %c0_81, %c0_82] : memref<1x16x16x32xbf16, #tpu.memory_space<vmem>>, vector<1x16x16x32xbf16>
    tpu.vector_store %arg5[%c0_79, %c0_80, %c0_81, %c0_82], %53 {strides = array<i32>} : memref<1x16x16x32xbf16, #tpu.memory_space<vmem>>, vector<1x16x16x32xbf16>,
    %cst_83 = arith.constant dense<0.000000e+00> : vector<32xf32>
    %55 = vector.multi_reduction <add>, %51, %cst_83 [0] : vector<256x32xf32> to vector<32xf32>
    %56 = vector.shape_cast %55 : vector<32xf32> to vector<1x32xf32>
    %57 = vector.shape_cast %56 : vector<1x32xf32> to vector<1x1x32xf32>
    %c0_84 = arith.constant 0 : index
    %c0_85 = arith.constant 0 : index
    %c0_86 = arith.constant 0 : index
    %58 = vector.load %arg6[%c0_84, %c0_85, %c0_86] : memref<1x1x32xf32, #tpu.memory_space<vmem>>, vector<1x1x32xf32>
    tpu.vector_store %arg6[%c0_84, %c0_85, %c0_86], %57 {strides = array<i32>} : memref<1x1x32xf32, #tpu.memory_space<vmem>>, vector<1x1x32xf32>,
    %59 = arith.mulf %51, %51 : vector<256x32xf32>
    %cst_87 = arith.constant dense<0.000000e+00> : vector<32xf32>
    %60 = vector.multi_reduction <add>, %59, %cst_87 [0] : vector<256x32xf32> to vector<32xf32>
    %61 = vector.shape_cast %60 : vector<32xf32> to vector<1x32xf32>
    %62 = vector.shape_cast %61 : vector<1x32xf32> to vector<1x1x32xf32>
    %c0_88 = arith.constant 0 : index
    %c0_89 = arith.constant 0 : index
    %c0_90 = arith.constant 0 : index
    %63 = vector.load %arg7[%c0_88, %c0_89, %c0_90] : memref<1x1x32xf32, #tpu.memory_space<vmem>>, vector<1x1x32xf32>
    tpu.vector_store %arg7[%c0_88, %c0_89, %c0_90], %62 {strides = array<i32>} : memref<1x1x32xf32, #tpu.memory_space<vmem>>, vector<1x1x32xf32>,
    return
  }
  func.func @transform_0(%arg0: i32) -> (i32, i32, i32, i32) {
    %c0_i32 = arith.constant 0 : i32
    %c0_i32_0 = arith.constant 0 : i32
    %c0_i32_1 = arith.constant 0 : i32
    %c0_i32_2 = arith.constant 0 : i32
    return %arg0, %c0_i32, %c0_i32_0, %c0_i32_1 : i32, i32, i32, i32
  }
  func.func @transform_1(%arg0: i32) -> (i32, i32) {
    %c0_i32 = arith.constant 0 : i32
    %c0_i32_0 = arith.constant 0 : i32
    %c0_i32_1 = arith.constant 0 : i32
    return %c0_i32, %c0_i32_0 : i32, i32
  }
  func.func @transform_2(%arg0: i32) -> (i32, i32) {
    %c0_i32 = arith.constant 0 : i32
    %c0_i32_0 = arith.constant 0 : i32
    %c0_i32_1 = arith.constant 0 : i32
    return %c0_i32, %c0_i32_0 : i32, i32
  }
  func.func @transform_3(%arg0: i32) -> (i32, i32) {
    %c0_i32 = arith.constant 0 : i32
    %c0_i32_0 = arith.constant 0 : i32
    %c0_i32_1 = arith.constant 0 : i32
    return %c0_i32, %c0_i32_0 : i32, i32
  }
  func.func @transform_4(%arg0: i32) -> (i32, i32, i32, i32) {
    %c0_i32 = arith.constant 0 : i32
    %c0_i32_0 = arith.constant 0 : i32
    %c0_i32_1 = arith.constant 0 : i32
    %c0_i32_2 = arith.constant 0 : i32
    return %arg0, %c0_i32, %c0_i32_0, %c0_i32_1 : i32, i32, i32, i32
  }
  func.func @transform_5(%arg0: i32) -> (i32, i32, i32) {
    %c0_i32 = arith.constant 0 : i32
    %c0_i32_0 = arith.constant 0 : i32
    %c0_i32_1 = arith.constant 0 : i32
    return %arg0, %c0_i32, %c0_i32_0 : i32, i32, i32
  }
  func.func @transform_6(%arg0: i32) -> (i32, i32, i32) {
    %c0_i32 = arith.constant 0 : i32
    %c0_i32_0 = arith.constant 0 : i32
    %c0_i32_1 = arith.constant 0 : i32
    return %arg0, %c0_i32, %c0_i32_0 : i32, i32, i32
  }
}

module attributes {stable_mosaic.version = 11 : i64} {
  func.func @_bn_relu_t_kernel(%arg0: i32, %arg1: memref<1x16x16x32xbf16, #tpu.memory_space<vmem>>, %arg2: memref<1x32xf32, #tpu.memory_space<vmem>>, %arg3: memref<1x32xf32, #tpu.memory_space<vmem>>, %arg4: memref<1x32x256xf32, #tpu.memory_space<vmem>>) attributes {dimension_semantics = [#tpu.dimension_semantics<parallel>], iteration_bounds = array<i64: 2>, scalar_prefetch = 0 : i64, scratch_operands = 0 : i64, tpu.core_type = #tpu.core_type<tc>, window_params = [{transform_indices = @transform_0, window_bounds = array<i64: 1, 16, 16, 32>}, {pipeline_mode = #tpu.pipeline_mode<synchronous>, transform_indices = @transform_1, window_bounds = array<i64: 1, 32>}, {pipeline_mode = #tpu.pipeline_mode<synchronous>, transform_indices = @transform_2, window_bounds = array<i64: 1, 32>}, {transform_indices = @transform_3, window_bounds = array<i64: 1, 32, 256>}]} {
    %c0 = arith.constant 0 : index
    %c0_0 = arith.constant 0 : index
    %c0_1 = arith.constant 0 : index
    %c0_2 = arith.constant 0 : index
    %0 = vector.load %arg1[%c0, %c0_0, %c0_1, %c0_2] : memref<1x16x16x32xbf16, #tpu.memory_space<vmem>>, vector<1x16x16x32xbf16>
    %1 = vector.shape_cast %0 : vector<1x16x16x32xbf16> to vector<1x256x32xbf16>
    %2 = arith.extf %1 : vector<1x256x32xbf16> to vector<1x256x32xf32>
    %c0_3 = arith.constant 0 : index
    %c0_4 = arith.constant 0 : index
    %3 = vector.load %arg2[%c0_3, %c0_4] : memref<1x32xf32, #tpu.memory_space<vmem>>, vector<1x32xf32>
    %4 = vector.shape_cast %3 : vector<1x32xf32> to vector<1x1x32xf32>
    %5 = vector.broadcast %4 : vector<1x1x32xf32> to vector<1x256x32xf32>
    %6 = arith.mulf %2, %5 : vector<1x256x32xf32>
    %c0_5 = arith.constant 0 : index
    %c0_6 = arith.constant 0 : index
    %7 = vector.load %arg3[%c0_5, %c0_6] : memref<1x32xf32, #tpu.memory_space<vmem>>, vector<1x32xf32>
    %8 = vector.shape_cast %7 : vector<1x32xf32> to vector<1x1x32xf32>
    %9 = vector.broadcast %8 : vector<1x1x32xf32> to vector<1x256x32xf32>
    %10 = arith.addf %6, %9 : vector<1x256x32xf32>
    %cst = arith.constant 0.000000e+00 : f32
    %11 = vector.broadcast %cst : f32 to vector<1x256x32xf32>
    %12 = arith.maximumf %10, %11 : vector<1x256x32xf32>
    %13 = vector.shape_cast %12 : vector<1x256x32xf32> to vector<256x32xf32>
    %14 = tpu.transpose %13, [1, 0] : vector<256x32xf32> -> vector<32x256xf32>
    %c0_7 = arith.constant 0 : index
    %c0_8 = arith.constant 0 : index
    %c0_9 = arith.constant 0 : index
    %15 = vector.load %arg4[%c0_7, %c0_8, %c0_9] : memref<1x32x256xf32, #tpu.memory_space<vmem>>, vector<1x32x256xf32>
    %16 = vector.shape_cast %15 : vector<1x32x256xf32> to vector<32x256xf32>
    %17 = vector.shape_cast %14 : vector<32x256xf32> to vector<1x32x256xf32>
    tpu.vector_store %arg4[%c0_7, %c0_8, %c0_9], %17 {strides = array<i32>} : memref<1x32x256xf32, #tpu.memory_space<vmem>>, vector<1x32x256xf32>,
    return
  }
  func.func @transform_0(%arg0: i32) -> (i32, i32, i32, i32) {
    %c0_i32 = arith.constant 0 : i32
    %c0_i32_0 = arith.constant 0 : i32
    %c0_i32_1 = arith.constant 0 : i32
    %c0_i32_2 = arith.constant 0 : i32
    return %arg0, %c0_i32, %c0_i32_0, %c0_i32_1 : i32, i32, i32, i32
  }
  func.func @transform_1(%arg0: i32) -> (i32, i32) {
    %c0_i32 = arith.constant 0 : i32
    %c0_i32_0 = arith.constant 0 : i32
    %c0_i32_1 = arith.constant 0 : i32
    return %c0_i32, %c0_i32_0 : i32, i32
  }
  func.func @transform_2(%arg0: i32) -> (i32, i32) {
    %c0_i32 = arith.constant 0 : i32
    %c0_i32_0 = arith.constant 0 : i32
    %c0_i32_1 = arith.constant 0 : i32
    return %c0_i32, %c0_i32_0 : i32, i32
  }
  func.func @transform_3(%arg0: i32) -> (i32, i32, i32) {
    %c0_i32 = arith.constant 0 : i32
    %c0_i32_0 = arith.constant 0 : i32
    %c0_i32_1 = arith.constant 0 : i32
    return %arg0, %c0_i32, %c0_i32_0 : i32, i32, i32
  }
}

</mosaic_0001>

<llo_original>
// kernel: double_conv_forward.5
$region0: #{double_conv_forward.5}
  #allocation0 [shape = 'u32[]', space=smem, size = 0x4, offset = 0x4, fixed_abs, tag = 'smem constant byte address 0x4 - core index']
  #allocation1 [shape = 'u32[144,128]{1,0:T(1,128)}', space=vmem, size = 0x12000, scoped, tag = 'internal scratch']
  %s0 = inlined_call_operand.vmem [shape: bf16[2,16,16,32], index: 0, kind: input, shape index: {}]
  %s1 = inlined_call_operand.vmem [shape: f32[1,32], index: 1, kind: input, shape index: {}]
  %s2 = inlined_call_operand.vmem [shape: f32[1,32], index: 2, kind: input, shape index: {}]
  %s3 = inlined_call_operand.vmem [shape: f32[2,32,256], index: 3, kind: output, shape index: {}]
  %s4 = sld [smem:[#allocation0]]
  $region45: #{double_conv_forward.5} parent=0
    _
  %s6 = ssub.s32 1, %s4
  %s7 = scalar_select 0, %s6, %s4
  loop: start=0, step=1, limit=4
  $region2: #{double_conv_forward.5} parent=0 // loop_pre_header
    _
  $region3: #{double_conv_forward.5} parent=0 // loop_header
    %s9 = sphi 0, %s13
    %p10 = scmp.ge.s32.totalorder %s9, 4
    %s19 = sphi 0, %s21
    %s22 = sphi 0, %s19
    %s23 = sphi 0, %s22
    %s39 = sphi 0, %s23
    %s43 = sphi 0, %s43
    %s45 = sphi 0, %s43
    %s46 = sphi 0, %s45
    %s60 = sphi 0, %s46
    %s64 = sphi 0, %s64
    %s66 = sphi 0, %s64
    %s67 = sphi 0, %s66
    %s81 = sphi 0, %s67
    %s87 = sphi 0, %s89
    %s90 = sphi 0, %s87
    %s91 = sphi 0, %s90
    %s107 = sphi 0, %s91
  $region4: #{double_conv_forward.5} parent=0 // loop_header_branch
    %12 = sbr.rel (%p10) target = $region8
  $region5: #{double_conv_forward.5} parent=0 // loop_body
    %s14 = ssub.s32 %s9, 1
    %s15 = ssub.s32 %s9, 2
    %s16 = sadd.s32 %s9, 1
    %s17 = ssub.s32 %s9, %s16
    %p18 = scmp.eq.s32.totalorder %s17, 0
    %s20 = sadd.s32 %s19, 1
    %s21 = scalar_select %p18, %s19, %s20
    %p24 = pneg %p18
    %p25 = scmp.eq.s32.totalorder %s9, 1
    %p26 = por %p24, %p25
    %p27 = scmp.ne.s32.totalorder %s19, %s22
    %p28 = scmp.eq.s32.totalorder %s9, 0
    %p29 = por %p27, %p28
    %p30 = scmp.ne.s32.totalorder %s19, %s22
    %p31 = scmp.eq.s32.totalorder %s14, 1
    %p32 = por %p30, %p31
    %p33 = scmp.ne.s32.totalorder %s22, %s23
    %p34 = scmp.eq.s32.totalorder %s14, 0
    %p35 = por %p33, %p34
    %p36 = scmp.ne.s32.totalorder %s22, %s23
    %p37 = scmp.eq.s32.totalorder %s15, 1
    %p38 = por %p36, %p37
    %p40 = scmp.ne.s32.totalorder %s23, %s39
    %p41 = scmp.eq.s32.totalorder %s15, 0
    %p42 = por %p40, %p41
    %s44 = sadd.s32 %s43, 1
    %p47 = scmp.eq.s32.totalorder %s9, 1
    %p48 = scmp.ne.s32.totalorder %s43, %s45
    %p49 = scmp.eq.s32.totalorder %s9, 0
    %p50 = por %p48, %p49
    %p51 = scmp.ne.s32.totalorder %s43, %s45
    %p52 = scmp.eq.s32.totalorder %s14, 1
    %p53 = por %p51, %p52
    %p54 = scmp.ne.s32.totalorder %s45, %s46
    %p55 = scmp.eq.s32.totalorder %s14, 0
    %p56 = por %p54, %p55
    %p57 = scmp.ne.s32.totalorder %s45, %s46
    %p58 = scmp.eq.s32.totalorder %s15, 1
    %p59 = por %p57, %p58
    %p61 = scmp.ne.s32.totalorder %s46, %s60
    %p62 = scmp.eq.s32.totalorder %s15, 0
    %p63 = por %p61, %p62
    %s65 = sadd.s32 %s64, 1
    %p68 = scmp.eq.s32.totalorder %s9, 1
    %p69 = scmp.ne.s32.totalorder %s64, %s66
    %p70 = scmp.eq.s32.totalorder %s9, 0
    %p71 = por %p69, %p70
    %p72 = scmp.ne.s32.totalorder %s64, %s66
    %p73 = scmp.eq.s32.totalorder %s14, 1
    %p74 = por %p72, %p73
    %p75 = scmp.ne.s32.totalorder %s66, %s67
    %p76 = scmp.eq.s32.totalorder %s14, 0
    %p77 = por %p75, %p76
    %p78 = scmp.ne.s32.totalorder %s66, %s67
    %p79 = scmp.eq.s32.totalorder %s15, 1
    %p80 = por %p78, %p79
    %p82 = scmp.ne.s32.totalorder %s67, %s81
    %p83 = scmp.eq.s32.totalorder %s15, 0
    %p84 = por %p82, %p83
    %s85 = ssub.s32 %s9, %s16
    %p86 = scmp.eq.s32.totalorder %s85, 0
    %s88 = sadd.s32 %s87, 1
    %s89 = scalar_select %p86, %s87, %s88
    %p92 = pneg %p86
    %p93 = scmp.eq.s32.totalorder %s9, 1
    %p94 = por %p92, %p93
    %p95 = scmp.ne.s32.totalorder %s87, %s90
    %p96 = scmp.eq.s32.totalorder %s9, 0
    %p97 = por %p95, %p96
    %p98 = scmp.ne.s32.totalorder %s87, %s90
    %p99 = scmp.eq.s32.totalorder %s14, 1
    %p100 = por %p98, %p99
    %p101 = scmp.ne.s32.totalorder %s90, %s91
    %p102 = scmp.eq.s32.totalorder %s14, 0
    %p103 = por %p101, %p102
    %p104 = scmp.ne.s32.totalorder %s90, %s91
    %p105 = scmp.eq.s32.totalorder %s15, 1
    %p106 = por %p104, %p105
    %p108 = scmp.ne.s32.totalorder %s91, %s107
    %p109 = scmp.eq.s32.totalorder %s15, 0
    %p110 = por %p108, %p109
    %p111 = scmp.le.s32.totalorder 1, %s9
    %p112 = scmp.lt.s32.totalorder %s9, 3
    %p113 = pnand %p111, %p112
    %p114 = pneg %p113
    // Predicated region
    $region9: #{double_conv_forward.5} parent=5 // pred_check
      _
    $region10: #{double_conv_forward.5} parent=5 // pred_check_branch
      %116 = sbr.rel (%p113) target = $region12
    $region11: #{double_conv_forward.5} parent=5 // pred_region
      %s117 = ssub.s32 %s9, 1
      // Predicated region
      $region13: #{double_conv_forward.5} parent=11 // pred_check
        %p118 = pneg %p56
      $region14: #{double_conv_forward.5} parent=11 // pred_check_branch
        %120 = sbr.rel (%p118) target = $region16
      $region15: #{double_conv_forward.5} parent=11 // pred_region
        _
      $region16: #{double_conv_forward.5} parent=11 // pred_fallthru
        _
      // Predicated region
      $region17: #{double_conv_forward.5} parent=11 // pred_check
        %p121 = pneg %p77
      $region18: #{double_conv_forward.5} parent=11 // pred_check_branch
        %123 = sbr.rel (%p121) target = $region20
      $region19: #{double_conv_forward.5} parent=11 // pred_region
        _
      $region20: #{double_conv_forward.5} parent=11 // pred_fallthru
        _
    $region12: #{double_conv_forward.5} parent=5 // pred_fallthru
      _
    %p124 = scmp.lt.s32.totalorder %s9, 2
    // Predicated region
    $region21: #{double_conv_forward.5} parent=5 // pred_check
      %p125 = pneg %p124
    $region22: #{double_conv_forward.5} parent=5 // pred_check_branch
      %127 = sbr.rel (%p125) target = $region24
    $region23: #{double_conv_forward.5} parent=5 // pred_region
      // Predicated region
      $region25: #{double_conv_forward.5} parent=23 // pred_check
        %p128 = pneg %p29
      $region26: #{double_conv_forward.5} parent=23 // pred_check_branch
        %130 = sbr.rel (%p128) target = $region28
      $region27: #{double_conv_forward.5} parent=23 // pred_region
        %p131 = scmp.lt.s32.totalorder %s9, 1
        %s132 = scalar_select %p131, %s9, 1
        %s133 = smul.addr %s132, 32
        %s134 = smul.addr %s133, 4
        %s135 = scalar_lea.vmem %s0, %s134
      $region28: #{double_conv_forward.5} parent=23 // pred_fallthru
        _
    $region24: #{double_conv_forward.5} parent=5 // pred_fallthru
      _
    %p136 = scmp.le.s32.totalorder 1, %s9
    %p137 = scmp.lt.s32.totalorder %s9, 3
    %p138 = pnand %p136, %p137
    %p139 = pneg %p138
    // Predicated region
    $region29: #{double_conv_forward.5} parent=5 // pred_check
      _
    $region30: #{double_conv_forward.5} parent=5 // pred_check_branch
      %141 = sbr.rel (%p138) target = $region32
    $region31: #{double_conv_forward.5} parent=5 // pred_region
      %s142 = ssub.s32 %s9, 1
      %p143 = scmp.lt.s32.totalorder %s14, 1
      %s144 = scalar_select %p143, %s14, 1
      %s145 = smul.addr %s144, 32
      %s146 = smul.addr %s145, 4
      %s147 = scalar_lea.vmem %s0, %s146
      %p148 = pneg %p35
      %p149 = pneg %p32
      %p150 = pneg %p56
      %p151 = pneg %p53
      %p152 = pneg %p77
      %p153 = pneg %p74
      %p154 = pneg %p103
      %p155 = pneg %p100
      %p156 = scmp.lt.s32.totalorder %s14, 1
      %s157 = scalar_select %p156, %s14, 1
      %s158 = smul.addr %s157, 8
      %s159 = smul.addr %s158, 8
      %s160 = scalar_lea.vmem %s3, %s159
      %p161 = scmp.lt.s32.totalorder %s14, 1
      %s162 = scalar_select %p161, %s14, 1
      %s163 = smul.addr %s162, 32
      %s164 = smul.addr %s163, 4
      %s165 = scalar_lea.vmem %s0, %s164
      %p166 = scmp.lt.s32.totalorder %s14, 1
      %s167 = scalar_select %p166, %s14, 1
      %s168 = smul.addr %s167, 8
      %s169 = smul.addr %s168, 8
      %s170 = scalar_lea.vmem %s3, %s169
      %v171 = vld [vmem:[%s165] sm:$0xf]
      %v172 = vld [vmem:[%s165 + $0x4] sm:$0xf]
      %v173 = vld [vmem:[%s165 + $0x8] sm:$0xf]
      %v174 = vld [vmem:[%s165 + $0xc] sm:$0xf]
      %v175 = vld [vmem:[%s165 + $0x10] sm:$0xf]
      %v176 = vld [vmem:[%s165 + $0x14] sm:$0xf]
      %v177 = vld [vmem:[%s165 + $0x18] sm:$0xf]
      %v178 = vld [vmem:[%s165 + $0x1c] sm:$0xf]
      %v179 = vld [vmem:[%s165 + $0x20] sm:$0xf]
      %v180 = vld [vmem:[%s165 + $0x24] sm:$0xf]
      %v181 = vld [vmem:[%s165 + $0x28] sm:$0xf]
      %v182 = vld [vmem:[%s165 + $0x2c] sm:$0xf]
      %v183 = vld [vmem:[%s165 + $0x30] sm:$0xf]
      %v184 = vld [vmem:[%s165 + $0x34] sm:$0xf]
      %v185 = vld [vmem:[%s165 + $0x38] sm:$0xf]
      %v186 = vld [vmem:[%s165 + $0x3c] sm:$0xf]
      %v187 = vld [vmem:[%s165 + $0x40] sm:$0xf]
      %v188 = vld [vmem:[%s165 + $0x44] sm:$0xf]
      %v189 = vld [vmem:[%s165 + $0x48] sm:$0xf]
      %v190 = vld [vmem:[%s165 + $0x4c] sm:$0xf]
      %v191 = vld [vmem:[%s165 + $0x50] sm:$0xf]
      %v192 = vld [vmem:[%s165 + $0x54] sm:$0xf]
      %v193 = vld [vmem:[%s165 + $0x58] sm:$0xf]
      %v194 = vld [vmem:[%s165 + $0x5c] sm:$0xf]
      %v195 = vld [vmem:[%s165 + $0x60] sm:$0xf]
      %v196 = vld [vmem:[%s165 + $0x64] sm:$0xf]
      %v197 = vld [vmem:[%s165 + $0x68] sm:$0xf]
      %v198 = vld [vmem:[%s165 + $0x6c] sm:$0xf]
      %v199 = vld [vmem:[%s165 + $0x70] sm:$0xf]
      %v200 = vld [vmem:[%s165 + $0x74] sm:$0xf]
      %v201 = vld [vmem:[%s165 + $0x78] sm:$0xf]
      %v202 = vld [vmem:[%s165 + $0x7c] sm:$0xf]
      %v203 = vunpack.c.l.bf16 %v171
      %v204 = vunpack.c.l.bf16 %v172
      %v205 = vunpack.c.l.bf16 %v173
      %v206 = vunpack.c.l.bf16 %v174
      %v207 = vunpack.c.l.bf16 %v175
      %v208 = vunpack.c.l.bf16 %v176
      %v209 = vunpack.c.l.bf16 %v177
      %v210 = vunpack.c.l.bf16 %v178
      %v211 = vunpack.c.l.bf16 %v179
      %v212 = vunpack.c.l.bf16 %v180
      %v213 = vunpack.c.l.bf16 %v181
      %v214 = vunpack.c.l.bf16 %v182
      %v215 = vunpack.c.l.bf16 %v183
      %v216 = vunpack.c.l.bf16 %v184
      %v217 = vunpack.c.l.bf16 %v185
      %v218 = vunpack.c.l.bf16 %v186
      %v219 = vunpack.c.l.bf16 %v187
      %v220 = vunpack.c.l.bf16 %v188
      %v221 = vunpack.c.l.bf16 %v189
      %v222 = vunpack.c.l.bf16 %v190
      %v223 = vunpack.c.l.bf16 %v191
      %v224 = vunpack.c.l.bf16 %v192
      %v225 = vunpack.c.l.bf16 %v193
      %v226 = vunpack.c.l.bf16 %v194
      %v227 = vunpack.c.l.bf16 %v195
      %v228 = vunpack.c.l.bf16 %v196
      %v229 = vunpack.c.l.bf16 %v197
      %v230 = vunpack.c.l.bf16 %v198
      %v231 = vunpack.c.l.bf16 %v199
      %v232 = vunpack.c.l.bf16 %v200
      %v233 = vunpack.c.l.bf16 %v201
      %v234 = vunpack.c.l.bf16 %v202
      %v235 = vld [vmem:[%s1] sm:$0x1]
      %v237 = vlaneseq
      %v238 = vshrl.u32 %v237, 7
      %v239 = vsub.s32 0, %v238
      %v240 = vrot.slane %v235, %v239
      %v242 = vmul.f32 %v203, %v240
      %v243 = vmul.f32 %v204, %v240
      %v244 = vmul.f32 %v205, %v240
      %v245 = vmul.f32 %v206, %v240
      %v246 = vmul.f32 %v207, %v240
      %v247 = vmul.f32 %v208, %v240
      %v248 = vmul.f32 %v209, %v240
      %v249 = vmul.f32 %v210, %v240
      %v250 = vmul.f32 %v211, %v240
      %v251 = vmul.f32 %v212, %v240
      %v252 = vmul.f32 %v213, %v240
      %v253 = vmul.f32 %v214, %v240
      %v254 = vmul.f32 %v215, %v240
      %v255 = vmul.f32 %v216, %v240
      %v256 = vmul.f32 %v217, %v240
      %v257 = vmul.f32 %v218, %v240
      %v258 = vmul.f32 %v219, %v240
      %v259 = vmul.f32 %v220, %v240
      %v260 = vmul.f32 %v221, %v240
      %v261 = vmul.f32 %v222, %v240
      %v262 = vmul.f32 %v223, %v240
      %v263 = vmul.f32 %v224, %v240
      %v264 = vmul.f32 %v225, %v240
      %v265 = vmul.f32 %v226, %v240
      %v266 = vmul.f32 %v227, %v240
      %v267 = vmul.f32 %v228, %v240
      %v268 = vmul.f32 %v229, %v240
      %v269 = vmul.f32 %v230, %v240
      %v270 = vmul.f32 %v231, %v240
      %v271 = vmul.f32 %v232, %v240
      %v272 = vmul.f32 %v233, %v240
      %v273 = vmul.f32 %v234, %v240
      %v274 = vld [vmem:[%s2] sm:$0x1]
      %v276 = vlaneseq
      %v277 = vshrl.u32 %v276, 7
      %v278 = vsub.s32 0, %v277
      %v279 = vrot.slane %v274, %v278
      %v281 = vadd.f32 %v242, %v279
      %v282 = vadd.f32 %v243, %v279
      %v283 = vadd.f32 %v244, %v279
      %v284 = vadd.f32 %v245, %v279
      %v285 = vadd.f32 %v246, %v279
      %v286 = vadd.f32 %v247, %v279
      %v287 = vadd.f32 %v248, %v279
      %v288 = vadd.f32 %v249, %v279
      %v289 = vadd.f32 %v250, %v279
      %v290 = vadd.f32 %v251, %v279
      %v291 = vadd.f32 %v252, %v279
      %v292 = vadd.f32 %v253, %v279
      %v293 = vadd.f32 %v254, %v279
      %v294 = vadd.f32 %v255, %v279
      %v295 = vadd.f32 %v256, %v279
      %v296 = vadd.f32 %v257, %v279
      %v297 = vadd.f32 %v258, %v279
      %v298 = vadd.f32 %v259, %v279
      %v299 = vadd.f32 %v260, %v279
      %v300 = vadd.f32 %v261, %v279
      %v301 = vadd.f32 %v262, %v279
      %v302 = vadd.f32 %v263, %v279
      %v303 = vadd.f32 %v264, %v279
      %v304 = vadd.f32 %v265, %v279
      %v305 = vadd.f32 %v266, %v279
      %v306 = vadd.f32 %v267, %v279
      %v307 = vadd.f32 %v268, %v279
      %v308 = vadd.f32 %v269, %v279
      %v309 = vadd.f32 %v270, %v279
      %v310 = vadd.f32 %v271, %v279
      %v311 = vadd.f32 %v272, %v279
      %v312 = vadd.f32 %v273, %v279
      %v313 = vmax.f32 %v281, 0.0
      %v314 = vmax.f32 %v282, 0.0
      %v315 = vmax.f32 %v283, 0.0
      %v316 = vmax.f32 %v284, 0.0
      %v317 = vmax.f32 %v285, 0.0
      %v318 = vmax.f32 %v286, 0.0
      %v319 = vmax.f32 %v287, 0.0
      %v320 = vmax.f32 %v288, 0.0
      %v321 = vmax.f32 %v289, 0.0
      %v322 = vmax.f32 %v290, 0.0
      %v323 = vmax.f32 %v291, 0.0
      %v324 = vmax.f32 %v292, 0.0
      %v325 = vmax.f32 %v293, 0.0
      %v326 = vmax.f32 %v294, 0.0
      %v327 = vmax.f32 %v295, 0.0
      %v328 = vmax.f32 %v296, 0.0
      %v329 = vmax.f32 %v297, 0.0
      %v330 = vmax.f32 %v298, 0.0
      %v331 = vmax.f32 %v299, 0.0
      %v332 = vmax.f32 %v300, 0.0
      %v333 = vmax.f32 %v301, 0.0
      %v334 = vmax.f32 %v302, 0.0
      %v335 = vmax.f32 %v303, 0.0
      %v336 = vmax.f32 %v304, 0.0
      %v337 = vmax.f32 %v305, 0.0
      %v338 = vmax.f32 %v306, 0.0
      %v339 = vmax.f32 %v307, 0.0
      %v340 = vmax.f32 %v308, 0.0
      %v341 = vmax.f32 %v309, 0.0
      %v342 = vmax.f32 %v310, 0.0
      %v343 = vmax.f32 %v311, 0.0
      %v344 = vmax.f32 %v312, 0.0
      %345 = vxpose.xlu0.b32.start [1/16] %v313, 128
      %346 = vxpose.xlu0.b32.cont [2/16] %v314, 128
      %347 = vxpose.xlu0.b32.cont [3/16] %v315, 128
      %348 = vxpose.xlu0.b32.cont [4/16] %v316, 128
      %349 = vxpose.xlu0.b32.cont [5/16] %v317, 128
      %350 = vxpose.xlu0.b32.cont [6/16] %v318, 128
      %351 = vxpose.xlu0.b32.cont [7/16] %v319, 128
      %352 = vxpose.xlu0.b32.cont [8/16] %v320, 128
      %353 = vxpose.xlu0.b32.cont [9/16] %v321, 128
      %354 = vxpose.xlu0.b32.cont [10/16] %v322, 128
      %355 = vxpose.xlu0.b32.cont [11/16] %v323, 128
      %356 = vxpose.xlu0.b32.cont [12/16] %v324, 128
      %357 = vxpose.xlu0.b32.cont [13/16] %v325, 128
      %358 = vxpose.xlu0.b32.cont [14/16] %v326, 128
      %359 = vxpose.xlu0.b32.cont [15/16] %v327, 128
      %360 = vxpose.xlu0.b32.end [16/16] %v328, 128
      %v361 = vpop.trf.xlu0
      %v362 = vpop.trf.xlu0
      %v363 = vpop.trf.xlu0
      %v364 = vpop.trf.xlu0
      %v365 = vpop.trf.xlu0
      %v366 = vpop.trf.xlu0
      %v367 = vpop.trf.xlu0
      %v368 = vpop.trf.xlu0
      %v369 = vpop.trf.xlu0
      %v370 = vpop.trf.xlu0
      %v371 = vpop.trf.xlu0
      %v372 = vpop.trf.xlu0
      %v373 = vpop.trf.xlu0
      %v374 = vpop.trf.xlu0
      %v375 = vpop.trf.xlu0
      %v376 = vpop.trf.xlu0
      %377 = vxpose.xlu0.b32.start [1/16] %v329, 128
      %378 = vxpose.xlu0.b32.cont [2/16] %v330, 128
      %379 = vxpose.xlu0.b32.cont [3/16] %v331, 128
      %380 = vxpose.xlu0.b32.cont [4/16] %v332, 128
      %381 = vxpose.xlu0.b32.cont [5/16] %v333, 128
      %382 = vxpose.xlu0.b32.cont [6/16] %v334, 128
      %383 = vxpose.xlu0.b32.cont [7/16] %v335, 128
      %384 = vxpose.xlu0.b32.cont [8/16] %v336, 128
      %385 = vxpose.xlu0.b32.cont [9/16] %v337, 128
      %386 = vxpose.xlu0.b32.cont [10/16] %v338, 128
      %387 = vxpose.xlu0.b32.cont [11/16] %v339, 128
      %388 = vxpose.xlu0.b32.cont [12/16] %v340, 128
      %389 = vxpose.xlu0.b32.cont [13/16] %v341, 128
      %390 = vxpose.xlu0.b32.cont [14/16] %v342, 128
      %391 = vxpose.xlu0.b32.cont [15/16] %v343, 128
      %392 = vxpose.xlu0.b32.end [16/16] %v344, 128
      %v393 = vpop.trf.xlu0
      %v394 = vpop.trf.xlu0
      %v395 = vpop.trf.xlu0
      %v396 = vpop.trf.xlu0
      %v397 = vpop.trf.xlu0
      %v398 = vpop.trf.xlu0
      %v399 = vpop.trf.xlu0
      %v400 = vpop.trf.xlu0
      %v401 = vpop.trf.xlu0
      %v402 = vpop.trf.xlu0
      %v403 = vpop.trf.xlu0
      %v404 = vpop.trf.xlu0
      %v405 = vpop.trf.xlu0
      %v406 = vpop.trf.xlu0
      %v407 = vpop.trf.xlu0
      %v408 = vpop.trf.xlu0
      %409 = vst [vmem:[%s170] sm:$0xff] %v361
      %410 = vst [vmem:[%s170 + $0x8] sm:$0xff] %v393
      %411 = vst [vmem:[%s170 + $0x10] sm:$0xff] %v362
      %412 = vst [vmem:[%s170 + $0x18] sm:$0xff] %v394
      %413 = vst [vmem:[%s170 + $0x20] sm:$0xff] %v363
      %414 = vst [vmem:[%s170 + $0x28] sm:$0xff] %v395
      %415 = vst [vmem:[%s170 + $0x30] sm:$0xff] %v364
      %416 = vst [vmem:[%s170 + $0x38] sm:$0xff] %v396
      %p417 = scmp.lt.s32.totalorder %s14, 1
      %s418 = scalar_select %p417, %s14, 1
      %s419 = smul.addr %s418, 8
      %s420 = smul.addr %s419, 8
      %s421 = scalar_lea.vmem %s3, %s420
      // Predicated region
      $region33: #{double_conv_forward.5} parent=31 // pred_check
        %p422 = pneg %p100
      $region34: #{double_conv_forward.5} parent=31 // pred_check_branch
        %424 = sbr.rel (%p422) target = $region36
      $region35: #{double_conv_forward.5} parent=31 // pred_region
        _
      $region36: #{double_conv_forward.5} parent=31 // pred_fallthru
        _
    $region32: #{double_conv_forward.5} parent=5 // pred_fallthru
      _
    %p425 = scmp.le.s32.totalorder 2, %s9
    // Predicated region
    $region37: #{double_conv_forward.5} parent=5 // pred_check
      %p426 = pneg %p425
    $region38: #{double_conv_forward.5} parent=5 // pred_check_branch
      %428 = sbr.rel (%p426) target = $region40
    $region39: #{double_conv_forward.5} parent=5 // pred_region
      %s429 = ssub.s32 %s9, 2
      // Predicated region
      $region41: #{double_conv_forward.5} parent=39 // pred_check
        %p430 = pneg %p106
      $region42: #{double_conv_forward.5} parent=39 // pred_check_branch
        %432 = sbr.rel (%p430) target = $region44
      $region43: #{double_conv_forward.5} parent=39 // pred_region
        %p433 = scmp.lt.s32.totalorder %s15, 1
        %s434 = scalar_select %p433, %s15, 1
        %s435 = smul.addr %s434, 8
        %s436 = smul.addr %s435, 8
        %s437 = scalar_lea.vmem %s3, %s436
      $region44: #{double_conv_forward.5} parent=39 // pred_fallthru
        _
    $region40: #{double_conv_forward.5} parent=5 // pred_fallthru
      _
  $region6: #{double_conv_forward.5} parent=0 // loop_footer
    %s13 = sadd.s32 1, %s9
  $region7: #{double_conv_forward.5} parent=0 // loop_footer_branch
    %8 = sbr.rel target = $region3
  $region8: #{double_conv_forward.5} parent=0 // loop_exit
    _

// kernel: double_conv_forward.3
$region0: #{double_conv_forward.3}
  #allocation0 [shape = 'u32[]', space=smem, size = 0x4, offset = 0x4, fixed_abs, tag = 'smem constant byte address 0x4 - core index']
  #allocation1 [shape = 'u32[144,128]{1,0:T(1,128)}', space=vmem, size = 0x12000, scoped, tag = 'internal scratch']
  #allocation2 [shape = 'bf16[1,18,18,4]{3,2,1,0:T(8,128)(2,1)}', space=vmem, size = 0x1b000, scoped, tag = 'scratch operand']
  #allocation3 [shape = 'bf16[256,36]{1,0:T(16,128)(2,1)}', space=vmem, size = 0x10000, scoped, tag = 'scratch operand']
  %s0 = inlined_call_operand.vmem [shape: bf16[2,16,16,4], index: 0, kind: input, shape index: {}]
  %s1 = inlined_call_operand.vmem [shape: bf16[36,32], index: 1, kind: input, shape index: {}]
  %s2 = inlined_call_operand.vmem [shape: bf16[2,16,16,32], index: 2, kind: output, shape index: {0}]
  %s3 = inlined_call_operand.vmem [shape: f32[2,1,32], index: 3, kind: output, shape index: {1}]
  %s4 = inlined_call_operand.vmem [shape: f32[2,1,32], index: 4, kind: output, shape index: {2}]
  %5 = xla_tuple %s2, %s3, %s4
  %s6 = sld [smem:[#allocation0]]
  $region57: #{double_conv_forward.3} parent=0
    _
  %s8 = ssub.s32 1, %s6
  %s9 = scalar_select 0, %s8, %s6
  loop: start=0, step=1, limit=4
  $region2: #{double_conv_forward.3} parent=0 // loop_pre_header
    _
  $region3: #{double_conv_forward.3} parent=0 // loop_header
    %s11 = sphi 0, %s15
    %p12 = scmp.ge.s32.totalorder %s11, 4
    %s21 = sphi 0, %s23
    %s24 = sphi 0, %s21
    %s25 = sphi 0, %s24
    %s41 = sphi 0, %s25
    %s45 = sphi 0, %s45
    %s47 = sphi 0, %s45
    %s48 = sphi 0, %s47
    %s62 = sphi 0, %s48
    %s68 = sphi 0, %s70
    %s71 = sphi 0, %s68
    %s72 = sphi 0, %s71
    %s88 = sphi 0, %s72
    %s94 = sphi 0, %s96
    %s97 = sphi 0, %s94
    %s98 = sphi 0, %s97
    %s114 = sphi 0, %s98
    %s120 = sphi 0, %s122
    %s123 = sphi 0, %s120
    %s124 = sphi 0, %s123
    %s140 = sphi 0, %s124
  $region4: #{double_conv_forward.3} parent=0 // loop_header_branch
    %14 = sbr.rel (%p12) target = $region8
  $region5: #{double_conv_forward.3} parent=0 // loop_body
    %s16 = ssub.s32 %s11, 1
    %s17 = ssub.s32 %s11, 2
    %s18 = sadd.s32 %s11, 1
    %s19 = ssub.s32 %s11, %s18
    %p20 = scmp.eq.s32.totalorder %s19, 0
    %s22 = sadd.s32 %s21, 1
    %s23 = scalar_select %p20, %s21, %s22
    %p26 = pneg %p20
    %p27 = scmp.eq.s32.totalorder %s11, 1
    %p28 = por %p26, %p27
    %p29 = scmp.ne.s32.totalorder %s21, %s24
    %p30 = scmp.eq.s32.totalorder %s11, 0
    %p31 = por %p29, %p30
    %p32 = scmp.ne.s32.totalorder %s21, %s24
    %p33 = scmp.eq.s32.totalorder %s16, 1
    %p34 = por %p32, %p33
    %p35 = scmp.ne.s32.totalorder %s24, %s25
    %p36 = scmp.eq.s32.totalorder %s16, 0
    %p37 = por %p35, %p36
    %p38 = scmp.ne.s32.totalorder %s24, %s25
    %p39 = scmp.eq.s32.totalorder %s17, 1
    %p40 = por %p38, %p39
    %p42 = scmp.ne.s32.totalorder %s25, %s41
    %p43 = scmp.eq.s32.totalorder %s17, 0
    %p44 = por %p42, %p43
    %s46 = sadd.s32 %s45, 1
    %p49 = scmp.eq.s32.totalorder %s11, 1
    %p50 = scmp.ne.s32.totalorder %s45, %s47
    %p51 = scmp.eq.s32.totalorder %s11, 0
    %p52 = por %p50, %p51
    %p53 = scmp.ne.s32.totalorder %s45, %s47
    %p54 = scmp.eq.s32.totalorder %s16, 1
    %p55 = por %p53, %p54
    %p56 = scmp.ne.s32.totalorder %s47, %s48
    %p57 = scmp.eq.s32.totalorder %s16, 0
    %p58 = por %p56, %p57
    %p59 = scmp.ne.s32.totalorder %s47, %s48
    %p60 = scmp.eq.s32.totalorder %s17, 1
    %p61 = por %p59, %p60
    %p63 = scmp.ne.s32.totalorder %s48, %s62
    %p64 = scmp.eq.s32.totalorder %s17, 0
    %p65 = por %p63, %p64
    %s66 = ssub.s32 %s11, %s18
    %p67 = scmp.eq.s32.totalorder %s66, 0
    %s69 = sadd.s32 %s68, 1
    %s70 = scalar_select %p67, %s68, %s69
    %p73 = pneg %p67
    %p74 = scmp.eq.s32.totalorder %s11, 1
    %p75 = por %p73, %p74
    %p76 = scmp.ne.s32.totalorder %s68, %s71
    %p77 = scmp.eq.s32.totalorder %s11, 0
    %p78 = por %p76, %p77
    %p79 = scmp.ne.s32.totalorder %s68, %s71
    %p80 = scmp.eq.s32.totalorder %s16, 1
    %p81 = por %p79, %p80
    %p82 = scmp.ne.s32.totalorder %s71, %s72
    %p83 = scmp.eq.s32.totalorder %s16, 0
    %p84 = por %p82, %p83
    %p85 = scmp.ne.s32.totalorder %s71, %s72
    %p86 = scmp.eq.s32.totalorder %s17, 1
    %p87 = por %p85, %p86
    %p89 = scmp.ne.s32.totalorder %s72, %s88
    %p90 = scmp.eq.s32.totalorder %s17, 0
    %p91 = por %p89, %p90
    %s92 = ssub.s32 %s11, %s18
    %p93 = scmp.eq.s32.totalorder %s92, 0
    %s95 = sadd.s32 %s94, 1
    %s96 = scalar_select %p93, %s94, %s95
    %p99 = pneg %p93
    %p100 = scmp.eq.s32.totalorder %s11, 1
    %p101 = por %p99, %p100
    %p102 = scmp.ne.s32.totalorder %s94, %s97
    %p103 = scmp.eq.s32.totalorder %s11, 0
    %p104 = por %p102, %p103
    %p105 = scmp.ne.s32.totalorder %s94, %s97
    %p106 = scmp.eq.s32.totalorder %s16, 1
    %p107 = por %p105, %p106
    %p108 = scmp.ne.s32.totalorder %s97, %s98
    %p109 = scmp.eq.s32.totalorder %s16, 0
    %p110 = por %p108, %p109
    %p111 = scmp.ne.s32.totalorder %s97, %s98
    %p112 = scmp.eq.s32.totalorder %s17, 1
    %p113 = por %p111, %p112
    %p115 = scmp.ne.s32.totalorder %s98, %s114
    %p116 = scmp.eq.s32.totalorder %s17, 0
    %p117 = por %p115, %p116
    %s118 = ssub.s32 %s11, %s18
    %p119 = scmp.eq.s32.totalorder %s118, 0
    %s121 = sadd.s32 %s120, 1
    %s122 = scalar_select %p119, %s120, %s121
    %p125 = pneg %p119
    %p126 = scmp.eq.s32.totalorder %s11, 1
    %p127 = por %p125, %p126
    %p128 = scmp.ne.s32.totalorder %s120, %s123
    %p129 = scmp.eq.s32.totalorder %s11, 0
    %p130 = por %p128, %p129
    %p131 = scmp.ne.s32.totalorder %s120, %s123
    %p132 = scmp.eq.s32.totalorder %s16, 1
    %p133 = por %p131, %p132
    %p134 = scmp.ne.s32.totalorder %s123, %s124
    %p135 = scmp.eq.s32.totalorder %s16, 0
    %p136 = por %p134, %p135
    %p137 = scmp.ne.s32.totalorder %s123, %s124
    %p138 = scmp.eq.s32.totalorder %s17, 1
    %p139 = por %p137, %p138
    %p141 = scmp.ne.s32.totalorder %s124, %s140
    %p142 = scmp.eq.s32.totalorder %s17, 0
    %p143 = por %p141, %p142
    %p144 = scmp.le.s32.totalorder 1, %s11
    %p145 = scmp.lt.s32.totalorder %s11, 3
    %p146 = pnand %p144, %p145
    %p147 = pneg %p146
    // Predicated region
    $region9: #{double_conv_forward.3} parent=5 // pred_check
      _
    $region10: #{double_conv_forward.3} parent=5 // pred_check_branch
      %149 = sbr.rel (%p146) target = $region12
    $region11: #{double_conv_forward.3} parent=5 // pred_region
      %s150 = ssub.s32 %s11, 1
      // Predicated region
      $region13: #{double_conv_forward.3} parent=11 // pred_check
        %p151 = pneg %p58
      $region14: #{double_conv_forward.3} parent=11 // pred_check_branch
        %153 = sbr.rel (%p151) target = $region16
      $region15: #{double_conv_forward.3} parent=11 // pred_region
        _
      $region16: #{double_conv_forward.3} parent=11 // pred_fallthru
        _
    $region12: #{double_conv_forward.3} parent=5 // pred_fallthru
      _
    %p154 = scmp.lt.s32.totalorder %s11, 2
    // Predicated region
    $region17: #{double_conv_forward.3} parent=5 // pred_check
      %p155 = pneg %p154
    $region18: #{double_conv_forward.3} parent=5 // pred_check_branch
      %157 = sbr.rel (%p155) target = $region20
    $region19: #{double_conv_forward.3} parent=5 // pred_region
      // Predicated region
      $region21: #{double_conv_forward.3} parent=19 // pred_check
        %p158 = pneg %p31
      $region22: #{double_conv_forward.3} parent=19 // pred_check_branch
        %160 = sbr.rel (%p158) target = $region24
      $region23: #{double_conv_forward.3} parent=19 // pred_region
        %p161 = scmp.lt.s32.totalorder %s11, 1
        %s162 = scalar_select %p161, %s11, 1
        %s163 = smul.addr %s162, 32
        %s164 = smul.addr %s163, 4
        %s165 = scalar_lea.vmem %s0, %s164
      $region24: #{double_conv_forward.3} parent=19 // pred_fallthru
        _
    $region20: #{double_conv_forward.3} parent=5 // pred_fallthru
      _
    %p166 = scmp.le.s32.totalorder 1, %s11
    %p167 = scmp.lt.s32.totalorder %s11, 3
    %p168 = pnand %p166, %p167
    %p169 = pneg %p168
    // Predicated region
    $region25: #{double_conv_forward.3} parent=5 // pred_check
      _
    $region26: #{double_conv_forward.3} parent=5 // pred_check_branch
      %171 = sbr.rel (%p168) target = $region28
    $region27: #{double_conv_forward.3} parent=5 // pred_region
      %s172 = ssub.s32 %s11, 1
      %p173 = scmp.lt.s32.totalorder %s16, 1
      %s174 = scalar_select %p173, %s16, 1
      %s175 = smul.addr %s174, 32
      %s176 = smul.addr %s175, 4
      %s177 = scalar_lea.vmem %s0, %s176
      %p178 = pneg %p37
      %p179 = pneg %p34
      %p180 = pneg %p58
      %p181 = pneg %p55
      %p182 = pneg %p84
      %p183 = pneg %p81
      %p184 = scmp.lt.s32.totalorder %s16, 1
      %s185 = scalar_select %p184, %s16, 1
      %s186 = smul.addr %s185, 32
      %s187 = smul.addr %s186, 4
      %s188 = scalar_lea.vmem %s2, %s187
      %p189 = pneg %p110
      %p190 = pneg %p107
      %p191 = scmp.lt.s32.totalorder %s16, 1
      %s192 = scalar_select %p191, %s16, 1
      %s193 = scalar_lea.vmem %s3, %s192
      %p194 = pneg %p136
      %p195 = pneg %p133
      %p196 = scmp.lt.s32.totalorder %s16, 1
      %s197 = scalar_select %p196, %s16, 1
      %s198 = scalar_lea.vmem %s4, %s197
      %p199 = scmp.lt.s32.totalorder %s16, 1
      %s200 = scalar_select %p199, %s16, 1
      %s201 = smul.addr %s200, 32
      %s202 = smul.addr %s201, 4
      %s203 = scalar_lea.vmem %s0, %s202
      %p204 = scmp.lt.s32.totalorder %s16, 1
      %s205 = scalar_select %p204, %s16, 1
      %s206 = smul.addr %s205, 32
      %s207 = smul.addr %s206, 4
      %s208 = scalar_lea.vmem %s2, %s207
      %p209 = scmp.lt.s32.totalorder %s16, 1
      %s210 = scalar_select %p209, %s16, 1
      %s211 = scalar_lea.vmem %s3, %s210
      %p212 = scmp.lt.s32.totalorder %s16, 1
      %s213 = scalar_select %p212, %s16, 1
      %s214 = scalar_lea.vmem %s4, %s213
      %v216 = vld [vmem:[%s203] sm:$0xf]
      %v217 = vld [vmem:[%s203 + $0x4] sm:$0xf]
      %v218 = vld [vmem:[%s203 + $0x8] sm:$0xf]
      %v219 = vld [vmem:[%s203 + $0xc] sm:$0xf]
      %v220 = vld [vmem:[%s203 + $0x10] sm:$0xf]
      %v221 = vld [vmem:[%s203 + $0x14] sm:$0xf]
      %v222 = vld [vmem:[%s203 + $0x18] sm:$0xf]
      %v223 = vld [vmem:[%s203 + $0x1c] sm:$0xf]
      %v224 = vld [vmem:[%s203 + $0x20] sm:$0xf]
      %v225 = vld [vmem:[%s203 + $0x24] sm:$0xf]
      %v226 = vld [vmem:[%s203 + $0x28] sm:$0xf]
      %v227 = vld [vmem:[%s203 + $0x2c] sm:$0xf]
      %v228 = vld [vmem:[%s203 + $0x30] sm:$0xf]
      %v229 = vld [vmem:[%s203 + $0x34] sm:$0xf]
      %v230 = vld [vmem:[%s203 + $0x38] sm:$0xf]
      %v231 = vld [vmem:[%s203 + $0x3c] sm:$0xf]
      %v232 = vld [vmem:[%s203 + $0x40] sm:$0xf]
      %v233 = vld [vmem:[%s203 + $0x44] sm:$0xf]
      %v234 = vld [vmem:[%s203 + $0x48] sm:$0xf]
      %v235 = vld [vmem:[%s203 + $0x4c] sm:$0xf]
      %v236 = vld [vmem:[%s203 + $0x50] sm:$0xf]
      %v237 = vld [vmem:[%s203 + $0x54] sm:$0xf]
      %v238 = vld [vmem:[%s203 + $0x58] sm:$0xf]
      %v239 = vld [vmem:[%s203 + $0x5c] sm:$0xf]
      %v240 = vld [vmem:[%s203 + $0x60] sm:$0xf]
      %v241 = vld [vmem:[%s203 + $0x64] sm:$0xf]
      %v242 = vld [vmem:[%s203 + $0x68] sm:$0xf]
      %v243 = vld [vmem:[%s203 + $0x6c] sm:$0xf]
      %v244 = vld [vmem:[%s203 + $0x70] sm:$0xf]
      %v245 = vld [vmem:[%s203 + $0x74] sm:$0xf]
      %v246 = vld [vmem:[%s203 + $0x78] sm:$0xf]
      %v247 = vld [vmem:[%s203 + $0x7c] sm:$0xf]
      %vm248 = vcmask 27648
      %249 = vst.msk [vmem:[#allocation2] sm:$0xf] %vm248, 0
      %250 = vst.msk [vmem:[#allocation2 + $0x4] sm:$0xf] %vm248, 0
      %vm251 = vcmask 24576
      %252 = vst.msk [vmem:[#allocation2 + $0x8] sm:$0x1] %vm251, 0
      %s253 = scalar_lea.vmem [#allocation2], 204
      %254 = vst.msk [vmem:[%s253] sm:$0xf] %vm248, 0
      %255 = vst.msk [vmem:[%s253 + $0x4] sm:$0xf] %vm248, 0
      %256 = vst.msk [vmem:[%s253 + $0x8] sm:$0x1] %vm251, 0
      %s257 = scalar_lea.vmem [#allocation2], 12
      %vm258 = vcmask 24576
      %vm259 = vsmask.f32 256
      %vm260 = vmand %vm258, %vm259
      %v261 = vld [vmem:[%s257] sm:$0x1]
      %v262 = vsel %vm260, 0, %v261
      %263 = vst [vmem:[%s257] sm:$0x1] %v262
      %v264 = vld [vmem:[%s257 + $0xc] sm:$0x1]
      %v265 = vsel %vm260, 0, %v264
      %266 = vst [vmem:[%s257 + $0xc] sm:$0x1] %v265
      %v267 = vld [vmem:[%s257 + $0x18] sm:$0x1]
      %v268 = vsel %vm260, 0, %v267
      %269 = vst [vmem:[%s257 + $0x18] sm:$0x1] %v268
      %v270 = vld [vmem:[%s257 + $0x24] sm:$0x1]
      %v271 = vsel %vm260, 0, %v270
      %272 = vst [vmem:[%s257 + $0x24] sm:$0x1] %v271
      %v273 = vld [vmem:[%s257 + $0x30] sm:$0x1]
      %v274 = vsel %vm260, 0, %v273
      %275 = vst [vmem:[%s257 + $0x30] sm:$0x1] %v274
      %v276 = vld [vmem:[%s257 + $0x3c] sm:$0x1]
      %v277 = vsel %vm260, 0, %v276
      %278 = vst [vmem:[%s257 + $0x3c] sm:$0x1] %v277
      %v279 = vld [vmem:[%s257 + $0x48] sm:$0x1]
      %v280 = vsel %vm260, 0, %v279
      %281 = vst [vmem:[%s257 + $0x48] sm:$0x1] %v280
      %v282 = vld [vmem:[%s257 + $0x54] sm:$0x1]
      %v283 = vsel %vm260, 0, %v282
      %284 = vst [vmem:[%s257 + $0x54] sm:$0x1] %v283
      %v285 = vld [vmem:[%s257 + $0x60] sm:$0x1]
      %v286 = vsel %vm260, 0, %v285
      %287 = vst [vmem:[%s257 + $0x60] sm:$0x1] %v286
      %v288 = vld [vmem:[%s257 + $0x6c] sm:$0x1]
      %v289 = vsel %vm260, 0, %v288
      %290 = vst [vmem:[%s257 + $0x6c] sm:$0x1] %v289
      %v291 = vld [vmem:[%s257 + $0x78] sm:$0x1]
      %v292 = vsel %vm260, 0, %v291
      %293 = vst [vmem:[%s257 + $0x78] sm:$0x1] %v292
      %v294 = vld [vmem:[%s257 + $0x84] sm:$0x1]
      %v295 = vsel %vm260, 0, %v294
      %296 = vst [vmem:[%s257 + $0x84] sm:$0x1] %v295
      %v297 = vld [vmem:[%s257 + $0x90] sm:$0x1]
      %v298 = vsel %vm260, 0, %v297
      %299 = vst [vmem:[%s257 + $0x90] sm:$0x1] %v298
      %v300 = vld [vmem:[%s257 + $0x9c] sm:$0x1]
      %v301 = vsel %vm260, 0, %v300
      %302 = vst [vmem:[%s257 + $0x9c] sm:$0x1] %v301
      %v303 = vld [vmem:[%s257 + $0xa8] sm:$0x1]
      %v304 = vsel %vm260, 0, %v303
      %305 = vst [vmem:[%s257 + $0xa8] sm:$0x1] %v304
      %v306 = vld [vmem:[%s257 + $0xb4] sm:$0x1]
      %v307 = vsel %vm260, 0, %v306
      %308 = vst [vmem:[%s257 + $0xb4] sm:$0x1] %v307
      %vm309 = vsmask.f32 7938
      %vm310 = vmand %vm258, %vm309
      %v311 = vld [vmem:[%s257 + $0x8] sm:$0x1]
      %v312 = vsel %vm310, 0, %v311
      %313 = vst [vmem:[%s257 + $0x8] sm:$0x1] %v312
      %v314 = vld [vmem:[%s257 + $0x14] sm:$0x1]
      %v315 = vsel %vm310, 0, %v314
      %316 = vst [vmem:[%s257 + $0x14] sm:$0x1] %v315
      %v317 = vld [vmem:[%s257 + $0x20] sm:$0x1]
      %v318 = vsel %vm310, 0, %v317
      %319 = vst [vmem:[%s257 + $0x20] sm:$0x1] %v318
      %v320 = vld [vmem:[%s257 + $0x2c] sm:$0x1]
      %v321 = vsel %vm310, 0, %v320
      %322 = vst [vmem:[%s257 + $0x2c] sm:$0x1] %v321
      %v323 = vld [vmem:[%s257 + $0x38] sm:$0x1]
      %v324 = vsel %vm310, 0, %v323
      %325 = vst [vmem:[%s257 + $0x38] sm:$0x1] %v324
      %v326 = vld [vmem:[%s257 + $0x44] sm:$0x1]
      %v327 = vsel %vm310, 0, %v326
      %328 = vst [vmem:[%s257 + $0x44] sm:$0x1] %v327
      %v329 = vld [vmem:[%s257 + $0x50] sm:$0x1]
      %v330 = vsel %vm310, 0, %v329
      %331 = vst [vmem:[%s257 + $0x50] sm:$0x1] %v330
      %v332 = vld [vmem:[%s257 + $0x5c] sm:$0x1]
      %v333 = vsel %vm310, 0, %v332
      %334 = vst [vmem:[%s257 + $0x5c] sm:$0x1] %v333
      %v335 = vld [vmem:[%s257 + $0x68] sm:$0x1]
      %v336 = vsel %vm310, 0, %v335
      %337 = vst [vmem:[%s257 + $0x68] sm:$0x1] %v336
      %v338 = vld [vmem:[%s257 + $0x74] sm:$0x1]
      %v339 = vsel %vm310, 0, %v338
      %340 = vst [vmem:[%s257 + $0x74] sm:$0x1] %v339
      %v341 = vld [vmem:[%s257 + $0x80] sm:$0x1]
      %v342 = vsel %vm310, 0, %v341
      %343 = vst [vmem:[%s257 + $0x80] sm:$0x1] %v342
      %v344 = vld [vmem:[%s257 + $0x8c] sm:$0x1]
      %v345 = vsel %vm310, 0, %v344
      %346 = vst [vmem:[%s257 + $0x8c] sm:$0x1] %v345
      %v347 = vld [vmem:[%s257 + $0x98] sm:$0x1]
      %v348 = vsel %vm310, 0, %v347
      %349 = vst [vmem:[%s257 + $0x98] sm:$0x1] %v348
      %v350 = vld [vmem:[%s257 + $0xa4] sm:$0x1]
      %v351 = vsel %vm310, 0, %v350
      %352 = vst [vmem:[%s257 + $0xa4] sm:$0x1] %v351
      %v353 = vld [vmem:[%s257 + $0xb0] sm:$0x1]
      %v354 = vsel %vm310, 0, %v353
      %355 = vst [vmem:[%s257 + $0xb0] sm:$0x1] %v354
      %v356 = vld [vmem:[%s257 + $0xbc] sm:$0x1]
      %v357 = vsel %vm310, 0, %v356
      %358 = vst [vmem:[%s257 + $0xbc] sm:$0x1] %v357
      %vm359 = vsmask.f32 4368
      %vm360 = vmor %vm259, %vm359
      %v362 = vshrl.u32 %v216, 16
      %v364 = vrot.slane %v362, 7
      %v365 = vshll.u32 %v216, 16
      %v367 = vor.u32 %v364, %v365
      %v368 = vrot.slane %v364, 4
      %v370 = vshrl.u32 %v217, 16
      %v372 = vrot.slane %v370, 7
      %v373 = vshll.u32 %v217, 16
      %v375 = vor.u32 %v372, %v373
      %v376 = vsel %vm360, %v368, %v375
      %v377 = vrot.slane %v372, 4
      %v379 = vshrl.u32 %v218, 16
      %v381 = vrot.slane %v379, 7
      %v382 = vshll.u32 %v218, 16
      %v384 = vor.u32 %v381, %v382
      %v385 = vrot.slane %v381, 4
      %v387 = vshrl.u32 %v219, 16
      %v389 = vrot.slane %v387, 7
      %v390 = vshll.u32 %v219, 16
      %v392 = vor.u32 %v389, %v390
      %v393 = vsel %vm360, %v385, %v392
      %v394 = vrot.slane %v389, 4
      %v396 = vshrl.u32 %v220, 16
      %v398 = vrot.slane %v396, 7
      %v399 = vshll.u32 %v220, 16
      %v401 = vor.u32 %v398, %v399
      %v402 = vrot.slane %v398, 4
      %v404 = vshrl.u32 %v221, 16
      %v406 = vrot.slane %v404, 7
      %v407 = vshll.u32 %v221, 16
      %v409 = vor.u32 %v406, %v407
      %v410 = vsel %vm360, %v402, %v409
      %v411 = vrot.slane %v406, 4
      %v413 = vshrl.u32 %v222, 16
      %v415 = vrot.slane %v413, 7
      %v416 = vshll.u32 %v222, 16
      %v418 = vor.u32 %v415, %v416
      %v419 = vrot.slane %v415, 4
      %v421 = vshrl.u32 %v223, 16
      %v423 = vrot.slane %v421, 7
      %v424 = vshll.u32 %v223, 16
      %v426 = vor.u32 %v423, %v424
      %v427 = vsel %vm360, %v419, %v426
      %v428 = vrot.slane %v423, 4
      %v430 = vshrl.u32 %v224, 16
      %v432 = vrot.slane %v430, 7
      %v433 = vshll.u32 %v224, 16
      %v435 = vor.u32 %v432, %v433
      %v436 = vrot.slane %v432, 4
      %v438 = vshrl.u32 %v225, 16
      %v440 = vrot.slane %v438, 7
      %v441 = vshll.u32 %v225, 16
      %v443 = vor.u32 %v440, %v441
      %v444 = vsel %vm360, %v436, %v443
      %v445 = vrot.slane %v440, 4
      %v447 = vshrl.u32 %v226, 16
      %v449 = vrot.slane %v447, 7
      %v450 = vshll.u32 %v226, 16
      %v452 = vor.u32 %v449, %v450
      %v453 = vrot.slane %v449, 4
      %v455 = vshrl.u32 %v227, 16
      %v457 = vrot.slane %v455, 7
      %v458 = vshll.u32 %v227, 16
      %v460 = vor.u32 %v457, %v458
      %v461 = vsel %vm360, %v453, %v460
      %v462 = vrot.slane %v457, 4
      %v464 = vshrl.u32 %v228, 16
      %v466 = vrot.slane %v464, 7
      %v467 = vshll.u32 %v228, 16
      %v469 = vor.u32 %v466, %v467
      %v470 = vrot.slane %v466, 4
      %v472 = vshrl.u32 %v229, 16
      %v474 = vrot.slane %v472, 7
      %v475 = vshll.u32 %v229, 16
      %v477 = vor.u32 %v474, %v475
      %v478 = vsel %vm360, %v470, %v477
      %v479 = vrot.slane %v474, 4
      %v481 = vshrl.u32 %v230, 16
      %v483 = vrot.slane %v481, 7
      %v484 = vshll.u32 %v230, 16
      %v486 = vor.u32 %v483, %v484
      %v487 = vrot.slane %v483, 4
      %v489 = vshrl.u32 %v231, 16
      %v491 = vrot.slane %v489, 7
      %v492 = vshll.u32 %v231, 16
      %v494 = vor.u32 %v491, %v492
      %v495 = vsel %vm360, %v487, %v494
      %v496 = vrot.slane %v491, 4
      %v498 = vshrl.u32 %v232, 16
      %v500 = vrot.slane %v498, 7
      %v501 = vshll.u32 %v232, 16
      %v503 = vor.u32 %v500, %v501
      %v504 = vrot.slane %v500, 4
      %v506 = vshrl.u32 %v233, 16
      %v508 = vrot.slane %v506, 7
      %v509 = vshll.u32 %v233, 16
      %v511 = vor.u32 %v508, %v509
      %v512 = vsel %vm360, %v504, %v511
      %v513 = vrot.slane %v508, 4
      %v515 = vshrl.u32 %v234, 16
      %v517 = vrot.slane %v515, 7
      %v518 = vshll.u32 %v234, 16
      %v520 = vor.u32 %v517, %v518
      %v521 = vrot.slane %v517, 4
      %v523 = vshrl.u32 %v235, 16
      %v525 = vrot.slane %v523, 7
      %v526 = vshll.u32 %v235, 16
      %v528 = vor.u32 %v525, %v526
      %v529 = vsel %vm360, %v521, %v528
      %v530 = vrot.slane %v525, 4
      %v532 = vshrl.u32 %v236, 16
      %v534 = vrot.slane %v532, 7
      %v535 = vshll.u32 %v236, 16
      %v537 = vor.u32 %v534, %v535
      %v538 = vrot.slane %v534, 4
      %v540 = vshrl.u32 %v237, 16
      %v542 = vrot.slane %v540, 7
      %v543 = vshll.u32 %v237, 16
      %v545 = vor.u32 %v542, %v543
      %v546 = vsel %vm360, %v538, %v545
      %v547 = vrot.slane %v542, 4
      %v549 = vshrl.u32 %v238, 16
      %v551 = vrot.slane %v549, 7
      %v552 = vshll.u32 %v238, 16
      %v554 = vor.u32 %v551, %v552
      %v555 = vrot.slane %v551, 4
      %v557 = vshrl.u32 %v239, 16
      %v559 = vrot.slane %v557, 7
      %v560 = vshll.u32 %v239, 16
      %v562 = vor.u32 %v559, %v560
      %v563 = vsel %vm360, %v555, %v562
      %v564 = vrot.slane %v559, 4
      %v566 = vshrl.u32 %v240, 16
      %v568 = vrot.slane %v566, 7
      %v569 = vshll.u32 %v240, 16
      %v571 = vor.u32 %v568, %v569
      %v572 = vrot.slane %v568, 4
      %v574 = vshrl.u32 %v241, 16
      %v576 = vrot.slane %v574, 7
      %v577 = vshll.u32 %v241, 16
      %v579 = vor.u32 %v576, %v577
      %v580 = vsel %vm360, %v572, %v579
      %v581 = vrot.slane %v576, 4
      %v583 = vshrl.u32 %v242, 16
      %v585 = vrot.slane %v583, 7
      %v586 = vshll.u32 %v242, 16
      %v588 = vor.u32 %v585, %v586
      %v589 = vrot.slane %v585, 4
      %v591 = vshrl.u32 %v243, 16
      %v593 = vrot.slane %v591, 7
      %v594 = vshll.u32 %v243, 16
      %v596 = vor.u32 %v593, %v594
      %v597 = vsel %vm360, %v589, %v596
      %v598 = vrot.slane %v593, 4
      %v600 = vshrl.u32 %v244, 16
      %v602 = vrot.slane %v600, 7
      %v603 = vshll.u32 %v244, 16
      %v605 = vor.u32 %v602, %v603
      %v606 = vrot.slane %v602, 4
      %v608 = vshrl.u32 %v245, 16
      %v610 = vrot.slane %v608, 7
      %v611 = vshll.u32 %v245, 16
      %v613 = vor.u32 %v610, %v611
      %v614 = vsel %vm360, %v606, %v613
      %v615 = vrot.slane %v610, 4
      %v617 = vshrl.u32 %v246, 16
      %v619 = vrot.slane %v617, 7
      %v620 = vshll.u32 %v246, 16
      %v622 = vor.u32 %v619, %v620
      %v623 = vrot.slane %v619, 4
      %v625 = vshrl.u32 %v247, 16
      %v627 = vrot.slane %v625, 7
      %v628 = vshll.u32 %v247, 16
      %v630 = vor.u32 %v627, %v628
      %v631 = vsel %vm360, %v623, %v630
      %v632 = vrot.slane %v627, 4
      %vm681 = vcmask 27648
      %vm682 = vmand %vm681, %vm309
      %v683 = vld [vmem:[%s257] sm:$0xf]
      %v684 = vsel %vm682, %v367, %v683
      %685 = vst [vmem:[%s257] sm:$0xf] %v684
      %686 = vst.msk [vmem:[%s257 + $0x4] sm:$0xf] %vm248, %v376
      %v687 = vld [vmem:[%s257 + $0x8] sm:$0x1]
      %v688 = vsel %vm260, %v377, %v687
      %689 = vst [vmem:[%s257 + $0x8] sm:$0x1] %v688
      %v690 = vld [vmem:[%s257 + $0xc] sm:$0xf]
      %v691 = vsel %vm682, %v384, %v690
      %692 = vst [vmem:[%s257 + $0xc] sm:$0xf] %v691
      %693 = vst.msk [vmem:[%s257 + $0x10] sm:$0xf] %vm248, %v393
      %v694 = vld [vmem:[%s257 + $0x14] sm:$0x1]
      %v695 = vsel %vm260, %v394, %v694
      %696 = vst [vmem:[%s257 + $0x14] sm:$0x1] %v695
      %v697 = vld [vmem:[%s257 + $0x18] sm:$0xf]
      %v698 = vsel %vm682, %v401, %v697
      %699 = vst [vmem:[%s257 + $0x18] sm:$0xf] %v698
      %700 = vst.msk [vmem:[%s257 + $0x1c] sm:$0xf] %vm248, %v410
      %v701 = vld [vmem:[%s257 + $0x20] sm:$0x1]
      %v702 = vsel %vm260, %v411, %v701
      %703 = vst [vmem:[%s257 + $0x20] sm:$0x1] %v702
      %v704 = vld [vmem:[%s257 + $0x24] sm:$0xf]
      %v705 = vsel %vm682, %v418, %v704
      %706 = vst [vmem:[%s257 + $0x24] sm:$0xf] %v705
      %707 = vst.msk [vmem:[%s257 + $0x28] sm:$0xf] %vm248, %v427
      %v708 = vld [vmem:[%s257 + $0x2c] sm:$0x1]
      %v709 = vsel %vm260, %v428, %v708
      %710 = vst [vmem:[%s257 + $0x2c] sm:$0x1] %v709
      %v711 = vld [vmem:[%s257 + $0x30] sm:$0xf]
      %v712 = vsel %vm682, %v435, %v711
      %713 = vst [vmem:[%s257 + $0x30] sm:$0xf] %v712
      %714 = vst.msk [vmem:[%s257 + $0x34] sm:$0xf] %vm248, %v444
      %v715 = vld [vmem:[%s257 + $0x38] sm:$0x1]
      %v716 = vsel %vm260, %v445, %v715
      %717 = vst [vmem:[%s257 + $0x38] sm:$0x1] %v716
      %v718 = vld [vmem:[%s257 + $0x3c] sm:$0xf]
      %v719 = vsel %vm682, %v452, %v718
      %720 = vst [vmem:[%s257 + $0x3c] sm:$0xf] %v719
      %721 = vst.msk [vmem:[%s257 + $0x40] sm:$0xf] %vm248, %v461
      %v722 = vld [vmem:[%s257 + $0x44] sm:$0x1]
      %v723 = vsel %vm260, %v462, %v722
      %724 = vst [vmem:[%s257 + $0x44] sm:$0x1] %v723
      %v725 = vld [vmem:[%s257 + $0x48] sm:$0xf]
      %v726 = vsel %vm682, %v469, %v725
      %727 = vst [vmem:[%s257 + $0x48] sm:$0xf] %v726
      %728 = vst.msk [vmem:[%s257 + $0x4c] sm:$0xf] %vm248, %v478
      %v729 = vld [vmem:[%s257 + $0x50] sm:$0x1]
      %v730 = vsel %vm260, %v479, %v729
      %731 = vst [vmem:[%s257 + $0x50] sm:$0x1] %v730
      %v732 = vld [vmem:[%s257 + $0x54] sm:$0xf]
      %v733 = vsel %vm682, %v486, %v732
      %734 = vst [vmem:[%s257 + $0x54] sm:$0xf] %v733
      %735 = vst.msk [vmem:[%s257 + $0x58] sm:$0xf] %vm248, %v495
      %v736 = vld [vmem:[%s257 + $0x5c] sm:$0x1]
      %v737 = vsel %vm260, %v496, %v736
      %738 = vst [vmem:[%s257 + $0x5c] sm:$0x1] %v737
      %v739 = vld [vmem:[%s257 + $0x60] sm:$0xf]
      %v740 = vsel %vm682, %v503, %v739
      %741 = vst [vmem:[%s257 + $0x60] sm:$0xf] %v740
      %742 = vst.msk [vmem:[%s257 + $0x64] sm:$0xf] %vm248, %v512
      %v743 = vld [vmem:[%s257 + $0x68] sm:$0x1]
      %v744 = vsel %vm260, %v513, %v743
      %745 = vst [vmem:[%s257 + $0x68] sm:$0x1] %v744
      %v746 = vld [vmem:[%s257 + $0x6c] sm:$0xf]
      %v747 = vsel %vm682, %v520, %v746
      %748 = vst [vmem:[%s257 + $0x6c] sm:$0xf] %v747
      %749 = vst.msk [vmem:[%s257 + $0x70] sm:$0xf] %vm248, %v529
      %v750 = vld [vmem:[%s257 + $0x74] sm:$0x1]
      %v751 = vsel %vm260, %v530, %v750
      %752 = vst [vmem:[%s257 + $0x74] sm:$0x1] %v751
      %v753 = vld [vmem:[%s257 + $0x78] sm:$0xf]
      %v754 = vsel %vm682, %v537, %v753
      %755 = vst [vmem:[%s257 + $0x78] sm:$0xf] %v754
      %756 = vst.msk [vmem:[%s257 + $0x7c] sm:$0xf] %vm248, %v546
      %v757 = vld [vmem:[%s257 + $0x80] sm:$0x1]
      %v758 = vsel %vm260, %v547, %v757
      %759 = vst [vmem:[%s257 + $0x80] sm:$0x1] %v758
      %v760 = vld [vmem:[%s257 + $0x84] sm:$0xf]
      %v761 = vsel %vm682, %v554, %v760
      %762 = vst [vmem:[%s257 + $0x84] sm:$0xf] %v761
      %763 = vst.msk [vmem:[%s257 + $0x88] sm:$0xf] %vm248, %v563
      %v764 = vld [vmem:[%s257 + $0x8c] sm:$0x1]
      %v765 = vsel %vm260, %v564, %v764
      %766 = vst [vmem:[%s257 + $0x8c] sm:$0x1] %v765
      %v767 = vld [vmem:[%s257 + $0x90] sm:$0xf]
      %v768 = vsel %vm682, %v571, %v767
      %769 = vst [vmem:[%s257 + $0x90] sm:$0xf] %v768
      %770 = vst.msk [vmem:[%s257 + $0x94] sm:$0xf] %vm248, %v580
      %v771 = vld [vmem:[%s257 + $0x98] sm:$0x1]
      %v772 = vsel %vm260, %v581, %v771
      %773 = vst [vmem:[%s257 + $0x98] sm:$0x1] %v772
      %v774 = vld [vmem:[%s257 + $0x9c] sm:$0xf]
      %v775 = vsel %vm682, %v588, %v774
      %776 = vst [vmem:[%s257 + $0x9c] sm:$0xf] %v775
      %777 = vst.msk [vmem:[%s257 + $0xa0] sm:$0xf] %vm248, %v597
      %v778 = vld [vmem:[%s257 + $0xa4] sm:$0x1]
      %v779 = vsel %vm260, %v598, %v778
      %780 = vst [vmem:[%s257 + $0xa4] sm:$0x1] %v779
      %v781 = vld [vmem:[%s257 + $0xa8] sm:$0xf]
      %v782 = vsel %vm682, %v605, %v781
      %783 = vst [vmem:[%s257 + $0xa8] sm:$0xf] %v782
      %784 = vst.msk [vmem:[%s257 + $0xac] sm:$0xf] %vm248, %v614
      %v785 = vld [vmem:[%s257 + $0xb0] sm:$0x1]
      %v786 = vsel %vm260, %v615, %v785
      %787 = vst [vmem:[%s257 + $0xb0] sm:$0x1] %v786
      %v788 = vld [vmem:[%s257 + $0xb4] sm:$0xf]
      %v789 = vsel %vm682, %v622, %v788
      %790 = vst [vmem:[%s257 + $0xb4] sm:$0xf] %v789
      %791 = vst.msk [vmem:[%s257 + $0xb8] sm:$0xf] %vm248, %v631
      %v792 = vld [vmem:[%s257 + $0xbc] sm:$0x1]
      %v793 = vsel %vm260, %v632, %v792
      %794 = vst [vmem:[%s257 + $0xbc] sm:$0x1] %v793
      %v795 = vld [vmem:[#allocation2] sm:$0xf]
      %v796 = vld [vmem:[#allocation2 + $0x4] sm:$0xf]
      %v797 = vld [vmem:[#allocation2 + $0xc] sm:$0xf]
      %v798 = vld [vmem:[#allocation2 + $0x10] sm:$0xf]
      %v799 = vld [vmem:[#allocation2 + $0x18] sm:$0xf]
      %v800 = vld [vmem:[#allocation2 + $0x1c] sm:$0xf]
      %v801 = vld [vmem:[#allocation2 + $0x24] sm:$0xf]
      %v802 = vld [vmem:[#allocation2 + $0x28] sm:$0xf]
      %v803 = vld [vmem:[#allocation2 + $0x30] sm:$0xf]
      %v804 = vld [vmem:[#allocation2 + $0x34] sm:$0xf]
      %v805 = vld [vmem:[#allocation2 + $0x3c] sm:$0xf]
      %v806 = vld [vmem:[#allocation2 + $0x40] sm:$0xf]
      %v807 = vld [vmem:[#allocation2 + $0x48] sm:$0xf]
      %v808 = vld [vmem:[#allocation2 + $0x4c] sm:$0xf]
      %v809 = vld [vmem:[#allocation2 + $0x54] sm:$0xf]
      %v810 = vld [vmem:[#allocation2 + $0x58] sm:$0xf]
      %v811 = vld [vmem:[#allocation2 + $0x60] sm:$0xf]
      %v812 = vld [vmem:[#allocation2 + $0x64] sm:$0xf]
      %v813 = vld [vmem:[#allocation2 + $0x6c] sm:$0xf]
      %v814 = vld [vmem:[#allocation2 + $0x70] sm:$0xf]
      %v815 = vld [vmem:[#allocation2 + $0x78] sm:$0xf]
      %v816 = vld [vmem:[#allocation2 + $0x7c] sm:$0xf]
      %v817 = vld [vmem:[#allocation2 + $0x84] sm:$0xf]
      %v818 = vld [vmem:[#allocation2 + $0x88] sm:$0xf]
      %v819 = vld [vmem:[#allocation2 + $0x90] sm:$0xf]
      %v820 = vld [vmem:[#allocation2 + $0x94] sm:$0xf]
      %v821 = vld [vmem:[#allocation2 + $0x9c] sm:$0xf]
      %v822 = vld [vmem:[#allocation2 + $0xa0] sm:$0xf]
      %v823 = vld [vmem:[#allocation2 + $0xa8] sm:$0xf]
      %v824 = vld [vmem:[#allocation2 + $0xac] sm:$0xf]
      %v825 = vld [vmem:[#allocation2 + $0xb4] sm:$0xf]
      %v826 = vld [vmem:[#allocation2 + $0xb8] sm:$0xf]
      %v859 = vunpack.c.l.b16 %v795
      %v860 = vunpack.c.l.b16 %v796
      %v861 = vunpack.c.l.b16 %v797
      %v862 = vunpack.c.l.b16 %v798
      %v863 = vunpack.c.l.b16 %v799
      %v864 = vunpack.c.l.b16 %v800
      %v865 = vunpack.c.l.b16 %v801
      %v866 = vunpack.c.l.b16 %v802
      %v867 = vunpack.c.l.b16 %v803
      %v868 = vunpack.c.l.b16 %v804
      %v869 = vunpack.c.l.b16 %v805
      %v870 = vunpack.c.l.b16 %v806
      %v871 = vunpack.c.l.b16 %v807
      %v872 = vunpack.c.l.b16 %v808
      %v873 = vunpack.c.l.b16 %v809
      %v874 = vunpack.c.l.b16 %v810
      %v875 = vunpack.c.l.b16 %v811
      %v876 = vunpack.c.l.b16 %v812
      %v877 = vunpack.c.l.b16 %v813
      %v878 = vunpack.c.l.b16 %v814
      %v879 = vunpack.c.l.b16 %v815
      %v880 = vunpack.c.l.b16 %v816
      %v881 = vunpack.c.l.b16 %v817
      %v882 = vunpack.c.l.b16 %v818
      %v883 = vunpack.c.l.b16 %v819
      %v884 = vunpack.c.l.b16 %v820
      %v885 = vunpack.c.l.b16 %v821
      %v886 = vunpack.c.l.b16 %v822
      %v887 = vunpack.c.l.b16 %v823
      %v888 = vunpack.c.l.b16 %v824
      %v889 = vunpack.c.l.b16 %v825
      %v890 = vunpack.c.l.b16 %v826
      %v891 = vpack.c.b16 %v860, %v859
      %v892 = vpack.c.b16 %v862, %v861
      %v893 = vpack.c.b16 %v864, %v863
      %v894 = vpack.c.b16 %v866, %v865
      %v895 = vpack.c.b16 %v868, %v867
      %v896 = vpack.c.b16 %v870, %v869
      %v897 = vpack.c.b16 %v872, %v871
      %v898 = vpack.c.b16 %v874, %v873
      %v899 = vpack.c.b16 %v876, %v875
      %v900 = vpack.c.b16 %v878, %v877
      %v901 = vpack.c.b16 %v880, %v879
      %v902 = vpack.c.b16 %v882, %v881
      %v903 = vpack.c.b16 %v884, %v883
      %v904 = vpack.c.b16 %v886, %v885
      %v905 = vpack.c.b16 %v888, %v887
      %v906 = vpack.c.b16 %v890, %v889
      %vm923 = vcmask 31744
      %924 = vst.msk [vmem:[#allocation3] sm:$0xff] %vm923, %v891
      %925 = vst.msk [vmem:[#allocation3 + $0x8] sm:$0xff] %vm923, %v892
      %926 = vst.msk [vmem:[#allocation3 + $0x10] sm:$0xff] %vm923, %v893
      %927 = vst.msk [vmem:[#allocation3 + $0x18] sm:$0xff] %vm923, %v894
      %928 = vst.msk [vmem:[#allocation3 + $0x20] sm:$0xff] %vm923, %v895
      %929 = vst.msk [vmem:[#allocation3 + $0x28] sm:$0xff] %vm923, %v896
      %930 = vst.msk [vmem:[#allocation3 + $0x30] sm:$0xff] %vm923, %v897
      %931 = vst.msk [vmem:[#allocation3 + $0x38] sm:$0xff] %vm923, %v898
      %932 = vst.msk [vmem:[#allocation3 + $0x40] sm:$0xff] %vm923, %v899
      %933 = vst.msk [vmem:[#allocation3 + $0x48] sm:$0xff] %vm923, %v900
      %934 = vst.msk [vmem:[#allocation3 + $0x50] sm:$0xff] %vm923, %v901
      %935 = vst.msk [vmem:[#allocation3 + $0x58] sm:$0xff] %vm923, %v902
      %936 = vst.msk [vmem:[#allocation3 + $0x60] sm:$0xff] %vm923, %v903
      %937 = vst.msk [vmem:[#allocation3 + $0x68] sm:$0xff] %vm923, %v904
      %938 = vst.msk [vmem:[#allocation3 + $0x70] sm:$0xff] %vm923, %v905
      %939 = vst.msk [vmem:[#allocation3 + $0x78] sm:$0xff] %vm923, %v906
      %v940 = vld [vmem:[#allocation2] sm:$0xf]
      %v941 = vld [vmem:[#allocation2 + $0x4] sm:$0xf]
      %v942 = vld [vmem:[#allocation2 + $0x8] sm:$0x1]
      %v943 = vld [vmem:[#allocation2 + $0xc] sm:$0xf]
      %v944 = vld [vmem:[#allocation2 + $0x10] sm:$0xf]
      %v945 = vld [vmem:[#allocation2 + $0x14] sm:$0x1]
      %v946 = vld [vmem:[#allocation2 + $0x18] sm:$0xf]
      %v947 = vld [vmem:[#allocation2 + $0x1c] sm:$0xf]
      %v948 = vld [vmem:[#allocation2 + $0x20] sm:$0x1]
      %v949 = vld [vmem:[#allocation2 + $0x24] sm:$0xf]
      %v950 = vld [vmem:[#allocation2 + $0x28] sm:$0xf]
      %v951 = vld [vmem:[#allocation2 + $0x2c] sm:$0x1]
      %v952 = vld [vmem:[#allocation2 + $0x30] sm:$0xf]
      %v953 = vld [vmem:[#allocation2 + $0x34] sm:$0xf]
      %v954 = vld [vmem:[#allocation2 + $0x38] sm:$0x1]
      %v955 = vld [vmem:[#allocation2 + $0x3c] sm:$0xf]
      %v956 = vld [vmem:[#allocation2 + $0x40] sm:$0xf]
      %v957 = vld [vmem:[#allocation2 + $0x44] sm:$0x1]
      %v958 = vld [vmem:[#allocation2 + $0x48] sm:$0xf]
      %v959 = vld [vmem:[#allocation2 + $0x4c] sm:$0xf]
      %v960 = vld [vmem:[#allocation2 + $0x50] sm:$0x1]
      %v961 = vld [vmem:[#allocation2 + $0x54] sm:$0xf]
      %v962 = vld [vmem:[#allocation2 + $0x58] sm:$0xf]
      %v963 = vld [vmem:[#allocation2 + $0x5c] sm:$0x1]
      %v964 = vld [vmem:[#allocation2 + $0x60] sm:$0xf]
      %v965 = vld [vmem:[#allocation2 + $0x64] sm:$0xf]
      %v966 = vld [vmem:[#allocation2 + $0x68] sm:$0x1]
      %v967 = vld [vmem:[#allocation2 + $0x6c] sm:$0xf]
      %v968 = vld [vmem:[#allocation2 + $0x70] sm:$0xf]
      %v969 = vld [vmem:[#allocation2 + $0x74] sm:$0x1]
      %v970 = vld [vmem:[#allocation2 + $0x78] sm:$0xf]
      %v971 = vld [vmem:[#allocation2 + $0x7c] sm:$0xf]
      %v972 = vld [vmem:[#allocation2 + $0x80] sm:$0x1]
      %v973 = vld [vmem:[#allocation2 + $0x84] sm:$0xf]
      %v974 = vld [vmem:[#allocation2 + $0x88] sm:$0xf]
      %v975 = vld [vmem:[#allocation2 + $0x8c] sm:$0x1]
      %v976 = vld [vmem:[#allocation2 + $0x90] sm:$0xf]
      %v977 = vld [vmem:[#allocation2 + $0x94] sm:$0xf]
      %v978 = vld [vmem:[#allocation2 + $0x98] sm:$0x1]
      %v979 = vld [vmem:[#allocation2 + $0x9c] sm:$0xf]
      %v980 = vld [vmem:[#allocation2 + $0xa0] sm:$0xf]
      %v981 = vld [vmem:[#allocation2 + $0xa4] sm:$0x1]
      %v982 = vld [vmem:[#allocation2 + $0xa8] sm:$0xf]
      %v983 = vld [vmem:[#allocation2 + $0xac] sm:$0xf]
      %v984 = vld [vmem:[#allocation2 + $0xb0] sm:$0x1]
      %v985 = vld [vmem:[#allocation2 + $0xb4] sm:$0xf]
      %v986 = vld [vmem:[#allocation2 + $0xb8] sm:$0xf]
      %v987 = vld [vmem:[#allocation2 + $0xbc] sm:$0x1]
      %vm988 = vsmask.f32 3328
      %vm989 = vsmask.f32 7440
      %vm990 = vmor %vm988, %vm989
      %v992 = vshrl.u32 %v940, 16
      %v994 = vrot.slane %v992, 4
      %v995 = vshll.u32 %v940, 16
      %v997 = vrot.slane %v995, 5
      %v998 = vor.u32 %v994, %v997
      %v999 = vrot.slane %v998, 4
      %v1001 = vshll.u32 %v941, 16
      %v1003 = vrot.slane %v1001, 5
      %v1004 = vsel %vm990, %v999, %v1003
      %v1005 = vshrl.u32 %v941, 16
      %v1007 = vrot.slane %v1005, 4
      %v1008 = vor.u32 %v1007, %v1003
      %v1009 = vrot.slane %v1008, 4
      %v1011 = vshll.u32 %v942, 16
      %v1013 = vrot.slane %v1011, 5
      %v1014 = vsel %vm990, %v1009, %v1013
      %v1016 = vshrl.u32 %v943, 16
      %v1018 = vrot.slane %v1016, 4
      %v1019 = vshll.u32 %v943, 16
      %v1021 = vrot.slane %v1019, 5
      %v1022 = vor.u32 %v1018, %v1021
      %v1023 = vrot.slane %v1022, 4
      %v1025 = vshll.u32 %v944, 16
      %v1027 = vrot.slane %v1025, 5
      %v1028 = vsel %vm990, %v1023, %v1027
      %v1029 = vshrl.u32 %v944, 16
      %v1031 = vrot.slane %v1029, 4
      %v1032 = vor.u32 %v1031, %v1027
      %v1033 = vrot.slane %v1032, 4
      %v1035 = vshll.u32 %v945, 16
      %v1037 = vrot.slane %v1035, 5
      %v1038 = vsel %vm990, %v1033, %v1037
      %v1040 = vshrl.u32 %v946, 16
      %v1042 = vrot.slane %v1040, 4
      %v1043 = vshll.u32 %v946, 16
      %v1045 = vrot.slane %v1043, 5
      %v1046 = vor.u32 %v1042, %v1045
      %v1047 = vrot.slane %v1046, 4
      %v1049 = vshll.u32 %v947, 16
      %v1051 = vrot.slane %v1049, 5
      %v1052 = vsel %vm990, %v1047, %v1051
      %v1053 = vshrl.u32 %v947, 16
      %v1055 = vrot.slane %v1053, 4
      %v1056 = vor.u32 %v1055, %v1051
      %v1057 = vrot.slane %v1056, 4
      %v1059 = vshll.u32 %v948, 16
      %v1061 = vrot.slane %v1059, 5
      %v1062 = vsel %vm990, %v1057, %v1061
      %v1064 = vshrl.u32 %v949, 16
      %v1066 = vrot.slane %v1064, 4
      %v1067 = vshll.u32 %v949, 16
      %v1069 = vrot.slane %v1067, 5
      %v1070 = vor.u32 %v1066, %v1069
      %v1071 = vrot.slane %v1070, 4
      %v1073 = vshll.u32 %v950, 16
      %v1075 = vrot.slane %v1073, 5
      %v1076 = vsel %vm990, %v1071, %v1075
      %v1077 = vshrl.u32 %v950, 16
      %v1079 = vrot.slane %v1077, 4
      %v1080 = vor.u32 %v1079, %v1075
      %v1081 = vrot.slane %v1080, 4
      %v1083 = vshll.u32 %v951, 16
      %v1085 = vrot.slane %v1083, 5
      %v1086 = vsel %vm990, %v1081, %v1085
      %v1088 = vshrl.u32 %v952, 16
      %v1090 = vrot.slane %v1088, 4
      %v1091 = vshll.u32 %v952, 16
      %v1093 = vrot.slane %v1091, 5
      %v1094 = vor.u32 %v1090, %v1093
      %v1095 = vrot.slane %v1094, 4
      %v1097 = vshll.u32 %v953, 16
      %v1099 = vrot.slane %v1097, 5
      %v1100 = vsel %vm990, %v1095, %v1099
      %v1101 = vshrl.u32 %v953, 16
      %v1103 = vrot.slane %v1101, 4
      %v1104 = vor.u32 %v1103, %v1099
      %v1105 = vrot.slane %v1104, 4
      %v1107 = vshll.u32 %v954, 16
      %v1109 = vrot.slane %v1107, 5
      %v1110 = vsel %vm990, %v1105, %v1109
      %v1112 = vshrl.u32 %v955, 16
      %v1114 = vrot.slane %v1112, 4
      %v1115 = vshll.u32 %v955, 16
      %v1117 = vrot.slane %v1115, 5
      %v1118 = vor.u32 %v1114, %v1117
      %v1119 = vrot.slane %v1118, 4
      %v1121 = vshll.u32 %v956, 16
      %v1123 = vrot.slane %v1121, 5
      %v1124 = vsel %vm990, %v1119, %v1123
      %v1125 = vshrl.u32 %v956, 16
      %v1127 = vrot.slane %v1125, 4
      %v1128 = vor.u32 %v1127, %v1123
      %v1129 = vrot.slane %v1128, 4
      %v1131 = vshll.u32 %v957, 16
      %v1133 = vrot.slane %v1131, 5
      %v1134 = vsel %vm990, %v1129, %v1133
      %v1136 = vshrl.u32 %v958, 16
      %v1138 = vrot.slane %v1136, 4
      %v1139 = vshll.u32 %v958, 16
      %v1141 = vrot.slane %v1139, 5
      %v1142 = vor.u32 %v1138, %v1141
      %v1143 = vrot.slane %v1142, 4
      %v1145 = vshll.u32 %v959, 16
      %v1147 = vrot.slane %v1145, 5
      %v1148 = vsel %vm990, %v1143, %v1147
      %v1149 = vshrl.u32 %v959, 16
      %v1151 = vrot.slane %v1149, 4
      %v1152 = vor.u32 %v1151, %v1147
      %v1153 = vrot.slane %v1152, 4
      %v1155 = vshll.u32 %v960, 16
      %v1157 = vrot.slane %v1155, 5
      %v1158 = vsel %vm990, %v1153, %v1157
      %v1160 = vshrl.u32 %v961, 16
      %v1162 = vrot.slane %v1160, 4
      %v1163 = vshll.u32 %v961, 16
      %v1165 = vrot.slane %v1163, 5
      %v1166 = vor.u32 %v1162, %v1165
      %v1167 = vrot.slane %v1166, 4
      %v1169 = vshll.u32 %v962, 16
      %v1171 = vrot.slane %v1169, 5
      %v1172 = vsel %vm990, %v1167, %v1171
      %v1173 = vshrl.u32 %v962, 16
      %v1175 = vrot.slane %v1173, 4
      %v1176 = vor.u32 %v1175, %v1171
      %v1177 = vrot.slane %v1176, 4
      %v1179 = vshll.u32 %v963, 16
      %v1181 = vrot.slane %v1179, 5
      %v1182 = vsel %vm990, %v1177, %v1181
      %v1184 = vshrl.u32 %v964, 16
      %v1186 = vrot.slane %v1184, 4
      %v1187 = vshll.u32 %v964, 16
      %v1189 = vrot.slane %v1187, 5
      %v1190 = vor.u32 %v1186, %v1189
      %v1191 = vrot.slane %v1190, 4
      %v1193 = vshll.u32 %v965, 16
      %v1195 = vrot.slane %v1193, 5
      %v1196 = vsel %vm990, %v1191, %v1195
      %v1197 = vshrl.u32 %v965, 16
      %v1199 = vrot.slane %v1197, 4
      %v1200 = vor.u32 %v1199, %v1195
      %v1201 = vrot.slane %v1200, 4
      %v1203 = vshll.u32 %v966, 16
      %v1205 = vrot.slane %v1203, 5
      %v1206 = vsel %vm990, %v1201, %v1205
      %v1208 = vshrl.u32 %v967, 16
      %v1210 = vrot.slane %v1208, 4
      %v1211 = vshll.u32 %v967, 16
      %v1213 = vrot.slane %v1211, 5
      %v1214 = vor.u32 %v1210, %v1213
      %v1215 = vrot.slane %v1214, 4
      %v1217 = vshll.u32 %v968, 16
      %v1219 = vrot.slane %v1217, 5
      %v1220 = vsel %vm990, %v1215, %v1219
      %v1221 = vshrl.u32 %v968, 16
      %v1223 = vrot.slane %v1221, 4
      %v1224 = vor.u32 %v1223, %v1219
      %v1225 = vrot.slane %v1224, 4
      %v1227 = vshll.u32 %v969, 16
      %v1229 = vrot.slane %v1227, 5
      %v1230 = vsel %vm990, %v1225, %v1229
      %v1232 = vshrl.u32 %v970, 16
      %v1234 = vrot.slane %v1232, 4
      %v1235 = vshll.u32 %v970, 16
      %v1237 = vrot.slane %v1235, 5
      %v1238 = vor.u32 %v1234, %v1237
      %v1239 = vrot.slane %v1238, 4
      %v1241 = vshll.u32 %v971, 16
      %v1243 = vrot.slane %v1241, 5
      %v1244 = vsel %vm990, %v1239, %v1243
      %v1245 = vshrl.u32 %v971, 16
      %v1247 = vrot.slane %v1245, 4
      %v1248 = vor.u32 %v1247, %v1243
      %v1249 = vrot.slane %v1248, 4
      %v1251 = vshll.u32 %v972, 16
      %v1253 = vrot.slane %v1251, 5
      %v1254 = vsel %vm990, %v1249, %v1253
      %v1256 = vshrl.u32 %v973, 16
      %v1258 = vrot.slane %v1256, 4
      %v1259 = vshll.u32 %v973, 16
      %v1261 = vrot.slane %v1259, 5
      %v1262 = vor.u32 %v1258, %v1261
      %v1263 = vrot.slane %v1262, 4
      %v1265 = vshll.u32 %v974, 16
      %v1267 = vrot.slane %v1265, 5
      %v1268 = vsel %vm990, %v1263, %v1267
      %v1269 = vshrl.u32 %v974, 16
      %v1271 = vrot.slane %v1269, 4
      %v1272 = vor.u32 %v1271, %v1267
      %v1273 = vrot.slane %v1272, 4
      %v1275 = vshll.u32 %v975, 16
      %v1277 = vrot.slane %v1275, 5
      %v1278 = vsel %vm990, %v1273, %v1277
      %v1280 = vshrl.u32 %v976, 16
      %v1282 = vrot.slane %v1280, 4
      %v1283 = vshll.u32 %v976, 16
      %v1285 = vrot.slane %v1283, 5
      %v1286 = vor.u32 %v1282, %v1285
      %v1287 = vrot.slane %v1286, 4
      %v1289 = vshll.u32 %v977, 16
      %v1291 = vrot.slane %v1289, 5
      %v1292 = vsel %vm990, %v1287, %v1291
      %v1293 = vshrl.u32 %v977, 16
      %v1295 = vrot.slane %v1293, 4
      %v1296 = vor.u32 %v1295, %v1291
      %v1297 = vrot.slane %v1296, 4
      %v1299 = vshll.u32 %v978, 16
      %v1301 = vrot.slane %v1299, 5
      %v1302 = vsel %vm990, %v1297, %v1301
      %v1304 = vshrl.u32 %v979, 16
      %v1306 = vrot.slane %v1304, 4
      %v1307 = vshll.u32 %v979, 16
      %v1309 = vrot.slane %v1307, 5
      %v1310 = vor.u32 %v1306, %v1309
      %v1311 = vrot.slane %v1310, 4
      %v1313 = vshll.u32 %v980, 16
      %v1315 = vrot.slane %v1313, 5
      %v1316 = vsel %vm990, %v1311, %v1315
      %v1317 = vshrl.u32 %v980, 16
      %v1319 = vrot.slane %v1317, 4
      %v1320 = vor.u32 %v1319, %v1315
      %v1321 = vrot.slane %v1320, 4
      %v1323 = vshll.u32 %v981, 16
      %v1325 = vrot.slane %v1323, 5
      %v1326 = vsel %vm990, %v1321, %v1325
      %v1328 = vshrl.u32 %v982, 16
      %v1330 = vrot.slane %v1328, 4
      %v1331 = vshll.u32 %v982, 16
      %v1333 = vrot.slane %v1331, 5
      %v1334 = vor.u32 %v1330, %v1333
      %v1335 = vrot.slane %v1334, 4
      %v1337 = vshll.u32 %v983, 16
      %v1339 = vrot.slane %v1337, 5
      %v1340 = vsel %vm990, %v1335, %v1339
      %v1341 = vshrl.u32 %v983, 16
      %v1343 = vrot.slane %v1341, 4
      %v1344 = vor.u32 %v1343, %v1339
      %v1345 = vrot.slane %v1344, 4
      %v1347 = vshll.u32 %v984, 16
      %v1349 = vrot.slane %v1347, 5
      %v1350 = vsel %vm990, %v1345, %v1349
      %v1352 = vshrl.u32 %v985, 16
      %v1354 = vrot.slane %v1352, 4
      %v1355 = vshll.u32 %v985, 16
      %v1357 = vrot.slane %v1355, 5
      %v1358 = vor.u32 %v1354, %v1357
      %v1359 = vrot.slane %v1358, 4
      %v1361 = vshll.u32 %v986, 16
      %v1363 = vrot.slane %v1361, 5
      %v1364 = vsel %vm990, %v1359, %v1363
      %v1365 = vshrl.u32 %v986, 16
      %v1367 = vrot.slane %v1365, 4
      %v1368 = vor.u32 %v1367, %v1363
      %v1369 = vrot.slane %v1368, 4
      %v1371 = vshll.u32 %v987, 16
      %v1373 = vrot.slane %v1371, 5
      %v1374 = vsel %vm990, %v1369, %v1373
      %v1375 = vunpack.c.l.b16 %v1004
      %v1376 = vunpack.c.l.b16 %v1014
      %v1377 = vunpack.c.l.b16 %v1028
      %v1378 = vunpack.c.l.b16 %v1038
      %v1379 = vunpack.c.l.b16 %v1052
      %v1380 = vunpack.c.l.b16 %v1062
      %v1381 = vunpack.c.l.b16 %v1076
      %v1382 = vunpack.c.l.b16 %v1086
      %v1383 = vunpack.c.l.b16 %v1100
      %v1384 = vunpack.c.l.b16 %v1110
      %v1385 = vunpack.c.l.b16 %v1124
      %v1386 = vunpack.c.l.b16 %v1134
      %v1387 = vunpack.c.l.b16 %v1148
      %v1388 = vunpack.c.l.b16 %v1158
      %v1389 = vunpack.c.l.b16 %v1172
      %v1390 = vunpack.c.l.b16 %v1182
      %v1391 = vunpack.c.l.b16 %v1196
      %v1392 = vunpack.c.l.b16 %v1206
      %v1393 = vunpack.c.l.b16 %v1220
      %v1394 = vunpack.c.l.b16 %v1230
      %v1395 = vunpack.c.l.b16 %v1244
      %v1396 = vunpack.c.l.b16 %v1254
      %v1397 = vunpack.c.l.b16 %v1268
      %v1398 = vunpack.c.l.b16 %v1278
      %v1399 = vunpack.c.l.b16 %v1292
      %v1400 = vunpack.c.l.b16 %v1302
      %v1401 = vunpack.c.l.b16 %v1316
      %v1402 = vunpack.c.l.b16 %v1326
      %v1403 = vunpack.c.l.b16 %v1340
      %v1404 = vunpack.c.l.b16 %v1350
      %v1405 = vunpack.c.l.b16 %v1364
      %v1406 = vunpack.c.l.b16 %v1374
      %v1407 = vpack.c.b16 %v1376, %v1375
      %v1408 = vpack.c.b16 %v1378, %v1377
      %v1409 = vpack.c.b16 %v1380, %v1379
      %v1410 = vpack.c.b16 %v1382, %v1381
      %v1411 = vpack.c.b16 %v1384, %v1383
      %v1412 = vpack.c.b16 %v1386, %v1385
      %v1413 = vpack.c.b16 %v1388, %v1387
      %v1414 = vpack.c.b16 %v1390, %v1389
      %v1415 = vpack.c.b16 %v1392, %v1391
      %v1416 = vpack.c.b16 %v1394, %v1393
      %v1417 = vpack.c.b16 %v1396, %v1395
      %v1418 = vpack.c.b16 %v1398, %v1397
      %v1419 = vpack.c.b16 %v1400, %v1399
      %v1420 = vpack.c.b16 %v1402, %v1401
      %v1421 = vpack.c.b16 %v1404, %v1403
      %v1422 = vpack.c.b16 %v1406, %v1405
      %1423 = vrot.lane.b32.xlu0 %v1407, 4
      %v1424 = vpop.permute.xlu0 %1423
      %1425 = vrot.lane.b32.xlu0 %v1408, 4
      %v1426 = vpop.permute.xlu0 %1425
      %1427 = vrot.lane.b32.xlu0 %v1409, 4
      %v1428 = vpop.permute.xlu0 %1427
      %1429 = vrot.lane.b32.xlu0 %v1410, 4
      %v1430 = vpop.permute.xlu0 %1429
      %1431 = vrot.lane.b32.xlu0 %v1411, 4
      %v1432 = vpop.permute.xlu0 %1431
      %1433 = vrot.lane.b32.xlu0 %v1412, 4
      %v1434 = vpop.permute.xlu0 %1433
      %1435 = vrot.lane.b32.xlu0 %v1413, 4
      %v1436 = vpop.permute.xlu0 %1435
      %1437 = vrot.lane.b32.xlu0 %v1414, 4
      %v1438 = vpop.permute.xlu0 %1437
      %1439 = vrot.lane.b32.xlu0 %v1415, 4
      %v1440 = vpop.permute.xlu0 %1439
      %1441 = vrot.lane.b32.xlu0 %v1416, 4
      %v1442 = vpop.permute.xlu0 %1441
      %1443 = vrot.lane.b32.xlu0 %v1417, 4
      %v1444 = vpop.permute.xlu0 %1443
      %1445 = vrot.lane.b32.xlu0 %v1418, 4
      %v1446 = vpop.permute.xlu0 %1445
      %1447 = vrot.lane.b32.xlu0 %v1419, 4
      %v1448 = vpop.permute.xlu0 %1447
      %1449 = vrot.lane.b32.xlu0 %v1420, 4
      %v1450 = vpop.permute.xlu0 %1449
      %1451 = vrot.lane.b32.xlu0 %v1421, 4
      %v1452 = vpop.permute.xlu0 %1451
      %1453 = vrot.lane.b32.xlu0 %v1422, 4
      %v1454 = vpop.permute.xlu0 %1453
      %vm1471 = vcmask 64544
      %1472 = vst.msk [vmem:[#allocation3] sm:$0xff] %vm1471, %v1424
      %1473 = vst.msk [vmem:[#allocation3 + $0x8] sm:$0xff] %vm1471, %v1426
      %1474 = vst.msk [vmem:[#allocation3 + $0x10] sm:$0xff] %vm1471, %v1428
      %1475 = vst.msk [vmem:[#allocation3 + $0x18] sm:$0xff] %vm1471, %v1430
      %1476 = vst.msk [vmem:[#allocation3 + $0x20] sm:$0xff] %vm1471, %v1432
      %1477 = vst.msk [vmem:[#allocation3 + $0x28] sm:$0xff] %vm1471, %v1434
      %1478 = vst.msk [vmem:[#allocation3 + $0x30] sm:$0xff] %vm1471, %v1436
      %1479 = vst.msk [vmem:[#allocation3 + $0x38] sm:$0xff] %vm1471, %v1438
      %1480 = vst.msk [vmem:[#allocation3 + $0x40] sm:$0xff] %vm1471, %v1440
      %1481 = vst.msk [vmem:[#allocation3 + $0x48] sm:$0xff] %vm1471, %v1442
      %1482 = vst.msk [vmem:[#allocation3 + $0x50] sm:$0xff] %vm1471, %v1444
      %1483 = vst.msk [vmem:[#allocation3 + $0x58] sm:$0xff] %vm1471, %v1446
      %1484 = vst.msk [vmem:[#allocation3 + $0x60] sm:$0xff] %vm1471, %v1448
      %1485 = vst.msk [vmem:[#allocation3 + $0x68] sm:$0xff] %vm1471, %v1450
      %1486 = vst.msk [vmem:[#allocation3 + $0x70] sm:$0xff] %vm1471, %v1452
      %1487 = vst.msk [vmem:[#allocation3 + $0x78] sm:$0xff] %vm1471, %v1454
      %v1488 = vld [vmem:[#allocation2] sm:$0xe]
      %v1489 = vld [vmem:[#allocation2 + $0x4] sm:$0xf]
      %v1490 = vld [vmem:[#allocation2 + $0x8] sm:$0x1]
      %v1491 = vld [vmem:[#allocation2 + $0xc] sm:$0xe]
      %v1492 = vld [vmem:[#allocation2 + $0x10] sm:$0xf]
      %v1493 = vld [vmem:[#allocation2 + $0x14] sm:$0x1]
      %v1494 = vld [vmem:[#allocation2 + $0x18] sm:$0xe]
      %v1495 = vld [vmem:[#allocation2 + $0x1c] sm:$0xf]
      %v1496 = vld [vmem:[#allocation2 + $0x20] sm:$0x1]
      %v1497 = vld [vmem:[#allocation2 + $0x24] sm:$0xe]
      %v1498 = vld [vmem:[#allocation2 + $0x28] sm:$0xf]
      %v1499 = vld [vmem:[#allocation2 + $0x2c] sm:$0x1]
      %v1500 = vld [vmem:[#allocation2 + $0x30] sm:$0xe]
      %v1501 = vld [vmem:[#allocation2 + $0x34] sm:$0xf]
      %v1502 = vld [vmem:[#allocation2 + $0x38] sm:$0x1]
      %v1503 = vld [vmem:[#allocation2 + $0x3c] sm:$0xe]
      %v1504 = vld [vmem:[#allocation2 + $0x40] sm:$0xf]
      %v1505 = vld [vmem:[#allocation2 + $0x44] sm:$0x1]
      %v1506 = vld [vmem:[#allocation2 + $0x48] sm:$0xe]
      %v1507 = vld [vmem:[#allocation2 + $0x4c] sm:$0xf]
      %v1508 = vld [vmem:[#allocation2 + $0x50] sm:$0x1]
      %v1509 = vld [vmem:[#allocation2 + $0x54] sm:$0xe]
      %v1510 = vld [vmem:[#allocation2 + $0x58] sm:$0xf]
      %v1511 = vld [vmem:[#allocation2 + $0x5c] sm:$0x1]
      %v1512 = vld [vmem:[#allocation2 + $0x60] sm:$0xe]
      %v1513 = vld [vmem:[#allocation2 + $0x64] sm:$0xf]
      %v1514 = vld [vmem:[#allocation2 + $0x68] sm:$0x1]
      %v1515 = vld [vmem:[#allocation2 + $0x6c] sm:$0xe]
      %v1516 = vld [vmem:[#allocation2 + $0x70] sm:$0xf]
      %v1517 = vld [vmem:[#allocation2 + $0x74] sm:$0x1]
      %v1518 = vld [vmem:[#allocation2 + $0x78] sm:$0xe]
      %v1519 = vld [vmem:[#allocation2 + $0x7c] sm:$0xf]
      %v1520 = vld [vmem:[#allocation2 + $0x80] sm:$0x1]
      %v1521 = vld [vmem:[#allocation2 + $0x84] sm:$0xe]
      %v1522 = vld [vmem:[#allocation2 + $0x88] sm:$0xf]
      %v1523 = vld [vmem:[#allocation2 + $0x8c] sm:$0x1]
      %v1524 = vld [vmem:[#allocation2 + $0x90] sm:$0xe]
      %v1525 = vld [vmem:[#allocation2 + $0x94] sm:$0xf]
      %v1526 = vld [vmem:[#allocation2 + $0x98] sm:$0x1]
      %v1527 = vld [vmem:[#allocation2 + $0x9c] sm:$0xe]
      %v1528 = vld [vmem:[#allocation2 + $0xa0] sm:$0xf]
      %v1529 = vld [vmem:[#allocation2 + $0xa4] sm:$0x1]
      %v1530 = vld [vmem:[#allocation2 + $0xa8] sm:$0xe]
      %v1531 = vld [vmem:[#allocation2 + $0xac] sm:$0xf]
      %v1532 = vld [vmem:[#allocation2 + $0xb0] sm:$0x1]
      %v1533 = vld [vmem:[#allocation2 + $0xb4] sm:$0xe]
      %v1534 = vld [vmem:[#allocation2 + $0xb8] sm:$0xf]
      %v1535 = vld [vmem:[#allocation2 + $0xbc] sm:$0x1]
      %vm1584 = vcmask 1042432
      %vm1585 = vcmask 1046532
      %vm1586 = vmor %vm1584, %vm1585
      %v1587 = vrot.slane %v1488, 5
      %v1588 = vrot.slane %v1587, 4
      %v1589 = vrot.slane %v1489, 5
      %v1590 = vsel %vm1586, %v1588, %v1589
      %v1591 = vrot.slane %v1589, 4
      %v1592 = vrot.slane %v1490, 5
      %v1593 = vsel %vm1586, %v1591, %v1592
      %v1594 = vrot.slane %v1491, 5
      %v1595 = vrot.slane %v1594, 4
      %v1596 = vrot.slane %v1492, 5
      %v1597 = vsel %vm1586, %v1595, %v1596
      %v1598 = vrot.slane %v1596, 4
      %v1599 = vrot.slane %v1493, 5
      %v1600 = vsel %vm1586, %v1598, %v1599
      %v1601 = vrot.slane %v1494, 5
      %v1602 = vrot.slane %v1601, 4
      %v1603 = vrot.slane %v1495, 5
      %v1604 = vsel %vm1586, %v1602, %v1603
      %v1605 = vrot.slane %v1603, 4
      %v1606 = vrot.slane %v1496, 5
      %v1607 = vsel %vm1586, %v1605, %v1606
      %v1608 = vrot.slane %v1497, 5
      %v1609 = vrot.slane %v1608, 4
      %v1610 = vrot.slane %v1498, 5
      %v1611 = vsel %vm1586, %v1609, %v1610
      %v1612 = vrot.slane %v1610, 4
      %v1613 = vrot.slane %v1499, 5
      %v1614 = vsel %vm1586, %v1612, %v1613
      %v1615 = vrot.slane %v1500, 5
      %v1616 = vrot.slane %v1615, 4
      %v1617 = vrot.slane %v1501, 5
      %v1618 = vsel %vm1586, %v1616, %v1617
      %v1619 = vrot.slane %v1617, 4
      %v1620 = vrot.slane %v1502, 5
      %v1621 = vsel %vm1586, %v1619, %v1620
      %v1622 = vrot.slane %v1503, 5
      %v1623 = vrot.slane %v1622, 4
      %v1624 = vrot.slane %v1504, 5
      %v1625 = vsel %vm1586, %v1623, %v1624
      %v1626 = vrot.slane %v1624, 4
      %v1627 = vrot.slane %v1505, 5
      %v1628 = vsel %vm1586, %v1626, %v1627
      %v1629 = vrot.slane %v1506, 5
      %v1630 = vrot.slane %v1629, 4
      %v1631 = vrot.slane %v1507, 5
      %v1632 = vsel %vm1586, %v1630, %v1631
      %v1633 = vrot.slane %v1631, 4
      %v1634 = vrot.slane %v1508, 5
      %v1635 = vsel %vm1586, %v1633, %v1634
      %v1636 = vrot.slane %v1509, 5
      %v1637 = vrot.slane %v1636, 4
      %v1638 = vrot.slane %v1510, 5
      %v1639 = vsel %vm1586, %v1637, %v1638
      %v1640 = vrot.slane %v1638, 4
      %v1641 = vrot.slane %v1511, 5
      %v1642 = vsel %vm1586, %v1640, %v1641
      %v1643 = vrot.slane %v1512, 5
      %v1644 = vrot.slane %v1643, 4
      %v1645 = vrot.slane %v1513, 5
      %v1646 = vsel %vm1586, %v1644, %v1645
      %v1647 = vrot.slane %v1645, 4
      %v1648 = vrot.slane %v1514, 5
      %v1649 = vsel %vm1586, %v1647, %v1648
      %v1650 = vrot.slane %v1515, 5
      %v1651 = vrot.slane %v1650, 4
      %v1652 = vrot.slane %v1516, 5
      %v1653 = vsel %vm1586, %v1651, %v1652
      %v1654 = vrot.slane %v1652, 4
      %v1655 = vrot.slane %v1517, 5
      %v1656 = vsel %vm1586, %v1654, %v1655
      %v1657 = vrot.slane %v1518, 5
      %v1658 = vrot.slane %v1657, 4
      %v1659 = vrot.slane %v1519, 5
      %v1660 = vsel %vm1586, %v1658, %v1659
      %v1661 = vrot.slane %v1659, 4
      %v1662 = vrot.slane %v1520, 5
      %v1663 = vsel %vm1586, %v1661, %v1662
      %v1664 = vrot.slane %v1521, 5
      %v1665 = vrot.slane %v1664, 4
      %v1666 = vrot.slane %v1522, 5
      %v1667 = vsel %vm1586, %v1665, %v1666
      %v1668 = vrot.slane %v1666, 4
      %v1669 = vrot.slane %v1523, 5
      %v1670 = vsel %vm1586, %v1668, %v1669
      %v1671 = vrot.slane %v1524, 5
      %v1672 = vrot.slane %v1671, 4
      %v1673 = vrot.slane %v1525, 5
      %v1674 = vsel %vm1586, %v1672, %v1673
      %v1675 = vrot.slane %v1673, 4
      %v1676 = vrot.slane %v1526, 5
      %v1677 = vsel %vm1586, %v1675, %v1676
      %v1678 = vrot.slane %v1527, 5
      %v1679 = vrot.slane %v1678, 4
      %v1680 = vrot.slane %v1528, 5
      %v1681 = vsel %vm1586, %v1679, %v1680
      %v1682 = vrot.slane %v1680, 4
      %v1683 = vrot.slane %v1529, 5
      %v1684 = vsel %vm1586, %v1682, %v1683
      %v1685 = vrot.slane %v1530, 5
      %v1686 = vrot.slane %v1685, 4
      %v1687 = vrot.slane %v1531, 5
      %v1688 = vsel %vm1586, %v1686, %v1687
      %v1689 = vrot.slane %v1687, 4
      %v1690 = vrot.slane %v1532, 5
      %v1691 = vsel %vm1586, %v1689, %v1690
      %v1692 = vrot.slane %v1533, 5
      %v1693 = vrot.slane %v1692, 4
      %v1694 = vrot.slane %v1534, 5
      %v1695 = vsel %vm1586, %v1693, %v1694
      %v1696 = vrot.slane %v1694, 4
      %v1697 = vrot.slane %v1535, 5
      %v1698 = vsel %vm1586, %v1696, %v1697
      %v1699 = vunpack.c.l.b16 %v1590
      %v1700 = vunpack.c.l.b16 %v1593
      %v1701 = vunpack.c.l.b16 %v1597
      %v1702 = vunpack.c.l.b16 %v1600
      %v1703 = vunpack.c.l.b16 %v1604
      %v1704 = vunpack.c.l.b16 %v1607
      %v1705 = vunpack.c.l.b16 %v1611
      %v1706 = vunpack.c.l.b16 %v1614
      %v1707 = vunpack.c.l.b16 %v1618
      %v1708 = vunpack.c.l.b16 %v1621
      %v1709 = vunpack.c.l.b16 %v1625
      %v1710 = vunpack.c.l.b16 %v1628
      %v1711 = vunpack.c.l.b16 %v1632
      %v1712 = vunpack.c.l.b16 %v1635
      %v1713 = vunpack.c.l.b16 %v1639
      %v1714 = vunpack.c.l.b16 %v1642
      %v1715 = vunpack.c.l.b16 %v1646
      %v1716 = vunpack.c.l.b16 %v1649
      %v1717 = vunpack.c.l.b16 %v1653
      %v1718 = vunpack.c.l.b16 %v1656
      %v1719 = vunpack.c.l.b16 %v1660
      %v1720 = vunpack.c.l.b16 %v1663
      %v1721 = vunpack.c.l.b16 %v1667
      %v1722 = vunpack.c.l.b16 %v1670
      %v1723 = vunpack.c.l.b16 %v1674
      %v1724 = vunpack.c.l.b16 %v1677
      %v1725 = vunpack.c.l.b16 %v1681
      %v1726 = vunpack.c.l.b16 %v1684
      %v1727 = vunpack.c.l.b16 %v1688
      %v1728 = vunpack.c.l.b16 %v1691
      %v1729 = vunpack.c.l.b16 %v1695
      %v1730 = vunpack.c.l.b16 %v1698
      %v1731 = vpack.c.b16 %v1700, %v1699
      %v1732 = vpack.c.b16 %v1702, %v1701
      %v1733 = vpack.c.b16 %v1704, %v1703
      %v1734 = vpack.c.b16 %v1706, %v1705
      %v1735 = vpack.c.b16 %v1708, %v1707
      %v1736 = vpack.c.b16 %v1710, %v1709
      %v1737 = vpack.c.b16 %v1712, %v1711
      %v1738 = vpack.c.b16 %v1714, %v1713
      %v1739 = vpack.c.b16 %v1716, %v1715
      %v1740 = vpack.c.b16 %v1718, %v1717
      %v1741 = vpack.c.b16 %v1720, %v1719
      %v1742 = vpack.c.b16 %v1722, %v1721
      %v1743 = vpack.c.b16 %v1724, %v1723
      %v1744 = vpack.c.b16 %v1726, %v1725
      %v1745 = vpack.c.b16 %v1728, %v1727
      %v1746 = vpack.c.b16 %v1730, %v1729
      %1747 = vrot.lane.b32.xlu0 %v1731, 8
      %v1748 = vpop.permute.xlu0 %1747
      %1749 = vrot.lane.b32.xlu0 %v1732, 8
      %v1750 = vpop.permute.xlu0 %1749
      %1751 = vrot.lane.b32.xlu0 %v1733, 8
      %v1752 = vpop.permute.xlu0 %1751
      %1753 = vrot.lane.b32.xlu0 %v1734, 8
      %v1754 = vpop.permute.xlu0 %1753
      %1755 = vrot.lane.b32.xlu0 %v1735, 8
      %v1756 = vpop.permute.xlu0 %1755
      %1757 = vrot.lane.b32.xlu0 %v1736, 8
      %v1758 = vpop.permute.xlu0 %1757
      %1759 = vrot.lane.b32.xlu0 %v1737, 8
      %v1760 = vpop.permute.xlu0 %1759
      %1761 = vrot.lane.b32.xlu0 %v1738, 8
      %v1762 = vpop.permute.xlu0 %1761
      %1763 = vrot.lane.b32.xlu0 %v1739, 8
      %v1764 = vpop.permute.xlu0 %1763
      %1765 = vrot.lane.b32.xlu0 %v1740, 8
      %v1766 = vpop.permute.xlu0 %1765
      %1767 = vrot.lane.b32.xlu0 %v1741, 8
      %v1768 = vpop.permute.xlu0 %1767
      %1769 = vrot.lane.b32.xlu0 %v1742, 8
      %v1770 = vpop.permute.xlu0 %1769
      %1771 = vrot.lane.b32.xlu0 %v1743, 8
      %v1772 = vpop.permute.xlu0 %1771
      %1773 = vrot.lane.b32.xlu0 %v1744, 8
      %v1774 = vpop.permute.xlu0 %1773
      %1775 = vrot.lane.b32.xlu0 %v1745, 8
      %v1776 = vpop.permute.xlu0 %1775
      %1777 = vrot.lane.b32.xlu0 %v1746, 8
      %v1778 = vpop.permute.xlu0 %1777
      %vm1795 = vcmask 97344
      %1796 = vst.msk [vmem:[#allocation3] sm:$0xff] %vm1795, %v1748
      %1797 = vst.msk [vmem:[#allocation3 + $0x8] sm:$0xff] %vm1795, %v1750
      %1798 = vst.msk [vmem:[#allocation3 + $0x10] sm:$0xff] %vm1795, %v1752
      %1799 = vst.msk [vmem:[#allocation3 + $0x18] sm:$0xff] %vm1795, %v1754
      %1800 = vst.msk [vmem:[#allocation3 + $0x20] sm:$0xff] %vm1795, %v1756
      %1801 = vst.msk [vmem:[#allocation3 + $0x28] sm:$0xff] %vm1795, %v1758
      %1802 = vst.msk [vmem:[#allocation3 + $0x30] sm:$0xff] %vm1795, %v1760
      %1803 = vst.msk [vmem:[#allocation3 + $0x38] sm:$0xff] %vm1795, %v1762
      %1804 = vst.msk [vmem:[#allocation3 + $0x40] sm:$0xff] %vm1795, %v1764
      %1805 = vst.msk [vmem:[#allocation3 + $0x48] sm:$0xff] %vm1795, %v1766
      %1806 = vst.msk [vmem:[#allocation3 + $0x50] sm:$0xff] %vm1795, %v1768
      %1807 = vst.msk [vmem:[#allocation3 + $0x58] sm:$0xff] %vm1795, %v1770
      %1808 = vst.msk [vmem:[#allocation3 + $0x60] sm:$0xff] %vm1795, %v1772
      %1809 = vst.msk [vmem:[#allocation3 + $0x68] sm:$0xff] %vm1795, %v1774
      %1810 = vst.msk [vmem:[#allocation3 + $0x70] sm:$0xff] %vm1795, %v1776
      %1811 = vst.msk [vmem:[#allocation3 + $0x78] sm:$0xff] %vm1795, %v1778
      %v1812 = vld [vmem:[%s257] sm:$0xf]
      %v1813 = vld [vmem:[%s257 + $0x4] sm:$0xf]
      %v1814 = vld [vmem:[%s257 + $0xc] sm:$0xf]
      %v1815 = vld [vmem:[%s257 + $0x10] sm:$0xf]
      %v1816 = vld [vmem:[%s257 + $0x18] sm:$0xf]
      %v1817 = vld [vmem:[%s257 + $0x1c] sm:$0xf]
      %v1818 = vld [vmem:[%s257 + $0x24] sm:$0xf]
      %v1819 = vld [vmem:[%s257 + $0x28] sm:$0xf]
      %v1820 = vld [vmem:[%s257 + $0x30] sm:$0xf]
      %v1821 = vld [vmem:[%s257 + $0x34] sm:$0xf]
      %v1822 = vld [vmem:[%s257 + $0x3c] sm:$0xf]
      %v1823 = vld [vmem:[%s257 + $0x40] sm:$0xf]
      %v1824 = vld [vmem:[%s257 + $0x48] sm:$0xf]
      %v1825 = vld [vmem:[%s257 + $0x4c] sm:$0xf]
      %v1826 = vld [vmem:[%s257 + $0x54] sm:$0xf]
      %v1827 = vld [vmem:[%s257 + $0x58] sm:$0xf]
      %v1828 = vld [vmem:[%s257 + $0x60] sm:$0xf]
      %v1829 = vld [vmem:[%s257 + $0x64] sm:$0xf]
      %v1830 = vld [vmem:[%s257 + $0x6c] sm:$0xf]
      %v1831 = vld [vmem:[%s257 + $0x70] sm:$0xf]
      %v1832 = vld [vmem:[%s257 + $0x78] sm:$0xf]
      %v1833 = vld [vmem:[%s257 + $0x7c] sm:$0xf]
      %v1834 = vld [vmem:[%s257 + $0x84] sm:$0xf]
      %v1835 = vld [vmem:[%s257 + $0x88] sm:$0xf]
      %v1836 = vld [vmem:[%s257 + $0x90] sm:$0xf]
      %v1837 = vld [vmem:[%s257 + $0x94] sm:$0xf]
      %v1838 = vld [vmem:[%s257 + $0x9c] sm:$0xf]
      %v1839 = vld [vmem:[%s257 + $0xa0] sm:$0xf]
      %v1840 = vld [vmem:[%s257 + $0xa8] sm:$0xf]
      %v1841 = vld [vmem:[%s257 + $0xac] sm:$0xf]
      %v1842 = vld [vmem:[%s257 + $0xb4] sm:$0xf]
      %v1843 = vld [vmem:[%s257 + $0xb8] sm:$0xf]
      %v1876 = vunpack.c.l.b16 %v1812
      %v1877 = vunpack.c.l.b16 %v1813
      %v1878 = vunpack.c.l.b16 %v1814
      %v1879 = vunpack.c.l.b16 %v1815
      %v1880 = vunpack.c.l.b16 %v1816
      %v1881 = vunpack.c.l.b16 %v1817
      %v1882 = vunpack.c.l.b16 %v1818
      %v1883 = vunpack.c.l.b16 %v1819
      %v1884 = vunpack.c.l.b16 %v1820
      %v1885 = vunpack.c.l.b16 %v1821
      %v1886 = vunpack.c.l.b16 %v1822
      %v1887 = vunpack.c.l.b16 %v1823
      %v1888 = vunpack.c.l.b16 %v1824
      %v1889 = vunpack.c.l.b16 %v1825
      %v1890 = vunpack.c.l.b16 %v1826
      %v1891 = vunpack.c.l.b16 %v1827
      %v1892 = vunpack.c.l.b16 %v1828
      %v1893 = vunpack.c.l.b16 %v1829
      %v1894 = vunpack.c.l.b16 %v1830
      %v1895 = vunpack.c.l.b16 %v1831
      %v1896 = vunpack.c.l.b16 %v1832
      %v1897 = vunpack.c.l.b16 %v1833
      %v1898 = vunpack.c.l.b16 %v1834
      %v1899 = vunpack.c.l.b16 %v1835
      %v1900 = vunpack.c.l.b16 %v1836
      %v1901 = vunpack.c.l.b16 %v1837
      %v1902 = vunpack.c.l.b16 %v1838
      %v1903 = vunpack.c.l.b16 %v1839
      %v1904 = vunpack.c.l.b16 %v1840
      %v1905 = vunpack.c.l.b16 %v1841
      %v1906 = vunpack.c.l.b16 %v1842
      %v1907 = vunpack.c.l.b16 %v1843
      %v1908 = vpack.c.b16 %v1877, %v1876
      %v1909 = vpack.c.b16 %v1879, %v1878
      %v1910 = vpack.c.b16 %v1881, %v1880
      %v1911 = vpack.c.b16 %v1883, %v1882
      %v1912 = vpack.c.b16 %v1885, %v1884
      %v1913 = vpack.c.b16 %v1887, %v1886
      %v1914 = vpack.c.b16 %v1889, %v1888
      %v1915 = vpack.c.b16 %v1891, %v1890
      %v1916 = vpack.c.b16 %v1893, %v1892
      %v1917 = vpack.c.b16 %v1895, %v1894
      %v1918 = vpack.c.b16 %v1897, %v1896
      %v1919 = vpack.c.b16 %v1899, %v1898
      %v1920 = vpack.c.b16 %v1901, %v1900
      %v1921 = vpack.c.b16 %v1903, %v1902
      %v1922 = vpack.c.b16 %v1905, %v1904
      %v1923 = vpack.c.b16 %v1907, %v1906
      %1924 = vrot.lane.b32.xlu0 %v1908, 12
      %v1925 = vpop.permute.xlu0 %1924
      %1926 = vrot.lane.b32.xlu0 %v1909, 12
      %v1927 = vpop.permute.xlu0 %1926
      %1928 = vrot.lane.b32.xlu0 %v1910, 12
      %v1929 = vpop.permute.xlu0 %1928
      %1930 = vrot.lane.b32.xlu0 %v1911, 12
      %v1931 = vpop.permute.xlu0 %1930
      %1932 = vrot.lane.b32.xlu0 %v1912, 12
      %v1933 = vpop.permute.xlu0 %1932
      %1934 = vrot.lane.b32.xlu0 %v1913, 12
      %v1935 = vpop.permute.xlu0 %1934
      %1936 = vrot.lane.b32.xlu0 %v1914, 12
      %v1937 = vpop.permute.xlu0 %1936
      %1938 = vrot.lane.b32.xlu0 %v1915, 12
      %v1939 = vpop.permute.xlu0 %1938
      %1940 = vrot.lane.b32.xlu0 %v1916, 12
      %v1941 = vpop.permute.xlu0 %1940
      %1942 = vrot.lane.b32.xlu0 %v1917, 12
      %v1943 = vpop.permute.xlu0 %1942
      %1944 = vrot.lane.b32.xlu0 %v1918, 12
      %v1945 = vpop.permute.xlu0 %1944
      %1946 = vrot.lane.b32.xlu0 %v1919, 12
      %v1947 = vpop.permute.xlu0 %1946
      %1948 = vrot.lane.b32.xlu0 %v1920, 12
      %v1949 = vpop.permute.xlu0 %1948
      %1950 = vrot.lane.b32.xlu0 %v1921, 12
      %v1951 = vpop.permute.xlu0 %1950
      %1952 = vrot.lane.b32.xlu0 %v1922, 12
      %v1953 = vpop.permute.xlu0 %1952
      %1954 = vrot.lane.b32.xlu0 %v1923, 12
      %v1955 = vpop.permute.xlu0 %1954
      %vm1972 = vcmask 130144
      %1973 = vst.msk [vmem:[#allocation3] sm:$0xff] %vm1972, %v1925
      %1974 = vst.msk [vmem:[#allocation3 + $0x8] sm:$0xff] %vm1972, %v1927
      %1975 = vst.msk [vmem:[#allocation3 + $0x10] sm:$0xff] %vm1972, %v1929
      %1976 = vst.msk [vmem:[#allocation3 + $0x18] sm:$0xff] %vm1972, %v1931
      %1977 = vst.msk [vmem:[#allocation3 + $0x20] sm:$0xff] %vm1972, %v1933
      %1978 = vst.msk [vmem:[#allocation3 + $0x28] sm:$0xff] %vm1972, %v1935
      %1979 = vst.msk [vmem:[#allocation3 + $0x30] sm:$0xff] %vm1972, %v1937
      %1980 = vst.msk [vmem:[#allocation3 + $0x38] sm:$0xff] %vm1972, %v1939
      %1981 = vst.msk [vmem:[#allocation3 + $0x40] sm:$0xff] %vm1972, %v1941
      %1982 = vst.msk [vmem:[#allocation3 + $0x48] sm:$0xff] %vm1972, %v1943
      %1983 = vst.msk [vmem:[#allocation3 + $0x50] sm:$0xff] %vm1972, %v1945
      %1984 = vst.msk [vmem:[#allocation3 + $0x58] sm:$0xff] %vm1972, %v1947
      %1985 = vst.msk [vmem:[#allocation3 + $0x60] sm:$0xff] %vm1972, %v1949
      %1986 = vst.msk [vmem:[#allocation3 + $0x68] sm:$0xff] %vm1972, %v1951
      %1987 = vst.msk [vmem:[#allocation3 + $0x70] sm:$0xff] %vm1972, %v1953
      %1988 = vst.msk [vmem:[#allocation3 + $0x78] sm:$0xff] %vm1972, %v1955
      %v1989 = vld [vmem:[%s257] sm:$0xf]
      %v1990 = vld [vmem:[%s257 + $0x4] sm:$0xf]
      %v1991 = vld [vmem:[%s257 + $0x8] sm:$0x1]
      %v1992 = vld [vmem:[%s257 + $0xc] sm:$0xf]
      %v1993 = vld [vmem:[%s257 + $0x10] sm:$0xf]
      %v1994 = vld [vmem:[%s257 + $0x14] sm:$0x1]
      %v1995 = vld [vmem:[%s257 + $0x18] sm:$0xf]
      %v1996 = vld [vmem:[%s257 + $0x1c] sm:$0xf]
      %v1997 = vld [vmem:[%s257 + $0x20] sm:$0x1]
      %v1998 = vld [vmem:[%s257 + $0x24] sm:$0xf]
      %v1999 = vld [vmem:[%s257 + $0x28] sm:$0xf]
      %v2000 = vld [vmem:[%s257 + $0x2c] sm:$0x1]
      %v2001 = vld [vmem:[%s257 + $0x30] sm:$0xf]
      %v2002 = vld [vmem:[%s257 + $0x34] sm:$0xf]
      %v2003 = vld [vmem:[%s257 + $0x38] sm:$0x1]
      %v2004 = vld [vmem:[%s257 + $0x3c] sm:$0xf]
      %v2005 = vld [vmem:[%s257 + $0x40] sm:$0xf]
      %v2006 = vld [vmem:[%s257 + $0x44] sm:$0x1]
      %v2007 = vld [vmem:[%s257 + $0x48] sm:$0xf]
      %v2008 = vld [vmem:[%s257 + $0x4c] sm:$0xf]
      %v2009 = vld [vmem:[%s257 + $0x50] sm:$0x1]
      %v2010 = vld [vmem:[%s257 + $0x54] sm:$0xf]
      %v2011 = vld [vmem:[%s257 + $0x58] sm:$0xf]
      %v2012 = vld [vmem:[%s257 + $0x5c] sm:$0x1]
      %v2013 = vld [vmem:[%s257 + $0x60] sm:$0xf]
      %v2014 = vld [vmem:[%s257 + $0x64] sm:$0xf]
      %v2015 = vld [vmem:[%s257 + $0x68] sm:$0x1]
      %v2016 = vld [vmem:[%s257 + $0x6c] sm:$0xf]
      %v2017 = vld [vmem:[%s257 + $0x70] sm:$0xf]
      %v2018 = vld [vmem:[%s257 + $0x74] sm:$0x1]
      %v2019 = vld [vmem:[%s257 + $0x78] sm:$0xf]
      %v2020 = vld [vmem:[%s257 + $0x7c] sm:$0xf]
      %v2021 = vld [vmem:[%s257 + $0x80] sm:$0x1]
      %v2022 = vld [vmem:[%s257 + $0x84] sm:$0xf]
      %v2023 = vld [vmem:[%s257 + $0x88] sm:$0xf]
      %v2024 = vld [vmem:[%s257 + $0x8c] sm:$0x1]
      %v2025 = vld [vmem:[%s257 + $0x90] sm:$0xf]
      %v2026 = vld [vmem:[%s257 + $0x94] sm:$0xf]
      %v2027 = vld [vmem:[%s257 + $0x98] sm:$0x1]
      %v2028 = vld [vmem:[%s257 + $0x9c] sm:$0xf]
      %v2029 = vld [vmem:[%s257 + $0xa0] sm:$0xf]
      %v2030 = vld [vmem:[%s257 + $0xa4] sm:$0x1]
      %v2031 = vld [vmem:[%s257 + $0xa8] sm:$0xf]
      %v2032 = vld [vmem:[%s257 + $0xac] sm:$0xf]
      %v2033 = vld [vmem:[%s257 + $0xb0] sm:$0x1]
      %v2034 = vld [vmem:[%s257 + $0xb4] sm:$0xf]
      %v2035 = vld [vmem:[%s257 + $0xb8] sm:$0xf]
      %v2036 = vld [vmem:[%s257 + $0xbc] sm:$0x1]
      %v2038 = vshrl.u32 %v1989, 16
      %v2040 = vrot.slane %v2038, 4
      %v2041 = vshll.u32 %v1989, 16
      %v2043 = vrot.slane %v2041, 5
      %v2044 = vor.u32 %v2040, %v2043
      %v2045 = vrot.slane %v2044, 4
      %v2047 = vshll.u32 %v1990, 16
      %v2049 = vrot.slane %v2047, 5
      %v2050 = vsel %vm990, %v2045, %v2049
      %v2051 = vshrl.u32 %v1990, 16
      %v2053 = vrot.slane %v2051, 4
      %v2054 = vor.u32 %v2053, %v2049
      %v2055 = vrot.slane %v2054, 4
      %v2057 = vshll.u32 %v1991, 16
      %v2059 = vrot.slane %v2057, 5
      %v2060 = vsel %vm990, %v2055, %v2059
      %v2062 = vshrl.u32 %v1992, 16
      %v2064 = vrot.slane %v2062, 4
      %v2065 = vshll.u32 %v1992, 16
      %v2067 = vrot.slane %v2065, 5
      %v2068 = vor.u32 %v2064, %v2067
      %v2069 = vrot.slane %v2068, 4
      %v2071 = vshll.u32 %v1993, 16
      %v2073 = vrot.slane %v2071, 5
      %v2074 = vsel %vm990, %v2069, %v2073
      %v2075 = vshrl.u32 %v1993, 16
      %v2077 = vrot.slane %v2075, 4
      %v2078 = vor.u32 %v2077, %v2073
      %v2079 = vrot.slane %v2078, 4
      %v2081 = vshll.u32 %v1994, 16
      %v2083 = vrot.slane %v2081, 5
      %v2084 = vsel %vm990, %v2079, %v2083
      %v2086 = vshrl.u32 %v1995, 16
      %v2088 = vrot.slane %v2086, 4
      %v2089 = vshll.u32 %v1995, 16
      %v2091 = vrot.slane %v2089, 5
      %v2092 = vor.u32 %v2088, %v2091
      %v2093 = vrot.slane %v2092, 4
      %v2095 = vshll.u32 %v1996, 16
      %v2097 = vrot.slane %v2095, 5
      %v2098 = vsel %vm990, %v2093, %v2097
      %v2099 = vshrl.u32 %v1996, 16
      %v2101 = vrot.slane %v2099, 4
      %v2102 = vor.u32 %v2101, %v2097
      %v2103 = vrot.slane %v2102, 4
      %v2105 = vshll.u32 %v1997, 16
      %v2107 = vrot.slane %v2105, 5
      %v2108 = vsel %vm990, %v2103, %v2107
      %v2110 = vshrl.u32 %v1998, 16
      %v2112 = vrot.slane %v2110, 4
      %v2113 = vshll.u32 %v1998, 16
      %v2115 = vrot.slane %v2113, 5
      %v2116 = vor.u32 %v2112, %v2115
      %v2117 = vrot.slane %v2116, 4
      %v2119 = vshll.u32 %v1999, 16
      %v2121 = vrot.slane %v2119, 5
      %v2122 = vsel %vm990, %v2117, %v2121
      %v2123 = vshrl.u32 %v1999, 16
      %v2125 = vrot.slane %v2123, 4
      %v2126 = vor.u32 %v2125, %v2121
      %v2127 = vrot.slane %v2126, 4
      %v2129 = vshll.u32 %v2000, 16
      %v2131 = vrot.slane %v2129, 5
      %v2132 = vsel %vm990, %v2127, %v2131
      %v2134 = vshrl.u32 %v2001, 16
      %v2136 = vrot.slane %v2134, 4
      %v2137 = vshll.u32 %v2001, 16
      %v2139 = vrot.slane %v2137, 5
      %v2140 = vor.u32 %v2136, %v2139
      %v2141 = vrot.slane %v2140, 4
      %v2143 = vshll.u32 %v2002, 16
      %v2145 = vrot.slane %v2143, 5
      %v2146 = vsel %vm990, %v2141, %v2145
      %v2147 = vshrl.u32 %v2002, 16
      %v2149 = vrot.slane %v2147, 4
      %v2150 = vor.u32 %v2149, %v2145
      %v2151 = vrot.slane %v2150, 4
      %v2153 = vshll.u32 %v2003, 16
      %v2155 = vrot.slane %v2153, 5
      %v2156 = vsel %vm990, %v2151, %v2155
      %v2158 = vshrl.u32 %v2004, 16
      %v2160 = vrot.slane %v2158, 4
      %v2161 = vshll.u32 %v2004, 16
      %v2163 = vrot.slane %v2161, 5
      %v2164 = vor.u32 %v2160, %v2163
      %v2165 = vrot.slane %v2164, 4
      %v2167 = vshll.u32 %v2005, 16
      %v2169 = vrot.slane %v2167, 5
      %v2170 = vsel %vm990, %v2165, %v2169
      %v2171 = vshrl.u32 %v2005, 16
      %v2173 = vrot.slane %v2171, 4
      %v2174 = vor.u32 %v2173, %v2169
      %v2175 = vrot.slane %v2174, 4
      %v2177 = vshll.u32 %v2006, 16
      %v2179 = vrot.slane %v2177, 5
      %v2180 = vsel %vm990, %v2175, %v2179
      %v2182 = vshrl.u32 %v2007, 16
      %v2184 = vrot.slane %v2182, 4
      %v2185 = vshll.u32 %v2007, 16
      %v2187 = vrot.slane %v2185, 5
      %v2188 = vor.u32 %v2184, %v2187
      %v2189 = vrot.slane %v2188, 4
      %v2191 = vshll.u32 %v2008, 16
      %v2193 = vrot.slane %v2191, 5
      %v2194 = vsel %vm990, %v2189, %v2193
      %v2195 = vshrl.u32 %v2008, 16
      %v2197 = vrot.slane %v2195, 4
      %v2198 = vor.u32 %v2197, %v2193
      %v2199 = vrot.slane %v2198, 4
      %v2201 = vshll.u32 %v2009, 16
      %v2203 = vrot.slane %v2201, 5
      %v2204 = vsel %vm990, %v2199, %v2203
      %v2206 = vshrl.u32 %v2010, 16
      %v2208 = vrot.slane %v2206, 4
      %v2209 = vshll.u32 %v2010, 16
      %v2211 = vrot.slane %v2209, 5
      %v2212 = vor.u32 %v2208, %v2211
      %v2213 = vrot.slane %v2212, 4
      %v2215 = vshll.u32 %v2011, 16
      %v2217 = vrot.slane %v2215, 5
      %v2218 = vsel %vm990, %v2213, %v2217
      %v2219 = vshrl.u32 %v2011, 16
      %v2221 = vrot.slane %v2219, 4
      %v2222 = vor.u32 %v2221, %v2217
      %v2223 = vrot.slane %v2222, 4
      %v2225 = vshll.u32 %v2012, 16
      %v2227 = vrot.slane %v2225, 5
      %v2228 = vsel %vm990, %v2223, %v2227
      %v2230 = vshrl.u32 %v2013, 16
      %v2232 = vrot.slane %v2230, 4
      %v2233 = vshll.u32 %v2013, 16
      %v2235 = vrot.slane %v2233, 5
      %v2236 = vor.u32 %v2232, %v2235
      %v2237 = vrot.slane %v2236, 4
      %v2239 = vshll.u32 %v2014, 16
      %v2241 = vrot.slane %v2239, 5
      %v2242 = vsel %vm990, %v2237, %v2241
      %v2243 = vshrl.u32 %v2014, 16
      %v2245 = vrot.slane %v2243, 4
      %v2246 = vor.u32 %v2245, %v2241
      %v2247 = vrot.slane %v2246, 4
      %v2249 = vshll.u32 %v2015, 16
      %v2251 = vrot.slane %v2249, 5
      %v2252 = vsel %vm990, %v2247, %v2251
      %v2254 = vshrl.u32 %v2016, 16
      %v2256 = vrot.slane %v2254, 4
      %v2257 = vshll.u32 %v2016, 16
      %v2259 = vrot.slane %v2257, 5
      %v2260 = vor.u32 %v2256, %v2259
      %v2261 = vrot.slane %v2260, 4
      %v2263 = vshll.u32 %v2017, 16
      %v2265 = vrot.slane %v2263, 5
      %v2266 = vsel %vm990, %v2261, %v2265
      %v2267 = vshrl.u32 %v2017, 16
      %v2269 = vrot.slane %v2267, 4
      %v2270 = vor.u32 %v2269, %v2265
      %v2271 = vrot.slane %v2270, 4
      %v2273 = vshll.u32 %v2018, 16
      %v2275 = vrot.slane %v2273, 5
      %v2276 = vsel %vm990, %v2271, %v2275
      %v2278 = vshrl.u32 %v2019, 16
      %v2280 = vrot.slane %v2278, 4
      %v2281 = vshll.u32 %v2019, 16
      %v2283 = vrot.slane %v2281, 5
      %v2284 = vor.u32 %v2280, %v2283
      %v2285 = vrot.slane %v2284, 4
      %v2287 = vshll.u32 %v2020, 16
      %v2289 = vrot.slane %v2287, 5
      %v2290 = vsel %vm990, %v2285, %v2289
      %v2291 = vshrl.u32 %v2020, 16
      %v2293 = vrot.slane %v2291, 4
      %v2294 = vor.u32 %v2293, %v2289
      %v2295 = vrot.slane %v2294, 4
      %v2297 = vshll.u32 %v2021, 16
      %v2299 = vrot.slane %v2297, 5
      %v2300 = vsel %vm990, %v2295, %v2299
      %v2302 = vshrl.u32 %v2022, 16
      %v2304 = vrot.slane %v2302, 4
      %v2305 = vshll.u32 %v2022, 16
      %v2307 = vrot.slane %v2305, 5
      %v2308 = vor.u32 %v2304, %v2307
      %v2309 = vrot.slane %v2308, 4
      %v2311 = vshll.u32 %v2023, 16
      %v2313 = vrot.slane %v2311, 5
      %v2314 = vsel %vm990, %v2309, %v2313
      %v2315 = vshrl.u32 %v2023, 16
      %v2317 = vrot.slane %v2315, 4
      %v2318 = vor.u32 %v2317, %v2313
      %v2319 = vrot.slane %v2318, 4
      %v2321 = vshll.u32 %v2024, 16
      %v2323 = vrot.slane %v2321, 5
      %v2324 = vsel %vm990, %v2319, %v2323
      %v2326 = vshrl.u32 %v2025, 16
      %v2328 = vrot.slane %v2326, 4
      %v2329 = vshll.u32 %v2025, 16
      %v2331 = vrot.slane %v2329, 5
      %v2332 = vor.u32 %v2328, %v2331
      %v2333 = vrot.slane %v2332, 4
      %v2335 = vshll.u32 %v2026, 16
      %v2337 = vrot.slane %v2335, 5
      %v2338 = vsel %vm990, %v2333, %v2337
      %v2339 = vshrl.u32 %v2026, 16
      %v2341 = vrot.slane %v2339, 4
      %v2342 = vor.u32 %v2341, %v2337
      %v2343 = vrot.slane %v2342, 4
      %v2345 = vshll.u32 %v2027, 16
      %v2347 = vrot.slane %v2345, 5
      %v2348 = vsel %vm990, %v2343, %v2347
      %v2350 = vshrl.u32 %v2028, 16
      %v2352 = vrot.slane %v2350, 4
      %v2353 = vshll.u32 %v2028, 16
      %v2355 = vrot.slane %v2353, 5
      %v2356 = vor.u32 %v2352, %v2355
      %v2357 = vrot.slane %v2356, 4
      %v2359 = vshll.u32 %v2029, 16
      %v2361 = vrot.slane %v2359, 5
      %v2362 = vsel %vm990, %v2357, %v2361
      %v2363 = vshrl.u32 %v2029, 16
      %v2365 = vrot.slane %v2363, 4
      %v2366 = vor.u32 %v2365, %v2361
      %v2367 = vrot.slane %v2366, 4
      %v2369 = vshll.u32 %v2030, 16
      %v2371 = vrot.slane %v2369, 5
      %v2372 = vsel %vm990, %v2367, %v2371
      %v2374 = vshrl.u32 %v2031, 16
      %v2376 = vrot.slane %v2374, 4
      %v2377 = vshll.u32 %v2031, 16
      %v2379 = vrot.slane %v2377, 5
      %v2380 = vor.u32 %v2376, %v2379
      %v2381 = vrot.slane %v2380, 4
      %v2383 = vshll.u32 %v2032, 16
      %v2385 = vrot.slane %v2383, 5
      %v2386 = vsel %vm990, %v2381, %v2385
      %v2387 = vshrl.u32 %v2032, 16
      %v2389 = vrot.slane %v2387, 4
      %v2390 = vor.u32 %v2389, %v2385
      %v2391 = vrot.slane %v2390, 4
      %v2393 = vshll.u32 %v2033, 16
      %v2395 = vrot.slane %v2393, 5
      %v2396 = vsel %vm990, %v2391, %v2395
      %v2398 = vshrl.u32 %v2034, 16
      %v2400 = vrot.slane %v2398, 4
      %v2401 = vshll.u32 %v2034, 16
      %v2403 = vrot.slane %v2401, 5
      %v2404 = vor.u32 %v2400, %v2403
      %v2405 = vrot.slane %v2404, 4
      %v2407 = vshll.u32 %v2035, 16
      %v2409 = vrot.slane %v2407, 5
      %v2410 = vsel %vm990, %v2405, %v2409
      %v2411 = vshrl.u32 %v2035, 16
      %v2413 = vrot.slane %v2411, 4
      %v2414 = vor.u32 %v2413, %v2409
      %v2415 = vrot.slane %v2414, 4
      %v2417 = vshll.u32 %v2036, 16
      %v2419 = vrot.slane %v2417, 5
      %v2420 = vsel %vm990, %v2415, %v2419
      %v2421 = vunpack.c.l.b16 %v2050
      %v2422 = vunpack.c.l.b16 %v2060
      %v2423 = vunpack.c.l.b16 %v2074
      %v2424 = vunpack.c.l.b16 %v2084
      %v2425 = vunpack.c.l.b16 %v2098
      %v2426 = vunpack.c.l.b16 %v2108
      %v2427 = vunpack.c.l.b16 %v2122
      %v2428 = vunpack.c.l.b16 %v2132
      %v2429 = vunpack.c.l.b16 %v2146
      %v2430 = vunpack.c.l.b16 %v2156
      %v2431 = vunpack.c.l.b16 %v2170
      %v2432 = vunpack.c.l.b16 %v2180
      %v2433 = vunpack.c.l.b16 %v2194
      %v2434 = vunpack.c.l.b16 %v2204
      %v2435 = vunpack.c.l.b16 %v2218
      %v2436 = vunpack.c.l.b16 %v2228
      %v2437 = vunpack.c.l.b16 %v2242
      %v2438 = vunpack.c.l.b16 %v2252
      %v2439 = vunpack.c.l.b16 %v2266
      %v2440 = vunpack.c.l.b16 %v2276
      %v2441 = vunpack.c.l.b16 %v2290
      %v2442 = vunpack.c.l.b16 %v2300
      %v2443 = vunpack.c.l.b16 %v2314
      %v2444 = vunpack.c.l.b16 %v2324
      %v2445 = vunpack.c.l.b16 %v2338
      %v2446 = vunpack.c.l.b16 %v2348
      %v2447 = vunpack.c.l.b16 %v2362
      %v2448 = vunpack.c.l.b16 %v2372
      %v2449 = vunpack.c.l.b16 %v2386
      %v2450 = vunpack.c.l.b16 %v2396
      %v2451 = vunpack.c.l.b16 %v2410
      %v2452 = vunpack.c.l.b16 %v2420
      %v2453 = vpack.c.b16 %v2422, %v2421
      %v2454 = vpack.c.b16 %v2424, %v2423
      %v2455 = vpack.c.b16 %v2426, %v2425
      %v2456 = vpack.c.b16 %v2428, %v2427
      %v2457 = vpack.c.b16 %v2430, %v2429
      %v2458 = vpack.c.b16 %v2432, %v2431
      %v2459 = vpack.c.b16 %v2434, %v2433
      %v2460 = vpack.c.b16 %v2436, %v2435
      %v2461 = vpack.c.b16 %v2438, %v2437
      %v2462 = vpack.c.b16 %v2440, %v2439
      %v2463 = vpack.c.b16 %v2442, %v2441
      %v2464 = vpack.c.b16 %v2444, %v2443
      %v2465 = vpack.c.b16 %v2446, %v2445
      %v2466 = vpack.c.b16 %v2448, %v2447
      %v2467 = vpack.c.b16 %v2450, %v2449
      %v2468 = vpack.c.b16 %v2452, %v2451
      %2469 = vrot.lane.b32.xlu0 %v2453, 16
      %v2470 = vpop.permute.xlu0 %2469
      %2471 = vrot.lane.b32.xlu0 %v2454, 16
      %v2472 = vpop.permute.xlu0 %2471
      %2473 = vrot.lane.b32.xlu0 %v2455, 16
      %v2474 = vpop.permute.xlu0 %2473
      %2475 = vrot.lane.b32.xlu0 %v2456, 16
      %v2476 = vpop.permute.xlu0 %2475
      %2477 = vrot.lane.b32.xlu0 %v2457, 16
      %v2478 = vpop.permute.xlu0 %2477
      %2479 = vrot.lane.b32.xlu0 %v2458, 16
      %v2480 = vpop.permute.xlu0 %2479
      %2481 = vrot.lane.b32.xlu0 %v2459, 16
      %v2482 = vpop.permute.xlu0 %2481
      %2483 = vrot.lane.b32.xlu0 %v2460, 16
      %v2484 = vpop.permute.xlu0 %2483
      %2485 = vrot.lane.b32.xlu0 %v2461, 16
      %v2486 = vpop.permute.xlu0 %2485
      %2487 = vrot.lane.b32.xlu0 %v2462, 16
      %v2488 = vpop.permute.xlu0 %2487
      %2489 = vrot.lane.b32.xlu0 %v2463, 16
      %v2490 = vpop.permute.xlu0 %2489
      %2491 = vrot.lane.b32.xlu0 %v2464, 16
      %v2492 = vpop.permute.xlu0 %2491
      %2493 = vrot.lane.b32.xlu0 %v2465, 16
      %v2494 = vpop.permute.xlu0 %2493
      %2495 = vrot.lane.b32.xlu0 %v2466, 16
      %v2496 = vpop.permute.xlu0 %2495
      %2497 = vrot.lane.b32.xlu0 %v2467, 16
      %v2498 = vpop.permute.xlu0 %2497
      %2499 = vrot.lane.b32.xlu0 %v2468, 16
      %v2500 = vpop.permute.xlu0 %2499
      %vm2517 = vcmask 162944
      %2518 = vst.msk [vmem:[#allocation3] sm:$0xff] %vm2517, %v2470
      %2519 = vst.msk [vmem:[#allocation3 + $0x8] sm:$0xff] %vm2517, %v2472
      %2520 = vst.msk [vmem:[#allocation3 + $0x10] sm:$0xff] %vm2517, %v2474
      %2521 = vst.msk [vmem:[#allocation3 + $0x18] sm:$0xff] %vm2517, %v2476
      %2522 = vst.msk [vmem:[#allocation3 + $0x20] sm:$0xff] %vm2517, %v2478
      %2523 = vst.msk [vmem:[#allocation3 + $0x28] sm:$0xff] %vm2517, %v2480
      %2524 = vst.msk [vmem:[#allocation3 + $0x30] sm:$0xff] %vm2517, %v2482
      %2525 = vst.msk [vmem:[#allocation3 + $0x38] sm:$0xff] %vm2517, %v2484
      %2526 = vst.msk [vmem:[#allocation3 + $0x40] sm:$0xff] %vm2517, %v2486
      %2527 = vst.msk [vmem:[#allocation3 + $0x48] sm:$0xff] %vm2517, %v2488
      %2528 = vst.msk [vmem:[#allocation3 + $0x50] sm:$0xff] %vm2517, %v2490
      %2529 = vst.msk [vmem:[#allocation3 + $0x58] sm:$0xff] %vm2517, %v2492
      %2530 = vst.msk [vmem:[#allocation3 + $0x60] sm:$0xff] %vm2517, %v2494
      %2531 = vst.msk [vmem:[#allocation3 + $0x68] sm:$0xff] %vm2517, %v2496
      %2532 = vst.msk [vmem:[#allocation3 + $0x70] sm:$0xff] %vm2517, %v2498
      %2533 = vst.msk [vmem:[#allocation3 + $0x78] sm:$0xff] %vm2517, %v2500
      %v2534 = vld [vmem:[%s257] sm:$0xe]
      %v2535 = vld [vmem:[%s257 + $0x4] sm:$0xf]
      %v2536 = vld [vmem:[%s257 + $0x8] sm:$0x1]
      %v2537 = vld [vmem:[%s257 + $0xc] sm:$0xe]
      %v2538 = vld [vmem:[%s257 + $0x10] sm:$0xf]
      %v2539 = vld [vmem:[%s257 + $0x14] sm:$0x1]
      %v2540 = vld [vmem:[%s257 + $0x18] sm:$0xe]
      %v2541 = vld [vmem:[%s257 + $0x1c] sm:$0xf]
      %v2542 = vld [vmem:[%s257 + $0x20] sm:$0x1]
      %v2543 = vld [vmem:[%s257 + $0x24] sm:$0xe]
      %v2544 = vld [vmem:[%s257 + $0x28] sm:$0xf]
      %v2545 = vld [vmem:[%s257 + $0x2c] sm:$0x1]
      %v2546 = vld [vmem:[%s257 + $0x30] sm:$0xe]
      %v2547 = vld [vmem:[%s257 + $0x34] sm:$0xf]
      %v2548 = vld [vmem:[%s257 + $0x38] sm:$0x1]
      %v2549 = vld [vmem:[%s257 + $0x3c] sm:$0xe]
      %v2550 = vld [vmem:[%s257 + $0x40] sm:$0xf]
      %v2551 = vld [vmem:[%s257 + $0x44] sm:$0x1]
      %v2552 = vld [vmem:[%s257 + $0x48] sm:$0xe]
      %v2553 = vld [vmem:[%s257 + $0x4c] sm:$0xf]
      %v2554 = vld [vmem:[%s257 + $0x50] sm:$0x1]
      %v2555 = vld [vmem:[%s257 + $0x54] sm:$0xe]
      %v2556 = vld [vmem:[%s257 + $0x58] sm:$0xf]
      %v2557 = vld [vmem:[%s257 + $0x5c] sm:$0x1]
      %v2558 = vld [vmem:[%s257 + $0x60] sm:$0xe]
      %v2559 = vld [vmem:[%s257 + $0x64] sm:$0xf]
      %v2560 = vld [vmem:[%s257 + $0x68] sm:$0x1]
      %v2561 = vld [vmem:[%s257 + $0x6c] sm:$0xe]
      %v2562 = vld [vmem:[%s257 + $0x70] sm:$0xf]
      %v2563 = vld [vmem:[%s257 + $0x74] sm:$0x1]
      %v2564 = vld [vmem:[%s257 + $0x78] sm:$0xe]
      %v2565 = vld [vmem:[%s257 + $0x7c] sm:$0xf]
      %v2566 = vld [vmem:[%s257 + $0x80] sm:$0x1]
      %v2567 = vld [vmem:[%s257 + $0x84] sm:$0xe]
      %v2568 = vld [vmem:[%s257 + $0x88] sm:$0xf]
      %v2569 = vld [vmem:[%s257 + $0x8c] sm:$0x1]
      %v2570 = vld [vmem:[%s257 + $0x90] sm:$0xe]
      %v2571 = vld [vmem:[%s257 + $0x94] sm:$0xf]
      %v2572 = vld [vmem:[%s257 + $0x98] sm:$0x1]
      %v2573 = vld [vmem:[%s257 + $0x9c] sm:$0xe]
      %v2574 = vld [vmem:[%s257 + $0xa0] sm:$0xf]
      %v2575 = vld [vmem:[%s257 + $0xa4] sm:$0x1]
      %v2576 = vld [vmem:[%s257 + $0xa8] sm:$0xe]
      %v2577 = vld [vmem:[%s257 + $0xac] sm:$0xf]
      %v2578 = vld [vmem:[%s257 + $0xb0] sm:$0x1]
      %v2579 = vld [vmem:[%s257 + $0xb4] sm:$0xe]
      %v2580 = vld [vmem:[%s257 + $0xb8] sm:$0xf]
      %v2581 = vld [vmem:[%s257 + $0xbc] sm:$0x1]
      %v2630 = vrot.slane %v2534, 5
      %v2631 = vrot.slane %v2630, 4
      %v2632 = vrot.slane %v2535, 5
      %v2633 = vsel %vm1586, %v2631, %v2632
      %v2634 = vrot.slane %v2632, 4
      %v2635 = vrot.slane %v2536, 5
      %v2636 = vsel %vm1586, %v2634, %v2635
      %v2637 = vrot.slane %v2537, 5
      %v2638 = vrot.slane %v2637, 4
      %v2639 = vrot.slane %v2538, 5
      %v2640 = vsel %vm1586, %v2638, %v2639
      %v2641 = vrot.slane %v2639, 4
      %v2642 = vrot.slane %v2539, 5
      %v2643 = vsel %vm1586, %v2641, %v2642
      %v2644 = vrot.slane %v2540, 5
      %v2645 = vrot.slane %v2644, 4
      %v2646 = vrot.slane %v2541, 5
      %v2647 = vsel %vm1586, %v2645, %v2646
      %v2648 = vrot.slane %v2646, 4
      %v2649 = vrot.slane %v2542, 5
      %v2650 = vsel %vm1586, %v2648, %v2649
      %v2651 = vrot.slane %v2543, 5
      %v2652 = vrot.slane %v2651, 4
      %v2653 = vrot.slane %v2544, 5
      %v2654 = vsel %vm1586, %v2652, %v2653
      %v2655 = vrot.slane %v2653, 4
      %v2656 = vrot.slane %v2545, 5
      %v2657 = vsel %vm1586, %v2655, %v2656
      %v2658 = vrot.slane %v2546, 5
      %v2659 = vrot.slane %v2658, 4
      %v2660 = vrot.slane %v2547, 5
      %v2661 = vsel %vm1586, %v2659, %v2660
      %v2662 = vrot.slane %v2660, 4
      %v2663 = vrot.slane %v2548, 5
      %v2664 = vsel %vm1586, %v2662, %v2663
      %v2665 = vrot.slane %v2549, 5
      %v2666 = vrot.slane %v2665, 4
      %v2667 = vrot.slane %v2550, 5
      %v2668 = vsel %vm1586, %v2666, %v2667
      %v2669 = vrot.slane %v2667, 4
      %v2670 = vrot.slane %v2551, 5
      %v2671 = vsel %vm1586, %v2669, %v2670
      %v2672 = vrot.slane %v2552, 5
      %v2673 = vrot.slane %v2672, 4
      %v2674 = vrot.slane %v2553, 5
      %v2675 = vsel %vm1586, %v2673, %v2674
      %v2676 = vrot.slane %v2674, 4
      %v2677 = vrot.slane %v2554, 5
      %v2678 = vsel %vm1586, %v2676, %v2677
      %v2679 = vrot.slane %v2555, 5
      %v2680 = vrot.slane %v2679, 4
      %v2681 = vrot.slane %v2556, 5
      %v2682 = vsel %vm1586, %v2680, %v2681
      %v2683 = vrot.slane %v2681, 4
      %v2684 = vrot.slane %v2557, 5
      %v2685 = vsel %vm1586, %v2683, %v2684
      %v2686 = vrot.slane %v2558, 5
      %v2687 = vrot.slane %v2686, 4
      %v2688 = vrot.slane %v2559, 5
      %v2689 = vsel %vm1586, %v2687, %v2688
      %v2690 = vrot.slane %v2688, 4
      %v2691 = vrot.slane %v2560, 5
      %v2692 = vsel %vm1586, %v2690, %v2691
      %v2693 = vrot.slane %v2561, 5
      %v2694 = vrot.slane %v2693, 4
      %v2695 = vrot.slane %v2562, 5
      %v2696 = vsel %vm1586, %v2694, %v2695
      %v2697 = vrot.slane %v2695, 4
      %v2698 = vrot.slane %v2563, 5
      %v2699 = vsel %vm1586, %v2697, %v2698
      %v2700 = vrot.slane %v2564, 5
      %v2701 = vrot.slane %v2700, 4
      %v2702 = vrot.slane %v2565, 5
      %v2703 = vsel %vm1586, %v2701, %v2702
      %v2704 = vrot.slane %v2702, 4
      %v2705 = vrot.slane %v2566, 5
      %v2706 = vsel %vm1586, %v2704, %v2705
      %v2707 = vrot.slane %v2567, 5
      %v2708 = vrot.slane %v2707, 4
      %v2709 = vrot.slane %v2568, 5
      %v2710 = vsel %vm1586, %v2708, %v2709
      %v2711 = vrot.slane %v2709, 4
      %v2712 = vrot.slane %v2569, 5
      %v2713 = vsel %vm1586, %v2711, %v2712
      %v2714 = vrot.slane %v2570, 5
      %v2715 = vrot.slane %v2714, 4
      %v2716 = vrot.slane %v2571, 5
      %v2717 = vsel %vm1586, %v2715, %v2716
      %v2718 = vrot.slane %v2716, 4
      %v2719 = vrot.slane %v2572, 5
      %v2720 = vsel %vm1586, %v2718, %v2719
      %v2721 = vrot.slane %v2573, 5
      %v2722 = vrot.slane %v2721, 4
      %v2723 = vrot.slane %v2574, 5
      %v2724 = vsel %vm1586, %v2722, %v2723
      %v2725 = vrot.slane %v2723, 4
      %v2726 = vrot.slane %v2575, 5
      %v2727 = vsel %vm1586, %v2725, %v2726
      %v2728 = vrot.slane %v2576, 5
      %v2729 = vrot.slane %v2728, 4
      %v2730 = vrot.slane %v2577, 5
      %v2731 = vsel %vm1586, %v2729, %v2730
      %v2732 = vrot.slane %v2730, 4
      %v2733 = vrot.slane %v2578, 5
      %v2734 = vsel %vm1586, %v2732, %v2733
      %v2735 = vrot.slane %v2579, 5
      %v2736 = vrot.slane %v2735, 4
      %v2737 = vrot.slane %v2580, 5
      %v2738 = vsel %vm1586, %v2736, %v2737
      %v2739 = vrot.slane %v2737, 4
      %v2740 = vrot.slane %v2581, 5
      %v2741 = vsel %vm1586, %v2739, %v2740
      %v2742 = vunpack.c.l.b16 %v2633
      %v2743 = vunpack.c.l.b16 %v2636
      %v2744 = vunpack.c.l.b16 %v2640
      %v2745 = vunpack.c.l.b16 %v2643
      %v2746 = vunpack.c.l.b16 %v2647
      %v2747 = vunpack.c.l.b16 %v2650
      %v2748 = vunpack.c.l.b16 %v2654
      %v2749 = vunpack.c.l.b16 %v2657
      %v2750 = vunpack.c.l.b16 %v2661
      %v2751 = vunpack.c.l.b16 %v2664
      %v2752 = vunpack.c.l.b16 %v2668
      %v2753 = vunpack.c.l.b16 %v2671
      %v2754 = vunpack.c.l.b16 %v2675
      %v2755 = vunpack.c.l.b16 %v2678
      %v2756 = vunpack.c.l.b16 %v2682
      %v2757 = vunpack.c.l.b16 %v2685
      %v2758 = vunpack.c.l.b16 %v2689
      %v2759 = vunpack.c.l.b16 %v2692
      %v2760 = vunpack.c.l.b16 %v2696
      %v2761 = vunpack.c.l.b16 %v2699
      %v2762 = vunpack.c.l.b16 %v2703
      %v2763 = vunpack.c.l.b16 %v2706
      %v2764 = vunpack.c.l.b16 %v2710
      %v2765 = vunpack.c.l.b16 %v2713
      %v2766 = vunpack.c.l.b16 %v2717
      %v2767 = vunpack.c.l.b16 %v2720
      %v2768 = vunpack.c.l.b16 %v2724
      %v2769 = vunpack.c.l.b16 %v2727
      %v2770 = vunpack.c.l.b16 %v2731
      %v2771 = vunpack.c.l.b16 %v2734
      %v2772 = vunpack.c.l.b16 %v2738
      %v2773 = vunpack.c.l.b16 %v2741
      %v2774 = vpack.c.b16 %v2743, %v2742
      %v2775 = vpack.c.b16 %v2745, %v2744
      %v2776 = vpack.c.b16 %v2747, %v2746
      %v2777 = vpack.c.b16 %v2749, %v2748
      %v2778 = vpack.c.b16 %v2751, %v2750
      %v2779 = vpack.c.b16 %v2753, %v2752
      %v2780 = vpack.c.b16 %v2755, %v2754
      %v2781 = vpack.c.b16 %v2757, %v2756
      %v2782 = vpack.c.b16 %v2759, %v2758
      %v2783 = vpack.c.b16 %v2761, %v2760
      %v2784 = vpack.c.b16 %v2763, %v2762
      %v2785 = vpack.c.b16 %v2765, %v2764
      %v2786 = vpack.c.b16 %v2767, %v2766
      %v2787 = vpack.c.b16 %v2769, %v2768
      %v2788 = vpack.c.b16 %v2771, %v2770
      %v2789 = vpack.c.b16 %v2773, %v2772
      %2790 = vrot.lane.b32.xlu0 %v2774, 20
      %v2791 = vpop.permute.xlu0 %2790
      %2792 = vrot.lane.b32.xlu0 %v2775, 20
      %v2793 = vpop.permute.xlu0 %2792
      %2794 = vrot.lane.b32.xlu0 %v2776, 20
      %v2795 = vpop.permute.xlu0 %2794
      %2796 = vrot.lane.b32.xlu0 %v2777, 20
      %v2797 = vpop.permute.xlu0 %2796
      %2798 = vrot.lane.b32.xlu0 %v2778, 20
      %v2799 = vpop.permute.xlu0 %2798
      %2800 = vrot.lane.b32.xlu0 %v2779, 20
      %v2801 = vpop.permute.xlu0 %2800
      %2802 = vrot.lane.b32.xlu0 %v2780, 20
      %v2803 = vpop.permute.xlu0 %2802
      %2804 = vrot.lane.b32.xlu0 %v2781, 20
      %v2805 = vpop.permute.xlu0 %2804
      %2806 = vrot.lane.b32.xlu0 %v2782, 20
      %v2807 = vpop.permute.xlu0 %2806
      %2808 = vrot.lane.b32.xlu0 %v2783, 20
      %v2809 = vpop.permute.xlu0 %2808
      %2810 = vrot.lane.b32.xlu0 %v2784, 20
      %v2811 = vpop.permute.xlu0 %2810
      %2812 = vrot.lane.b32.xlu0 %v2785, 20
      %v2813 = vpop.permute.xlu0 %2812
      %2814 = vrot.lane.b32.xlu0 %v2786, 20
      %v2815 = vpop.permute.xlu0 %2814
      %2816 = vrot.lane.b32.xlu0 %v2787, 20
      %v2817 = vpop.permute.xlu0 %2816
      %2818 = vrot.lane.b32.xlu0 %v2788, 20
      %v2819 = vpop.permute.xlu0 %2818
      %2820 = vrot.lane.b32.xlu0 %v2789, 20
      %v2821 = vpop.permute.xlu0 %2820
      %vm2838 = vcmask 195744
      %2839 = vst.msk [vmem:[#allocation3] sm:$0xff] %vm2838, %v2791
      %2840 = vst.msk [vmem:[#allocation3 + $0x8] sm:$0xff] %vm2838, %v2793
      %2841 = vst.msk [vmem:[#allocation3 + $0x10] sm:$0xff] %vm2838, %v2795
      %2842 = vst.msk [vmem:[#allocation3 + $0x18] sm:$0xff] %vm2838, %v2797
      %2843 = vst.msk [vmem:[#allocation3 + $0x20] sm:$0xff] %vm2838, %v2799
      %2844 = vst.msk [vmem:[#allocation3 + $0x28] sm:$0xff] %vm2838, %v2801
      %2845 = vst.msk [vmem:[#allocation3 + $0x30] sm:$0xff] %vm2838, %v2803
      %2846 = vst.msk [vmem:[#allocation3 + $0x38] sm:$0xff] %vm2838, %v2805
      %2847 = vst.msk [vmem:[#allocation3 + $0x40] sm:$0xff] %vm2838, %v2807
      %2848 = vst.msk [vmem:[#allocation3 + $0x48] sm:$0xff] %vm2838, %v2809
      %2849 = vst.msk [vmem:[#allocation3 + $0x50] sm:$0xff] %vm2838, %v2811
      %2850 = vst.msk [vmem:[#allocation3 + $0x58] sm:$0xff] %vm2838, %v2813
      %2851 = vst.msk [vmem:[#allocation3 + $0x60] sm:$0xff] %vm2838, %v2815
      %2852 = vst.msk [vmem:[#allocation3 + $0x68] sm:$0xff] %vm2838, %v2817
      %2853 = vst.msk [vmem:[#allocation3 + $0x70] sm:$0xff] %vm2838, %v2819
      %2854 = vst.msk [vmem:[#allocation3 + $0x78] sm:$0xff] %vm2838, %v2821
      %s2855 = scalar_lea.vmem [#allocation2], 24
      %v2856 = vld [vmem:[%s2855] sm:$0xf]
      %v2857 = vld [vmem:[%s2855 + $0x4] sm:$0xf]
      %v2858 = vld [vmem:[%s2855 + $0xc] sm:$0xf]
      %v2859 = vld [vmem:[%s2855 + $0x10] sm:$0xf]
      %v2860 = vld [vmem:[%s2855 + $0x18] sm:$0xf]
      %v2861 = vld [vmem:[%s2855 + $0x1c] sm:$0xf]
      %v2862 = vld [vmem:[%s2855 + $0x24] sm:$0xf]
      %v2863 = vld [vmem:[%s2855 + $0x28] sm:$0xf]
      %v2864 = vld [vmem:[%s2855 + $0x30] sm:$0xf]
      %v2865 = vld [vmem:[%s2855 + $0x34] sm:$0xf]
      %v2866 = vld [vmem:[%s2855 + $0x3c] sm:$0xf]
      %v2867 = vld [vmem:[%s2855 + $0x40] sm:$0xf]
      %v2868 = vld [vmem:[%s2855 + $0x48] sm:$0xf]
      %v2869 = vld [vmem:[%s2855 + $0x4c] sm:$0xf]
      %v2870 = vld [vmem:[%s2855 + $0x54] sm:$0xf]
      %v2871 = vld [vmem:[%s2855 + $0x58] sm:$0xf]
      %v2872 = vld [vmem:[%s2855 + $0x60] sm:$0xf]
      %v2873 = vld [vmem:[%s2855 + $0x64] sm:$0xf]
      %v2874 = vld [vmem:[%s2855 + $0x6c] sm:$0xf]
      %v2875 = vld [vmem:[%s2855 + $0x70] sm:$0xf]
      %v2876 = vld [vmem:[%s2855 + $0x78] sm:$0xf]
      %v2877 = vld [vmem:[%s2855 + $0x7c] sm:$0xf]
      %v2878 = vld [vmem:[%s2855 + $0x84] sm:$0xf]
      %v2879 = vld [vmem:[%s2855 + $0x88] sm:$0xf]
      %v2880 = vld [vmem:[%s2855 + $0x90] sm:$0xf]
      %v2881 = vld [vmem:[%s2855 + $0x94] sm:$0xf]
      %v2882 = vld [vmem:[%s2855 + $0x9c] sm:$0xf]
      %v2883 = vld [vmem:[%s2855 + $0xa0] sm:$0xf]
      %v2884 = vld [vmem:[%s2855 + $0xa8] sm:$0xf]
      %v2885 = vld [vmem:[%s2855 + $0xac] sm:$0xf]
      %v2886 = vld [vmem:[%s2855 + $0xb4] sm:$0xf]
      %v2887 = vld [vmem:[%s2855 + $0xb8] sm:$0xf]
      %v2920 = vunpack.c.l.b16 %v2856
      %v2921 = vunpack.c.l.b16 %v2857
      %v2922 = vunpack.c.l.b16 %v2858
      %v2923 = vunpack.c.l.b16 %v2859
      %v2924 = vunpack.c.l.b16 %v2860
      %v2925 = vunpack.c.l.b16 %v2861
      %v2926 = vunpack.c.l.b16 %v2862
      %v2927 = vunpack.c.l.b16 %v2863
      %v2928 = vunpack.c.l.b16 %v2864
      %v2929 = vunpack.c.l.b16 %v2865
      %v2930 = vunpack.c.l.b16 %v2866
      %v2931 = vunpack.c.l.b16 %v2867
      %v2932 = vunpack.c.l.b16 %v2868
      %v2933 = vunpack.c.l.b16 %v2869
      %v2934 = vunpack.c.l.b16 %v2870
      %v2935 = vunpack.c.l.b16 %v2871
      %v2936 = vunpack.c.l.b16 %v2872
      %v2937 = vunpack.c.l.b16 %v2873
      %v2938 = vunpack.c.l.b16 %v2874
      %v2939 = vunpack.c.l.b16 %v2875
      %v2940 = vunpack.c.l.b16 %v2876
      %v2941 = vunpack.c.l.b16 %v2877
      %v2942 = vunpack.c.l.b16 %v2878
      %v2943 = vunpack.c.l.b16 %v2879
      %v2944 = vunpack.c.l.b16 %v2880
      %v2945 = vunpack.c.l.b16 %v2881
      %v2946 = vunpack.c.l.b16 %v2882
      %v2947 = vunpack.c.l.b16 %v2883
      %v2948 = vunpack.c.l.b16 %v2884
      %v2949 = vunpack.c.l.b16 %v2885
      %v2950 = vunpack.c.l.b16 %v2886
      %v2951 = vunpack.c.l.b16 %v2887
      %v2952 = vpack.c.b16 %v2921, %v2920
      %v2953 = vpack.c.b16 %v2923, %v2922
      %v2954 = vpack.c.b16 %v2925, %v2924
      %v2955 = vpack.c.b16 %v2927, %v2926
      %v2956 = vpack.c.b16 %v2929, %v2928
      %v2957 = vpack.c.b16 %v2931, %v2930
      %v2958 = vpack.c.b16 %v2933, %v2932
      %v2959 = vpack.c.b16 %v2935, %v2934
      %v2960 = vpack.c.b16 %v2937, %v2936
      %v2961 = vpack.c.b16 %v2939, %v2938
      %v2962 = vpack.c.b16 %v2941, %v2940
      %v2963 = vpack.c.b16 %v2943, %v2942
      %v2964 = vpack.c.b16 %v2945, %v2944
      %v2965 = vpack.c.b16 %v2947, %v2946
      %v2966 = vpack.c.b16 %v2949, %v2948
      %v2967 = vpack.c.b16 %v2951, %v2950
      %2968 = vrot.lane.b32.xlu0 %v2952, 24
      %v2969 = vpop.permute.xlu0 %2968
      %2970 = vrot.lane.b32.xlu0 %v2953, 24
      %v2971 = vpop.permute.xlu0 %2970
      %2972 = vrot.lane.b32.xlu0 %v2954, 24
      %v2973 = vpop.permute.xlu0 %2972
      %2974 = vrot.lane.b32.xlu0 %v2955, 24
      %v2975 = vpop.permute.xlu0 %2974
      %2976 = vrot.lane.b32.xlu0 %v2956, 24
      %v2977 = vpop.permute.xlu0 %2976
      %2978 = vrot.lane.b32.xlu0 %v2957, 24
      %v2979 = vpop.permute.xlu0 %2978
      %2980 = vrot.lane.b32.xlu0 %v2958, 24
      %v2981 = vpop.permute.xlu0 %2980
      %2982 = vrot.lane.b32.xlu0 %v2959, 24
      %v2983 = vpop.permute.xlu0 %2982
      %2984 = vrot.lane.b32.xlu0 %v2960, 24
      %v2985 = vpop.permute.xlu0 %2984
      %2986 = vrot.lane.b32.xlu0 %v2961, 24
      %v2987 = vpop.permute.xlu0 %2986
      %2988 = vrot.lane.b32.xlu0 %v2962, 24
      %v2989 = vpop.permute.xlu0 %2988
      %2990 = vrot.lane.b32.xlu0 %v2963, 24
      %v2991 = vpop.permute.xlu0 %2990
      %2992 = vrot.lane.b32.xlu0 %v2964, 24
      %v2993 = vpop.permute.xlu0 %2992
      %2994 = vrot.lane.b32.xlu0 %v2965, 24
      %v2995 = vpop.permute.xlu0 %2994
      %2996 = vrot.lane.b32.xlu0 %v2966, 24
      %v2997 = vpop.permute.xlu0 %2996
      %2998 = vrot.lane.b32.xlu0 %v2967, 24
      %v2999 = vpop.permute.xlu0 %2998
      %vm3016 = vcmask 228544
      %3017 = vst.msk [vmem:[#allocation3] sm:$0xff] %vm3016, %v2969
      %3018 = vst.msk [vmem:[#allocation3 + $0x8] sm:$0xff] %vm3016, %v2971
      %3019 = vst.msk [vmem:[#allocation3 + $0x10] sm:$0xff] %vm3016, %v2973
      %3020 = vst.msk [vmem:[#allocation3 + $0x18] sm:$0xff] %vm3016, %v2975
      %3021 = vst.msk [vmem:[#allocation3 + $0x20] sm:$0xff] %vm3016, %v2977
      %3022 = vst.msk [vmem:[#allocation3 + $0x28] sm:$0xff] %vm3016, %v2979
      %3023 = vst.msk [vmem:[#allocation3 + $0x30] sm:$0xff] %vm3016, %v2981
      %3024 = vst.msk [vmem:[#allocation3 + $0x38] sm:$0xff] %vm3016, %v2983
      %3025 = vst.msk [vmem:[#allocation3 + $0x40] sm:$0xff] %vm3016, %v2985
      %3026 = vst.msk [vmem:[#allocation3 + $0x48] sm:$0xff] %vm3016, %v2987
      %3027 = vst.msk [vmem:[#allocation3 + $0x50] sm:$0xff] %vm3016, %v2989
      %3028 = vst.msk [vmem:[#allocation3 + $0x58] sm:$0xff] %vm3016, %v2991
      %3029 = vst.msk [vmem:[#allocation3 + $0x60] sm:$0xff] %vm3016, %v2993
      %3030 = vst.msk [vmem:[#allocation3 + $0x68] sm:$0xff] %vm3016, %v2995
      %3031 = vst.msk [vmem:[#allocation3 + $0x70] sm:$0xff] %vm3016, %v2997
      %3032 = vst.msk [vmem:[#allocation3 + $0x78] sm:$0xff] %vm3016, %v2999
      %v3033 = vld [vmem:[%s2855] sm:$0xf]
      %v3034 = vld [vmem:[%s2855 + $0x4] sm:$0xf]
      %v3035 = vld [vmem:[%s2855 + $0x8] sm:$0x1]
      %v3036 = vld [vmem:[%s2855 + $0xc] sm:$0xf]
      %v3037 = vld [vmem:[%s2855 + $0x10] sm:$0xf]
      %v3038 = vld [vmem:[%s2855 + $0x14] sm:$0x1]
      %v3039 = vld [vmem:[%s2855 + $0x18] sm:$0xf]
      %v3040 = vld [vmem:[%s2855 + $0x1c] sm:$0xf]
      %v3041 = vld [vmem:[%s2855 + $0x20] sm:$0x1]
      %v3042 = vld [vmem:[%s2855 + $0x24] sm:$0xf]
      %v3043 = vld [vmem:[%s2855 + $0x28] sm:$0xf]
      %v3044 = vld [vmem:[%s2855 + $0x2c] sm:$0x1]
      %v3045 = vld [vmem:[%s2855 + $0x30] sm:$0xf]
      %v3046 = vld [vmem:[%s2855 + $0x34] sm:$0xf]
      %v3047 = vld [vmem:[%s2855 + $0x38] sm:$0x1]
      %v3048 = vld [vmem:[%s2855 + $0x3c] sm:$0xf]
      %v3049 = vld [vmem:[%s2855 + $0x40] sm:$0xf]
      %v3050 = vld [vmem:[%s2855 + $0x44] sm:$0x1]
      %v3051 = vld [vmem:[%s2855 + $0x48] sm:$0xf]
      %v3052 = vld [vmem:[%s2855 + $0x4c] sm:$0xf]
      %v3053 = vld [vmem:[%s2855 + $0x50] sm:$0x1]
      %v3054 = vld [vmem:[%s2855 + $0x54] sm:$0xf]
      %v3055 = vld [vmem:[%s2855 + $0x58] sm:$0xf]
      %v3056 = vld [vmem:[%s2855 + $0x5c] sm:$0x1]
      %v3057 = vld [vmem:[%s2855 + $0x60] sm:$0xf]
      %v3058 = vld [vmem:[%s2855 + $0x64] sm:$0xf]
      %v3059 = vld [vmem:[%s2855 + $0x68] sm:$0x1]
      %v3060 = vld [vmem:[%s2855 + $0x6c] sm:$0xf]
      %v3061 = vld [vmem:[%s2855 + $0x70] sm:$0xf]
      %v3062 = vld [vmem:[%s2855 + $0x74] sm:$0x1]
      %v3063 = vld [vmem:[%s2855 + $0x78] sm:$0xf]
      %v3064 = vld [vmem:[%s2855 + $0x7c] sm:$0xf]
      %v3065 = vld [vmem:[%s2855 + $0x80] sm:$0x1]
      %v3066 = vld [vmem:[%s2855 + $0x84] sm:$0xf]
      %v3067 = vld [vmem:[%s2855 + $0x88] sm:$0xf]
      %v3068 = vld [vmem:[%s2855 + $0x8c] sm:$0x1]
      %v3069 = vld [vmem:[%s2855 + $0x90] sm:$0xf]
      %v3070 = vld [vmem:[%s2855 + $0x94] sm:$0xf]
      %v3071 = vld [vmem:[%s2855 + $0x98] sm:$0x1]
      %v3072 = vld [vmem:[%s2855 + $0x9c] sm:$0xf]
      %v3073 = vld [vmem:[%s2855 + $0xa0] sm:$0xf]
      %v3074 = vld [vmem:[%s2855 + $0xa4] sm:$0x1]
      %v3075 = vld [vmem:[%s2855 + $0xa8] sm:$0xf]
      %v3076 = vld [vmem:[%s2855 + $0xac] sm:$0xf]
      %v3077 = vld [vmem:[%s2855 + $0xb0] sm:$0x1]
      %v3078 = vld [vmem:[%s2855 + $0xb4] sm:$0xf]
      %v3079 = vld [vmem:[%s2855 + $0xb8] sm:$0xf]
      %v3080 = vld [vmem:[%s2855 + $0xbc] sm:$0x1]
      %v3082 = vshrl.u32 %v3033, 16
      %v3084 = vrot.slane %v3082, 4
      %v3085 = vshll.u32 %v3033, 16
      %v3087 = vrot.slane %v3085, 5
      %v3088 = vor.u32 %v3084, %v3087
      %v3089 = vrot.slane %v3088, 4
      %v3091 = vshll.u32 %v3034, 16
      %v3093 = vrot.slane %v3091, 5
      %v3094 = vsel %vm990, %v3089, %v3093
      %v3095 = vshrl.u32 %v3034, 16
      %v3097 = vrot.slane %v3095, 4
      %v3098 = vor.u32 %v3097, %v3093
      %v3099 = vrot.slane %v3098, 4
      %v3101 = vshll.u32 %v3035, 16
      %v3103 = vrot.slane %v3101, 5
      %v3104 = vsel %vm990, %v3099, %v3103
      %v3106 = vshrl.u32 %v3036, 16
      %v3108 = vrot.slane %v3106, 4
      %v3109 = vshll.u32 %v3036, 16
      %v3111 = vrot.slane %v3109, 5
      %v3112 = vor.u32 %v3108, %v3111
      %v3113 = vrot.slane %v3112, 4
      %v3115 = vshll.u32 %v3037, 16
      %v3117 = vrot.slane %v3115, 5
      %v3118 = vsel %vm990, %v3113, %v3117
      %v3119 = vshrl.u32 %v3037, 16
      %v3121 = vrot.slane %v3119, 4
      %v3122 = vor.u32 %v3121, %v3117
      %v3123 = vrot.slane %v3122, 4
      %v3125 = vshll.u32 %v3038, 16
      %v3127 = vrot.slane %v3125, 5
      %v3128 = vsel %vm990, %v3123, %v3127
      %v3130 = vshrl.u32 %v3039, 16
      %v3132 = vrot.slane %v3130, 4
      %v3133 = vshll.u32 %v3039, 16
      %v3135 = vrot.slane %v3133, 5
      %v3136 = vor.u32 %v3132, %v3135
      %v3137 = vrot.slane %v3136, 4
      %v3139 = vshll.u32 %v3040, 16
      %v3141 = vrot.slane %v3139, 5
      %v3142 = vsel %vm990, %v3137, %v3141
      %v3143 = vshrl.u32 %v3040, 16
      %v3145 = vrot.slane %v3143, 4
      %v3146 = vor.u32 %v3145, %v3141
      %v3147 = vrot.slane %v3146, 4
      %v3149 = vshll.u32 %v3041, 16
      %v3151 = vrot.slane %v3149, 5
      %v3152 = vsel %vm990, %v3147, %v3151
      %v3154 = vshrl.u32 %v3042, 16
      %v3156 = vrot.slane %v3154, 4
      %v3157 = vshll.u32 %v3042, 16
      %v3159 = vrot.slane %v3157, 5
      %v3160 = vor.u32 %v3156, %v3159
      %v3161 = vrot.slane %v3160, 4
      %v3163 = vshll.u32 %v3043, 16
      %v3165 = vrot.slane %v3163, 5
      %v3166 = vsel %vm990, %v3161, %v3165
      %v3167 = vshrl.u32 %v3043, 16
      %v3169 = vrot.slane %v3167, 4
      %v3170 = vor.u32 %v3169, %v3165
      %v3171 = vrot.slane %v3170, 4
      %v3173 = vshll.u32 %v3044, 16
      %v3175 = vrot.slane %v3173, 5
      %v3176 = vsel %vm990, %v3171, %v3175
      %v3178 = vshrl.u32 %v3045, 16
      %v3180 = vrot.slane %v3178, 4
      %v3181 = vshll.u32 %v3045, 16
      %v3183 = vrot.slane %v3181, 5
      %v3184 = vor.u32 %v3180, %v3183
      %v3185 = vrot.slane %v3184, 4
      %v3187 = vshll.u32 %v3046, 16
      %v3189 = vrot.slane %v3187, 5
      %v3190 = vsel %vm990, %v3185, %v3189
      %v3191 = vshrl.u32 %v3046, 16
      %v3193 = vrot.slane %v3191, 4
      %v3194 = vor.u32 %v3193, %v3189
      %v3195 = vrot.slane %v3194, 4
      %v3197 = vshll.u32 %v3047, 16
      %v3199 = vrot.slane %v3197, 5
      %v3200 = vsel %vm990, %v3195, %v3199
      %v3202 = vshrl.u32 %v3048, 16
      %v3204 = vrot.slane %v3202, 4
      %v3205 = vshll.u32 %v3048, 16
      %v3207 = vrot.slane %v3205, 5
      %v3208 = vor.u32 %v3204, %v3207
      %v3209 = vrot.slane %v3208, 4
      %v3211 = vshll.u32 %v3049, 16
      %v3213 = vrot.slane %v3211, 5
      %v3214 = vsel %vm990, %v3209, %v3213
      %v3215 = vshrl.u32 %v3049, 16
      %v3217 = vrot.slane %v3215, 4
      %v3218 = vor.u32 %v3217, %v3213
      %v3219 = vrot.slane %v3218, 4
      %v3221 = vshll.u32 %v3050, 16
      %v3223 = vrot.slane %v3221, 5
      %v3224 = vsel %vm990, %v3219, %v3223
      %v3226 = vshrl.u32 %v3051, 16
      %v3228 = vrot.slane %v3226, 4
      %v3229 = vshll.u32 %v3051, 16
      %v3231 = vrot.slane %v3229, 5
      %v3232 = vor.u32 %v3228, %v3231
      %v3233 = vrot.slane %v3232, 4
      %v3235 = vshll.u32 %v3052, 16
      %v3237 = vrot.slane %v3235, 5
      %v3238 = vsel %vm990, %v3233, %v3237
      %v3239 = vshrl.u32 %v3052, 16
      %v3241 = vrot.slane %v3239, 4
      %v3242 = vor.u32 %v3241, %v3237
      %v3243 = vrot.slane %v3242, 4
      %v3245 = vshll.u32 %v3053, 16
      %v3247 = vrot.slane %v3245, 5
      %v3248 = vsel %vm990, %v3243, %v3247
      %v3250 = vshrl.u32 %v3054, 16
      %v3252 = vrot.slane %v3250, 4
      %v3253 = vshll.u32 %v3054, 16
      %v3255 = vrot.slane %v3253, 5
      %v3256 = vor.u32 %v3252, %v3255
      %v3257 = vrot.slane %v3256, 4
      %v3259 = vshll.u32 %v3055, 16
      %v3261 = vrot.slane %v3259, 5
      %v3262 = vsel %vm990, %v3257, %v3261
      %v3263 = vshrl.u32 %v3055, 16
      %v3265 = vrot.slane %v3263, 4
      %v3266 = vor.u32 %v3265, %v3261
      %v3267 = vrot.slane %v3266, 4
      %v3269 = vshll.u32 %v3056, 16
      %v3271 = vrot.slane %v3269, 5
      %v3272 = vsel %vm990, %v3267, %v3271
      %v3274 = vshrl.u32 %v3057, 16
      %v3276 = vrot.slane %v3274, 4
      %v3277 = vshll.u32 %v3057, 16
      %v3279 = vrot.slane %v3277, 5
      %v3280 = vor.u32 %v3276, %v3279
      %v3281 = vrot.slane %v3280, 4
      %v3283 = vshll.u32 %v3058, 16
      %v3285 = vrot.slane %v3283, 5
      %v3286 = vsel %vm990, %v3281, %v3285
      %v3287 = vshrl.u32 %v3058, 16
      %v3289 = vrot.slane %v3287, 4
      %v3290 = vor.u32 %v3289, %v3285
      %v3291 = vrot.slane %v3290, 4
      %v3293 = vshll.u32 %v3059, 16
      %v3295 = vrot.slane %v3293, 5
      %v3296 = vsel %vm990, %v3291, %v3295
      %v3298 = vshrl.u32 %v3060, 16
      %v3300 = vrot.slane %v3298, 4
      %v3301 = vshll.u32 %v3060, 16
      %v3303 = vrot.slane %v3301, 5
      %v3304 = vor.u32 %v3300, %v3303
      %v3305 = vrot.slane %v3304, 4
      %v3307 = vshll.u32 %v3061, 16
      %v3309 = vrot.slane %v3307, 5
      %v3310 = vsel %vm990, %v3305, %v3309
      %v3311 = vshrl.u32 %v3061, 16
      %v3313 = vrot.slane %v3311, 4
      %v3314 = vor.u32 %v3313, %v3309
      %v3315 = vrot.slane %v3314, 4
      %v3317 = vshll.u32 %v3062, 16
      %v3319 = vrot.slane %v3317, 5
      %v3320 = vsel %vm990, %v3315, %v3319
      %v3322 = vshrl.u32 %v3063, 16
      %v3324 = vrot.slane %v3322, 4
      %v3325 = vshll.u32 %v3063, 16
      %v3327 = vrot.slane %v3325, 5
      %v3328 = vor.u32 %v3324, %v3327
      %v3329 = vrot.slane %v3328, 4
      %v3331 = vshll.u32 %v3064, 16
      %v3333 = vrot.slane %v3331, 5
      %v3334 = vsel %vm990, %v3329, %v3333
      %v3335 = vshrl.u32 %v3064, 16
      %v3337 = vrot.slane %v3335, 4
      %v3338 = vor.u32 %v3337, %v3333
      %v3339 = vrot.slane %v3338, 4
      %v3341 = vshll.u32 %v3065, 16
      %v3343 = vrot.slane %v3341, 5
      %v3344 = vsel %vm990, %v3339, %v3343
      %v3346 = vshrl.u32 %v3066, 16
      %v3348 = vrot.slane %v3346, 4
      %v3349 = vshll.u32 %v3066, 16
      %v3351 = vrot.slane %v3349, 5
      %v3352 = vor.u32 %v3348, %v3351
      %v3353 = vrot.slane %v3352, 4
      %v3355 = vshll.u32 %v3067, 16
      %v3357 = vrot.slane %v3355, 5
      %v3358 = vsel %vm990, %v3353, %v3357
      %v3359 = vshrl.u32 %v3067, 16
      %v3361 = vrot.slane %v3359, 4
      %v3362 = vor.u32 %v3361, %v3357
      %v3363 = vrot.slane %v3362, 4
      %v3365 = vshll.u32 %v3068, 16
      %v3367 = vrot.slane %v3365, 5
      %v3368 = vsel %vm990, %v3363, %v3367
      %v3370 = vshrl.u32 %v3069, 16
      %v3372 = vrot.slane %v3370, 4
      %v3373 = vshll.u32 %v3069, 16
      %v3375 = vrot.slane %v3373, 5
      %v3376 = vor.u32 %v3372, %v3375
      %v3377 = vrot.slane %v3376, 4
      %v3379 = vshll.u32 %v3070, 16
      %v3381 = vrot.slane %v3379, 5
      %v3382 = vsel %vm990, %v3377, %v3381
      %v3383 = vshrl.u32 %v3070, 16
      %v3385 = vrot.slane %v3383, 4
      %v3386 = vor.u32 %v3385, %v3381
      %v3387 = vrot.slane %v3386, 4
      %v3389 = vshll.u32 %v3071, 16
      %v3391 = vrot.slane %v3389, 5
      %v3392 = vsel %vm990, %v3387, %v3391
      %v3394 = vshrl.u32 %v3072, 16
      %v3396 = vrot.slane %v3394, 4
      %v3397 = vshll.u32 %v3072, 16
      %v3399 = vrot.slane %v3397, 5
      %v3400 = vor.u32 %v3396, %v3399
      %v3401 = vrot.slane %v3400, 4
      %v3403 = vshll.u32 %v3073, 16
      %v3405 = vrot.slane %v3403, 5
      %v3406 = vsel %vm990, %v3401, %v3405
      %v3407 = vshrl.u32 %v3073, 16
      %v3409 = vrot.slane %v3407, 4
      %v3410 = vor.u32 %v3409, %v3405
      %v3411 = vrot.slane %v3410, 4
      %v3413 = vshll.u32 %v3074, 16
      %v3415 = vrot.slane %v3413, 5
      %v3416 = vsel %vm990, %v3411, %v3415
      %v3418 = vshrl.u32 %v3075, 16
      %v3420 = vrot.slane %v3418, 4
      %v3421 = vshll.u32 %v3075, 16
      %v3423 = vrot.slane %v3421, 5
      %v3424 = vor.u32 %v3420, %v3423
      %v3425 = vrot.slane %v3424, 4
      %v3427 = vshll.u32 %v3076, 16
      %v3429 = vrot.slane %v3427, 5
      %v3430 = vsel %vm990, %v3425, %v3429
      %v3431 = vshrl.u32 %v3076, 16
      %v3433 = vrot.slane %v3431, 4
      %v3434 = vor.u32 %v3433, %v3429
      %v3435 = vrot.slane %v3434, 4
      %v3437 = vshll.u32 %v3077, 16
      %v3439 = vrot.slane %v3437, 5
      %v3440 = vsel %vm990, %v3435, %v3439
      %v3442 = vshrl.u32 %v3078, 16
      %v3444 = vrot.slane %v3442, 4
      %v3445 = vshll.u32 %v3078, 16
      %v3447 = vrot.slane %v3445, 5
      %v3448 = vor.u32 %v3444, %v3447
      %v3449 = vrot.slane %v3448, 4
      %v3451 = vshll.u32 %v3079, 16
      %v3453 = vrot.slane %v3451, 5
      %v3454 = vsel %vm990, %v3449, %v3453
      %v3455 = vshrl.u32 %v3079, 16
      %v3457 = vrot.slane %v3455, 4
      %v3458 = vor.u32 %v3457, %v3453
      %v3459 = vrot.slane %v3458, 4
      %v3461 = vshll.u32 %v3080, 16
      %v3463 = vrot.slane %v3461, 5
      %v3464 = vsel %vm990, %v3459, %v3463
      %v3465 = vunpack.c.l.b16 %v3094
      %v3466 = vunpack.c.l.b16 %v3104
      %v3467 = vunpack.c.l.b16 %v3118
      %v3468 = vunpack.c.l.b16 %v3128
      %v3469 = vunpack.c.l.b16 %v3142
      %v3470 = vunpack.c.l.b16 %v3152
      %v3471 = vunpack.c.l.b16 %v3166
      %v3472 = vunpack.c.l.b16 %v3176
      %v3473 = vunpack.c.l.b16 %v3190
      %v3474 = vunpack.c.l.b16 %v3200
      %v3475 = vunpack.c.l.b16 %v3214
      %v3476 = vunpack.c.l.b16 %v3224
      %v3477 = vunpack.c.l.b16 %v3238
      %v3478 = vunpack.c.l.b16 %v3248
      %v3479 = vunpack.c.l.b16 %v3262
      %v3480 = vunpack.c.l.b16 %v3272
      %v3481 = vunpack.c.l.b16 %v3286
      %v3482 = vunpack.c.l.b16 %v3296
      %v3483 = vunpack.c.l.b16 %v3310
      %v3484 = vunpack.c.l.b16 %v3320
      %v3485 = vunpack.c.l.b16 %v3334
      %v3486 = vunpack.c.l.b16 %v3344
      %v3487 = vunpack.c.l.b16 %v3358
      %v3488 = vunpack.c.l.b16 %v3368
      %v3489 = vunpack.c.l.b16 %v3382
      %v3490 = vunpack.c.l.b16 %v3392
      %v3491 = vunpack.c.l.b16 %v3406
      %v3492 = vunpack.c.l.b16 %v3416
      %v3493 = vunpack.c.l.b16 %v3430
      %v3494 = vunpack.c.l.b16 %v3440
      %v3495 = vunpack.c.l.b16 %v3454
      %v3496 = vunpack.c.l.b16 %v3464
      %v3497 = vpack.c.b16 %v3466, %v3465
      %v3498 = vpack.c.b16 %v3468, %v3467
      %v3499 = vpack.c.b16 %v3470, %v3469
      %v3500 = vpack.c.b16 %v3472, %v3471
      %v3501 = vpack.c.b16 %v3474, %v3473
      %v3502 = vpack.c.b16 %v3476, %v3475
      %v3503 = vpack.c.b16 %v3478, %v3477
      %v3504 = vpack.c.b16 %v3480, %v3479
      %v3505 = vpack.c.b16 %v3482, %v3481
      %v3506 = vpack.c.b16 %v3484, %v3483
      %v3507 = vpack.c.b16 %v3486, %v3485
      %v3508 = vpack.c.b16 %v3488, %v3487
      %v3509 = vpack.c.b16 %v3490, %v3489
      %v3510 = vpack.c.b16 %v3492, %v3491
      %v3511 = vpack.c.b16 %v3494, %v3493
      %v3512 = vpack.c.b16 %v3496, %v3495
      %3513 = vrot.lane.b32.xlu0 %v3497, 28
      %v3514 = vpop.permute.xlu0 %3513
      %3515 = vrot.lane.b32.xlu0 %v3498, 28
      %v3516 = vpop.permute.xlu0 %3515
      %3517 = vrot.lane.b32.xlu0 %v3499, 28
      %v3518 = vpop.permute.xlu0 %3517
      %3519 = vrot.lane.b32.xlu0 %v3500, 28
      %v3520 = vpop.permute.xlu0 %3519
      %3521 = vrot.lane.b32.xlu0 %v3501, 28
      %v3522 = vpop.permute.xlu0 %3521
      %3523 = vrot.lane.b32.xlu0 %v3502, 28
      %v3524 = vpop.permute.xlu0 %3523
      %3525 = vrot.lane.b32.xlu0 %v3503, 28
      %v3526 = vpop.permute.xlu0 %3525
      %3527 = vrot.lane.b32.xlu0 %v3504, 28
      %v3528 = vpop.permute.xlu0 %3527
      %3529 = vrot.lane.b32.xlu0 %v3505, 28
      %v3530 = vpop.permute.xlu0 %3529
      %3531 = vrot.lane.b32.xlu0 %v3506, 28
      %v3532 = vpop.permute.xlu0 %3531
      %3533 = vrot.lane.b32.xlu0 %v3507, 28
      %v3534 = vpop.permute.xlu0 %3533
      %3535 = vrot.lane.b32.xlu0 %v3508, 28
      %v3536 = vpop.permute.xlu0 %3535
      %3537 = vrot.lane.b32.xlu0 %v3509, 28
      %v3538 = vpop.permute.xlu0 %3537
      %3539 = vrot.lane.b32.xlu0 %v3510, 28
      %v3540 = vpop.permute.xlu0 %3539
      %3541 = vrot.lane.b32.xlu0 %v3511, 28
      %v3542 = vpop.permute.xlu0 %3541
      %3543 = vrot.lane.b32.xlu0 %v3512, 28
      %v3544 = vpop.permute.xlu0 %3543
      %vm3561 = vcmask 261344
      %3562 = vst.msk [vmem:[#allocation3] sm:$0xff] %vm3561, %v3514
      %3563 = vst.msk [vmem:[#allocation3 + $0x8] sm:$0xff] %vm3561, %v3516
      %3564 = vst.msk [vmem:[#allocation3 + $0x10] sm:$0xff] %vm3561, %v3518
      %3565 = vst.msk [vmem:[#allocation3 + $0x18] sm:$0xff] %vm3561, %v3520
      %3566 = vst.msk [vmem:[#allocation3 + $0x20] sm:$0xff] %vm3561, %v3522
      %3567 = vst.msk [vmem:[#allocation3 + $0x28] sm:$0xff] %vm3561, %v3524
      %3568 = vst.msk [vmem:[#allocation3 + $0x30] sm:$0xff] %vm3561, %v3526
      %3569 = vst.msk [vmem:[#allocation3 + $0x38] sm:$0xff] %vm3561, %v3528
      %3570 = vst.msk [vmem:[#allocation3 + $0x40] sm:$0xff] %vm3561, %v3530
      %3571 = vst.msk [vmem:[#allocation3 + $0x48] sm:$0xff] %vm3561, %v3532
      %3572 = vst.msk [vmem:[#allocation3 + $0x50] sm:$0xff] %vm3561, %v3534
      %3573 = vst.msk [vmem:[#allocation3 + $0x58] sm:$0xff] %vm3561, %v3536
      %3574 = vst.msk [vmem:[#allocation3 + $0x60] sm:$0xff] %vm3561, %v3538
      %3575 = vst.msk [vmem:[#allocation3 + $0x68] sm:$0xff] %vm3561, %v3540
      %3576 = vst.msk [vmem:[#allocation3 + $0x70] sm:$0xff] %vm3561, %v3542
      %3577 = vst.msk [vmem:[#allocation3 + $0x78] sm:$0xff] %vm3561, %v3544
      %v3578 = vld [vmem:[%s2855] sm:$0xe]
      %v3579 = vld [vmem:[%s2855 + $0x4] sm:$0xf]
      %v3580 = vld [vmem:[%s2855 + $0x8] sm:$0x1]
      %v3581 = vld [vmem:[%s2855 + $0xc] sm:$0xe]
      %v3582 = vld [vmem:[%s2855 + $0x10] sm:$0xf]
      %v3583 = vld [vmem:[%s2855 + $0x14] sm:$0x1]
      %v3584 = vld [vmem:[%s2855 + $0x18] sm:$0xe]
      %v3585 = vld [vmem:[%s2855 + $0x1c] sm:$0xf]
      %v3586 = vld [vmem:[%s2855 + $0x20] sm:$0x1]
      %v3587 = vld [vmem:[%s2855 + $0x24] sm:$0xe]
      %v3588 = vld [vmem:[%s2855 + $0x28] sm:$0xf]
      %v3589 = vld [vmem:[%s2855 + $0x2c] sm:$0x1]
      %v3590 = vld [vmem:[%s2855 + $0x30] sm:$0xe]
      %v3591 = vld [vmem:[%s2855 + $0x34] sm:$0xf]
      %v3592 = vld [vmem:[%s2855 + $0x38] sm:$0x1]
      %v3593 = vld [vmem:[%s2855 + $0x3c] sm:$0xe]
      %v3594 = vld [vmem:[%s2855 + $0x40] sm:$0xf]
      %v3595 = vld [vmem:[%s2855 + $0x44] sm:$0x1]
      %v3596 = vld [vmem:[%s2855 + $0x48] sm:$0xe]
      %v3597 = vld [vmem:[%s2855 + $0x4c] sm:$0xf]
      %v3598 = vld [vmem:[%s2855 + $0x50] sm:$0x1]
      %v3599 = vld [vmem:[%s2855 + $0x54] sm:$0xe]
      %v3600 = vld [vmem:[%s2855 + $0x58] sm:$0xf]
      %v3601 = vld [vmem:[%s2855 + $0x5c] sm:$0x1]
      %v3602 = vld [vmem:[%s2855 + $0x60] sm:$0xe]
      %v3603 = vld [vmem:[%s2855 + $0x64] sm:$0xf]
      %v3604 = vld [vmem:[%s2855 + $0x68] sm:$0x1]
      %v3605 = vld [vmem:[%s2855 + $0x6c] sm:$0xe]
      %v3606 = vld [vmem:[%s2855 + $0x70] sm:$0xf]
      %v3607 = vld [vmem:[%s2855 + $0x74] sm:$0x1]
      %v3608 = vld [vmem:[%s2855 + $0x78] sm:$0xe]
      %v3609 = vld [vmem:[%s2855 + $0x7c] sm:$0xf]
      %v3610 = vld [vmem:[%s2855 + $0x80] sm:$0x1]
      %v3611 = vld [vmem:[%s2855 + $0x84] sm:$0xe]
      %v3612 = vld [vmem:[%s2855 + $0x88] sm:$0xf]
      %v3613 = vld [vmem:[%s2855 + $0x8c] sm:$0x1]
      %v3614 = vld [vmem:[%s2855 + $0x90] sm:$0xe]
      %v3615 = vld [vmem:[%s2855 + $0x94] sm:$0xf]
      %v3616 = vld [vmem:[%s2855 + $0x98] sm:$0x1]
      %v3617 = vld [vmem:[%s2855 + $0x9c] sm:$0xe]
      %v3618 = vld [vmem:[%s2855 + $0xa0] sm:$0xf]
      %v3619 = vld [vmem:[%s2855 + $0xa4] sm:$0x1]
      %v3620 = vld [vmem:[%s2855 + $0xa8] sm:$0xe]
      %v3621 = vld [vmem:[%s2855 + $0xac] sm:$0xf]
      %v3622 = vld [vmem:[%s2855 + $0xb0] sm:$0x1]
      %v3623 = vld [vmem:[%s2855 + $0xb4] sm:$0xe]
      %v3624 = vld [vmem:[%s2855 + $0xb8] sm:$0xf]
      %v3625 = vld [vmem:[%s2855 + $0xbc] sm:$0x1]
      %v3674 = vrot.slane %v3578, 5
      %v3675 = vrot.slane %v3674, 4
      %v3676 = vrot.slane %v3579, 5
      %v3677 = vsel %vm1586, %v3675, %v3676
      %v3678 = vrot.slane %v3676, 4
      %v3679 = vrot.slane %v3580, 5
      %v3680 = vsel %vm1586, %v3678, %v3679
      %v3681 = vrot.slane %v3581, 5
      %v3682 = vrot.slane %v3681, 4
      %v3683 = vrot.slane %v3582, 5
      %v3684 = vsel %vm1586, %v3682, %v3683
      %v3685 = vrot.slane %v3683, 4
      %v3686 = vrot.slane %v3583, 5
      %v3687 = vsel %vm1586, %v3685, %v3686
      %v3688 = vrot.slane %v3584, 5
      %v3689 = vrot.slane %v3688, 4
      %v3690 = vrot.slane %v3585, 5
      %v3691 = vsel %vm1586, %v3689, %v3690
      %v3692 = vrot.slane %v3690, 4
      %v3693 = vrot.slane %v3586, 5
      %v3694 = vsel %vm1586, %v3692, %v3693
      %v3695 = vrot.slane %v3587, 5
      %v3696 = vrot.slane %v3695, 4
      %v3697 = vrot.slane %v3588, 5
      %v3698 = vsel %vm1586, %v3696, %v3697
      %v3699 = vrot.slane %v3697, 4
      %v3700 = vrot.slane %v3589, 5
      %v3701 = vsel %vm1586, %v3699, %v3700
      %v3702 = vrot.slane %v3590, 5
      %v3703 = vrot.slane %v3702, 4
      %v3704 = vrot.slane %v3591, 5
      %v3705 = vsel %vm1586, %v3703, %v3704
      %v3706 = vrot.slane %v3704, 4
      %v3707 = vrot.slane %v3592, 5
      %v3708 = vsel %vm1586, %v3706, %v3707
      %v3709 = vrot.slane %v3593, 5
      %v3710 = vrot.slane %v3709, 4
      %v3711 = vrot.slane %v3594, 5
      %v3712 = vsel %vm1586, %v3710, %v3711
      %v3713 = vrot.slane %v3711, 4
      %v3714 = vrot.slane %v3595, 5
      %v3715 = vsel %vm1586, %v3713, %v3714
      %v3716 = vrot.slane %v3596, 5
      %v3717 = vrot.slane %v3716, 4
      %v3718 = vrot.slane %v3597, 5
      %v3719 = vsel %vm1586, %v3717, %v3718
      %v3720 = vrot.slane %v3718, 4
      %v3721 = vrot.slane %v3598, 5
      %v3722 = vsel %vm1586, %v3720, %v3721
      %v3723 = vrot.slane %v3599, 5
      %v3724 = vrot.slane %v3723, 4
      %v3725 = vrot.slane %v3600, 5
      %v3726 = vsel %vm1586, %v3724, %v3725
      %v3727 = vrot.slane %v3725, 4
      %v3728 = vrot.slane %v3601, 5
      %v3729 = vsel %vm1586, %v3727, %v3728
      %v3730 = vrot.slane %v3602, 5
      %v3731 = vrot.slane %v3730, 4
      %v3732 = vrot.slane %v3603, 5
      %v3733 = vsel %vm1586, %v3731, %v3732
      %v3734 = vrot.slane %v3732, 4
      %v3735 = vrot.slane %v3604, 5
      %v3736 = vsel %vm1586, %v3734, %v3735
      %v3737 = vrot.slane %v3605, 5
      %v3738 = vrot.slane %v3737, 4
      %v3739 = vrot.slane %v3606, 5
      %v3740 = vsel %vm1586, %v3738, %v3739
      %v3741 = vrot.slane %v3739, 4
      %v3742 = vrot.slane %v3607, 5
      %v3743 = vsel %vm1586, %v3741, %v3742
      %v3744 = vrot.slane %v3608, 5
      %v3745 = vrot.slane %v3744, 4
      %v3746 = vrot.slane %v3609, 5
      %v3747 = vsel %vm1586, %v3745, %v3746
      %v3748 = vrot.slane %v3746, 4
      %v3749 = vrot.slane %v3610, 5
      %v3750 = vsel %vm1586, %v3748, %v3749
      %v3751 = vrot.slane %v3611, 5
      %v3752 = vrot.slane %v3751, 4
      %v3753 = vrot.slane %v3612, 5
      %v3754 = vsel %vm1586, %v3752, %v3753
      %v3755 = vrot.slane %v3753, 4
      %v3756 = vrot.slane %v3613, 5
      %v3757 = vsel %vm1586, %v3755, %v3756
      %v3758 = vrot.slane %v3614, 5
      %v3759 = vrot.slane %v3758, 4
      %v3760 = vrot.slane %v3615, 5
      %v3761 = vsel %vm1586, %v3759, %v3760
      %v3762 = vrot.slane %v3760, 4
      %v3763 = vrot.slane %v3616, 5
      %v3764 = vsel %vm1586, %v3762, %v3763
      %v3765 = vrot.slane %v3617, 5
      %v3766 = vrot.slane %v3765, 4
      %v3767 = vrot.slane %v3618, 5
      %v3768 = vsel %vm1586, %v3766, %v3767
      %v3769 = vrot.slane %v3767, 4
      %v3770 = vrot.slane %v3619, 5
      %v3771 = vsel %vm1586, %v3769, %v3770
      %v3772 = vrot.slane %v3620, 5
      %v3773 = vrot.slane %v3772, 4
      %v3774 = vrot.slane %v3621, 5
      %v3775 = vsel %vm1586, %v3773, %v3774
      %v3776 = vrot.slane %v3774, 4
      %v3777 = vrot.slane %v3622, 5
      %v3778 = vsel %vm1586, %v3776, %v3777
      %v3779 = vrot.slane %v3623, 5
      %v3780 = vrot.slane %v3779, 4
      %v3781 = vrot.slane %v3624, 5
      %v3782 = vsel %vm1586, %v3780, %v3781
      %v3783 = vrot.slane %v3781, 4
      %v3784 = vrot.slane %v3625, 5
      %v3785 = vsel %vm1586, %v3783, %v3784
      %v3786 = vunpack.c.l.b16 %v3677
      %v3787 = vunpack.c.l.b16 %v3680
      %v3788 = vunpack.c.l.b16 %v3684
      %v3789 = vunpack.c.l.b16 %v3687
      %v3790 = vunpack.c.l.b16 %v3691
      %v3791 = vunpack.c.l.b16 %v3694
      %v3792 = vunpack.c.l.b16 %v3698
      %v3793 = vunpack.c.l.b16 %v3701
      %v3794 = vunpack.c.l.b16 %v3705
      %v3795 = vunpack.c.l.b16 %v3708
      %v3796 = vunpack.c.l.b16 %v3712
      %v3797 = vunpack.c.l.b16 %v3715
      %v3798 = vunpack.c.l.b16 %v3719
      %v3799 = vunpack.c.l.b16 %v3722
      %v3800 = vunpack.c.l.b16 %v3726
      %v3801 = vunpack.c.l.b16 %v3729
      %v3802 = vunpack.c.l.b16 %v3733
      %v3803 = vunpack.c.l.b16 %v3736
      %v3804 = vunpack.c.l.b16 %v3740
      %v3805 = vunpack.c.l.b16 %v3743
      %v3806 = vunpack.c.l.b16 %v3747
      %v3807 = vunpack.c.l.b16 %v3750
      %v3808 = vunpack.c.l.b16 %v3754
      %v3809 = vunpack.c.l.b16 %v3757
      %v3810 = vunpack.c.l.b16 %v3761
      %v3811 = vunpack.c.l.b16 %v3764
      %v3812 = vunpack.c.l.b16 %v3768
      %v3813 = vunpack.c.l.b16 %v3771
      %v3814 = vunpack.c.l.b16 %v3775
      %v3815 = vunpack.c.l.b16 %v3778
      %v3816 = vunpack.c.l.b16 %v3782
      %v3817 = vunpack.c.l.b16 %v3785
      %v3818 = vpack.c.b16 %v3787, %v3786
      %v3819 = vpack.c.b16 %v3789, %v3788
      %v3820 = vpack.c.b16 %v3791, %v3790
      %v3821 = vpack.c.b16 %v3793, %v3792
      %v3822 = vpack.c.b16 %v3795, %v3794
      %v3823 = vpack.c.b16 %v3797, %v3796
      %v3824 = vpack.c.b16 %v3799, %v3798
      %v3825 = vpack.c.b16 %v3801, %v3800
      %v3826 = vpack.c.b16 %v3803, %v3802
      %v3827 = vpack.c.b16 %v3805, %v3804
      %v3828 = vpack.c.b16 %v3807, %v3806
      %v3829 = vpack.c.b16 %v3809, %v3808
      %v3830 = vpack.c.b16 %v3811, %v3810
      %v3831 = vpack.c.b16 %v3813, %v3812
      %v3832 = vpack.c.b16 %v3815, %v3814
      %v3833 = vpack.c.b16 %v3817, %v3816
      %3834 = vrot.lane.b32.xlu0 %v3818, 32
      %v3835 = vpop.permute.xlu0 %3834
      %3836 = vrot.lane.b32.xlu0 %v3819, 32
      %v3837 = vpop.permute.xlu0 %3836
      %3838 = vrot.lane.b32.xlu0 %v3820, 32
      %v3839 = vpop.permute.xlu0 %3838
      %3840 = vrot.lane.b32.xlu0 %v3821, 32
      %v3841 = vpop.permute.xlu0 %3840
      %3842 = vrot.lane.b32.xlu0 %v3822, 32
      %v3843 = vpop.permute.xlu0 %3842
      %3844 = vrot.lane.b32.xlu0 %v3823, 32
      %v3845 = vpop.permute.xlu0 %3844
      %3846 = vrot.lane.b32.xlu0 %v3824, 32
      %v3847 = vpop.permute.xlu0 %3846
      %3848 = vrot.lane.b32.xlu0 %v3825, 32
      %v3849 = vpop.permute.xlu0 %3848
      %3850 = vrot.lane.b32.xlu0 %v3826, 32
      %v3851 = vpop.permute.xlu0 %3850
      %3852 = vrot.lane.b32.xlu0 %v3827, 32
      %v3853 = vpop.permute.xlu0 %3852
      %3854 = vrot.lane.b32.xlu0 %v3828, 32
      %v3855 = vpop.permute.xlu0 %3854
      %3856 = vrot.lane.b32.xlu0 %v3829, 32
      %v3857 = vpop.permute.xlu0 %3856
      %3858 = vrot.lane.b32.xlu0 %v3830, 32
      %v3859 = vpop.permute.xlu0 %3858
      %3860 = vrot.lane.b32.xlu0 %v3831, 32
      %v3861 = vpop.permute.xlu0 %3860
      %3862 = vrot.lane.b32.xlu0 %v3832, 32
      %v3863 = vpop.permute.xlu0 %3862
      %3864 = vrot.lane.b32.xlu0 %v3833, 32
      %v3865 = vpop.permute.xlu0 %3864
      %vm3882 = vcmask 294144
      %3883 = vst.msk [vmem:[#allocation3] sm:$0xff] %vm3882, %v3835
      %3884 = vst.msk [vmem:[#allocation3 + $0x8] sm:$0xff] %vm3882, %v3837
      %3885 = vst.msk [vmem:[#allocation3 + $0x10] sm:$0xff] %vm3882, %v3839
      %3886 = vst.msk [vmem:[#allocation3 + $0x18] sm:$0xff] %vm3882, %v3841
      %3887 = vst.msk [vmem:[#allocation3 + $0x20] sm:$0xff] %vm3882, %v3843
      %3888 = vst.msk [vmem:[#allocation3 + $0x28] sm:$0xff] %vm3882, %v3845
      %3889 = vst.msk [vmem:[#allocation3 + $0x30] sm:$0xff] %vm3882, %v3847
      %3890 = vst.msk [vmem:[#allocation3 + $0x38] sm:$0xff] %vm3882, %v3849
      %3891 = vst.msk [vmem:[#allocation3 + $0x40] sm:$0xff] %vm3882, %v3851
      %3892 = vst.msk [vmem:[#allocation3 + $0x48] sm:$0xff] %vm3882, %v3853
      %3893 = vst.msk [vmem:[#allocation3 + $0x50] sm:$0xff] %vm3882, %v3855
      %3894 = vst.msk [vmem:[#allocation3 + $0x58] sm:$0xff] %vm3882, %v3857
      %3895 = vst.msk [vmem:[#allocation3 + $0x60] sm:$0xff] %vm3882, %v3859
      %3896 = vst.msk [vmem:[#allocation3 + $0x68] sm:$0xff] %vm3882, %v3861
      %3897 = vst.msk [vmem:[#allocation3 + $0x70] sm:$0xff] %vm3882, %v3863
      %3898 = vst.msk [vmem:[#allocation3 + $0x78] sm:$0xff] %vm3882, %v3865
      %v3899 = vld [vmem:[#allocation3] sm:$0xff]
      %v3900 = vld [vmem:[#allocation3 + $0x8] sm:$0xff]
      %v3901 = vld [vmem:[#allocation3 + $0x10] sm:$0xff]
      %v3902 = vld [vmem:[#allocation3 + $0x18] sm:$0xff]
      %v3903 = vld [vmem:[#allocation3 + $0x20] sm:$0xff]
      %v3904 = vld [vmem:[#allocation3 + $0x28] sm:$0xff]
      %v3905 = vld [vmem:[#allocation3 + $0x30] sm:$0xff]
      %v3906 = vld [vmem:[#allocation3 + $0x38] sm:$0xff]
      %v3907 = vld [vmem:[#allocation3 + $0x40] sm:$0xff]
      %v3908 = vld [vmem:[#allocation3 + $0x48] sm:$0xff]
      %v3909 = vld [vmem:[#allocation3 + $0x50] sm:$0xff]
      %v3910 = vld [vmem:[#allocation3 + $0x58] sm:$0xff]
      %v3911 = vld [vmem:[#allocation3 + $0x60] sm:$0xff]
      %v3912 = vld [vmem:[#allocation3 + $0x68] sm:$0xff]
      %v3913 = vld [vmem:[#allocation3 + $0x70] sm:$0xff]
      %v3914 = vld [vmem:[#allocation3 + $0x78] sm:$0xff]
      %v3915 = vld [vmem:[%s1] sm:$0xf]
      %v3916 = vld [vmem:[%s1 + $0x4] sm:$0xf]
      %v3917 = vld [vmem:[%s1 + $0x8] sm:$0xf]
      %v3918 = vld [vmem:[%s1 + $0xc] sm:$0xf]
      %v3919 = vld [vmem:[%s1 + $0x10] sm:$0x3]
      %v3925 = vunpack.c.l.b16 %v3915
      %v3926 = vunpack.c.l.b16 %v3916
      %v3927 = vunpack.c.l.b16 %v3917
      %v3928 = vunpack.c.l.b16 %v3918
      %v3929 = vunpack.c.l.b16 %v3919
      %v3930 = vpack.c.b16 %v3926, %v3925
      %v3931 = vpack.c.b16 %v3928, %v3927
      %v3932 = vpack.c.b16 %v3929, %v3929
      %vm3935 = vcmask 293888
      %v3937 = vsel %vm3935, %v3899, 0
      %v3940 = vsel %vm3935, %v3900, 0
      %v3943 = vsel %vm3935, %v3901, 0
      %v3946 = vsel %vm3935, %v3902, 0
      %v3949 = vsel %vm3935, %v3903, 0
      %v3952 = vsel %vm3935, %v3904, 0
      %v3955 = vsel %vm3935, %v3905, 0
      %v3958 = vsel %vm3935, %v3906, 0
      %v3961 = vsel %vm3935, %v3907, 0
      %v3964 = vsel %vm3935, %v3908, 0
      %v3967 = vsel %vm3935, %v3909, 0
      %v3970 = vsel %vm3935, %v3910, 0
      %v3973 = vsel %vm3935, %v3911, 0
      %v3976 = vsel %vm3935, %v3912, 0
      %v3979 = vsel %vm3935, %v3913, 0
      %v3982 = vsel %vm3935, %v3914, 0
      %vm3984 = vcmask 1041408
      %v3986 = vsel %vm3984, %v3932, 0
      %3988 = vmatprep.subr.bf16.mxu0 0
      %3989 = vmatpush1.bf16.msra.mxu0 %v3930
      %3990 = vmatprep.subr.bf16.mxu0 0
      %3991 = vmatpush1.bf16.msra.mxu0 %v3931
      %3992 = vmatprep.subr.bf16.mxu0 0
      %3993 = vmatpush1.bf16.msra.mxu0 %v3986
      %3994 = vmatprep.subr.bf16.mxu0 0
      %3995 = vmatpush1.bf16.msra.mxu0 0
      %3996 = vmatprep.subr.bf16.mxu0 0
      %3997 = vmatpush1.bf16.msra.mxu0 0
      %3998 = vmatprep.subr.bf16.mxu0 0
      %3999 = vmatpush1.bf16.msra.mxu0 0
      %4000 = vmatprep.subr.bf16.mxu0 0
      %4001 = vmatpush1.bf16.msra.mxu0 0
      %4002 = vmatprep.subr.bf16.mxu0 0
      %4003 = vmatpush1.bf16.msra.mxu0 0
      %4004 = vmatprep.subr.bf16.mxu0 0
      %4005 = vmatpush1.bf16.msra.mxu0 0
      %4006 = vmatprep.subr.bf16.mxu0 0
      %4007 = vmatpush1.bf16.msra.mxu0 0
      %4008 = vmatprep.subr.bf16.mxu0 0
      %4009 = vmatpush1.bf16.msra.mxu0 0
      %4010 = vmatprep.subr.bf16.mxu0 0
      %4011 = vmatpush1.bf16.msra.mxu0 0
      %4012 = vmatprep.subr.bf16.mxu0 0
      %4013 = vmatpush1.bf16.msra.mxu0 0
      %4014 = vmatprep.subr.bf16.mxu0 0
      %4015 = vmatpush1.bf16.msra.mxu0 0
      %4016 = vmatprep.subr.bf16.mxu0 0
      %4017 = vmatpush1.bf16.msra.mxu0 0
      %4018 = vmatprep.subr.bf16.mxu0 0
      %4019 = vmatpush1.bf16.msra.mxu0 0
      %4020 = vmatprep.mubr.bf16.mxu0 0
      %4021 = vmatmul.mubr.bf16.gmra.mrb[0].mxu0 %v3937
      %v4022 = vpop.f32.mrb[0].mxu0
      %v4023 = vadd.f32 0.0, %v4022
      %v4024 = vpop.f32.mrb[0].mxu0
      %v4025 = vpop.f32.mrb[0].mxu0
      %v4026 = vadd.f32 0.0, %v4025
      %v4027 = vpop.f32.mrb[0].mxu0
      %4028 = vmatprep.mubr.bf16.mxu0 0
      %4029 = vmatmul.mubr.bf16.gmra.mrb[0].mxu0 %v3940
      %v4030 = vpop.f32.mrb[0].mxu0
      %v4031 = vadd.f32 0.0, %v4030
      %v4032 = vpop.f32.mrb[0].mxu0
      %v4033 = vpop.f32.mrb[0].mxu0
      %v4034 = vadd.f32 0.0, %v4033
      %v4035 = vpop.f32.mrb[0].mxu0
      %4036 = vmatprep.mubr.bf16.mxu0 0
      %4037 = vmatmul.mubr.bf16.gmra.mrb[0].mxu0 %v3943
      %v4038 = vpop.f32.mrb[0].mxu0
      %v4039 = vadd.f32 0.0, %v4038
      %v4040 = vpop.f32.mrb[0].mxu0
      %v4041 = vpop.f32.mrb[0].mxu0
      %v4042 = vadd.f32 0.0, %v4041
      %v4043 = vpop.f32.mrb[0].mxu0
      %4044 = vmatprep.mubr.bf16.mxu0 0
      %4045 = vmatmul.mubr.bf16.gmra.mrb[0].mxu0 %v3946
      %v4046 = vpop.f32.mrb[0].mxu0
      %v4047 = vadd.f32 0.0, %v4046
      %v4048 = vpop.f32.mrb[0].mxu0
      %v4049 = vpop.f32.mrb[0].mxu0
      %v4050 = vadd.f32 0.0, %v4049
      %v4051 = vpop.f32.mrb[0].mxu0
      %4052 = vmatprep.mubr.bf16.mxu0 0
      %4053 = vmatmul.mubr.bf16.gmra.mrb[0].mxu0 %v3949
      %v4054 = vpop.f32.mrb[0].mxu0
      %v4055 = vadd.f32 0.0, %v4054
      %v4056 = vpop.f32.mrb[0].mxu0
      %v4057 = vpop.f32.mrb[0].mxu0
      %v4058 = vadd.f32 0.0, %v4057
      %v4059 = vpop.f32.mrb[0].mxu0
      %4060 = vmatprep.mubr.bf16.mxu0 0
      %4061 = vmatmul.mubr.bf16.gmra.mrb[0].mxu0 %v3952
      %v4062 = vpop.f32.mrb[0].mxu0
      %v4063 = vadd.f32 0.0, %v4062
      %v4064 = vpop.f32.mrb[0].mxu0
      %v4065 = vpop.f32.mrb[0].mxu0
      %v4066 = vadd.f32 0.0, %v4065
      %v4067 = vpop.f32.mrb[0].mxu0
      %4068 = vmatprep.mubr.bf16.mxu0 0
      %4069 = vmatmul.mubr.bf16.gmra.mrb[0].mxu0 %v3955
      %v4070 = vpop.f32.mrb[0].mxu0
      %v4071 = vadd.f32 0.0, %v4070
      %v4072 = vpop.f32.mrb[0].mxu0
      %v4073 = vpop.f32.mrb[0].mxu0
      %v4074 = vadd.f32 0.0, %v4073
      %v4075 = vpop.f32.mrb[0].mxu0
      %4076 = vmatprep.mubr.bf16.mxu0 0
      %4077 = vmatmul.mubr.bf16.gmra.mrb[0].mxu0 %v3958
      %v4078 = vpop.f32.mrb[0].mxu0
      %v4079 = vadd.f32 0.0, %v4078
      %v4080 = vpop.f32.mrb[0].mxu0
      %v4081 = vpop.f32.mrb[0].mxu0
      %v4082 = vadd.f32 0.0, %v4081
      %v4083 = vpop.f32.mrb[0].mxu0
      %4084 = vmatprep.mubr.bf16.mxu0 0
      %4085 = vmatmul.mubr.bf16.gmra.mrb[0].mxu0 %v3961
      %v4086 = vpop.f32.mrb[0].mxu0
      %v4087 = vadd.f32 0.0, %v4086
      %v4088 = vpop.f32.mrb[0].mxu0
      %v4089 = vpop.f32.mrb[0].mxu0
      %v4090 = vadd.f32 0.0, %v4089
      %v4091 = vpop.f32.mrb[0].mxu0
      %4092 = vmatprep.mubr.bf16.mxu0 0
      %4093 = vmatmul.mubr.bf16.gmra.mrb[0].mxu0 %v3964
      %v4094 = vpop.f32.mrb[0].mxu0
      %v4095 = vadd.f32 0.0, %v4094
      %v4096 = vpop.f32.mrb[0].mxu0
      %v4097 = vpop.f32.mrb[0].mxu0
      %v4098 = vadd.f32 0.0, %v4097
      %v4099 = vpop.f32.mrb[0].mxu0
      %4100 = vmatprep.mubr.bf16.mxu0 0
      %4101 = vmatmul.mubr.bf16.gmra.mrb[0].mxu0 %v3967
      %v4102 = vpop.f32.mrb[0].mxu0
      %v4103 = vadd.f32 0.0, %v4102
      %v4104 = vpop.f32.mrb[0].mxu0
      %v4105 = vpop.f32.mrb[0].mxu0
      %v4106 = vadd.f32 0.0, %v4105
      %v4107 = vpop.f32.mrb[0].mxu0
      %4108 = vmatprep.mubr.bf16.mxu0 0
      %4109 = vmatmul.mubr.bf16.gmra.mrb[0].mxu0 %v3970
      %v4110 = vpop.f32.mrb[0].mxu0
      %v4111 = vadd.f32 0.0, %v4110
      %v4112 = vpop.f32.mrb[0].mxu0
      %v4113 = vpop.f32.mrb[0].mxu0
      %v4114 = vadd.f32 0.0, %v4113
      %v4115 = vpop.f32.mrb[0].mxu0
      %4116 = vmatprep.mubr.bf16.mxu0 0
      %4117 = vmatmul.mubr.bf16.gmra.mrb[0].mxu0 %v3973
      %v4118 = vpop.f32.mrb[0].mxu0
      %v4119 = vadd.f32 0.0, %v4118
      %v4120 = vpop.f32.mrb[0].mxu0
      %v4121 = vpop.f32.mrb[0].mxu0
      %v4122 = vadd.f32 0.0, %v4121
      %v4123 = vpop.f32.mrb[0].mxu0
      %4124 = vmatprep.mubr.bf16.mxu0 0
      %4125 = vmatmul.mubr.bf16.gmra.mrb[0].mxu0 %v3976
      %v4126 = vpop.f32.mrb[0].mxu0
      %v4127 = vadd.f32 0.0, %v4126
      %v4128 = vpop.f32.mrb[0].mxu0
      %v4129 = vpop.f32.mrb[0].mxu0
      %v4130 = vadd.f32 0.0, %v4129
      %v4131 = vpop.f32.mrb[0].mxu0
      %4132 = vmatprep.mubr.bf16.mxu0 0
      %4133 = vmatmul.mubr.bf16.gmra.mrb[0].mxu0 %v3979
      %v4134 = vpop.f32.mrb[0].mxu0
      %v4135 = vadd.f32 0.0, %v4134
      %v4136 = vpop.f32.mrb[0].mxu0
      %v4137 = vpop.f32.mrb[0].mxu0
      %v4138 = vadd.f32 0.0, %v4137
      %v4139 = vpop.f32.mrb[0].mxu0
      %4140 = vmatprep.mubr.bf16.mxu0 0
      %4141 = vmatmul.mubr.bf16.gmra.mrb[0].mxu0 %v3982
      %v4142 = vpop.f32.mrb[0].mxu0
      %v4143 = vadd.f32 0.0, %v4142
      %v4144 = vpop.f32.mrb[0].mxu0
      %v4145 = vpop.f32.mrb[0].mxu0
      %v4146 = vadd.f32 0.0, %v4145
      %v4147 = vpop.f32.mrb[0].mxu0
      %4148 = vdwg.mxu0
      %v4149 = vpack.c.bf16 %v4026, %v4023
      %v4150 = vpack.c.bf16 %v4034, %v4031
      %v4151 = vpack.c.bf16 %v4042, %v4039
      %v4152 = vpack.c.bf16 %v4050, %v4047
      %v4153 = vpack.c.bf16 %v4058, %v4055
      %v4154 = vpack.c.bf16 %v4066, %v4063
      %v4155 = vpack.c.bf16 %v4074, %v4071
      %v4156 = vpack.c.bf16 %v4082, %v4079
      %v4157 = vpack.c.bf16 %v4090, %v4087
      %v4158 = vpack.c.bf16 %v4098, %v4095
      %v4159 = vpack.c.bf16 %v4106, %v4103
      %v4160 = vpack.c.bf16 %v4114, %v4111
      %v4161 = vpack.c.bf16 %v4122, %v4119
      %v4162 = vpack.c.bf16 %v4130, %v4127
      %v4163 = vpack.c.bf16 %v4138, %v4135
      %v4164 = vpack.c.bf16 %v4146, %v4143
      %v4181 = vunpack.c.l.b16 %v4149
      %v4182 = vunpack.c.h.b16 %v4149
      %v4183 = vunpack.c.l.b16 %v4150
      %v4184 = vunpack.c.h.b16 %v4150
      %v4185 = vunpack.c.l.b16 %v4151
      %v4186 = vunpack.c.h.b16 %v4151
      %v4187 = vunpack.c.l.b16 %v4152
      %v4188 = vunpack.c.h.b16 %v4152
      %v4189 = vunpack.c.l.b16 %v4153
      %v4190 = vunpack.c.h.b16 %v4153
      %v4191 = vunpack.c.l.b16 %v4154
      %v4192 = vunpack.c.h.b16 %v4154
      %v4193 = vunpack.c.l.b16 %v4155
      %v4194 = vunpack.c.h.b16 %v4155
      %v4195 = vunpack.c.l.b16 %v4156
      %v4196 = vunpack.c.h.b16 %v4156
      %v4197 = vunpack.c.l.b16 %v4157
      %v4198 = vunpack.c.h.b16 %v4157
      %v4199 = vunpack.c.l.b16 %v4158
      %v4200 = vunpack.c.h.b16 %v4158
      %v4201 = vunpack.c.l.b16 %v4159
      %v4202 = vunpack.c.h.b16 %v4159
      %v4203 = vunpack.c.l.b16 %v4160
      %v4204 = vunpack.c.h.b16 %v4160
      %v4205 = vunpack.c.l.b16 %v4161
      %v4206 = vunpack.c.h.b16 %v4161
      %v4207 = vunpack.c.l.b16 %v4162
      %v4208 = vunpack.c.h.b16 %v4162
      %v4209 = vunpack.c.l.b16 %v4163
      %v4210 = vunpack.c.h.b16 %v4163
      %v4211 = vunpack.c.l.b16 %v4164
      %v4212 = vunpack.c.h.b16 %v4164
      %v4213 = vpack.c.b16 %v4181, %v4181
      %v4214 = vpack.c.b16 %v4182, %v4182
      %v4215 = vpack.c.b16 %v4183, %v4183
      %v4216 = vpack.c.b16 %v4184, %v4184
      %v4217 = vpack.c.b16 %v4185, %v4185
      %v4218 = vpack.c.b16 %v4186, %v4186
      %v4219 = vpack.c.b16 %v4187, %v4187
      %v4220 = vpack.c.b16 %v4188, %v4188
      %v4221 = vpack.c.b16 %v4189, %v4189
      %v4222 = vpack.c.b16 %v4190, %v4190
      %v4223 = vpack.c.b16 %v4191, %v4191
      %v4224 = vpack.c.b16 %v4192, %v4192
      %v4225 = vpack.c.b16 %v4193, %v4193
      %v4226 = vpack.c.b16 %v4194, %v4194
      %v4227 = vpack.c.b16 %v4195, %v4195
      %v4228 = vpack.c.b16 %v4196, %v4196
      %v4229 = vpack.c.b16 %v4197, %v4197
      %v4230 = vpack.c.b16 %v4198, %v4198
      %v4231 = vpack.c.b16 %v4199, %v4199
      %v4232 = vpack.c.b16 %v4200, %v4200
      %v4233 = vpack.c.b16 %v4201, %v4201
      %v4234 = vpack.c.b16 %v4202, %v4202
      %v4235 = vpack.c.b16 %v4203, %v4203
      %v4236 = vpack.c.b16 %v4204, %v4204
      %v4237 = vpack.c.b16 %v4205, %v4205
      %v4238 = vpack.c.b16 %v4206, %v4206
      %v4239 = vpack.c.b16 %v4207, %v4207
      %v4240 = vpack.c.b16 %v4208, %v4208
      %v4241 = vpack.c.b16 %v4209, %v4209
      %v4242 = vpack.c.b16 %v4210, %v4210
      %v4243 = vpack.c.b16 %v4211, %v4211
      %v4244 = vpack.c.b16 %v4212, %v4212
      %vm4277 = vcmask 257024
      %4278 = vst.msk [vmem:[%s208] sm:$0xf] %vm4277, %v4213
      %4279 = vst.msk [vmem:[%s208 + $0x4] sm:$0xf] %vm4277, %v4214
      %4280 = vst.msk [vmem:[%s208 + $0x8] sm:$0xf] %vm4277, %v4215
      %4281 = vst.msk [vmem:[%s208 + $0xc] sm:$0xf] %vm4277, %v4216
      %4282 = vst.msk [vmem:[%s208 + $0x10] sm:$0xf] %vm4277, %v4217
      %4283 = vst.msk [vmem:[%s208 + $0x14] sm:$0xf] %vm4277, %v4218
      %4284 = vst.msk [vmem:[%s208 + $0x18] sm:$0xf] %vm4277, %v4219
      %4285 = vst.msk [vmem:[%s208 + $0x1c] sm:$0xf] %vm4277, %v4220
      %4286 = vst.msk [vmem:[%s208 + $0x20] sm:$0xf] %vm4277, %v4221
      %4287 = vst.msk [vmem:[%s208 + $0x24] sm:$0xf] %vm4277, %v4222
      %4288 = vst.msk [vmem:[%s208 + $0x28] sm:$0xf] %vm4277, %v4223
      %4289 = vst.msk [vmem:[%s208 + $0x2c] sm:$0xf] %vm4277, %v4224
      %4290 = vst.msk [vmem:[%s208 + $0x30] sm:$0xf] %vm4277, %v4225
      %4291 = vst.msk [vmem:[%s208 + $0x34] sm:$0xf] %vm4277, %v4226
      %4292 = vst.msk [vmem:[%s208 + $0x38] sm:$0xf] %vm4277, %v4227
      %4293 = vst.msk [vmem:[%s208 + $0x3c] sm:$0xf] %vm4277, %v4228
      %4294 = vst.msk [vmem:[%s208 + $0x40] sm:$0xf] %vm4277, %v4229
      %4295 = vst.msk [vmem:[%s208 + $0x44] sm:$0xf] %vm4277, %v4230
      %4296 = vst.msk [vmem:[%s208 + $0x48] sm:$0xf] %vm4277, %v4231
      %4297 = vst.msk [vmem:[%s208 + $0x4c] sm:$0xf] %vm4277, %v4232
      %4298 = vst.msk [vmem:[%s208 + $0x50] sm:$0xf] %vm4277, %v4233
      %4299 = vst.msk [vmem:[%s208 + $0x54] sm:$0xf] %vm4277, %v4234
      %4300 = vst.msk [vmem:[%s208 + $0x58] sm:$0xf] %vm4277, %v4235
      %4301 = vst.msk [vmem:[%s208 + $0x5c] sm:$0xf] %vm4277, %v4236
      %4302 = vst.msk [vmem:[%s208 + $0x60] sm:$0xf] %vm4277, %v4237
      %4303 = vst.msk [vmem:[%s208 + $0x64] sm:$0xf] %vm4277, %v4238
      %4304 = vst.msk [vmem:[%s208 + $0x68] sm:$0xf] %vm4277, %v4239
      %4305 = vst.msk [vmem:[%s208 + $0x6c] sm:$0xf] %vm4277, %v4240
      %4306 = vst.msk [vmem:[%s208 + $0x70] sm:$0xf] %vm4277, %v4241
      %4307 = vst.msk [vmem:[%s208 + $0x74] sm:$0xf] %vm4277, %v4242
      %4308 = vst.msk [vmem:[%s208 + $0x78] sm:$0xf] %vm4277, %v4243
      %4309 = vst.msk [vmem:[%s208 + $0x7c] sm:$0xf] %vm4277, %v4244
      %vm4310 = vcmask 261120
      %v4311 = vsel %vm4310, %v4023, 0.0
      %v4312 = vsel %vm4310, %v4026, 0.0
      %v4313 = vadd.f32 %v4311, %v4312
      %v4314 = vsel %vm4310, %v4031, 0.0
      %v4315 = vadd.f32 %v4313, %v4314
      %v4316 = vsel %vm4310, %v4034, 0.0
      %v4317 = vadd.f32 %v4315, %v4316
      %v4318 = vsel %vm4310, %v4039, 0.0
      %v4319 = vadd.f32 %v4317, %v4318
      %v4320 = vsel %vm4310, %v4042, 0.0
      %v4321 = vadd.f32 %v4319, %v4320
      %v4322 = vsel %vm4310, %v4047, 0.0
      %v4323 = vadd.f32 %v4321, %v4322
      %v4324 = vsel %vm4310, %v4050, 0.0
      %v4325 = vadd.f32 %v4323, %v4324
      %v4326 = vsel %vm4310, %v4055, 0.0
      %v4327 = vadd.f32 %v4325, %v4326
      %v4328 = vsel %vm4310, %v4058, 0.0
      %v4329 = vadd.f32 %v4327, %v4328
      %v4330 = vsel %vm4310, %v4063, 0.0
      %v4331 = vadd.f32 %v4329, %v4330
      %v4332 = vsel %vm4310, %v4066, 0.0
      %v4333 = vadd.f32 %v4331, %v4332
      %v4334 = vsel %vm4310, %v4071, 0.0
      %v4335 = vadd.f32 %v4333, %v4334
      %v4336 = vsel %vm4310, %v4074, 0.0
      %v4337 = vadd.f32 %v4335, %v4336
      %v4338 = vsel %vm4310, %v4079, 0.0
      %v4339 = vadd.f32 %v4337, %v4338
      %v4340 = vsel %vm4310, %v4082, 0.0
      %v4341 = vadd.f32 %v4339, %v4340
      %v4342 = vsel %vm4310, %v4087, 0.0
      %v4343 = vadd.f32 %v4341, %v4342
      %v4344 = vsel %vm4310, %v4090, 0.0
      %v4345 = vadd.f32 %v4343, %v4344
      %v4346 = vsel %vm4310, %v4095, 0.0
      %v4347 = vadd.f32 %v4345, %v4346
      %v4348 = vsel %vm4310, %v4098, 0.0
      %v4349 = vadd.f32 %v4347, %v4348
      %v4350 = vsel %vm4310, %v4103, 0.0
      %v4351 = vadd.f32 %v4349, %v4350
      %v4352 = vsel %vm4310, %v4106, 0.0
      %v4353 = vadd.f32 %v4351, %v4352
      %v4354 = vsel %vm4310, %v4111, 0.0
      %v4355 = vadd.f32 %v4353, %v4354
      %v4356 = vsel %vm4310, %v4114, 0.0
      %v4357 = vadd.f32 %v4355, %v4356
      %v4358 = vsel %vm4310, %v4119, 0.0
      %v4359 = vadd.f32 %v4357, %v4358
      %v4360 = vsel %vm4310, %v4122, 0.0
      %v4361 = vadd.f32 %v4359, %v4360
      %v4362 = vsel %vm4310, %v4127, 0.0
      %v4363 = vadd.f32 %v4361, %v4362
      %v4364 = vsel %vm4310, %v4130, 0.0
      %v4365 = vadd.f32 %v4363, %v4364
      %v4366 = vsel %vm4310, %v4135, 0.0
      %v4367 = vadd.f32 %v4365, %v4366
      %v4368 = vsel %vm4310, %v4138, 0.0
      %v4369 = vadd.f32 %v4367, %v4368
      %v4370 = vsel %vm4310, %v4143, 0.0
      %v4371 = vadd.f32 %v4369, %v4370
      %v4372 = vsel %vm4310, %v4146, 0.0
      %v4373 = vadd.f32 %v4371, %v4372
      %v4374 = vrot.slane %v4373, 4
      %v4375 = vadd.f32 %v4373, %v4374
      %v4376 = vrot.slane %v4375, 2
      %v4377 = vadd.f32 %v4375, %v4376
      %v4378 = vrot.slane %v4377, 1
      %v4379 = vadd.f32 %v4377, %v4378
      %vm4380 = vcmask 253952
      %4381 = vst.msk [vmem:[%s211] sm:$0x1] %vm4380, %v4379
      %v4382 = vmul.f32 %v4023, %v4023
      %v4383 = vmul.f32 %v4026, %v4026
      %v4384 = vmul.f32 %v4031, %v4031
      %v4385 = vmul.f32 %v4034, %v4034
      %v4386 = vmul.f32 %v4039, %v4039
      %v4387 = vmul.f32 %v4042, %v4042
      %v4388 = vmul.f32 %v4047, %v4047
      %v4389 = vmul.f32 %v4050, %v4050
      %v4390 = vmul.f32 %v4055, %v4055
      %v4391 = vmul.f32 %v4058, %v4058
      %v4392 = vmul.f32 %v4063, %v4063
      %v4393 = vmul.f32 %v4066, %v4066
      %v4394 = vmul.f32 %v4071, %v4071
      %v4395 = vmul.f32 %v4074, %v4074
      %v4396 = vmul.f32 %v4079, %v4079
      %v4397 = vmul.f32 %v4082, %v4082
      %v4398 = vmul.f32 %v4087, %v4087
      %v4399 = vmul.f32 %v4090, %v4090
      %v4400 = vmul.f32 %v4095, %v4095
      %v4401 = vmul.f32 %v4098, %v4098
      %v4402 = vmul.f32 %v4103, %v4103
      %v4403 = vmul.f32 %v4106, %v4106
      %v4404 = vmul.f32 %v4111, %v4111
      %v4405 = vmul.f32 %v4114, %v4114
      %v4406 = vmul.f32 %v4119, %v4119
      %v4407 = vmul.f32 %v4122, %v4122
      %v4408 = vmul.f32 %v4127, %v4127
      %v4409 = vmul.f32 %v4130, %v4130
      %v4410 = vmul.f32 %v4135, %v4135
      %v4411 = vmul.f32 %v4138, %v4138
      %v4412 = vmul.f32 %v4143, %v4143
      %v4413 = vmul.f32 %v4146, %v4146
      %v4414 = vsel %vm4310, %v4382, 0.0
      %v4415 = vsel %vm4310, %v4383, 0.0
      %v4416 = vadd.f32 %v4414, %v4415
      %v4417 = vsel %vm4310, %v4384, 0.0
      %v4418 = vadd.f32 %v4416, %v4417
      %v4419 = vsel %vm4310, %v4385, 0.0
      %v4420 = vadd.f32 %v4418, %v4419
      %v4421 = vsel %vm4310, %v4386, 0.0
      %v4422 = vadd.f32 %v4420, %v4421
      %v4423 = vsel %vm4310, %v4387, 0.0
      %v4424 = vadd.f32 %v4422, %v4423
      %v4425 = vsel %vm4310, %v4388, 0.0
      %v4426 = vadd.f32 %v4424, %v4425
      %v4427 = vsel %vm4310, %v4389, 0.0
      %v4428 = vadd.f32 %v4426, %v4427
      %v4429 = vsel %vm4310, %v4390, 0.0
      %v4430 = vadd.f32 %v4428, %v4429
      %v4431 = vsel %vm4310, %v4391, 0.0
      %v4432 = vadd.f32 %v4430, %v4431
      %v4433 = vsel %vm4310, %v4392, 0.0
      %v4434 = vadd.f32 %v4432, %v4433
      %v4435 = vsel %vm4310, %v4393, 0.0
      %v4436 = vadd.f32 %v4434, %v4435
      %v4437 = vsel %vm4310, %v4394, 0.0
      %v4438 = vadd.f32 %v4436, %v4437
      %v4439 = vsel %vm4310, %v4395, 0.0
      %v4440 = vadd.f32 %v4438, %v4439
      %v4441 = vsel %vm4310, %v4396, 0.0
      %v4442 = vadd.f32 %v4440, %v4441
      %v4443 = vsel %vm4310, %v4397, 0.0
      %v4444 = vadd.f32 %v4442, %v4443
      %v4445 = vsel %vm4310, %v4398, 0.0
      %v4446 = vadd.f32 %v4444, %v4445
      %v4447 = vsel %vm4310, %v4399, 0.0
      %v4448 = vadd.f32 %v4446, %v4447
      %v4449 = vsel %vm4310, %v4400, 0.0
      %v4450 = vadd.f32 %v4448, %v4449
      %v4451 = vsel %vm4310, %v4401, 0.0
      %v4452 = vadd.f32 %v4450, %v4451
      %v4453 = vsel %vm4310, %v4402, 0.0
      %v4454 = vadd.f32 %v4452, %v4453
      %v4455 = vsel %vm4310, %v4403, 0.0
      %v4456 = vadd.f32 %v4454, %v4455
      %v4457 = vsel %vm4310, %v4404, 0.0
      %v4458 = vadd.f32 %v4456, %v4457
      %v4459 = vsel %vm4310, %v4405, 0.0
      %v4460 = vadd.f32 %v4458, %v4459
      %v4461 = vsel %vm4310, %v4406, 0.0
      %v4462 = vadd.f32 %v4460, %v4461
      %v4463 = vsel %vm4310, %v4407, 0.0
      %v4464 = vadd.f32 %v4462, %v4463
      %v4465 = vsel %vm4310, %v4408, 0.0
      %v4466 = vadd.f32 %v4464, %v4465
      %v4467 = vsel %vm4310, %v4409, 0.0
      %v4468 = vadd.f32 %v4466, %v4467
      %v4469 = vsel %vm4310, %v4410, 0.0
      %v4470 = vadd.f32 %v4468, %v4469
      %v4471 = vsel %vm4310, %v4411, 0.0
      %v4472 = vadd.f32 %v4470, %v4471
      %v4473 = vsel %vm4310, %v4412, 0.0
      %v4474 = vadd.f32 %v4472, %v4473
      %v4475 = vsel %vm4310, %v4413, 0.0
      %v4476 = vadd.f32 %v4474, %v4475
      %v4477 = vrot.slane %v4476, 4
      %v4478 = vadd.f32 %v4476, %v4477
      %v4479 = vrot.slane %v4478, 2
      %v4480 = vadd.f32 %v4478, %v4479
      %v4481 = vrot.slane %v4480, 1
      %v4482 = vadd.f32 %v4480, %v4481
      %4483 = vst.msk [vmem:[%s214] sm:$0x1] %vm4380, %v4482
      %p4484 = scmp.lt.s32.totalorder %s16, 1
      %s4485 = scalar_select %p4484, %s16, 1
      %s4486 = smul.addr %s4485, 32
      %s4487 = smul.addr %s4486, 4
      %s4488 = scalar_lea.vmem %s2, %s4487
      %p4489 = scmp.lt.s32.totalorder %s16, 1
      %s4490 = scalar_select %p4489, %s16, 1
      %s4491 = scalar_lea.vmem %s3, %s4490
      %p4492 = scmp.lt.s32.totalorder %s16, 1
      %s4493 = scalar_select %p4492, %s16, 1
      %s4494 = scalar_lea.vmem %s4, %s4493
      // Predicated region
      $region29: #{double_conv_forward.3} parent=27 // pred_check
        %p4495 = pneg %p81
      $region30: #{double_conv_forward.3} parent=27 // pred_check_branch
        %4497 = sbr.rel (%p4495) target = $region32
      $region31: #{double_conv_forward.3} parent=27 // pred_region
        _
      $region32: #{double_conv_forward.3} parent=27 // pred_fallthru
        _
      // Predicated region
      $region33: #{double_conv_forward.3} parent=27 // pred_check
        %p4498 = pneg %p107
      $region34: #{double_conv_forward.3} parent=27 // pred_check_branch
        %4500 = sbr.rel (%p4498) target = $region36
      $region35: #{double_conv_forward.3} parent=27 // pred_region
        _
      $region36: #{double_conv_forward.3} parent=27 // pred_fallthru
        _
      // Predicated region
      $region37: #{double_conv_forward.3} parent=27 // pred_check
        %p4501 = pneg %p133
      $region38: #{double_conv_forward.3} parent=27 // pred_check_branch
        %4503 = sbr.rel (%p4501) target = $region40
      $region39: #{double_conv_forward.3} parent=27 // pred_region
        _
      $region40: #{double_conv_forward.3} parent=27 // pred_fallthru
        _
    $region28: #{double_conv_forward.3} parent=5 // pred_fallthru
      _
    %p4504 = scmp.le.s32.totalorder 2, %s11
    // Predicated region
    $region41: #{double_conv_forward.3} parent=5 // pred_check
      %p4505 = pneg %p4504
    $region42: #{double_conv_forward.3} parent=5 // pred_check_branch
      %4507 = sbr.rel (%p4505) target = $region44
    $region43: #{double_conv_forward.3} parent=5 // pred_region
      %s4508 = ssub.s32 %s11, 2
      // Predicated region
      $region45: #{double_conv_forward.3} parent=43 // pred_check
        %p4509 = pneg %p87
      $region46: #{double_conv_forward.3} parent=43 // pred_check_branch
        %4511 = sbr.rel (%p4509) target = $region48
      $region47: #{double_conv_forward.3} parent=43 // pred_region
        %p4512 = scmp.lt.s32.totalorder %s17, 1
        %s4513 = scalar_select %p4512, %s17, 1
        %s4514 = smul.addr %s4513, 32
        %s4515 = smul.addr %s4514, 4
        %s4516 = scalar_lea.vmem %s2, %s4515
      $region48: #{double_conv_forward.3} parent=43 // pred_fallthru
        _
      // Predicated region
      $region49: #{double_conv_forward.3} parent=43 // pred_check
        %p4517 = pneg %p113
      $region50: #{double_conv_forward.3} parent=43 // pred_check_branch
        %4519 = sbr.rel (%p4517) target = $region52
      $region51: #{double_conv_forward.3} parent=43 // pred_region
        %p4520 = scmp.lt.s32.totalorder %s17, 1
        %s4521 = scalar_select %p4520, %s17, 1
        %s4522 = scalar_lea.vmem %s3, %s4521
      $region52: #{double_conv_forward.3} parent=43 // pred_fallthru
        _
      // Predicated region
      $region53: #{double_conv_forward.3} parent=43 // pred_check
        %p4523 = pneg %p139
      $region54: #{double_conv_forward.3} parent=43 // pred_check_branch
        %4525 = sbr.rel (%p4523) target = $region56
      $region55: #{double_conv_forward.3} parent=43 // pred_region
        %p4526 = scmp.lt.s32.totalorder %s17, 1
        %s4527 = scalar_select %p4526, %s17, 1
        %s4528 = scalar_lea.vmem %s4, %s4527
      $region56: #{double_conv_forward.3} parent=43 // pred_fallthru
        _
    $region44: #{double_conv_forward.3} parent=5 // pred_fallthru
      _
  $region6: #{double_conv_forward.3} parent=0 // loop_footer
    %s15 = sadd.s32 1, %s11
  $region7: #{double_conv_forward.3} parent=0 // loop_footer_branch
    %10 = sbr.rel target = $region3
  $region8: #{double_conv_forward.3} parent=0 // loop_exit
    _

// kernel: double_conv_forward.4
$region0: #{double_conv_forward.4}
  #allocation0 [shape = 'u32[]', space=smem, size = 0x4, offset = 0x4, fixed_abs, tag = 'smem constant byte address 0x4 - core index']
  #allocation1 [shape = 'u32[144,128]{1,0:T(1,128)}', space=vmem, size = 0x12000, scoped, tag = 'internal scratch']
  #allocation2 [shape = 'bf16[1,18,18,32]{3,2,1,0:T(8,128)(2,1)}', space=vmem, size = 0x1b000, scoped, tag = 'scratch operand']
  #allocation3 [shape = 'bf16[256,288]{1,0:T(16,128)(2,1)}', space=vmem, size = 0x30000, scoped, tag = 'scratch operand']
  %s0 = inlined_call_operand.vmem [shape: bf16[2,16,16,32], index: 0, kind: input, shape index: {}]
  %s1 = inlined_call_operand.vmem [shape: f32[1,32], index: 1, kind: input, shape index: {}]
  %s2 = inlined_call_operand.vmem [shape: f32[1,32], index: 2, kind: input, shape index: {}]
  %s3 = inlined_call_operand.vmem [shape: bf16[288,32], index: 3, kind: input, shape index: {}]
  %s4 = inlined_call_operand.vmem [shape: bf16[2,16,16,32], index: 4, kind: output, shape index: {0}]
  %s5 = inlined_call_operand.vmem [shape: f32[2,1,32], index: 5, kind: output, shape index: {1}]
  %s6 = inlined_call_operand.vmem [shape: f32[2,1,32], index: 6, kind: output, shape index: {2}]
  %7 = xla_tuple %s4, %s5, %s6
  %s8 = sld [smem:[#allocation0]]
  $region65: #{double_conv_forward.4} parent=0
    _
  %s10 = ssub.s32 1, %s8
  %s11 = scalar_select 0, %s10, %s8
  loop: start=0, step=1, limit=4
  $region2: #{double_conv_forward.4} parent=0 // loop_pre_header
    _
  $region3: #{double_conv_forward.4} parent=0 // loop_header
    %s13 = sphi 0, %s17
    %p14 = scmp.ge.s32.totalorder %s13, 4
    %s23 = sphi 0, %s25
    %s26 = sphi 0, %s23
    %s27 = sphi 0, %s26
    %s43 = sphi 0, %s27
    %s47 = sphi 0, %s47
    %s49 = sphi 0, %s47
    %s50 = sphi 0, %s49
    %s64 = sphi 0, %s50
    %s68 = sphi 0, %s68
    %s70 = sphi 0, %s68
    %s71 = sphi 0, %s70
    %s85 = sphi 0, %s71
    %s89 = sphi 0, %s89
    %s91 = sphi 0, %s89
    %s92 = sphi 0, %s91
    %s106 = sphi 0, %s92
    %s112 = sphi 0, %s114
    %s115 = sphi 0, %s112
    %s116 = sphi 0, %s115
    %s132 = sphi 0, %s116
    %s138 = sphi 0, %s140
    %s141 = sphi 0, %s138
    %s142 = sphi 0, %s141
    %s158 = sphi 0, %s142
    %s164 = sphi 0, %s166
    %s167 = sphi 0, %s164
    %s168 = sphi 0, %s167
    %s184 = sphi 0, %s168
  $region4: #{double_conv_forward.4} parent=0 // loop_header_branch
    %16 = sbr.rel (%p14) target = $region8
  $region5: #{double_conv_forward.4} parent=0 // loop_body
    %s18 = ssub.s32 %s13, 1
    %s19 = ssub.s32 %s13, 2
    %s20 = sadd.s32 %s13, 1
    %s21 = ssub.s32 %s13, %s20
    %p22 = scmp.eq.s32.totalorder %s21, 0
    %s24 = sadd.s32 %s23, 1
    %s25 = scalar_select %p22, %s23, %s24
    %p28 = pneg %p22
    %p29 = scmp.eq.s32.totalorder %s13, 1
    %p30 = por %p28, %p29
    %p31 = scmp.ne.s32.totalorder %s23, %s26
    %p32 = scmp.eq.s32.totalorder %s13, 0
    %p33 = por %p31, %p32
    %p34 = scmp.ne.s32.totalorder %s23, %s26
    %p35 = scmp.eq.s32.totalorder %s18, 1
    %p36 = por %p34, %p35
    %p37 = scmp.ne.s32.totalorder %s26, %s27
    %p38 = scmp.eq.s32.totalorder %s18, 0
    %p39 = por %p37, %p38
    %p40 = scmp.ne.s32.totalorder %s26, %s27
    %p41 = scmp.eq.s32.totalorder %s19, 1
    %p42 = por %p40, %p41
    %p44 = scmp.ne.s32.totalorder %s27, %s43
    %p45 = scmp.eq.s32.totalorder %s19, 0
    %p46 = por %p44, %p45
    %s48 = sadd.s32 %s47, 1
    %p51 = scmp.eq.s32.totalorder %s13, 1
    %p52 = scmp.ne.s32.totalorder %s47, %s49
    %p53 = scmp.eq.s32.totalorder %s13, 0
    %p54 = por %p52, %p53
    %p55 = scmp.ne.s32.totalorder %s47, %s49
    %p56 = scmp.eq.s32.totalorder %s18, 1
    %p57 = por %p55, %p56
    %p58 = scmp.ne.s32.totalorder %s49, %s50
    %p59 = scmp.eq.s32.totalorder %s18, 0
    %p60 = por %p58, %p59
    %p61 = scmp.ne.s32.totalorder %s49, %s50
    %p62 = scmp.eq.s32.totalorder %s19, 1
    %p63 = por %p61, %p62
    %p65 = scmp.ne.s32.totalorder %s50, %s64
    %p66 = scmp.eq.s32.totalorder %s19, 0
    %p67 = por %p65, %p66
    %s69 = sadd.s32 %s68, 1
    %p72 = scmp.eq.s32.totalorder %s13, 1
    %p73 = scmp.ne.s32.totalorder %s68, %s70
    %p74 = scmp.eq.s32.totalorder %s13, 0
    %p75 = por %p73, %p74
    %p76 = scmp.ne.s32.totalorder %s68, %s70
    %p77 = scmp.eq.s32.totalorder %s18, 1
    %p78 = por %p76, %p77
    %p79 = scmp.ne.s32.totalorder %s70, %s71
    %p80 = scmp.eq.s32.totalorder %s18, 0
    %p81 = por %p79, %p80
    %p82 = scmp.ne.s32.totalorder %s70, %s71
    %p83 = scmp.eq.s32.totalorder %s19, 1
    %p84 = por %p82, %p83
    %p86 = scmp.ne.s32.totalorder %s71, %s85
    %p87 = scmp.eq.s32.totalorder %s19, 0
    %p88 = por %p86, %p87
    %s90 = sadd.s32 %s89, 1
    %p93 = scmp.eq.s32.totalorder %s13, 1
    %p94 = scmp.ne.s32.totalorder %s89, %s91
    %p95 = scmp.eq.s32.totalorder %s13, 0
    %p96 = por %p94, %p95
    %p97 = scmp.ne.s32.totalorder %s89, %s91
    %p98 = scmp.eq.s32.totalorder %s18, 1
    %p99 = por %p97, %p98
    %p100 = scmp.ne.s32.totalorder %s91, %s92
    %p101 = scmp.eq.s32.totalorder %s18, 0
    %p102 = por %p100, %p101
    %p103 = scmp.ne.s32.totalorder %s91, %s92
    %p104 = scmp.eq.s32.totalorder %s19, 1
    %p105 = por %p103, %p104
    %p107 = scmp.ne.s32.totalorder %s92, %s106
    %p108 = scmp.eq.s32.totalorder %s19, 0
    %p109 = por %p107, %p108
    %s110 = ssub.s32 %s13, %s20
    %p111 = scmp.eq.s32.totalorder %s110, 0
    %s113 = sadd.s32 %s112, 1
    %s114 = scalar_select %p111, %s112, %s113
    %p117 = pneg %p111
    %p118 = scmp.eq.s32.totalorder %s13, 1
    %p119 = por %p117, %p118
    %p120 = scmp.ne.s32.totalorder %s112, %s115
    %p121 = scmp.eq.s32.totalorder %s13, 0
    %p122 = por %p120, %p121
    %p123 = scmp.ne.s32.totalorder %s112, %s115
    %p124 = scmp.eq.s32.totalorder %s18, 1
    %p125 = por %p123, %p124
    %p126 = scmp.ne.s32.totalorder %s115, %s116
    %p127 = scmp.eq.s32.totalorder %s18, 0
    %p128 = por %p126, %p127
    %p129 = scmp.ne.s32.totalorder %s115, %s116
    %p130 = scmp.eq.s32.totalorder %s19, 1
    %p131 = por %p129, %p130
    %p133 = scmp.ne.s32.totalorder %s116, %s132
    %p134 = scmp.eq.s32.totalorder %s19, 0
    %p135 = por %p133, %p134
    %s136 = ssub.s32 %s13, %s20
    %p137 = scmp.eq.s32.totalorder %s136, 0
    %s139 = sadd.s32 %s138, 1
    %s140 = scalar_select %p137, %s138, %s139
    %p143 = pneg %p137
    %p144 = scmp.eq.s32.totalorder %s13, 1
    %p145 = por %p143, %p144
    %p146 = scmp.ne.s32.totalorder %s138, %s141
    %p147 = scmp.eq.s32.totalorder %s13, 0
    %p148 = por %p146, %p147
    %p149 = scmp.ne.s32.totalorder %s138, %s141
    %p150 = scmp.eq.s32.totalorder %s18, 1
    %p151 = por %p149, %p150
    %p152 = scmp.ne.s32.totalorder %s141, %s142
    %p153 = scmp.eq.s32.totalorder %s18, 0
    %p154 = por %p152, %p153
    %p155 = scmp.ne.s32.totalorder %s141, %s142
    %p156 = scmp.eq.s32.totalorder %s19, 1
    %p157 = por %p155, %p156
    %p159 = scmp.ne.s32.totalorder %s142, %s158
    %p160 = scmp.eq.s32.totalorder %s19, 0
    %p161 = por %p159, %p160
    %s162 = ssub.s32 %s13, %s20
    %p163 = scmp.eq.s32.totalorder %s162, 0
    %s165 = sadd.s32 %s164, 1
    %s166 = scalar_select %p163, %s164, %s165
    %p169 = pneg %p163
    %p170 = scmp.eq.s32.totalorder %s13, 1
    %p171 = por %p169, %p170
    %p172 = scmp.ne.s32.totalorder %s164, %s167
    %p173 = scmp.eq.s32.totalorder %s13, 0
    %p174 = por %p172, %p173
    %p175 = scmp.ne.s32.totalorder %s164, %s167
    %p176 = scmp.eq.s32.totalorder %s18, 1
    %p177 = por %p175, %p176
    %p178 = scmp.ne.s32.totalorder %s167, %s168
    %p179 = scmp.eq.s32.totalorder %s18, 0
    %p180 = por %p178, %p179
    %p181 = scmp.ne.s32.totalorder %s167, %s168
    %p182 = scmp.eq.s32.totalorder %s19, 1
    %p183 = por %p181, %p182
    %p185 = scmp.ne.s32.totalorder %s168, %s184
    %p186 = scmp.eq.s32.totalorder %s19, 0
    %p187 = por %p185, %p186
    %p188 = scmp.le.s32.totalorder 1, %s13
    %p189 = scmp.lt.s32.totalorder %s13, 3
    %p190 = pnand %p188, %p189
    %p191 = pneg %p190
    // Predicated region
    $region9: #{double_conv_forward.4} parent=5 // pred_check
      _
    $region10: #{double_conv_forward.4} parent=5 // pred_check_branch
      %193 = sbr.rel (%p190) target = $region12
    $region11: #{double_conv_forward.4} parent=5 // pred_region
      %s194 = ssub.s32 %s13, 1
      // Predicated region
      $region13: #{double_conv_forward.4} parent=11 // pred_check
        %p195 = pneg %p60
      $region14: #{double_conv_forward.4} parent=11 // pred_check_branch
        %197 = sbr.rel (%p195) target = $region16
      $region15: #{double_conv_forward.4} parent=11 // pred_region
        _
      $region16: #{double_conv_forward.4} parent=11 // pred_fallthru
        _
      // Predicated region
      $region17: #{double_conv_forward.4} parent=11 // pred_check
        %p198 = pneg %p81
      $region18: #{double_conv_forward.4} parent=11 // pred_check_branch
        %200 = sbr.rel (%p198) target = $region20
      $region19: #{double_conv_forward.4} parent=11 // pred_region
        _
      $region20: #{double_conv_forward.4} parent=11 // pred_fallthru
        _
      // Predicated region
      $region21: #{double_conv_forward.4} parent=11 // pred_check
        %p201 = pneg %p102
      $region22: #{double_conv_forward.4} parent=11 // pred_check_branch
        %203 = sbr.rel (%p201) target = $region24
      $region23: #{double_conv_forward.4} parent=11 // pred_region
        _
      $region24: #{double_conv_forward.4} parent=11 // pred_fallthru
        _
    $region12: #{double_conv_forward.4} parent=5 // pred_fallthru
      _
    %p204 = scmp.lt.s32.totalorder %s13, 2
    // Predicated region
    $region25: #{double_conv_forward.4} parent=5 // pred_check
      %p205 = pneg %p204
    $region26: #{double_conv_forward.4} parent=5 // pred_check_branch
      %207 = sbr.rel (%p205) target = $region28
    $region27: #{double_conv_forward.4} parent=5 // pred_region
      // Predicated region
      $region29: #{double_conv_forward.4} parent=27 // pred_check
        %p208 = pneg %p33
      $region30: #{double_conv_forward.4} parent=27 // pred_check_branch
        %210 = sbr.rel (%p208) target = $region32
      $region31: #{double_conv_forward.4} parent=27 // pred_region
        %p211 = scmp.lt.s32.totalorder %s13, 1
        %s212 = scalar_select %p211, %s13, 1
        %s213 = smul.addr %s212, 32
        %s214 = smul.addr %s213, 4
        %s215 = scalar_lea.vmem %s0, %s214
      $region32: #{double_conv_forward.4} parent=27 // pred_fallthru
        _
    $region28: #{double_conv_forward.4} parent=5 // pred_fallthru
      _
    %p216 = scmp.le.s32.totalorder 1, %s13
    %p217 = scmp.lt.s32.totalorder %s13, 3
    %p218 = pnand %p216, %p217
    %p219 = pneg %p218
    // Predicated region
    $region33: #{double_conv_forward.4} parent=5 // pred_check
      _
    $region34: #{double_conv_forward.4} parent=5 // pred_check_branch
      %221 = sbr.rel (%p218) target = $region36
    $region35: #{double_conv_forward.4} parent=5 // pred_region
      %s222 = ssub.s32 %s13, 1
      %p223 = scmp.lt.s32.totalorder %s18, 1
      %s224 = scalar_select %p223, %s18, 1
      %s225 = smul.addr %s224, 32
      %s226 = smul.addr %s225, 4
      %s227 = scalar_lea.vmem %s0, %s226
      %p228 = pneg %p39
      %p229 = pneg %p36
      %p230 = pneg %p60
      %p231 = pneg %p57
      %p232 = pneg %p81
      %p233 = pneg %p78
      %p234 = pneg %p102
      %p235 = pneg %p99
      %p236 = pneg %p128
      %p237 = pneg %p125
      %p238 = scmp.lt.s32.totalorder %s18, 1
      %s239 = scalar_select %p238, %s18, 1
      %s240 = smul.addr %s239, 32
      %s241 = smul.addr %s240, 4
      %s242 = scalar_lea.vmem %s4, %s241
      %p243 = pneg %p154
      %p244 = pneg %p151
      %p245 = scmp.lt.s32.totalorder %s18, 1
      %s246 = scalar_select %p245, %s18, 1
      %s247 = scalar_lea.vmem %s5, %s246
      %p248 = pneg %p180
      %p249 = pneg %p177
      %p250 = scmp.lt.s32.totalorder %s18, 1
      %s251 = scalar_select %p250, %s18, 1
      %s252 = scalar_lea.vmem %s6, %s251
      %p253 = scmp.lt.s32.totalorder %s18, 1
      %s254 = scalar_select %p253, %s18, 1
      %s255 = smul.addr %s254, 32
      %s256 = smul.addr %s255, 4
      %s257 = scalar_lea.vmem %s0, %s256
      %p258 = scmp.lt.s32.totalorder %s18, 1
      %s259 = scalar_select %p258, %s18, 1
      %s260 = smul.addr %s259, 32
      %s261 = smul.addr %s260, 4
      %s262 = scalar_lea.vmem %s4, %s261
      %p263 = scmp.lt.s32.totalorder %s18, 1
      %s264 = scalar_select %p263, %s18, 1
      %s265 = scalar_lea.vmem %s5, %s264
      %p266 = scmp.lt.s32.totalorder %s18, 1
      %s267 = scalar_select %p266, %s18, 1
      %s268 = scalar_lea.vmem %s6, %s267
      %v270 = vld [vmem:[%s1] sm:$0x1]
      %v271 = vpack.c.bf16 %v270, %v270
      %v272 = vld [vmem:[%s2] sm:$0x1]
      %v273 = vpack.c.bf16 %v272, %v272
      %v274 = vld [vmem:[%s257] sm:$0xf]
      %v275 = vld [vmem:[%s257 + $0x4] sm:$0xf]
      %v276 = vld [vmem:[%s257 + $0x8] sm:$0xf]
      %v277 = vld [vmem:[%s257 + $0xc] sm:$0xf]
      %v278 = vld [vmem:[%s257 + $0x10] sm:$0xf]
      %v279 = vld [vmem:[%s257 + $0x14] sm:$0xf]
      %v280 = vld [vmem:[%s257 + $0x18] sm:$0xf]
      %v281 = vld [vmem:[%s257 + $0x1c] sm:$0xf]
      %v282 = vld [vmem:[%s257 + $0x20] sm:$0xf]
      %v283 = vld [vmem:[%s257 + $0x24] sm:$0xf]
      %v284 = vld [vmem:[%s257 + $0x28] sm:$0xf]
      %v285 = vld [vmem:[%s257 + $0x2c] sm:$0xf]
      %v286 = vld [vmem:[%s257 + $0x30] sm:$0xf]
      %v287 = vld [vmem:[%s257 + $0x34] sm:$0xf]
      %v288 = vld [vmem:[%s257 + $0x38] sm:$0xf]
      %v289 = vld [vmem:[%s257 + $0x3c] sm:$0xf]
      %v290 = vld [vmem:[%s257 + $0x40] sm:$0xf]
      %v291 = vld [vmem:[%s257 + $0x44] sm:$0xf]
      %v292 = vld [vmem:[%s257 + $0x48] sm:$0xf]
      %v293 = vld [vmem:[%s257 + $0x4c] sm:$0xf]
      %v294 = vld [vmem:[%s257 + $0x50] sm:$0xf]
      %v295 = vld [vmem:[%s257 + $0x54] sm:$0xf]
      %v296 = vld [vmem:[%s257 + $0x58] sm:$0xf]
      %v297 = vld [vmem:[%s257 + $0x5c] sm:$0xf]
      %v298 = vld [vmem:[%s257 + $0x60] sm:$0xf]
      %v299 = vld [vmem:[%s257 + $0x64] sm:$0xf]
      %v300 = vld [vmem:[%s257 + $0x68] sm:$0xf]
      %v301 = vld [vmem:[%s257 + $0x6c] sm:$0xf]
      %v302 = vld [vmem:[%s257 + $0x70] sm:$0xf]
      %v303 = vld [vmem:[%s257 + $0x74] sm:$0xf]
      %v304 = vld [vmem:[%s257 + $0x78] sm:$0xf]
      %v305 = vld [vmem:[%s257 + $0x7c] sm:$0xf]
      %v307 = vpack.i.b16 %v271, %v271
      %v309 = vlaneseq
      %v310 = vshrl.u32 %v309, 7
      %v311 = vsub.s32 0, %v310
      %v312 = vrot.slane %v307, %v311
      %v314 = vunpack.c.l.b16 %v312
      %v315 = vpack.c.b16 %v314, %v314
      %v317 = vmul.bf16 %v274, %v315
      %v318 = vmul.bf16 %v275, %v315
      %v319 = vmul.bf16 %v276, %v315
      %v320 = vmul.bf16 %v277, %v315
      %v321 = vmul.bf16 %v278, %v315
      %v322 = vmul.bf16 %v279, %v315
      %v323 = vmul.bf16 %v280, %v315
      %v324 = vmul.bf16 %v281, %v315
      %v325 = vmul.bf16 %v282, %v315
      %v326 = vmul.bf16 %v283, %v315
      %v327 = vmul.bf16 %v284, %v315
      %v328 = vmul.bf16 %v285, %v315
      %v329 = vmul.bf16 %v286, %v315
      %v330 = vmul.bf16 %v287, %v315
      %v331 = vmul.bf16 %v288, %v315
      %v332 = vmul.bf16 %v289, %v315
      %v333 = vmul.bf16 %v290, %v315
      %v334 = vmul.bf16 %v291, %v315
      %v335 = vmul.bf16 %v292, %v315
      %v336 = vmul.bf16 %v293, %v315
      %v337 = vmul.bf16 %v294, %v315
      %v338 = vmul.bf16 %v295, %v315
      %v339 = vmul.bf16 %v296, %v315
      %v340 = vmul.bf16 %v297, %v315
      %v341 = vmul.bf16 %v298, %v315
      %v342 = vmul.bf16 %v299, %v315
      %v343 = vmul.bf16 %v300, %v315
      %v344 = vmul.bf16 %v301, %v315
      %v345 = vmul.bf16 %v302, %v315
      %v346 = vmul.bf16 %v303, %v315
      %v347 = vmul.bf16 %v304, %v315
      %v348 = vmul.bf16 %v305, %v315
      %v350 = vpack.i.b16 %v273, %v273
      %v352 = vlaneseq
      %v353 = vshrl.u32 %v352, 7
      %v354 = vsub.s32 0, %v353
      %v355 = vrot.slane %v350, %v354
      %v357 = vunpack.c.l.b16 %v355
      %v358 = vpack.c.b16 %v357, %v357
      %v360 = vadd.bf16 %v317, %v358
      %v361 = vadd.bf16 %v318, %v358
      %v362 = vadd.bf16 %v319, %v358
      %v363 = vadd.bf16 %v320, %v358
      %v364 = vadd.bf16 %v321, %v358
      %v365 = vadd.bf16 %v322, %v358
      %v366 = vadd.bf16 %v323, %v358
      %v367 = vadd.bf16 %v324, %v358
      %v368 = vadd.bf16 %v325, %v358
      %v369 = vadd.bf16 %v326, %v358
      %v370 = vadd.bf16 %v327, %v358
      %v371 = vadd.bf16 %v328, %v358
      %v372 = vadd.bf16 %v329, %v358
      %v373 = vadd.bf16 %v330, %v358
      %v374 = vadd.bf16 %v331, %v358
      %v375 = vadd.bf16 %v332, %v358
      %v376 = vadd.bf16 %v333, %v358
      %v377 = vadd.bf16 %v334, %v358
      %v378 = vadd.bf16 %v335, %v358
      %v379 = vadd.bf16 %v336, %v358
      %v380 = vadd.bf16 %v337, %v358
      %v381 = vadd.bf16 %v338, %v358
      %v382 = vadd.bf16 %v339, %v358
      %v383 = vadd.bf16 %v340, %v358
      %v384 = vadd.bf16 %v341, %v358
      %v385 = vadd.bf16 %v342, %v358
      %v386 = vadd.bf16 %v343, %v358
      %v387 = vadd.bf16 %v344, %v358
      %v388 = vadd.bf16 %v345, %v358
      %v389 = vadd.bf16 %v346, %v358
      %v390 = vadd.bf16 %v347, %v358
      %v391 = vadd.bf16 %v348, %v358
      %v392 = vmax.bf16 %v360, 0
      %v393 = vmax.bf16 %v361, 0
      %v394 = vmax.bf16 %v362, 0
      %v395 = vmax.bf16 %v363, 0
      %v396 = vmax.bf16 %v364, 0
      %v397 = vmax.bf16 %v365, 0
      %v398 = vmax.bf16 %v366, 0
      %v399 = vmax.bf16 %v367, 0
      %v400 = vmax.bf16 %v368, 0
      %v401 = vmax.bf16 %v369, 0
      %v402 = vmax.bf16 %v370, 0
      %v403 = vmax.bf16 %v371, 0
      %v404 = vmax.bf16 %v372, 0
      %v405 = vmax.bf16 %v373, 0
      %v406 = vmax.bf16 %v374, 0
      %v407 = vmax.bf16 %v375, 0
      %v408 = vmax.bf16 %v376, 0
      %v409 = vmax.bf16 %v377, 0
      %v410 = vmax.bf16 %v378, 0
      %v411 = vmax.bf16 %v379, 0
      %v412 = vmax.bf16 %v380, 0
      %v413 = vmax.bf16 %v381, 0
      %v414 = vmax.bf16 %v382, 0
      %v415 = vmax.bf16 %v383, 0
      %v416 = vmax.bf16 %v384, 0
      %v417 = vmax.bf16 %v385, 0
      %v418 = vmax.bf16 %v386, 0
      %v419 = vmax.bf16 %v387, 0
      %v420 = vmax.bf16 %v388, 0
      %v421 = vmax.bf16 %v389, 0
      %v422 = vmax.bf16 %v390, 0
      %v423 = vmax.bf16 %v391, 0
      %vm424 = vcmask 257024
      %425 = vst.msk [vmem:[#allocation2] sm:$0xf] %vm424, 0
      %426 = vst.msk [vmem:[#allocation2 + $0x4] sm:$0xf] %vm424, 0
      %vm427 = vcmask 253952
      %428 = vst.msk [vmem:[#allocation2 + $0x8] sm:$0x1] %vm427, 0
      %s429 = scalar_lea.vmem [#allocation2], 204
      %430 = vst.msk [vmem:[%s429] sm:$0xf] %vm424, 0
      %431 = vst.msk [vmem:[%s429 + $0x4] sm:$0xf] %vm424, 0
      %432 = vst.msk [vmem:[%s429 + $0x8] sm:$0x1] %vm427, 0
      %s433 = scalar_lea.vmem [#allocation2], 12
      %vm434 = vcmask 253952
      %vm435 = vsmask.f32 256
      %vm436 = vmand %vm434, %vm435
      %v437 = vld [vmem:[%s433] sm:$0x1]
      %v438 = vsel %vm436, 0, %v437
      %439 = vst [vmem:[%s433] sm:$0x1] %v438
      %v440 = vld [vmem:[%s433 + $0xc] sm:$0x1]
      %v441 = vsel %vm436, 0, %v440
      %442 = vst [vmem:[%s433 + $0xc] sm:$0x1] %v441
      %v443 = vld [vmem:[%s433 + $0x18] sm:$0x1]
      %v444 = vsel %vm436, 0, %v443
      %445 = vst [vmem:[%s433 + $0x18] sm:$0x1] %v444
      %v446 = vld [vmem:[%s433 + $0x24] sm:$0x1]
      %v447 = vsel %vm436, 0, %v446
      %448 = vst [vmem:[%s433 + $0x24] sm:$0x1] %v447
      %v449 = vld [vmem:[%s433 + $0x30] sm:$0x1]
      %v450 = vsel %vm436, 0, %v449
      %451 = vst [vmem:[%s433 + $0x30] sm:$0x1] %v450
      %v452 = vld [vmem:[%s433 + $0x3c] sm:$0x1]
      %v453 = vsel %vm436, 0, %v452
      %454 = vst [vmem:[%s433 + $0x3c] sm:$0x1] %v453
      %v455 = vld [vmem:[%s433 + $0x48] sm:$0x1]
      %v456 = vsel %vm436, 0, %v455
      %457 = vst [vmem:[%s433 + $0x48] sm:$0x1] %v456
      %v458 = vld [vmem:[%s433 + $0x54] sm:$0x1]
      %v459 = vsel %vm436, 0, %v458
      %460 = vst [vmem:[%s433 + $0x54] sm:$0x1] %v459
      %v461 = vld [vmem:[%s433 + $0x60] sm:$0x1]
      %v462 = vsel %vm436, 0, %v461
      %463 = vst [vmem:[%s433 + $0x60] sm:$0x1] %v462
      %v464 = vld [vmem:[%s433 + $0x6c] sm:$0x1]
      %v465 = vsel %vm436, 0, %v464
      %466 = vst [vmem:[%s433 + $0x6c] sm:$0x1] %v465
      %v467 = vld [vmem:[%s433 + $0x78] sm:$0x1]
      %v468 = vsel %vm436, 0, %v467
      %469 = vst [vmem:[%s433 + $0x78] sm:$0x1] %v468
      %v470 = vld [vmem:[%s433 + $0x84] sm:$0x1]
      %v471 = vsel %vm436, 0, %v470
      %472 = vst [vmem:[%s433 + $0x84] sm:$0x1] %v471
      %v473 = vld [vmem:[%s433 + $0x90] sm:$0x1]
      %v474 = vsel %vm436, 0, %v473
      %475 = vst [vmem:[%s433 + $0x90] sm:$0x1] %v474
      %v476 = vld [vmem:[%s433 + $0x9c] sm:$0x1]
      %v477 = vsel %vm436, 0, %v476
      %478 = vst [vmem:[%s433 + $0x9c] sm:$0x1] %v477
      %v479 = vld [vmem:[%s433 + $0xa8] sm:$0x1]
      %v480 = vsel %vm436, 0, %v479
      %481 = vst [vmem:[%s433 + $0xa8] sm:$0x1] %v480
      %v482 = vld [vmem:[%s433 + $0xb4] sm:$0x1]
      %v483 = vsel %vm436, 0, %v482
      %484 = vst [vmem:[%s433 + $0xb4] sm:$0x1] %v483
      %vm485 = vsmask.f32 7938
      %vm486 = vmand %vm434, %vm485
      %v487 = vld [vmem:[%s433 + $0x8] sm:$0x1]
      %v488 = vsel %vm486, 0, %v487
      %489 = vst [vmem:[%s433 + $0x8] sm:$0x1] %v488
      %v490 = vld [vmem:[%s433 + $0x14] sm:$0x1]
      %v491 = vsel %vm486, 0, %v490
      %492 = vst [vmem:[%s433 + $0x14] sm:$0x1] %v491
      %v493 = vld [vmem:[%s433 + $0x20] sm:$0x1]
      %v494 = vsel %vm486, 0, %v493
      %495 = vst [vmem:[%s433 + $0x20] sm:$0x1] %v494
      %v496 = vld [vmem:[%s433 + $0x2c] sm:$0x1]
      %v497 = vsel %vm486, 0, %v496
      %498 = vst [vmem:[%s433 + $0x2c] sm:$0x1] %v497
      %v499 = vld [vmem:[%s433 + $0x38] sm:$0x1]
      %v500 = vsel %vm486, 0, %v499
      %501 = vst [vmem:[%s433 + $0x38] sm:$0x1] %v500
      %v502 = vld [vmem:[%s433 + $0x44] sm:$0x1]
      %v503 = vsel %vm486, 0, %v502
      %504 = vst [vmem:[%s433 + $0x44] sm:$0x1] %v503
      %v505 = vld [vmem:[%s433 + $0x50] sm:$0x1]
      %v506 = vsel %vm486, 0, %v505
      %507 = vst [vmem:[%s433 + $0x50] sm:$0x1] %v506
      %v508 = vld [vmem:[%s433 + $0x5c] sm:$0x1]
      %v509 = vsel %vm486, 0, %v508
      %510 = vst [vmem:[%s433 + $0x5c] sm:$0x1] %v509
      %v511 = vld [vmem:[%s433 + $0x68] sm:$0x1]
      %v512 = vsel %vm486, 0, %v511
      %513 = vst [vmem:[%s433 + $0x68] sm:$0x1] %v512
      %v514 = vld [vmem:[%s433 + $0x74] sm:$0x1]
      %v515 = vsel %vm486, 0, %v514
      %516 = vst [vmem:[%s433 + $0x74] sm:$0x1] %v515
      %v517 = vld [vmem:[%s433 + $0x80] sm:$0x1]
      %v518 = vsel %vm486, 0, %v517
      %519 = vst [vmem:[%s433 + $0x80] sm:$0x1] %v518
      %v520 = vld [vmem:[%s433 + $0x8c] sm:$0x1]
      %v521 = vsel %vm486, 0, %v520
      %522 = vst [vmem:[%s433 + $0x8c] sm:$0x1] %v521
      %v523 = vld [vmem:[%s433 + $0x98] sm:$0x1]
      %v524 = vsel %vm486, 0, %v523
      %525 = vst [vmem:[%s433 + $0x98] sm:$0x1] %v524
      %v526 = vld [vmem:[%s433 + $0xa4] sm:$0x1]
      %v527 = vsel %vm486, 0, %v526
      %528 = vst [vmem:[%s433 + $0xa4] sm:$0x1] %v527
      %v529 = vld [vmem:[%s433 + $0xb0] sm:$0x1]
      %v530 = vsel %vm486, 0, %v529
      %531 = vst [vmem:[%s433 + $0xb0] sm:$0x1] %v530
      %v532 = vld [vmem:[%s433 + $0xbc] sm:$0x1]
      %v533 = vsel %vm486, 0, %v532
      %534 = vst [vmem:[%s433 + $0xbc] sm:$0x1] %v533
      %vm535 = vsmask.f32 4368
      %vm536 = vmor %vm435, %vm535
      %v538 = vshrl.u32 %v392, 16
      %v540 = vrot.slane %v538, 7
      %v541 = vshll.u32 %v392, 16
      %v543 = vor.u32 %v540, %v541
      %v544 = vrot.slane %v540, 4
      %v546 = vshrl.u32 %v393, 16
      %v548 = vrot.slane %v546, 7
      %v549 = vshll.u32 %v393, 16
      %v551 = vor.u32 %v548, %v549
      %v552 = vsel %vm536, %v544, %v551
      %v553 = vrot.slane %v548, 4
      %v555 = vshrl.u32 %v394, 16
      %v557 = vrot.slane %v555, 7
      %v558 = vshll.u32 %v394, 16
      %v560 = vor.u32 %v557, %v558
      %v561 = vrot.slane %v557, 4
      %v563 = vshrl.u32 %v395, 16
      %v565 = vrot.slane %v563, 7
      %v566 = vshll.u32 %v395, 16
      %v568 = vor.u32 %v565, %v566
      %v569 = vsel %vm536, %v561, %v568
      %v570 = vrot.slane %v565, 4
      %v572 = vshrl.u32 %v396, 16
      %v574 = vrot.slane %v572, 7
      %v575 = vshll.u32 %v396, 16
      %v577 = vor.u32 %v574, %v575
      %v578 = vrot.slane %v574, 4
      %v580 = vshrl.u32 %v397, 16
      %v582 = vrot.slane %v580, 7
      %v583 = vshll.u32 %v397, 16
      %v585 = vor.u32 %v582, %v583
      %v586 = vsel %vm536, %v578, %v585
      %v587 = vrot.slane %v582, 4
      %v589 = vshrl.u32 %v398, 16
      %v591 = vrot.slane %v589, 7
      %v592 = vshll.u32 %v398, 16
      %v594 = vor.u32 %v591, %v592
      %v595 = vrot.slane %v591, 4
      %v597 = vshrl.u32 %v399, 16
      %v599 = vrot.slane %v597, 7
      %v600 = vshll.u32 %v399, 16
      %v602 = vor.u32 %v599, %v600
      %v603 = vsel %vm536, %v595, %v602
      %v604 = vrot.slane %v599, 4
      %v606 = vshrl.u32 %v400, 16
      %v608 = vrot.slane %v606, 7
      %v609 = vshll.u32 %v400, 16
      %v611 = vor.u32 %v608, %v609
      %v612 = vrot.slane %v608, 4
      %v614 = vshrl.u32 %v401, 16
      %v616 = vrot.slane %v614, 7
      %v617 = vshll.u32 %v401, 16
      %v619 = vor.u32 %v616, %v617
      %v620 = vsel %vm536, %v612, %v619
      %v621 = vrot.slane %v616, 4
      %v623 = vshrl.u32 %v402, 16
      %v625 = vrot.slane %v623, 7
      %v626 = vshll.u32 %v402, 16
      %v628 = vor.u32 %v625, %v626
      %v629 = vrot.slane %v625, 4
      %v631 = vshrl.u32 %v403, 16
      %v633 = vrot.slane %v631, 7
      %v634 = vshll.u32 %v403, 16
      %v636 = vor.u32 %v633, %v634
      %v637 = vsel %vm536, %v629, %v636
      %v638 = vrot.slane %v633, 4
      %v640 = vshrl.u32 %v404, 16
      %v642 = vrot.slane %v640, 7
      %v643 = vshll.u32 %v404, 16
      %v645 = vor.u32 %v642, %v643
      %v646 = vrot.slane %v642, 4
      %v648 = vshrl.u32 %v405, 16
      %v650 = vrot.slane %v648, 7
      %v651 = vshll.u32 %v405, 16
      %v653 = vor.u32 %v650, %v651
      %v654 = vsel %vm536, %v646, %v653
      %v655 = vrot.slane %v650, 4
      %v657 = vshrl.u32 %v406, 16
      %v659 = vrot.slane %v657, 7
      %v660 = vshll.u32 %v406, 16
      %v662 = vor.u32 %v659, %v660
      %v663 = vrot.slane %v659, 4
      %v665 = vshrl.u32 %v407, 16
      %v667 = vrot.slane %v665, 7
      %v668 = vshll.u32 %v407, 16
      %v670 = vor.u32 %v667, %v668
      %v671 = vsel %vm536, %v663, %v670
      %v672 = vrot.slane %v667, 4
      %v674 = vshrl.u32 %v408, 16
      %v676 = vrot.slane %v674, 7
      %v677 = vshll.u32 %v408, 16
      %v679 = vor.u32 %v676, %v677
      %v680 = vrot.slane %v676, 4
      %v682 = vshrl.u32 %v409, 16
      %v684 = vrot.slane %v682, 7
      %v685 = vshll.u32 %v409, 16
      %v687 = vor.u32 %v684, %v685
      %v688 = vsel %vm536, %v680, %v687
      %v689 = vrot.slane %v684, 4
      %v691 = vshrl.u32 %v410, 16
      %v693 = vrot.slane %v691, 7
      %v694 = vshll.u32 %v410, 16
      %v696 = vor.u32 %v693, %v694
      %v697 = vrot.slane %v693, 4
      %v699 = vshrl.u32 %v411, 16
      %v701 = vrot.slane %v699, 7
      %v702 = vshll.u32 %v411, 16
      %v704 = vor.u32 %v701, %v702
      %v705 = vsel %vm536, %v697, %v704
      %v706 = vrot.slane %v701, 4
      %v708 = vshrl.u32 %v412, 16
      %v710 = vrot.slane %v708, 7
      %v711 = vshll.u32 %v412, 16
      %v713 = vor.u32 %v710, %v711
      %v714 = vrot.slane %v710, 4
      %v716 = vshrl.u32 %v413, 16
      %v718 = vrot.slane %v716, 7
      %v719 = vshll.u32 %v413, 16
      %v721 = vor.u32 %v718, %v719
      %v722 = vsel %vm536, %v714, %v721
      %v723 = vrot.slane %v718, 4
      %v725 = vshrl.u32 %v414, 16
      %v727 = vrot.slane %v725, 7
      %v728 = vshll.u32 %v414, 16
      %v730 = vor.u32 %v727, %v728
      %v731 = vrot.slane %v727, 4
      %v733 = vshrl.u32 %v415, 16
      %v735 = vrot.slane %v733, 7
      %v736 = vshll.u32 %v415, 16
      %v738 = vor.u32 %v735, %v736
      %v739 = vsel %vm536, %v731, %v738
      %v740 = vrot.slane %v735, 4
      %v742 = vshrl.u32 %v416, 16
      %v744 = vrot.slane %v742, 7
      %v745 = vshll.u32 %v416, 16
      %v747 = vor.u32 %v744, %v745
      %v748 = vrot.slane %v744, 4
      %v750 = vshrl.u32 %v417, 16
      %v752 = vrot.slane %v750, 7
      %v753 = vshll.u32 %v417, 16
      %v755 = vor.u32 %v752, %v753
      %v756 = vsel %vm536, %v748, %v755
      %v757 = vrot.slane %v752, 4
      %v759 = vshrl.u32 %v418, 16
      %v761 = vrot.slane %v759, 7
      %v762 = vshll.u32 %v418, 16
      %v764 = vor.u32 %v761, %v762
      %v765 = vrot.slane %v761, 4
      %v767 = vshrl.u32 %v419, 16
      %v769 = vrot.slane %v767, 7
      %v770 = vshll.u32 %v419, 16
      %v772 = vor.u32 %v769, %v770
      %v773 = vsel %vm536, %v765, %v772
      %v774 = vrot.slane %v769, 4
      %v776 = vshrl.u32 %v420, 16
      %v778 = vrot.slane %v776, 7
      %v779 = vshll.u32 %v420, 16
      %v781 = vor.u32 %v778, %v779
      %v782 = vrot.slane %v778, 4
      %v784 = vshrl.u32 %v421, 16
      %v786 = vrot.slane %v784, 7
      %v787 = vshll.u32 %v421, 16
      %v789 = vor.u32 %v786, %v787
      %v790 = vsel %vm536, %v782, %v789
      %v791 = vrot.slane %v786, 4
      %v793 = vshrl.u32 %v422, 16
      %v795 = vrot.slane %v793, 7
      %v796 = vshll.u32 %v422, 16
      %v798 = vor.u32 %v795, %v796
      %v799 = vrot.slane %v795, 4
      %v801 = vshrl.u32 %v423, 16
      %v803 = vrot.slane %v801, 7
      %v804 = vshll.u32 %v423, 16
      %v806 = vor.u32 %v803, %v804
      %v807 = vsel %vm536, %v799, %v806
      %v808 = vrot.slane %v803, 4
      %vm857 = vcmask 257024
      %vm858 = vmand %vm857, %vm485
      %v859 = vld [vmem:[%s433] sm:$0xf]
      %v860 = vsel %vm858, %v543, %v859
      %861 = vst [vmem:[%s433] sm:$0xf] %v860
      %862 = vst.msk [vmem:[%s433 + $0x4] sm:$0xf] %vm424, %v552
      %v863 = vld [vmem:[%s433 + $0x8] sm:$0x1]
      %v864 = vsel %vm436, %v553, %v863
      %865 = vst [vmem:[%s433 + $0x8] sm:$0x1] %v864
      %v866 = vld [vmem:[%s433 + $0xc] sm:$0xf]
      %v867 = vsel %vm858, %v560, %v866
      %868 = vst [vmem:[%s433 + $0xc] sm:$0xf] %v867
      %869 = vst.msk [vmem:[%s433 + $0x10] sm:$0xf] %vm424, %v569
      %v870 = vld [vmem:[%s433 + $0x14] sm:$0x1]
      %v871 = vsel %vm436, %v570, %v870
      %872 = vst [vmem:[%s433 + $0x14] sm:$0x1] %v871
      %v873 = vld [vmem:[%s433 + $0x18] sm:$0xf]
      %v874 = vsel %vm858, %v577, %v873
      %875 = vst [vmem:[%s433 + $0x18] sm:$0xf] %v874
      %876 = vst.msk [vmem:[%s433 + $0x1c] sm:$0xf] %vm424, %v586
      %v877 = vld [vmem:[%s433 + $0x20] sm:$0x1]
      %v878 = vsel %vm436, %v587, %v877
      %879 = vst [vmem:[%s433 + $0x20] sm:$0x1] %v878
      %v880 = vld [vmem:[%s433 + $0x24] sm:$0xf]
      %v881 = vsel %vm858, %v594, %v880
      %882 = vst [vmem:[%s433 + $0x24] sm:$0xf] %v881
      %883 = vst.msk [vmem:[%s433 + $0x28] sm:$0xf] %vm424, %v603
      %v884 = vld [vmem:[%s433 + $0x2c] sm:$0x1]
      %v885 = vsel %vm436, %v604, %v884
      %886 = vst [vmem:[%s433 + $0x2c] sm:$0x1] %v885
      %v887 = vld [vmem:[%s433 + $0x30] sm:$0xf]
      %v888 = vsel %vm858, %v611, %v887
      %889 = vst [vmem:[%s433 + $0x30] sm:$0xf] %v888
      %890 = vst.msk [vmem:[%s433 + $0x34] sm:$0xf] %vm424, %v620
      %v891 = vld [vmem:[%s433 + $0x38] sm:$0x1]
      %v892 = vsel %vm436, %v621, %v891
      %893 = vst [vmem:[%s433 + $0x38] sm:$0x1] %v892
      %v894 = vld [vmem:[%s433 + $0x3c] sm:$0xf]
      %v895 = vsel %vm858, %v628, %v894
      %896 = vst [vmem:[%s433 + $0x3c] sm:$0xf] %v895
      %897 = vst.msk [vmem:[%s433 + $0x40] sm:$0xf] %vm424, %v637
      %v898 = vld [vmem:[%s433 + $0x44] sm:$0x1]
      %v899 = vsel %vm436, %v638, %v898
      %900 = vst [vmem:[%s433 + $0x44] sm:$0x1] %v899
      %v901 = vld [vmem:[%s433 + $0x48] sm:$0xf]
      %v902 = vsel %vm858, %v645, %v901
      %903 = vst [vmem:[%s433 + $0x48] sm:$0xf] %v902
      %904 = vst.msk [vmem:[%s433 + $0x4c] sm:$0xf] %vm424, %v654
      %v905 = vld [vmem:[%s433 + $0x50] sm:$0x1]
      %v906 = vsel %vm436, %v655, %v905
      %907 = vst [vmem:[%s433 + $0x50] sm:$0x1] %v906
      %v908 = vld [vmem:[%s433 + $0x54] sm:$0xf]
      %v909 = vsel %vm858, %v662, %v908
      %910 = vst [vmem:[%s433 + $0x54] sm:$0xf] %v909
      %911 = vst.msk [vmem:[%s433 + $0x58] sm:$0xf] %vm424, %v671
      %v912 = vld [vmem:[%s433 + $0x5c] sm:$0x1]
      %v913 = vsel %vm436, %v672, %v912
      %914 = vst [vmem:[%s433 + $0x5c] sm:$0x1] %v913
      %v915 = vld [vmem:[%s433 + $0x60] sm:$0xf]
      %v916 = vsel %vm858, %v679, %v915
      %917 = vst [vmem:[%s433 + $0x60] sm:$0xf] %v916
      %918 = vst.msk [vmem:[%s433 + $0x64] sm:$0xf] %vm424, %v688
      %v919 = vld [vmem:[%s433 + $0x68] sm:$0x1]
      %v920 = vsel %vm436, %v689, %v919
      %921 = vst [vmem:[%s433 + $0x68] sm:$0x1] %v920
      %v922 = vld [vmem:[%s433 + $0x6c] sm:$0xf]
      %v923 = vsel %vm858, %v696, %v922
      %924 = vst [vmem:[%s433 + $0x6c] sm:$0xf] %v923
      %925 = vst.msk [vmem:[%s433 + $0x70] sm:$0xf] %vm424, %v705
      %v926 = vld [vmem:[%s433 + $0x74] sm:$0x1]
      %v927 = vsel %vm436, %v706, %v926
      %928 = vst [vmem:[%s433 + $0x74] sm:$0x1] %v927
      %v929 = vld [vmem:[%s433 + $0x78] sm:$0xf]
      %v930 = vsel %vm858, %v713, %v929
      %931 = vst [vmem:[%s433 + $0x78] sm:$0xf] %v930
      %932 = vst.msk [vmem:[%s433 + $0x7c] sm:$0xf] %vm424, %v722
      %v933 = vld [vmem:[%s433 + $0x80] sm:$0x1]
      %v934 = vsel %vm436, %v723, %v933
      %935 = vst [vmem:[%s433 + $0x80] sm:$0x1] %v934
      %v936 = vld [vmem:[%s433 + $0x84] sm:$0xf]
      %v937 = vsel %vm858, %v730, %v936
      %938 = vst [vmem:[%s433 + $0x84] sm:$0xf] %v937
      %939 = vst.msk [vmem:[%s433 + $0x88] sm:$0xf] %vm424, %v739
      %v940 = vld [vmem:[%s433 + $0x8c] sm:$0x1]
      %v941 = vsel %vm436, %v740, %v940
      %942 = vst [vmem:[%s433 + $0x8c] sm:$0x1] %v941
      %v943 = vld [vmem:[%s433 + $0x90] sm:$0xf]
      %v944 = vsel %vm858, %v747, %v943
      %945 = vst [vmem:[%s433 + $0x90] sm:$0xf] %v944
      %946 = vst.msk [vmem:[%s433 + $0x94] sm:$0xf] %vm424, %v756
      %v947 = vld [vmem:[%s433 + $0x98] sm:$0x1]
      %v948 = vsel %vm436, %v757, %v947
      %949 = vst [vmem:[%s433 + $0x98] sm:$0x1] %v948
      %v950 = vld [vmem:[%s433 + $0x9c] sm:$0xf]
      %v951 = vsel %vm858, %v764, %v950
      %952 = vst [vmem:[%s433 + $0x9c] sm:$0xf] %v951
      %953 = vst.msk [vmem:[%s433 + $0xa0] sm:$0xf] %vm424, %v773
      %v954 = vld [vmem:[%s433 + $0xa4] sm:$0x1]
      %v955 = vsel %vm436, %v774, %v954
      %956 = vst [vmem:[%s433 + $0xa4] sm:$0x1] %v955
      %v957 = vld [vmem:[%s433 + $0xa8] sm:$0xf]
      %v958 = vsel %vm858, %v781, %v957
      %959 = vst [vmem:[%s433 + $0xa8] sm:$0xf] %v958
      %960 = vst.msk [vmem:[%s433 + $0xac] sm:$0xf] %vm424, %v790
      %v961 = vld [vmem:[%s433 + $0xb0] sm:$0x1]
      %v962 = vsel %vm436, %v791, %v961
      %963 = vst [vmem:[%s433 + $0xb0] sm:$0x1] %v962
      %v964 = vld [vmem:[%s433 + $0xb4] sm:$0xf]
      %v965 = vsel %vm858, %v798, %v964
      %966 = vst [vmem:[%s433 + $0xb4] sm:$0xf] %v965
      %967 = vst.msk [vmem:[%s433 + $0xb8] sm:$0xf] %vm424, %v807
      %v968 = vld [vmem:[%s433 + $0xbc] sm:$0x1]
      %v969 = vsel %vm436, %v808, %v968
      %970 = vst [vmem:[%s433 + $0xbc] sm:$0x1] %v969
      %v971 = vld [vmem:[#allocation2] sm:$0xf]
      %v972 = vld [vmem:[#allocation2 + $0x4] sm:$0xf]
      %v973 = vld [vmem:[#allocation2 + $0xc] sm:$0xf]
      %v974 = vld [vmem:[#allocation2 + $0x10] sm:$0xf]
      %v975 = vld [vmem:[#allocation2 + $0x18] sm:$0xf]
      %v976 = vld [vmem:[#allocation2 + $0x1c] sm:$0xf]
      %v977 = vld [vmem:[#allocation2 + $0x24] sm:$0xf]
      %v978 = vld [vmem:[#allocation2 + $0x28] sm:$0xf]
      %v979 = vld [vmem:[#allocation2 + $0x30] sm:$0xf]
      %v980 = vld [vmem:[#allocation2 + $0x34] sm:$0xf]
      %v981 = vld [vmem:[#allocation2 + $0x3c] sm:$0xf]
      %v982 = vld [vmem:[#allocation2 + $0x40] sm:$0xf]
      %v983 = vld [vmem:[#allocation2 + $0x48] sm:$0xf]
      %v984 = vld [vmem:[#allocation2 + $0x4c] sm:$0xf]
      %v985 = vld [vmem:[#allocation2 + $0x54] sm:$0xf]
      %v986 = vld [vmem:[#allocation2 + $0x58] sm:$0xf]
      %v987 = vld [vmem:[#allocation2 + $0x60] sm:$0xf]
      %v988 = vld [vmem:[#allocation2 + $0x64] sm:$0xf]
      %v989 = vld [vmem:[#allocation2 + $0x6c] sm:$0xf]
      %v990 = vld [vmem:[#allocation2 + $0x70] sm:$0xf]
      %v991 = vld [vmem:[#allocation2 + $0x78] sm:$0xf]
      %v992 = vld [vmem:[#allocation2 + $0x7c] sm:$0xf]
      %v993 = vld [vmem:[#allocation2 + $0x84] sm:$0xf]
      %v994 = vld [vmem:[#allocation2 + $0x88] sm:$0xf]
      %v995 = vld [vmem:[#allocation2 + $0x90] sm:$0xf]
      %v996 = vld [vmem:[#allocation2 + $0x94] sm:$0xf]
      %v997 = vld [vmem:[#allocation2 + $0x9c] sm:$0xf]
      %v998 = vld [vmem:[#allocation2 + $0xa0] sm:$0xf]
      %v999 = vld [vmem:[#allocation2 + $0xa8] sm:$0xf]
      %v1000 = vld [vmem:[#allocation2 + $0xac] sm:$0xf]
      %v1001 = vld [vmem:[#allocation2 + $0xb4] sm:$0xf]
      %v1002 = vld [vmem:[#allocation2 + $0xb8] sm:$0xf]
      %v1035 = vunpack.c.l.b16 %v971
      %v1036 = vunpack.c.l.b16 %v972
      %v1037 = vunpack.c.l.b16 %v973
      %v1038 = vunpack.c.l.b16 %v974
      %v1039 = vunpack.c.l.b16 %v975
      %v1040 = vunpack.c.l.b16 %v976
      %v1041 = vunpack.c.l.b16 %v977
      %v1042 = vunpack.c.l.b16 %v978
      %v1043 = vunpack.c.l.b16 %v979
      %v1044 = vunpack.c.l.b16 %v980
      %v1045 = vunpack.c.l.b16 %v981
      %v1046 = vunpack.c.l.b16 %v982
      %v1047 = vunpack.c.l.b16 %v983
      %v1048 = vunpack.c.l.b16 %v984
      %v1049 = vunpack.c.l.b16 %v985
      %v1050 = vunpack.c.l.b16 %v986
      %v1051 = vunpack.c.l.b16 %v987
      %v1052 = vunpack.c.l.b16 %v988
      %v1053 = vunpack.c.l.b16 %v989
      %v1054 = vunpack.c.l.b16 %v990
      %v1055 = vunpack.c.l.b16 %v991
      %v1056 = vunpack.c.l.b16 %v992
      %v1057 = vunpack.c.l.b16 %v993
      %v1058 = vunpack.c.l.b16 %v994
      %v1059 = vunpack.c.l.b16 %v995
      %v1060 = vunpack.c.l.b16 %v996
      %v1061 = vunpack.c.l.b16 %v997
      %v1062 = vunpack.c.l.b16 %v998
      %v1063 = vunpack.c.l.b16 %v999
      %v1064 = vunpack.c.l.b16 %v1000
      %v1065 = vunpack.c.l.b16 %v1001
      %v1066 = vunpack.c.l.b16 %v1002
      %v1067 = vpack.c.b16 %v1036, %v1035
      %v1068 = vpack.c.b16 %v1038, %v1037
      %v1069 = vpack.c.b16 %v1040, %v1039
      %v1070 = vpack.c.b16 %v1042, %v1041
      %v1071 = vpack.c.b16 %v1044, %v1043
      %v1072 = vpack.c.b16 %v1046, %v1045
      %v1073 = vpack.c.b16 %v1048, %v1047
      %v1074 = vpack.c.b16 %v1050, %v1049
      %v1075 = vpack.c.b16 %v1052, %v1051
      %v1076 = vpack.c.b16 %v1054, %v1053
      %v1077 = vpack.c.b16 %v1056, %v1055
      %v1078 = vpack.c.b16 %v1058, %v1057
      %v1079 = vpack.c.b16 %v1060, %v1059
      %v1080 = vpack.c.b16 %v1062, %v1061
      %v1081 = vpack.c.b16 %v1064, %v1063
      %v1082 = vpack.c.b16 %v1066, %v1065
      %vm1099 = vcmask 261120
      %1100 = vst.msk [vmem:[#allocation3] sm:$0xff] %vm1099, %v1067
      %1101 = vst.msk [vmem:[#allocation3 + $0x18] sm:$0xff] %vm1099, %v1068
      %1102 = vst.msk [vmem:[#allocation3 + $0x30] sm:$0xff] %vm1099, %v1069
      %1103 = vst.msk [vmem:[#allocation3 + $0x48] sm:$0xff] %vm1099, %v1070
      %1104 = vst.msk [vmem:[#allocation3 + $0x60] sm:$0xff] %vm1099, %v1071
      %1105 = vst.msk [vmem:[#allocation3 + $0x78] sm:$0xff] %vm1099, %v1072
      %1106 = vst.msk [vmem:[#allocation3 + $0x90] sm:$0xff] %vm1099, %v1073
      %1107 = vst.msk [vmem:[#allocation3 + $0xa8] sm:$0xff] %vm1099, %v1074
      %1108 = vst.msk [vmem:[#allocation3 + $0xc0] sm:$0xff] %vm1099, %v1075
      %1109 = vst.msk [vmem:[#allocation3 + $0xd8] sm:$0xff] %vm1099, %v1076
      %1110 = vst.msk [vmem:[#allocation3 + $0xf0] sm:$0xff] %vm1099, %v1077
      %1111 = vst.msk [vmem:[#allocation3 + $0x108] sm:$0xff] %vm1099, %v1078
      %1112 = vst.msk [vmem:[#allocation3 + $0x120] sm:$0xff] %vm1099, %v1079
      %1113 = vst.msk [vmem:[#allocation3 + $0x138] sm:$0xff] %vm1099, %v1080
      %1114 = vst.msk [vmem:[#allocation3 + $0x150] sm:$0xff] %vm1099, %v1081
      %1115 = vst.msk [vmem:[#allocation3 + $0x168] sm:$0xff] %vm1099, %v1082
      %v1116 = vld [vmem:[#allocation2] sm:$0xf]
      %v1117 = vld [vmem:[#allocation2 + $0x4] sm:$0xf]
      %v1118 = vld [vmem:[#allocation2 + $0x8] sm:$0x1]
      %v1119 = vld [vmem:[#allocation2 + $0xc] sm:$0xf]
      %v1120 = vld [vmem:[#allocation2 + $0x10] sm:$0xf]
      %v1121 = vld [vmem:[#allocation2 + $0x14] sm:$0x1]
      %v1122 = vld [vmem:[#allocation2 + $0x18] sm:$0xf]
      %v1123 = vld [vmem:[#allocation2 + $0x1c] sm:$0xf]
      %v1124 = vld [vmem:[#allocation2 + $0x20] sm:$0x1]
      %v1125 = vld [vmem:[#allocation2 + $0x24] sm:$0xf]
      %v1126 = vld [vmem:[#allocation2 + $0x28] sm:$0xf]
      %v1127 = vld [vmem:[#allocation2 + $0x2c] sm:$0x1]
      %v1128 = vld [vmem:[#allocation2 + $0x30] sm:$0xf]
      %v1129 = vld [vmem:[#allocation2 + $0x34] sm:$0xf]
      %v1130 = vld [vmem:[#allocation2 + $0x38] sm:$0x1]
      %v1131 = vld [vmem:[#allocation2 + $0x3c] sm:$0xf]
      %v1132 = vld [vmem:[#allocation2 + $0x40] sm:$0xf]
      %v1133 = vld [vmem:[#allocation2 + $0x44] sm:$0x1]
      %v1134 = vld [vmem:[#allocation2 + $0x48] sm:$0xf]
      %v1135 = vld [vmem:[#allocation2 + $0x4c] sm:$0xf]
      %v1136 = vld [vmem:[#allocation2 + $0x50] sm:$0x1]
      %v1137 = vld [vmem:[#allocation2 + $0x54] sm:$0xf]
      %v1138 = vld [vmem:[#allocation2 + $0x58] sm:$0xf]
      %v1139 = vld [vmem:[#allocation2 + $0x5c] sm:$0x1]
      %v1140 = vld [vmem:[#allocation2 + $0x60] sm:$0xf]
      %v1141 = vld [vmem:[#allocation2 + $0x64] sm:$0xf]
      %v1142 = vld [vmem:[#allocation2 + $0x68] sm:$0x1]
      %v1143 = vld [vmem:[#allocation2 + $0x6c] sm:$0xf]
      %v1144 = vld [vmem:[#allocation2 + $0x70] sm:$0xf]
      %v1145 = vld [vmem:[#allocation2 + $0x74] sm:$0x1]
      %v1146 = vld [vmem:[#allocation2 + $0x78] sm:$0xf]
      %v1147 = vld [vmem:[#allocation2 + $0x7c] sm:$0xf]
      %v1148 = vld [vmem:[#allocation2 + $0x80] sm:$0x1]
      %v1149 = vld [vmem:[#allocation2 + $0x84] sm:$0xf]
      %v1150 = vld [vmem:[#allocation2 + $0x88] sm:$0xf]
      %v1151 = vld [vmem:[#allocation2 + $0x8c] sm:$0x1]
      %v1152 = vld [vmem:[#allocation2 + $0x90] sm:$0xf]
      %v1153 = vld [vmem:[#allocation2 + $0x94] sm:$0xf]
      %v1154 = vld [vmem:[#allocation2 + $0x98] sm:$0x1]
      %v1155 = vld [vmem:[#allocation2 + $0x9c] sm:$0xf]
      %v1156 = vld [vmem:[#allocation2 + $0xa0] sm:$0xf]
      %v1157 = vld [vmem:[#allocation2 + $0xa4] sm:$0x1]
      %v1158 = vld [vmem:[#allocation2 + $0xa8] sm:$0xf]
      %v1159 = vld [vmem:[#allocation2 + $0xac] sm:$0xf]
      %v1160 = vld [vmem:[#allocation2 + $0xb0] sm:$0x1]
      %v1161 = vld [vmem:[#allocation2 + $0xb4] sm:$0xf]
      %v1162 = vld [vmem:[#allocation2 + $0xb8] sm:$0xf]
      %v1163 = vld [vmem:[#allocation2 + $0xbc] sm:$0x1]
      %vm1164 = vsmask.f32 3328
      %vm1165 = vsmask.f32 7440
      %vm1166 = vmor %vm1164, %vm1165
      %v1168 = vshrl.u32 %v1116, 16
      %v1170 = vrot.slane %v1168, 4
      %v1171 = vshll.u32 %v1116, 16
      %v1173 = vrot.slane %v1171, 5
      %v1174 = vor.u32 %v1170, %v1173
      %v1175 = vrot.slane %v1174, 4
      %v1177 = vshll.u32 %v1117, 16
      %v1179 = vrot.slane %v1177, 5
      %v1180 = vsel %vm1166, %v1175, %v1179
      %v1181 = vshrl.u32 %v1117, 16
      %v1183 = vrot.slane %v1181, 4
      %v1184 = vor.u32 %v1183, %v1179
      %v1185 = vrot.slane %v1184, 4
      %v1187 = vshll.u32 %v1118, 16
      %v1189 = vrot.slane %v1187, 5
      %v1190 = vsel %vm1166, %v1185, %v1189
      %v1192 = vshrl.u32 %v1119, 16
      %v1194 = vrot.slane %v1192, 4
      %v1195 = vshll.u32 %v1119, 16
      %v1197 = vrot.slane %v1195, 5
      %v1198 = vor.u32 %v1194, %v1197
      %v1199 = vrot.slane %v1198, 4
      %v1201 = vshll.u32 %v1120, 16
      %v1203 = vrot.slane %v1201, 5
      %v1204 = vsel %vm1166, %v1199, %v1203
      %v1205 = vshrl.u32 %v1120, 16
      %v1207 = vrot.slane %v1205, 4
      %v1208 = vor.u32 %v1207, %v1203
      %v1209 = vrot.slane %v1208, 4
      %v1211 = vshll.u32 %v1121, 16
      %v1213 = vrot.slane %v1211, 5
      %v1214 = vsel %vm1166, %v1209, %v1213
      %v1216 = vshrl.u32 %v1122, 16
      %v1218 = vrot.slane %v1216, 4
      %v1219 = vshll.u32 %v1122, 16
      %v1221 = vrot.slane %v1219, 5
      %v1222 = vor.u32 %v1218, %v1221
      %v1223 = vrot.slane %v1222, 4
      %v1225 = vshll.u32 %v1123, 16
      %v1227 = vrot.slane %v1225, 5
      %v1228 = vsel %vm1166, %v1223, %v1227
      %v1229 = vshrl.u32 %v1123, 16
      %v1231 = vrot.slane %v1229, 4
      %v1232 = vor.u32 %v1231, %v1227
      %v1233 = vrot.slane %v1232, 4
      %v1235 = vshll.u32 %v1124, 16
      %v1237 = vrot.slane %v1235, 5
      %v1238 = vsel %vm1166, %v1233, %v1237
      %v1240 = vshrl.u32 %v1125, 16
      %v1242 = vrot.slane %v1240, 4
      %v1243 = vshll.u32 %v1125, 16
      %v1245 = vrot.slane %v1243, 5
      %v1246 = vor.u32 %v1242, %v1245
      %v1247 = vrot.slane %v1246, 4
      %v1249 = vshll.u32 %v1126, 16
      %v1251 = vrot.slane %v1249, 5
      %v1252 = vsel %vm1166, %v1247, %v1251
      %v1253 = vshrl.u32 %v1126, 16
      %v1255 = vrot.slane %v1253, 4
      %v1256 = vor.u32 %v1255, %v1251
      %v1257 = vrot.slane %v1256, 4
      %v1259 = vshll.u32 %v1127, 16
      %v1261 = vrot.slane %v1259, 5
      %v1262 = vsel %vm1166, %v1257, %v1261
      %v1264 = vshrl.u32 %v1128, 16
      %v1266 = vrot.slane %v1264, 4
      %v1267 = vshll.u32 %v1128, 16
      %v1269 = vrot.slane %v1267, 5
      %v1270 = vor.u32 %v1266, %v1269
      %v1271 = vrot.slane %v1270, 4
      %v1273 = vshll.u32 %v1129, 16
      %v1275 = vrot.slane %v1273, 5
      %v1276 = vsel %vm1166, %v1271, %v1275
      %v1277 = vshrl.u32 %v1129, 16
      %v1279 = vrot.slane %v1277, 4
      %v1280 = vor.u32 %v1279, %v1275
      %v1281 = vrot.slane %v1280, 4
      %v1283 = vshll.u32 %v1130, 16
      %v1285 = vrot.slane %v1283, 5
      %v1286 = vsel %vm1166, %v1281, %v1285
      %v1288 = vshrl.u32 %v1131, 16
      %v1290 = vrot.slane %v1288, 4
      %v1291 = vshll.u32 %v1131, 16
      %v1293 = vrot.slane %v1291, 5
      %v1294 = vor.u32 %v1290, %v1293
      %v1295 = vrot.slane %v1294, 4
      %v1297 = vshll.u32 %v1132, 16
      %v1299 = vrot.slane %v1297, 5
      %v1300 = vsel %vm1166, %v1295, %v1299
      %v1301 = vshrl.u32 %v1132, 16
      %v1303 = vrot.slane %v1301, 4
      %v1304 = vor.u32 %v1303, %v1299
      %v1305 = vrot.slane %v1304, 4
      %v1307 = vshll.u32 %v1133, 16
      %v1309 = vrot.slane %v1307, 5
      %v1310 = vsel %vm1166, %v1305, %v1309
      %v1312 = vshrl.u32 %v1134, 16
      %v1314 = vrot.slane %v1312, 4
      %v1315 = vshll.u32 %v1134, 16
      %v1317 = vrot.slane %v1315, 5
      %v1318 = vor.u32 %v1314, %v1317
      %v1319 = vrot.slane %v1318, 4
      %v1321 = vshll.u32 %v1135, 16
      %v1323 = vrot.slane %v1321, 5
      %v1324 = vsel %vm1166, %v1319, %v1323
      %v1325 = vshrl.u32 %v1135, 16
      %v1327 = vrot.slane %v1325, 4
      %v1328 = vor.u32 %v1327, %v1323
      %v1329 = vrot.slane %v1328, 4
      %v1331 = vshll.u32 %v1136, 16
      %v1333 = vrot.slane %v1331, 5
      %v1334 = vsel %vm1166, %v1329, %v1333
      %v1336 = vshrl.u32 %v1137, 16
      %v1338 = vrot.slane %v1336, 4
      %v1339 = vshll.u32 %v1137, 16
      %v1341 = vrot.slane %v1339, 5
      %v1342 = vor.u32 %v1338, %v1341
      %v1343 = vrot.slane %v1342, 4
      %v1345 = vshll.u32 %v1138, 16
      %v1347 = vrot.slane %v1345, 5
      %v1348 = vsel %vm1166, %v1343, %v1347
      %v1349 = vshrl.u32 %v1138, 16
      %v1351 = vrot.slane %v1349, 4
      %v1352 = vor.u32 %v1351, %v1347
      %v1353 = vrot.slane %v1352, 4
      %v1355 = vshll.u32 %v1139, 16
      %v1357 = vrot.slane %v1355, 5
      %v1358 = vsel %vm1166, %v1353, %v1357
      %v1360 = vshrl.u32 %v1140, 16
      %v1362 = vrot.slane %v1360, 4
      %v1363 = vshll.u32 %v1140, 16
      %v1365 = vrot.slane %v1363, 5
      %v1366 = vor.u32 %v1362, %v1365
      %v1367 = vrot.slane %v1366, 4
      %v1369 = vshll.u32 %v1141, 16
      %v1371 = vrot.slane %v1369, 5
      %v1372 = vsel %vm1166, %v1367, %v1371
      %v1373 = vshrl.u32 %v1141, 16
      %v1375 = vrot.slane %v1373, 4
      %v1376 = vor.u32 %v1375, %v1371
      %v1377 = vrot.slane %v1376, 4
      %v1379 = vshll.u32 %v1142, 16
      %v1381 = vrot.slane %v1379, 5
      %v1382 = vsel %vm1166, %v1377, %v1381
      %v1384 = vshrl.u32 %v1143, 16
      %v1386 = vrot.slane %v1384, 4
      %v1387 = vshll.u32 %v1143, 16
      %v1389 = vrot.slane %v1387, 5
      %v1390 = vor.u32 %v1386, %v1389
      %v1391 = vrot.slane %v1390, 4
      %v1393 = vshll.u32 %v1144, 16
      %v1395 = vrot.slane %v1393, 5
      %v1396 = vsel %vm1166, %v1391, %v1395
      %v1397 = vshrl.u32 %v1144, 16
      %v1399 = vrot.slane %v1397, 4
      %v1400 = vor.u32 %v1399, %v1395
      %v1401 = vrot.slane %v1400, 4
      %v1403 = vshll.u32 %v1145, 16
      %v1405 = vrot.slane %v1403, 5
      %v1406 = vsel %vm1166, %v1401, %v1405
      %v1408 = vshrl.u32 %v1146, 16
      %v1410 = vrot.slane %v1408, 4
      %v1411 = vshll.u32 %v1146, 16
      %v1413 = vrot.slane %v1411, 5
      %v1414 = vor.u32 %v1410, %v1413
      %v1415 = vrot.slane %v1414, 4
      %v1417 = vshll.u32 %v1147, 16
      %v1419 = vrot.slane %v1417, 5
      %v1420 = vsel %vm1166, %v1415, %v1419
      %v1421 = vshrl.u32 %v1147, 16
      %v1423 = vrot.slane %v1421, 4
      %v1424 = vor.u32 %v1423, %v1419
      %v1425 = vrot.slane %v1424, 4
      %v1427 = vshll.u32 %v1148, 16
      %v1429 = vrot.slane %v1427, 5
      %v1430 = vsel %vm1166, %v1425, %v1429
      %v1432 = vshrl.u32 %v1149, 16
      %v1434 = vrot.slane %v1432, 4
      %v1435 = vshll.u32 %v1149, 16
      %v1437 = vrot.slane %v1435, 5
      %v1438 = vor.u32 %v1434, %v1437
      %v1439 = vrot.slane %v1438, 4
      %v1441 = vshll.u32 %v1150, 16
      %v1443 = vrot.slane %v1441, 5
      %v1444 = vsel %vm1166, %v1439, %v1443
      %v1445 = vshrl.u32 %v1150, 16
      %v1447 = vrot.slane %v1445, 4
      %v1448 = vor.u32 %v1447, %v1443
      %v1449 = vrot.slane %v1448, 4
      %v1451 = vshll.u32 %v1151, 16
      %v1453 = vrot.slane %v1451, 5
      %v1454 = vsel %vm1166, %v1449, %v1453
      %v1456 = vshrl.u32 %v1152, 16
      %v1458 = vrot.slane %v1456, 4
      %v1459 = vshll.u32 %v1152, 16
      %v1461 = vrot.slane %v1459, 5
      %v1462 = vor.u32 %v1458, %v1461
      %v1463 = vrot.slane %v1462, 4
      %v1465 = vshll.u32 %v1153, 16
      %v1467 = vrot.slane %v1465, 5
      %v1468 = vsel %vm1166, %v1463, %v1467
      %v1469 = vshrl.u32 %v1153, 16
      %v1471 = vrot.slane %v1469, 4
      %v1472 = vor.u32 %v1471, %v1467
      %v1473 = vrot.slane %v1472, 4
      %v1475 = vshll.u32 %v1154, 16
      %v1477 = vrot.slane %v1475, 5
      %v1478 = vsel %vm1166, %v1473, %v1477
      %v1480 = vshrl.u32 %v1155, 16
      %v1482 = vrot.slane %v1480, 4
      %v1483 = vshll.u32 %v1155, 16
      %v1485 = vrot.slane %v1483, 5
      %v1486 = vor.u32 %v1482, %v1485
      %v1487 = vrot.slane %v1486, 4
      %v1489 = vshll.u32 %v1156, 16
      %v1491 = vrot.slane %v1489, 5
      %v1492 = vsel %vm1166, %v1487, %v1491
      %v1493 = vshrl.u32 %v1156, 16
      %v1495 = vrot.slane %v1493, 4
      %v1496 = vor.u32 %v1495, %v1491
      %v1497 = vrot.slane %v1496, 4
      %v1499 = vshll.u32 %v1157, 16
      %v1501 = vrot.slane %v1499, 5
      %v1502 = vsel %vm1166, %v1497, %v1501
      %v1504 = vshrl.u32 %v1158, 16
      %v1506 = vrot.slane %v1504, 4
      %v1507 = vshll.u32 %v1158, 16
      %v1509 = vrot.slane %v1507, 5
      %v1510 = vor.u32 %v1506, %v1509
      %v1511 = vrot.slane %v1510, 4
      %v1513 = vshll.u32 %v1159, 16
      %v1515 = vrot.slane %v1513, 5
      %v1516 = vsel %vm1166, %v1511, %v1515
      %v1517 = vshrl.u32 %v1159, 16
      %v1519 = vrot.slane %v1517, 4
      %v1520 = vor.u32 %v1519, %v1515
      %v1521 = vrot.slane %v1520, 4
      %v1523 = vshll.u32 %v1160, 16
      %v1525 = vrot.slane %v1523, 5
      %v1526 = vsel %vm1166, %v1521, %v1525
      %v1528 = vshrl.u32 %v1161, 16
      %v1530 = vrot.slane %v1528, 4
      %v1531 = vshll.u32 %v1161, 16
      %v1533 = vrot.slane %v1531, 5
      %v1534 = vor.u32 %v1530, %v1533
      %v1535 = vrot.slane %v1534, 4
      %v1537 = vshll.u32 %v1162, 16
      %v1539 = vrot.slane %v1537, 5
      %v1540 = vsel %vm1166, %v1535, %v1539
      %v1541 = vshrl.u32 %v1162, 16
      %v1543 = vrot.slane %v1541, 4
      %v1544 = vor.u32 %v1543, %v1539
      %v1545 = vrot.slane %v1544, 4
      %v1547 = vshll.u32 %v1163, 16
      %v1549 = vrot.slane %v1547, 5
      %v1550 = vsel %vm1166, %v1545, %v1549
      %v1551 = vunpack.c.l.b16 %v1180
      %v1552 = vunpack.c.l.b16 %v1190
      %v1553 = vunpack.c.l.b16 %v1204
      %v1554 = vunpack.c.l.b16 %v1214
      %v1555 = vunpack.c.l.b16 %v1228
      %v1556 = vunpack.c.l.b16 %v1238
      %v1557 = vunpack.c.l.b16 %v1252
      %v1558 = vunpack.c.l.b16 %v1262
      %v1559 = vunpack.c.l.b16 %v1276
      %v1560 = vunpack.c.l.b16 %v1286
      %v1561 = vunpack.c.l.b16 %v1300
      %v1562 = vunpack.c.l.b16 %v1310
      %v1563 = vunpack.c.l.b16 %v1324
      %v1564 = vunpack.c.l.b16 %v1334
      %v1565 = vunpack.c.l.b16 %v1348
      %v1566 = vunpack.c.l.b16 %v1358
      %v1567 = vunpack.c.l.b16 %v1372
      %v1568 = vunpack.c.l.b16 %v1382
      %v1569 = vunpack.c.l.b16 %v1396
      %v1570 = vunpack.c.l.b16 %v1406
      %v1571 = vunpack.c.l.b16 %v1420
      %v1572 = vunpack.c.l.b16 %v1430
      %v1573 = vunpack.c.l.b16 %v1444
      %v1574 = vunpack.c.l.b16 %v1454
      %v1575 = vunpack.c.l.b16 %v1468
      %v1576 = vunpack.c.l.b16 %v1478
      %v1577 = vunpack.c.l.b16 %v1492
      %v1578 = vunpack.c.l.b16 %v1502
      %v1579 = vunpack.c.l.b16 %v1516
      %v1580 = vunpack.c.l.b16 %v1526
      %v1581 = vunpack.c.l.b16 %v1540
      %v1582 = vunpack.c.l.b16 %v1550
      %v1583 = vpack.c.b16 %v1552, %v1551
      %v1584 = vpack.c.b16 %v1554, %v1553
      %v1585 = vpack.c.b16 %v1556, %v1555
      %v1586 = vpack.c.b16 %v1558, %v1557
      %v1587 = vpack.c.b16 %v1560, %v1559
      %v1588 = vpack.c.b16 %v1562, %v1561
      %v1589 = vpack.c.b16 %v1564, %v1563
      %v1590 = vpack.c.b16 %v1566, %v1565
      %v1591 = vpack.c.b16 %v1568, %v1567
      %v1592 = vpack.c.b16 %v1570, %v1569
      %v1593 = vpack.c.b16 %v1572, %v1571
      %v1594 = vpack.c.b16 %v1574, %v1573
      %v1595 = vpack.c.b16 %v1576, %v1575
      %v1596 = vpack.c.b16 %v1578, %v1577
      %v1597 = vpack.c.b16 %v1580, %v1579
      %v1598 = vpack.c.b16 %v1582, %v1581
      %1599 = vrot.lane.b32.xlu0 %v1583, 32
      %v1600 = vpop.permute.xlu0 %1599
      %1601 = vrot.lane.b32.xlu0 %v1584, 32
      %v1602 = vpop.permute.xlu0 %1601
      %1603 = vrot.lane.b32.xlu0 %v1585, 32
      %v1604 = vpop.permute.xlu0 %1603
      %1605 = vrot.lane.b32.xlu0 %v1586, 32
      %v1606 = vpop.permute.xlu0 %1605
      %1607 = vrot.lane.b32.xlu0 %v1587, 32
      %v1608 = vpop.permute.xlu0 %1607
      %1609 = vrot.lane.b32.xlu0 %v1588, 32
      %v1610 = vpop.permute.xlu0 %1609
      %1611 = vrot.lane.b32.xlu0 %v1589, 32
      %v1612 = vpop.permute.xlu0 %1611
      %1613 = vrot.lane.b32.xlu0 %v1590, 32
      %v1614 = vpop.permute.xlu0 %1613
      %1615 = vrot.lane.b32.xlu0 %v1591, 32
      %v1616 = vpop.permute.xlu0 %1615
      %1617 = vrot.lane.b32.xlu0 %v1592, 32
      %v1618 = vpop.permute.xlu0 %1617
      %1619 = vrot.lane.b32.xlu0 %v1593, 32
      %v1620 = vpop.permute.xlu0 %1619
      %1621 = vrot.lane.b32.xlu0 %v1594, 32
      %v1622 = vpop.permute.xlu0 %1621
      %1623 = vrot.lane.b32.xlu0 %v1595, 32
      %v1624 = vpop.permute.xlu0 %1623
      %1625 = vrot.lane.b32.xlu0 %v1596, 32
      %v1626 = vpop.permute.xlu0 %1625
      %1627 = vrot.lane.b32.xlu0 %v1597, 32
      %v1628 = vpop.permute.xlu0 %1627
      %1629 = vrot.lane.b32.xlu0 %v1598, 32
      %v1630 = vpop.permute.xlu0 %1629
      %vm1647 = vcmask 523520
      %1648 = vst.msk [vmem:[#allocation3] sm:$0xff] %vm1647, %v1600
      %1649 = vst.msk [vmem:[#allocation3 + $0x18] sm:$0xff] %vm1647, %v1602
      %1650 = vst.msk [vmem:[#allocation3 + $0x30] sm:$0xff] %vm1647, %v1604
      %1651 = vst.msk [vmem:[#allocation3 + $0x48] sm:$0xff] %vm1647, %v1606
      %1652 = vst.msk [vmem:[#allocation3 + $0x60] sm:$0xff] %vm1647, %v1608
      %1653 = vst.msk [vmem:[#allocation3 + $0x78] sm:$0xff] %vm1647, %v1610
      %1654 = vst.msk [vmem:[#allocation3 + $0x90] sm:$0xff] %vm1647, %v1612
      %1655 = vst.msk [vmem:[#allocation3 + $0xa8] sm:$0xff] %vm1647, %v1614
      %1656 = vst.msk [vmem:[#allocation3 + $0xc0] sm:$0xff] %vm1647, %v1616
      %1657 = vst.msk [vmem:[#allocation3 + $0xd8] sm:$0xff] %vm1647, %v1618
      %1658 = vst.msk [vmem:[#allocation3 + $0xf0] sm:$0xff] %vm1647, %v1620
      %1659 = vst.msk [vmem:[#allocation3 + $0x108] sm:$0xff] %vm1647, %v1622
      %1660 = vst.msk [vmem:[#allocation3 + $0x120] sm:$0xff] %vm1647, %v1624
      %1661 = vst.msk [vmem:[#allocation3 + $0x138] sm:$0xff] %vm1647, %v1626
      %1662 = vst.msk [vmem:[#allocation3 + $0x150] sm:$0xff] %vm1647, %v1628
      %1663 = vst.msk [vmem:[#allocation3 + $0x168] sm:$0xff] %vm1647, %v1630
      %v1664 = vld [vmem:[#allocation2] sm:$0xe]
      %v1665 = vld [vmem:[#allocation2 + $0x4] sm:$0xf]
      %v1666 = vld [vmem:[#allocation2 + $0x8] sm:$0x1]
      %v1667 = vld [vmem:[#allocation2 + $0xc] sm:$0xe]
      %v1668 = vld [vmem:[#allocation2 + $0x10] sm:$0xf]
      %v1669 = vld [vmem:[#allocation2 + $0x14] sm:$0x1]
      %v1670 = vld [vmem:[#allocation2 + $0x18] sm:$0xe]
      %v1671 = vld [vmem:[#allocation2 + $0x1c] sm:$0xf]
      %v1672 = vld [vmem:[#allocation2 + $0x20] sm:$0x1]
      %v1673 = vld [vmem:[#allocation2 + $0x24] sm:$0xe]
      %v1674 = vld [vmem:[#allocation2 + $0x28] sm:$0xf]
      %v1675 = vld [vmem:[#allocation2 + $0x2c] sm:$0x1]
      %v1676 = vld [vmem:[#allocation2 + $0x30] sm:$0xe]
      %v1677 = vld [vmem:[#allocation2 + $0x34] sm:$0xf]
      %v1678 = vld [vmem:[#allocation2 + $0x38] sm:$0x1]
      %v1679 = vld [vmem:[#allocation2 + $0x3c] sm:$0xe]
      %v1680 = vld [vmem:[#allocation2 + $0x40] sm:$0xf]
      %v1681 = vld [vmem:[#allocation2 + $0x44] sm:$0x1]
      %v1682 = vld [vmem:[#allocation2 + $0x48] sm:$0xe]
      %v1683 = vld [vmem:[#allocation2 + $0x4c] sm:$0xf]
      %v1684 = vld [vmem:[#allocation2 + $0x50] sm:$0x1]
      %v1685 = vld [vmem:[#allocation2 + $0x54] sm:$0xe]
      %v1686 = vld [vmem:[#allocation2 + $0x58] sm:$0xf]
      %v1687 = vld [vmem:[#allocation2 + $0x5c] sm:$0x1]
      %v1688 = vld [vmem:[#allocation2 + $0x60] sm:$0xe]
      %v1689 = vld [vmem:[#allocation2 + $0x64] sm:$0xf]
      %v1690 = vld [vmem:[#allocation2 + $0x68] sm:$0x1]
      %v1691 = vld [vmem:[#allocation2 + $0x6c] sm:$0xe]
      %v1692 = vld [vmem:[#allocation2 + $0x70] sm:$0xf]
      %v1693 = vld [vmem:[#allocation2 + $0x74] sm:$0x1]
      %v1694 = vld [vmem:[#allocation2 + $0x78] sm:$0xe]
      %v1695 = vld [vmem:[#allocation2 + $0x7c] sm:$0xf]
      %v1696 = vld [vmem:[#allocation2 + $0x80] sm:$0x1]
      %v1697 = vld [vmem:[#allocation2 + $0x84] sm:$0xe]
      %v1698 = vld [vmem:[#allocation2 + $0x88] sm:$0xf]
      %v1699 = vld [vmem:[#allocation2 + $0x8c] sm:$0x1]
      %v1700 = vld [vmem:[#allocation2 + $0x90] sm:$0xe]
      %v1701 = vld [vmem:[#allocation2 + $0x94] sm:$0xf]
      %v1702 = vld [vmem:[#allocation2 + $0x98] sm:$0x1]
      %v1703 = vld [vmem:[#allocation2 + $0x9c] sm:$0xe]
      %v1704 = vld [vmem:[#allocation2 + $0xa0] sm:$0xf]
      %v1705 = vld [vmem:[#allocation2 + $0xa4] sm:$0x1]
      %v1706 = vld [vmem:[#allocation2 + $0xa8] sm:$0xe]
      %v1707 = vld [vmem:[#allocation2 + $0xac] sm:$0xf]
      %v1708 = vld [vmem:[#allocation2 + $0xb0] sm:$0x1]
      %v1709 = vld [vmem:[#allocation2 + $0xb4] sm:$0xe]
      %v1710 = vld [vmem:[#allocation2 + $0xb8] sm:$0xf]
      %v1711 = vld [vmem:[#allocation2 + $0xbc] sm:$0x1]
      %vm1760 = vcmask 1042432
      %vm1761 = vcmask 1046532
      %vm1762 = vmor %vm1760, %vm1761
      %v1763 = vrot.slane %v1664, 5
      %v1764 = vrot.slane %v1763, 4
      %v1765 = vrot.slane %v1665, 5
      %v1766 = vsel %vm1762, %v1764, %v1765
      %v1767 = vrot.slane %v1765, 4
      %v1768 = vrot.slane %v1666, 5
      %v1769 = vsel %vm1762, %v1767, %v1768
      %v1770 = vrot.slane %v1667, 5
      %v1771 = vrot.slane %v1770, 4
      %v1772 = vrot.slane %v1668, 5
      %v1773 = vsel %vm1762, %v1771, %v1772
      %v1774 = vrot.slane %v1772, 4
      %v1775 = vrot.slane %v1669, 5
      %v1776 = vsel %vm1762, %v1774, %v1775
      %v1777 = vrot.slane %v1670, 5
      %v1778 = vrot.slane %v1777, 4
      %v1779 = vrot.slane %v1671, 5
      %v1780 = vsel %vm1762, %v1778, %v1779
      %v1781 = vrot.slane %v1779, 4
      %v1782 = vrot.slane %v1672, 5
      %v1783 = vsel %vm1762, %v1781, %v1782
      %v1784 = vrot.slane %v1673, 5
      %v1785 = vrot.slane %v1784, 4
      %v1786 = vrot.slane %v1674, 5
      %v1787 = vsel %vm1762, %v1785, %v1786
      %v1788 = vrot.slane %v1786, 4
      %v1789 = vrot.slane %v1675, 5
      %v1790 = vsel %vm1762, %v1788, %v1789
      %v1791 = vrot.slane %v1676, 5
      %v1792 = vrot.slane %v1791, 4
      %v1793 = vrot.slane %v1677, 5
      %v1794 = vsel %vm1762, %v1792, %v1793
      %v1795 = vrot.slane %v1793, 4
      %v1796 = vrot.slane %v1678, 5
      %v1797 = vsel %vm1762, %v1795, %v1796
      %v1798 = vrot.slane %v1679, 5
      %v1799 = vrot.slane %v1798, 4
      %v1800 = vrot.slane %v1680, 5
      %v1801 = vsel %vm1762, %v1799, %v1800
      %v1802 = vrot.slane %v1800, 4
      %v1803 = vrot.slane %v1681, 5
      %v1804 = vsel %vm1762, %v1802, %v1803
      %v1805 = vrot.slane %v1682, 5
      %v1806 = vrot.slane %v1805, 4
      %v1807 = vrot.slane %v1683, 5
      %v1808 = vsel %vm1762, %v1806, %v1807
      %v1809 = vrot.slane %v1807, 4
      %v1810 = vrot.slane %v1684, 5
      %v1811 = vsel %vm1762, %v1809, %v1810
      %v1812 = vrot.slane %v1685, 5
      %v1813 = vrot.slane %v1812, 4
      %v1814 = vrot.slane %v1686, 5
      %v1815 = vsel %vm1762, %v1813, %v1814
      %v1816 = vrot.slane %v1814, 4
      %v1817 = vrot.slane %v1687, 5
      %v1818 = vsel %vm1762, %v1816, %v1817
      %v1819 = vrot.slane %v1688, 5
      %v1820 = vrot.slane %v1819, 4
      %v1821 = vrot.slane %v1689, 5
      %v1822 = vsel %vm1762, %v1820, %v1821
      %v1823 = vrot.slane %v1821, 4
      %v1824 = vrot.slane %v1690, 5
      %v1825 = vsel %vm1762, %v1823, %v1824
      %v1826 = vrot.slane %v1691, 5
      %v1827 = vrot.slane %v1826, 4
      %v1828 = vrot.slane %v1692, 5
      %v1829 = vsel %vm1762, %v1827, %v1828
      %v1830 = vrot.slane %v1828, 4
      %v1831 = vrot.slane %v1693, 5
      %v1832 = vsel %vm1762, %v1830, %v1831
      %v1833 = vrot.slane %v1694, 5
      %v1834 = vrot.slane %v1833, 4
      %v1835 = vrot.slane %v1695, 5
      %v1836 = vsel %vm1762, %v1834, %v1835
      %v1837 = vrot.slane %v1835, 4
      %v1838 = vrot.slane %v1696, 5
      %v1839 = vsel %vm1762, %v1837, %v1838
      %v1840 = vrot.slane %v1697, 5
      %v1841 = vrot.slane %v1840, 4
      %v1842 = vrot.slane %v1698, 5
      %v1843 = vsel %vm1762, %v1841, %v1842
      %v1844 = vrot.slane %v1842, 4
      %v1845 = vrot.slane %v1699, 5
      %v1846 = vsel %vm1762, %v1844, %v1845
      %v1847 = vrot.slane %v1700, 5
      %v1848 = vrot.slane %v1847, 4
      %v1849 = vrot.slane %v1701, 5
      %v1850 = vsel %vm1762, %v1848, %v1849
      %v1851 = vrot.slane %v1849, 4
      %v1852 = vrot.slane %v1702, 5
      %v1853 = vsel %vm1762, %v1851, %v1852
      %v1854 = vrot.slane %v1703, 5
      %v1855 = vrot.slane %v1854, 4
      %v1856 = vrot.slane %v1704, 5
      %v1857 = vsel %vm1762, %v1855, %v1856
      %v1858 = vrot.slane %v1856, 4
      %v1859 = vrot.slane %v1705, 5
      %v1860 = vsel %vm1762, %v1858, %v1859
      %v1861 = vrot.slane %v1706, 5
      %v1862 = vrot.slane %v1861, 4
      %v1863 = vrot.slane %v1707, 5
      %v1864 = vsel %vm1762, %v1862, %v1863
      %v1865 = vrot.slane %v1863, 4
      %v1866 = vrot.slane %v1708, 5
      %v1867 = vsel %vm1762, %v1865, %v1866
      %v1868 = vrot.slane %v1709, 5
      %v1869 = vrot.slane %v1868, 4
      %v1870 = vrot.slane %v1710, 5
      %v1871 = vsel %vm1762, %v1869, %v1870
      %v1872 = vrot.slane %v1870, 4
      %v1873 = vrot.slane %v1711, 5
      %v1874 = vsel %vm1762, %v1872, %v1873
      %v1875 = vunpack.c.l.b16 %v1766
      %v1876 = vunpack.c.l.b16 %v1769
      %v1877 = vunpack.c.l.b16 %v1773
      %v1878 = vunpack.c.l.b16 %v1776
      %v1879 = vunpack.c.l.b16 %v1780
      %v1880 = vunpack.c.l.b16 %v1783
      %v1881 = vunpack.c.l.b16 %v1787
      %v1882 = vunpack.c.l.b16 %v1790
      %v1883 = vunpack.c.l.b16 %v1794
      %v1884 = vunpack.c.l.b16 %v1797
      %v1885 = vunpack.c.l.b16 %v1801
      %v1886 = vunpack.c.l.b16 %v1804
      %v1887 = vunpack.c.l.b16 %v1808
      %v1888 = vunpack.c.l.b16 %v1811
      %v1889 = vunpack.c.l.b16 %v1815
      %v1890 = vunpack.c.l.b16 %v1818
      %v1891 = vunpack.c.l.b16 %v1822
      %v1892 = vunpack.c.l.b16 %v1825
      %v1893 = vunpack.c.l.b16 %v1829
      %v1894 = vunpack.c.l.b16 %v1832
      %v1895 = vunpack.c.l.b16 %v1836
      %v1896 = vunpack.c.l.b16 %v1839
      %v1897 = vunpack.c.l.b16 %v1843
      %v1898 = vunpack.c.l.b16 %v1846
      %v1899 = vunpack.c.l.b16 %v1850
      %v1900 = vunpack.c.l.b16 %v1853
      %v1901 = vunpack.c.l.b16 %v1857
      %v1902 = vunpack.c.l.b16 %v1860
      %v1903 = vunpack.c.l.b16 %v1864
      %v1904 = vunpack.c.l.b16 %v1867
      %v1905 = vunpack.c.l.b16 %v1871
      %v1906 = vunpack.c.l.b16 %v1874
      %v1907 = vpack.c.b16 %v1876, %v1875
      %v1908 = vpack.c.b16 %v1878, %v1877
      %v1909 = vpack.c.b16 %v1880, %v1879
      %v1910 = vpack.c.b16 %v1882, %v1881
      %v1911 = vpack.c.b16 %v1884, %v1883
      %v1912 = vpack.c.b16 %v1886, %v1885
      %v1913 = vpack.c.b16 %v1888, %v1887
      %v1914 = vpack.c.b16 %v1890, %v1889
      %v1915 = vpack.c.b16 %v1892, %v1891
      %v1916 = vpack.c.b16 %v1894, %v1893
      %v1917 = vpack.c.b16 %v1896, %v1895
      %v1918 = vpack.c.b16 %v1898, %v1897
      %v1919 = vpack.c.b16 %v1900, %v1899
      %v1920 = vpack.c.b16 %v1902, %v1901
      %v1921 = vpack.c.b16 %v1904, %v1903
      %v1922 = vpack.c.b16 %v1906, %v1905
      %1923 = vrot.lane.b32.xlu0 %v1907, 64
      %v1924 = vpop.permute.xlu0 %1923
      %1925 = vrot.lane.b32.xlu0 %v1908, 64
      %v1926 = vpop.permute.xlu0 %1925
      %1927 = vrot.lane.b32.xlu0 %v1909, 64
      %v1928 = vpop.permute.xlu0 %1927
      %1929 = vrot.lane.b32.xlu0 %v1910, 64
      %v1930 = vpop.permute.xlu0 %1929
      %1931 = vrot.lane.b32.xlu0 %v1911, 64
      %v1932 = vpop.permute.xlu0 %1931
      %1933 = vrot.lane.b32.xlu0 %v1912, 64
      %v1934 = vpop.permute.xlu0 %1933
      %1935 = vrot.lane.b32.xlu0 %v1913, 64
      %v1936 = vpop.permute.xlu0 %1935
      %1937 = vrot.lane.b32.xlu0 %v1914, 64
      %v1938 = vpop.permute.xlu0 %1937
      %1939 = vrot.lane.b32.xlu0 %v1915, 64
      %v1940 = vpop.permute.xlu0 %1939
      %1941 = vrot.lane.b32.xlu0 %v1916, 64
      %v1942 = vpop.permute.xlu0 %1941
      %1943 = vrot.lane.b32.xlu0 %v1917, 64
      %v1944 = vpop.permute.xlu0 %1943
      %1945 = vrot.lane.b32.xlu0 %v1918, 64
      %v1946 = vpop.permute.xlu0 %1945
      %1947 = vrot.lane.b32.xlu0 %v1919, 64
      %v1948 = vpop.permute.xlu0 %1947
      %1949 = vrot.lane.b32.xlu0 %v1920, 64
      %v1950 = vpop.permute.xlu0 %1949
      %1951 = vrot.lane.b32.xlu0 %v1921, 64
      %v1952 = vpop.permute.xlu0 %1951
      %1953 = vrot.lane.b32.xlu0 %v1922, 64
      %v1954 = vpop.permute.xlu0 %1953
      %vm1971 = vcmask 785920
      %1972 = vst.msk [vmem:[#allocation3] sm:$0xff] %vm1971, %v1924
      %1973 = vst.msk [vmem:[#allocation3 + $0x18] sm:$0xff] %vm1971, %v1926
      %1974 = vst.msk [vmem:[#allocation3 + $0x30] sm:$0xff] %vm1971, %v1928
      %1975 = vst.msk [vmem:[#allocation3 + $0x48] sm:$0xff] %vm1971, %v1930
      %1976 = vst.msk [vmem:[#allocation3 + $0x60] sm:$0xff] %vm1971, %v1932
      %1977 = vst.msk [vmem:[#allocation3 + $0x78] sm:$0xff] %vm1971, %v1934
      %1978 = vst.msk [vmem:[#allocation3 + $0x90] sm:$0xff] %vm1971, %v1936
      %1979 = vst.msk [vmem:[#allocation3 + $0xa8] sm:$0xff] %vm1971, %v1938
      %1980 = vst.msk [vmem:[#allocation3 + $0xc0] sm:$0xff] %vm1971, %v1940
      %1981 = vst.msk [vmem:[#allocation3 + $0xd8] sm:$0xff] %vm1971, %v1942
      %1982 = vst.msk [vmem:[#allocation3 + $0xf0] sm:$0xff] %vm1971, %v1944
      %1983 = vst.msk [vmem:[#allocation3 + $0x108] sm:$0xff] %vm1971, %v1946
      %1984 = vst.msk [vmem:[#allocation3 + $0x120] sm:$0xff] %vm1971, %v1948
      %1985 = vst.msk [vmem:[#allocation3 + $0x138] sm:$0xff] %vm1971, %v1950
      %1986 = vst.msk [vmem:[#allocation3 + $0x150] sm:$0xff] %vm1971, %v1952
      %1987 = vst.msk [vmem:[#allocation3 + $0x168] sm:$0xff] %vm1971, %v1954
      %v1988 = vld [vmem:[%s433] sm:$0xf]
      %v1989 = vld [vmem:[%s433 + $0x4] sm:$0xf]
      %v1990 = vld [vmem:[%s433 + $0xc] sm:$0xf]
      %v1991 = vld [vmem:[%s433 + $0x10] sm:$0xf]
      %v1992 = vld [vmem:[%s433 + $0x18] sm:$0xf]
      %v1993 = vld [vmem:[%s433 + $0x1c] sm:$0xf]
      %v1994 = vld [vmem:[%s433 + $0x24] sm:$0xf]
      %v1995 = vld [vmem:[%s433 + $0x28] sm:$0xf]
      %v1996 = vld [vmem:[%s433 + $0x30] sm:$0xf]
      %v1997 = vld [vmem:[%s433 + $0x34] sm:$0xf]
      %v1998 = vld [vmem:[%s433 + $0x3c] sm:$0xf]
      %v1999 = vld [vmem:[%s433 + $0x40] sm:$0xf]
      %v2000 = vld [vmem:[%s433 + $0x48] sm:$0xf]
      %v2001 = vld [vmem:[%s433 + $0x4c] sm:$0xf]
      %v2002 = vld [vmem:[%s433 + $0x54] sm:$0xf]
      %v2003 = vld [vmem:[%s433 + $0x58] sm:$0xf]
      %v2004 = vld [vmem:[%s433 + $0x60] sm:$0xf]
      %v2005 = vld [vmem:[%s433 + $0x64] sm:$0xf]
      %v2006 = vld [vmem:[%s433 + $0x6c] sm:$0xf]
      %v2007 = vld [vmem:[%s433 + $0x70] sm:$0xf]
      %v2008 = vld [vmem:[%s433 + $0x78] sm:$0xf]
      %v2009 = vld [vmem:[%s433 + $0x7c] sm:$0xf]
      %v2010 = vld [vmem:[%s433 + $0x84] sm:$0xf]
      %v2011 = vld [vmem:[%s433 + $0x88] sm:$0xf]
      %v2012 = vld [vmem:[%s433 + $0x90] sm:$0xf]
      %v2013 = vld [vmem:[%s433 + $0x94] sm:$0xf]
      %v2014 = vld [vmem:[%s433 + $0x9c] sm:$0xf]
      %v2015 = vld [vmem:[%s433 + $0xa0] sm:$0xf]
      %v2016 = vld [vmem:[%s433 + $0xa8] sm:$0xf]
      %v2017 = vld [vmem:[%s433 + $0xac] sm:$0xf]
      %v2018 = vld [vmem:[%s433 + $0xb4] sm:$0xf]
      %v2019 = vld [vmem:[%s433 + $0xb8] sm:$0xf]
      %v2052 = vunpack.c.l.b16 %v1988
      %v2053 = vunpack.c.l.b16 %v1989
      %v2054 = vunpack.c.l.b16 %v1990
      %v2055 = vunpack.c.l.b16 %v1991
      %v2056 = vunpack.c.l.b16 %v1992
      %v2057 = vunpack.c.l.b16 %v1993
      %v2058 = vunpack.c.l.b16 %v1994
      %v2059 = vunpack.c.l.b16 %v1995
      %v2060 = vunpack.c.l.b16 %v1996
      %v2061 = vunpack.c.l.b16 %v1997
      %v2062 = vunpack.c.l.b16 %v1998
      %v2063 = vunpack.c.l.b16 %v1999
      %v2064 = vunpack.c.l.b16 %v2000
      %v2065 = vunpack.c.l.b16 %v2001
      %v2066 = vunpack.c.l.b16 %v2002
      %v2067 = vunpack.c.l.b16 %v2003
      %v2068 = vunpack.c.l.b16 %v2004
      %v2069 = vunpack.c.l.b16 %v2005
      %v2070 = vunpack.c.l.b16 %v2006
      %v2071 = vunpack.c.l.b16 %v2007
      %v2072 = vunpack.c.l.b16 %v2008
      %v2073 = vunpack.c.l.b16 %v2009
      %v2074 = vunpack.c.l.b16 %v2010
      %v2075 = vunpack.c.l.b16 %v2011
      %v2076 = vunpack.c.l.b16 %v2012
      %v2077 = vunpack.c.l.b16 %v2013
      %v2078 = vunpack.c.l.b16 %v2014
      %v2079 = vunpack.c.l.b16 %v2015
      %v2080 = vunpack.c.l.b16 %v2016
      %v2081 = vunpack.c.l.b16 %v2017
      %v2082 = vunpack.c.l.b16 %v2018
      %v2083 = vunpack.c.l.b16 %v2019
      %v2084 = vpack.c.b16 %v2053, %v2052
      %v2085 = vpack.c.b16 %v2055, %v2054
      %v2086 = vpack.c.b16 %v2057, %v2056
      %v2087 = vpack.c.b16 %v2059, %v2058
      %v2088 = vpack.c.b16 %v2061, %v2060
      %v2089 = vpack.c.b16 %v2063, %v2062
      %v2090 = vpack.c.b16 %v2065, %v2064
      %v2091 = vpack.c.b16 %v2067, %v2066
      %v2092 = vpack.c.b16 %v2069, %v2068
      %v2093 = vpack.c.b16 %v2071, %v2070
      %v2094 = vpack.c.b16 %v2073, %v2072
      %v2095 = vpack.c.b16 %v2075, %v2074
      %v2096 = vpack.c.b16 %v2077, %v2076
      %v2097 = vpack.c.b16 %v2079, %v2078
      %v2098 = vpack.c.b16 %v2081, %v2080
      %v2099 = vpack.c.b16 %v2083, %v2082
      %2100 = vrot.lane.b32.xlu0 %v2084, 96
      %v2101 = vpop.permute.xlu0 %2100
      %2102 = vrot.lane.b32.xlu0 %v2085, 96
      %v2103 = vpop.permute.xlu0 %2102
      %2104 = vrot.lane.b32.xlu0 %v2086, 96
      %v2105 = vpop.permute.xlu0 %2104
      %2106 = vrot.lane.b32.xlu0 %v2087, 96
      %v2107 = vpop.permute.xlu0 %2106
      %2108 = vrot.lane.b32.xlu0 %v2088, 96
      %v2109 = vpop.permute.xlu0 %2108
      %2110 = vrot.lane.b32.xlu0 %v2089, 96
      %v2111 = vpop.permute.xlu0 %2110
      %2112 = vrot.lane.b32.xlu0 %v2090, 96
      %v2113 = vpop.permute.xlu0 %2112
      %2114 = vrot.lane.b32.xlu0 %v2091, 96
      %v2115 = vpop.permute.xlu0 %2114
      %2116 = vrot.lane.b32.xlu0 %v2092, 96
      %v2117 = vpop.permute.xlu0 %2116
      %2118 = vrot.lane.b32.xlu0 %v2093, 96
      %v2119 = vpop.permute.xlu0 %2118
      %2120 = vrot.lane.b32.xlu0 %v2094, 96
      %v2121 = vpop.permute.xlu0 %2120
      %2122 = vrot.lane.b32.xlu0 %v2095, 96
      %v2123 = vpop.permute.xlu0 %2122
      %2124 = vrot.lane.b32.xlu0 %v2096, 96
      %v2125 = vpop.permute.xlu0 %2124
      %2126 = vrot.lane.b32.xlu0 %v2097, 96
      %v2127 = vpop.permute.xlu0 %2126
      %2128 = vrot.lane.b32.xlu0 %v2098, 96
      %v2129 = vpop.permute.xlu0 %2128
      %2130 = vrot.lane.b32.xlu0 %v2099, 96
      %v2131 = vpop.permute.xlu0 %2130
      %vm2148 = vcmask 1048320
      %2149 = vst.msk [vmem:[#allocation3] sm:$0xff] %vm2148, %v2101
      %2150 = vst.msk [vmem:[#allocation3 + $0x18] sm:$0xff] %vm2148, %v2103
      %2151 = vst.msk [vmem:[#allocation3 + $0x30] sm:$0xff] %vm2148, %v2105
      %2152 = vst.msk [vmem:[#allocation3 + $0x48] sm:$0xff] %vm2148, %v2107
      %2153 = vst.msk [vmem:[#allocation3 + $0x60] sm:$0xff] %vm2148, %v2109
      %2154 = vst.msk [vmem:[#allocation3 + $0x78] sm:$0xff] %vm2148, %v2111
      %2155 = vst.msk [vmem:[#allocation3 + $0x90] sm:$0xff] %vm2148, %v2113
      %2156 = vst.msk [vmem:[#allocation3 + $0xa8] sm:$0xff] %vm2148, %v2115
      %2157 = vst.msk [vmem:[#allocation3 + $0xc0] sm:$0xff] %vm2148, %v2117
      %2158 = vst.msk [vmem:[#allocation3 + $0xd8] sm:$0xff] %vm2148, %v2119
      %2159 = vst.msk [vmem:[#allocation3 + $0xf0] sm:$0xff] %vm2148, %v2121
      %2160 = vst.msk [vmem:[#allocation3 + $0x108] sm:$0xff] %vm2148, %v2123
      %2161 = vst.msk [vmem:[#allocation3 + $0x120] sm:$0xff] %vm2148, %v2125
      %2162 = vst.msk [vmem:[#allocation3 + $0x138] sm:$0xff] %vm2148, %v2127
      %2163 = vst.msk [vmem:[#allocation3 + $0x150] sm:$0xff] %vm2148, %v2129
      %2164 = vst.msk [vmem:[#allocation3 + $0x168] sm:$0xff] %vm2148, %v2131
      %v2165 = vld [vmem:[%s433] sm:$0xf]
      %v2166 = vld [vmem:[%s433 + $0x4] sm:$0xf]
      %v2167 = vld [vmem:[%s433 + $0x8] sm:$0x1]
      %v2168 = vld [vmem:[%s433 + $0xc] sm:$0xf]
      %v2169 = vld [vmem:[%s433 + $0x10] sm:$0xf]
      %v2170 = vld [vmem:[%s433 + $0x14] sm:$0x1]
      %v2171 = vld [vmem:[%s433 + $0x18] sm:$0xf]
      %v2172 = vld [vmem:[%s433 + $0x1c] sm:$0xf]
      %v2173 = vld [vmem:[%s433 + $0x20] sm:$0x1]
      %v2174 = vld [vmem:[%s433 + $0x24] sm:$0xf]
      %v2175 = vld [vmem:[%s433 + $0x28] sm:$0xf]
      %v2176 = vld [vmem:[%s433 + $0x2c] sm:$0x1]
      %v2177 = vld [vmem:[%s433 + $0x30] sm:$0xf]
      %v2178 = vld [vmem:[%s433 + $0x34] sm:$0xf]
      %v2179 = vld [vmem:[%s433 + $0x38] sm:$0x1]
      %v2180 = vld [vmem:[%s433 + $0x3c] sm:$0xf]
      %v2181 = vld [vmem:[%s433 + $0x40] sm:$0xf]
      %v2182 = vld [vmem:[%s433 + $0x44] sm:$0x1]
      %v2183 = vld [vmem:[%s433 + $0x48] sm:$0xf]
      %v2184 = vld [vmem:[%s433 + $0x4c] sm:$0xf]
      %v2185 = vld [vmem:[%s433 + $0x50] sm:$0x1]
      %v2186 = vld [vmem:[%s433 + $0x54] sm:$0xf]
      %v2187 = vld [vmem:[%s433 + $0x58] sm:$0xf]
      %v2188 = vld [vmem:[%s433 + $0x5c] sm:$0x1]
      %v2189 = vld [vmem:[%s433 + $0x60] sm:$0xf]
      %v2190 = vld [vmem:[%s433 + $0x64] sm:$0xf]
      %v2191 = vld [vmem:[%s433 + $0x68] sm:$0x1]
      %v2192 = vld [vmem:[%s433 + $0x6c] sm:$0xf]
      %v2193 = vld [vmem:[%s433 + $0x70] sm:$0xf]
      %v2194 = vld [vmem:[%s433 + $0x74] sm:$0x1]
      %v2195 = vld [vmem:[%s433 + $0x78] sm:$0xf]
      %v2196 = vld [vmem:[%s433 + $0x7c] sm:$0xf]
      %v2197 = vld [vmem:[%s433 + $0x80] sm:$0x1]
      %v2198 = vld [vmem:[%s433 + $0x84] sm:$0xf]
      %v2199 = vld [vmem:[%s433 + $0x88] sm:$0xf]
      %v2200 = vld [vmem:[%s433 + $0x8c] sm:$0x1]
      %v2201 = vld [vmem:[%s433 + $0x90] sm:$0xf]
      %v2202 = vld [vmem:[%s433 + $0x94] sm:$0xf]
      %v2203 = vld [vmem:[%s433 + $0x98] sm:$0x1]
      %v2204 = vld [vmem:[%s433 + $0x9c] sm:$0xf]
      %v2205 = vld [vmem:[%s433 + $0xa0] sm:$0xf]
      %v2206 = vld [vmem:[%s433 + $0xa4] sm:$0x1]
      %v2207 = vld [vmem:[%s433 + $0xa8] sm:$0xf]
      %v2208 = vld [vmem:[%s433 + $0xac] sm:$0xf]
      %v2209 = vld [vmem:[%s433 + $0xb0] sm:$0x1]
      %v2210 = vld [vmem:[%s433 + $0xb4] sm:$0xf]
      %v2211 = vld [vmem:[%s433 + $0xb8] sm:$0xf]
      %v2212 = vld [vmem:[%s433 + $0xbc] sm:$0x1]
      %v2214 = vshrl.u32 %v2165, 16
      %v2216 = vrot.slane %v2214, 4
      %v2217 = vshll.u32 %v2165, 16
      %v2219 = vrot.slane %v2217, 5
      %v2220 = vor.u32 %v2216, %v2219
      %v2221 = vrot.slane %v2220, 4
      %v2223 = vshll.u32 %v2166, 16
      %v2225 = vrot.slane %v2223, 5
      %v2226 = vsel %vm1166, %v2221, %v2225
      %v2227 = vshrl.u32 %v2166, 16
      %v2229 = vrot.slane %v2227, 4
      %v2230 = vor.u32 %v2229, %v2225
      %v2231 = vrot.slane %v2230, 4
      %v2233 = vshll.u32 %v2167, 16
      %v2235 = vrot.slane %v2233, 5
      %v2236 = vsel %vm1166, %v2231, %v2235
      %v2238 = vshrl.u32 %v2168, 16
      %v2240 = vrot.slane %v2238, 4
      %v2241 = vshll.u32 %v2168, 16
      %v2243 = vrot.slane %v2241, 5
      %v2244 = vor.u32 %v2240, %v2243
      %v2245 = vrot.slane %v2244, 4
      %v2247 = vshll.u32 %v2169, 16
      %v2249 = vrot.slane %v2247, 5
      %v2250 = vsel %vm1166, %v2245, %v2249
      %v2251 = vshrl.u32 %v2169, 16
      %v2253 = vrot.slane %v2251, 4
      %v2254 = vor.u32 %v2253, %v2249
      %v2255 = vrot.slane %v2254, 4
      %v2257 = vshll.u32 %v2170, 16
      %v2259 = vrot.slane %v2257, 5
      %v2260 = vsel %vm1166, %v2255, %v2259
      %v2262 = vshrl.u32 %v2171, 16
      %v2264 = vrot.slane %v2262, 4
      %v2265 = vshll.u32 %v2171, 16
      %v2267 = vrot.slane %v2265, 5
      %v2268 = vor.u32 %v2264, %v2267
      %v2269 = vrot.slane %v2268, 4
      %v2271 = vshll.u32 %v2172, 16
      %v2273 = vrot.slane %v2271, 5
      %v2274 = vsel %vm1166, %v2269, %v2273
      %v2275 = vshrl.u32 %v2172, 16
      %v2277 = vrot.slane %v2275, 4
      %v2278 = vor.u32 %v2277, %v2273
      %v2279 = vrot.slane %v2278, 4
      %v2281 = vshll.u32 %v2173, 16
      %v2283 = vrot.slane %v2281, 5
      %v2284 = vsel %vm1166, %v2279, %v2283
      %v2286 = vshrl.u32 %v2174, 16
      %v2288 = vrot.slane %v2286, 4
      %v2289 = vshll.u32 %v2174, 16
      %v2291 = vrot.slane %v2289, 5
      %v2292 = vor.u32 %v2288, %v2291
      %v2293 = vrot.slane %v2292, 4
      %v2295 = vshll.u32 %v2175, 16
      %v2297 = vrot.slane %v2295, 5
      %v2298 = vsel %vm1166, %v2293, %v2297
      %v2299 = vshrl.u32 %v2175, 16
      %v2301 = vrot.slane %v2299, 4
      %v2302 = vor.u32 %v2301, %v2297
      %v2303 = vrot.slane %v2302, 4
      %v2305 = vshll.u32 %v2176, 16
      %v2307 = vrot.slane %v2305, 5
      %v2308 = vsel %vm1166, %v2303, %v2307
      %v2310 = vshrl.u32 %v2177, 16
      %v2312 = vrot.slane %v2310, 4
      %v2313 = vshll.u32 %v2177, 16
      %v2315 = vrot.slane %v2313, 5
      %v2316 = vor.u32 %v2312, %v2315
      %v2317 = vrot.slane %v2316, 4
      %v2319 = vshll.u32 %v2178, 16
      %v2321 = vrot.slane %v2319, 5
      %v2322 = vsel %vm1166, %v2317, %v2321
      %v2323 = vshrl.u32 %v2178, 16
      %v2325 = vrot.slane %v2323, 4
      %v2326 = vor.u32 %v2325, %v2321
      %v2327 = vrot.slane %v2326, 4
      %v2329 = vshll.u32 %v2179, 16
      %v2331 = vrot.slane %v2329, 5
      %v2332 = vsel %vm1166, %v2327, %v2331
      %v2334 = vshrl.u32 %v2180, 16
      %v2336 = vrot.slane %v2334, 4
      %v2337 = vshll.u32 %v2180, 16
      %v2339 = vrot.slane %v2337, 5
      %v2340 = vor.u32 %v2336, %v2339
      %v2341 = vrot.slane %v2340, 4
      %v2343 = vshll.u32 %v2181, 16
      %v2345 = vrot.slane %v2343, 5
      %v2346 = vsel %vm1166, %v2341, %v2345
      %v2347 = vshrl.u32 %v2181, 16
      %v2349 = vrot.slane %v2347, 4
      %v2350 = vor.u32 %v2349, %v2345
      %v2351 = vrot.slane %v2350, 4
      %v2353 = vshll.u32 %v2182, 16
      %v2355 = vrot.slane %v2353, 5
      %v2356 = vsel %vm1166, %v2351, %v2355
      %v2358 = vshrl.u32 %v2183, 16
      %v2360 = vrot.slane %v2358, 4
      %v2361 = vshll.u32 %v2183, 16
      %v2363 = vrot.slane %v2361, 5
      %v2364 = vor.u32 %v2360, %v2363
      %v2365 = vrot.slane %v2364, 4
      %v2367 = vshll.u32 %v2184, 16
      %v2369 = vrot.slane %v2367, 5
      %v2370 = vsel %vm1166, %v2365, %v2369
      %v2371 = vshrl.u32 %v2184, 16
      %v2373 = vrot.slane %v2371, 4
      %v2374 = vor.u32 %v2373, %v2369
      %v2375 = vrot.slane %v2374, 4
      %v2377 = vshll.u32 %v2185, 16
      %v2379 = vrot.slane %v2377, 5
      %v2380 = vsel %vm1166, %v2375, %v2379
      %v2382 = vshrl.u32 %v2186, 16
      %v2384 = vrot.slane %v2382, 4
      %v2385 = vshll.u32 %v2186, 16
      %v2387 = vrot.slane %v2385, 5
      %v2388 = vor.u32 %v2384, %v2387
      %v2389 = vrot.slane %v2388, 4
      %v2391 = vshll.u32 %v2187, 16
      %v2393 = vrot.slane %v2391, 5
      %v2394 = vsel %vm1166, %v2389, %v2393
      %v2395 = vshrl.u32 %v2187, 16
      %v2397 = vrot.slane %v2395, 4
      %v2398 = vor.u32 %v2397, %v2393
      %v2399 = vrot.slane %v2398, 4
      %v2401 = vshll.u32 %v2188, 16
      %v2403 = vrot.slane %v2401, 5
      %v2404 = vsel %vm1166, %v2399, %v2403
      %v2406 = vshrl.u32 %v2189, 16
      %v2408 = vrot.slane %v2406, 4
      %v2409 = vshll.u32 %v2189, 16
      %v2411 = vrot.slane %v2409, 5
      %v2412 = vor.u32 %v2408, %v2411
      %v2413 = vrot.slane %v2412, 4
      %v2415 = vshll.u32 %v2190, 16
      %v2417 = vrot.slane %v2415, 5
      %v2418 = vsel %vm1166, %v2413, %v2417
      %v2419 = vshrl.u32 %v2190, 16
      %v2421 = vrot.slane %v2419, 4
      %v2422 = vor.u32 %v2421, %v2417
      %v2423 = vrot.slane %v2422, 4
      %v2425 = vshll.u32 %v2191, 16
      %v2427 = vrot.slane %v2425, 5
      %v2428 = vsel %vm1166, %v2423, %v2427
      %v2430 = vshrl.u32 %v2192, 16
      %v2432 = vrot.slane %v2430, 4
      %v2433 = vshll.u32 %v2192, 16
      %v2435 = vrot.slane %v2433, 5
      %v2436 = vor.u32 %v2432, %v2435
      %v2437 = vrot.slane %v2436, 4
      %v2439 = vshll.u32 %v2193, 16
      %v2441 = vrot.slane %v2439, 5
      %v2442 = vsel %vm1166, %v2437, %v2441
      %v2443 = vshrl.u32 %v2193, 16
      %v2445 = vrot.slane %v2443, 4
      %v2446 = vor.u32 %v2445, %v2441
      %v2447 = vrot.slane %v2446, 4
      %v2449 = vshll.u32 %v2194, 16
      %v2451 = vrot.slane %v2449, 5
      %v2452 = vsel %vm1166, %v2447, %v2451
      %v2454 = vshrl.u32 %v2195, 16
      %v2456 = vrot.slane %v2454, 4
      %v2457 = vshll.u32 %v2195, 16
      %v2459 = vrot.slane %v2457, 5
      %v2460 = vor.u32 %v2456, %v2459
      %v2461 = vrot.slane %v2460, 4
      %v2463 = vshll.u32 %v2196, 16
      %v2465 = vrot.slane %v2463, 5
      %v2466 = vsel %vm1166, %v2461, %v2465
      %v2467 = vshrl.u32 %v2196, 16
      %v2469 = vrot.slane %v2467, 4
      %v2470 = vor.u32 %v2469, %v2465
      %v2471 = vrot.slane %v2470, 4
      %v2473 = vshll.u32 %v2197, 16
      %v2475 = vrot.slane %v2473, 5
      %v2476 = vsel %vm1166, %v2471, %v2475
      %v2478 = vshrl.u32 %v2198, 16
      %v2480 = vrot.slane %v2478, 4
      %v2481 = vshll.u32 %v2198, 16
      %v2483 = vrot.slane %v2481, 5
      %v2484 = vor.u32 %v2480, %v2483
      %v2485 = vrot.slane %v2484, 4
      %v2487 = vshll.u32 %v2199, 16
      %v2489 = vrot.slane %v2487, 5
      %v2490 = vsel %vm1166, %v2485, %v2489
      %v2491 = vshrl.u32 %v2199, 16
      %v2493 = vrot.slane %v2491, 4
      %v2494 = vor.u32 %v2493, %v2489
      %v2495 = vrot.slane %v2494, 4
      %v2497 = vshll.u32 %v2200, 16
      %v2499 = vrot.slane %v2497, 5
      %v2500 = vsel %vm1166, %v2495, %v2499
      %v2502 = vshrl.u32 %v2201, 16
      %v2504 = vrot.slane %v2502, 4
      %v2505 = vshll.u32 %v2201, 16
      %v2507 = vrot.slane %v2505, 5
      %v2508 = vor.u32 %v2504, %v2507
      %v2509 = vrot.slane %v2508, 4
      %v2511 = vshll.u32 %v2202, 16
      %v2513 = vrot.slane %v2511, 5
      %v2514 = vsel %vm1166, %v2509, %v2513
      %v2515 = vshrl.u32 %v2202, 16
      %v2517 = vrot.slane %v2515, 4
      %v2518 = vor.u32 %v2517, %v2513
      %v2519 = vrot.slane %v2518, 4
      %v2521 = vshll.u32 %v2203, 16
      %v2523 = vrot.slane %v2521, 5
      %v2524 = vsel %vm1166, %v2519, %v2523
      %v2526 = vshrl.u32 %v2204, 16
      %v2528 = vrot.slane %v2526, 4
      %v2529 = vshll.u32 %v2204, 16
      %v2531 = vrot.slane %v2529, 5
      %v2532 = vor.u32 %v2528, %v2531
      %v2533 = vrot.slane %v2532, 4
      %v2535 = vshll.u32 %v2205, 16
      %v2537 = vrot.slane %v2535, 5
      %v2538 = vsel %vm1166, %v2533, %v2537
      %v2539 = vshrl.u32 %v2205, 16
      %v2541 = vrot.slane %v2539, 4
      %v2542 = vor.u32 %v2541, %v2537
      %v2543 = vrot.slane %v2542, 4
      %v2545 = vshll.u32 %v2206, 16
      %v2547 = vrot.slane %v2545, 5
      %v2548 = vsel %vm1166, %v2543, %v2547
      %v2550 = vshrl.u32 %v2207, 16
      %v2552 = vrot.slane %v2550, 4
      %v2553 = vshll.u32 %v2207, 16
      %v2555 = vrot.slane %v2553, 5
      %v2556 = vor.u32 %v2552, %v2555
      %v2557 = vrot.slane %v2556, 4
      %v2559 = vshll.u32 %v2208, 16
      %v2561 = vrot.slane %v2559, 5
      %v2562 = vsel %vm1166, %v2557, %v2561
      %v2563 = vshrl.u32 %v2208, 16
      %v2565 = vrot.slane %v2563, 4
      %v2566 = vor.u32 %v2565, %v2561
      %v2567 = vrot.slane %v2566, 4
      %v2569 = vshll.u32 %v2209, 16
      %v2571 = vrot.slane %v2569, 5
      %v2572 = vsel %vm1166, %v2567, %v2571
      %v2574 = vshrl.u32 %v2210, 16
      %v2576 = vrot.slane %v2574, 4
      %v2577 = vshll.u32 %v2210, 16
      %v2579 = vrot.slane %v2577, 5
      %v2580 = vor.u32 %v2576, %v2579
      %v2581 = vrot.slane %v2580, 4
      %v2583 = vshll.u32 %v2211, 16
      %v2585 = vrot.slane %v2583, 5
      %v2586 = vsel %vm1166, %v2581, %v2585
      %v2587 = vshrl.u32 %v2211, 16
      %v2589 = vrot.slane %v2587, 4
      %v2590 = vor.u32 %v2589, %v2585
      %v2591 = vrot.slane %v2590, 4
      %v2593 = vshll.u32 %v2212, 16
      %v2595 = vrot.slane %v2593, 5
      %v2596 = vsel %vm1166, %v2591, %v2595
      %v2597 = vunpack.c.l.b16 %v2226
      %v2598 = vunpack.c.l.b16 %v2236
      %v2599 = vunpack.c.l.b16 %v2250
      %v2600 = vunpack.c.l.b16 %v2260
      %v2601 = vunpack.c.l.b16 %v2274
      %v2602 = vunpack.c.l.b16 %v2284
      %v2603 = vunpack.c.l.b16 %v2298
      %v2604 = vunpack.c.l.b16 %v2308
      %v2605 = vunpack.c.l.b16 %v2322
      %v2606 = vunpack.c.l.b16 %v2332
      %v2607 = vunpack.c.l.b16 %v2346
      %v2608 = vunpack.c.l.b16 %v2356
      %v2609 = vunpack.c.l.b16 %v2370
      %v2610 = vunpack.c.l.b16 %v2380
      %v2611 = vunpack.c.l.b16 %v2394
      %v2612 = vunpack.c.l.b16 %v2404
      %v2613 = vunpack.c.l.b16 %v2418
      %v2614 = vunpack.c.l.b16 %v2428
      %v2615 = vunpack.c.l.b16 %v2442
      %v2616 = vunpack.c.l.b16 %v2452
      %v2617 = vunpack.c.l.b16 %v2466
      %v2618 = vunpack.c.l.b16 %v2476
      %v2619 = vunpack.c.l.b16 %v2490
      %v2620 = vunpack.c.l.b16 %v2500
      %v2621 = vunpack.c.l.b16 %v2514
      %v2622 = vunpack.c.l.b16 %v2524
      %v2623 = vunpack.c.l.b16 %v2538
      %v2624 = vunpack.c.l.b16 %v2548
      %v2625 = vunpack.c.l.b16 %v2562
      %v2626 = vunpack.c.l.b16 %v2572
      %v2627 = vunpack.c.l.b16 %v2586
      %v2628 = vunpack.c.l.b16 %v2596
      %v2629 = vpack.c.b16 %v2598, %v2597
      %v2630 = vpack.c.b16 %v2600, %v2599
      %v2631 = vpack.c.b16 %v2602, %v2601
      %v2632 = vpack.c.b16 %v2604, %v2603
      %v2633 = vpack.c.b16 %v2606, %v2605
      %v2634 = vpack.c.b16 %v2608, %v2607
      %v2635 = vpack.c.b16 %v2610, %v2609
      %v2636 = vpack.c.b16 %v2612, %v2611
      %v2637 = vpack.c.b16 %v2614, %v2613
      %v2638 = vpack.c.b16 %v2616, %v2615
      %v2639 = vpack.c.b16 %v2618, %v2617
      %v2640 = vpack.c.b16 %v2620, %v2619
      %v2641 = vpack.c.b16 %v2622, %v2621
      %v2642 = vpack.c.b16 %v2624, %v2623
      %v2643 = vpack.c.b16 %v2626, %v2625
      %v2644 = vpack.c.b16 %v2628, %v2627
      %2661 = vst.msk [vmem:[#allocation3 + $0x8] sm:$0xff] %vm1099, %v2629
      %2662 = vst.msk [vmem:[#allocation3 + $0x20] sm:$0xff] %vm1099, %v2630
      %2663 = vst.msk [vmem:[#allocation3 + $0x38] sm:$0xff] %vm1099, %v2631
      %2664 = vst.msk [vmem:[#allocation3 + $0x50] sm:$0xff] %vm1099, %v2632
      %2665 = vst.msk [vmem:[#allocation3 + $0x68] sm:$0xff] %vm1099, %v2633
      %2666 = vst.msk [vmem:[#allocation3 + $0x80] sm:$0xff] %vm1099, %v2634
      %2667 = vst.msk [vmem:[#allocation3 + $0x98] sm:$0xff] %vm1099, %v2635
      %2668 = vst.msk [vmem:[#allocation3 + $0xb0] sm:$0xff] %vm1099, %v2636
      %2669 = vst.msk [vmem:[#allocation3 + $0xc8] sm:$0xff] %vm1099, %v2637
      %2670 = vst.msk [vmem:[#allocation3 + $0xe0] sm:$0xff] %vm1099, %v2638
      %2671 = vst.msk [vmem:[#allocation3 + $0xf8] sm:$0xff] %vm1099, %v2639
      %2672 = vst.msk [vmem:[#allocation3 + $0x110] sm:$0xff] %vm1099, %v2640
      %2673 = vst.msk [vmem:[#allocation3 + $0x128] sm:$0xff] %vm1099, %v2641
      %2674 = vst.msk [vmem:[#allocation3 + $0x140] sm:$0xff] %vm1099, %v2642
      %2675 = vst.msk [vmem:[#allocation3 + $0x158] sm:$0xff] %vm1099, %v2643
      %2676 = vst.msk [vmem:[#allocation3 + $0x170] sm:$0xff] %vm1099, %v2644
      %v2677 = vld [vmem:[%s433] sm:$0xe]
      %v2678 = vld [vmem:[%s433 + $0x4] sm:$0xf]
      %v2679 = vld [vmem:[%s433 + $0x8] sm:$0x1]
      %v2680 = vld [vmem:[%s433 + $0xc] sm:$0xe]
      %v2681 = vld [vmem:[%s433 + $0x10] sm:$0xf]
      %v2682 = vld [vmem:[%s433 + $0x14] sm:$0x1]
      %v2683 = vld [vmem:[%s433 + $0x18] sm:$0xe]
      %v2684 = vld [vmem:[%s433 + $0x1c] sm:$0xf]
      %v2685 = vld [vmem:[%s433 + $0x20] sm:$0x1]
      %v2686 = vld [vmem:[%s433 + $0x24] sm:$0xe]
      %v2687 = vld [vmem:[%s433 + $0x28] sm:$0xf]
      %v2688 = vld [vmem:[%s433 + $0x2c] sm:$0x1]
      %v2689 = vld [vmem:[%s433 + $0x30] sm:$0xe]
      %v2690 = vld [vmem:[%s433 + $0x34] sm:$0xf]
      %v2691 = vld [vmem:[%s433 + $0x38] sm:$0x1]
      %v2692 = vld [vmem:[%s433 + $0x3c] sm:$0xe]
      %v2693 = vld [vmem:[%s433 + $0x40] sm:$0xf]
      %v2694 = vld [vmem:[%s433 + $0x44] sm:$0x1]
      %v2695 = vld [vmem:[%s433 + $0x48] sm:$0xe]
      %v2696 = vld [vmem:[%s433 + $0x4c] sm:$0xf]
      %v2697 = vld [vmem:[%s433 + $0x50] sm:$0x1]
      %v2698 = vld [vmem:[%s433 + $0x54] sm:$0xe]
      %v2699 = vld [vmem:[%s433 + $0x58] sm:$0xf]
      %v2700 = vld [vmem:[%s433 + $0x5c] sm:$0x1]
      %v2701 = vld [vmem:[%s433 + $0x60] sm:$0xe]
      %v2702 = vld [vmem:[%s433 + $0x64] sm:$0xf]
      %v2703 = vld [vmem:[%s433 + $0x68] sm:$0x1]
      %v2704 = vld [vmem:[%s433 + $0x6c] sm:$0xe]
      %v2705 = vld [vmem:[%s433 + $0x70] sm:$0xf]
      %v2706 = vld [vmem:[%s433 + $0x74] sm:$0x1]
      %v2707 = vld [vmem:[%s433 + $0x78] sm:$0xe]
      %v2708 = vld [vmem:[%s433 + $0x7c] sm:$0xf]
      %v2709 = vld [vmem:[%s433 + $0x80] sm:$0x1]
      %v2710 = vld [vmem:[%s433 + $0x84] sm:$0xe]
      %v2711 = vld [vmem:[%s433 + $0x88] sm:$0xf]
      %v2712 = vld [vmem:[%s433 + $0x8c] sm:$0x1]
      %v2713 = vld [vmem:[%s433 + $0x90] sm:$0xe]
      %v2714 = vld [vmem:[%s433 + $0x94] sm:$0xf]
      %v2715 = vld [vmem:[%s433 + $0x98] sm:$0x1]
      %v2716 = vld [vmem:[%s433 + $0x9c] sm:$0xe]
      %v2717 = vld [vmem:[%s433 + $0xa0] sm:$0xf]
      %v2718 = vld [vmem:[%s433 + $0xa4] sm:$0x1]
      %v2719 = vld [vmem:[%s433 + $0xa8] sm:$0xe]
      %v2720 = vld [vmem:[%s433 + $0xac] sm:$0xf]
      %v2721 = vld [vmem:[%s433 + $0xb0] sm:$0x1]
      %v2722 = vld [vmem:[%s433 + $0xb4] sm:$0xe]
      %v2723 = vld [vmem:[%s433 + $0xb8] sm:$0xf]
      %v2724 = vld [vmem:[%s433 + $0xbc] sm:$0x1]
      %v2773 = vrot.slane %v2677, 5
      %v2774 = vrot.slane %v2773, 4
      %v2775 = vrot.slane %v2678, 5
      %v2776 = vsel %vm1762, %v2774, %v2775
      %v2777 = vrot.slane %v2775, 4
      %v2778 = vrot.slane %v2679, 5
      %v2779 = vsel %vm1762, %v2777, %v2778
      %v2780 = vrot.slane %v2680, 5
      %v2781 = vrot.slane %v2780, 4
      %v2782 = vrot.slane %v2681, 5
      %v2783 = vsel %vm1762, %v2781, %v2782
      %v2784 = vrot.slane %v2782, 4
      %v2785 = vrot.slane %v2682, 5
      %v2786 = vsel %vm1762, %v2784, %v2785
      %v2787 = vrot.slane %v2683, 5
      %v2788 = vrot.slane %v2787, 4
      %v2789 = vrot.slane %v2684, 5
      %v2790 = vsel %vm1762, %v2788, %v2789
      %v2791 = vrot.slane %v2789, 4
      %v2792 = vrot.slane %v2685, 5
      %v2793 = vsel %vm1762, %v2791, %v2792
      %v2794 = vrot.slane %v2686, 5
      %v2795 = vrot.slane %v2794, 4
      %v2796 = vrot.slane %v2687, 5
      %v2797 = vsel %vm1762, %v2795, %v2796
      %v2798 = vrot.slane %v2796, 4
      %v2799 = vrot.slane %v2688, 5
      %v2800 = vsel %vm1762, %v2798, %v2799
      %v2801 = vrot.slane %v2689, 5
      %v2802 = vrot.slane %v2801, 4
      %v2803 = vrot.slane %v2690, 5
      %v2804 = vsel %vm1762, %v2802, %v2803
      %v2805 = vrot.slane %v2803, 4
      %v2806 = vrot.slane %v2691, 5
      %v2807 = vsel %vm1762, %v2805, %v2806
      %v2808 = vrot.slane %v2692, 5
      %v2809 = vrot.slane %v2808, 4
      %v2810 = vrot.slane %v2693, 5
      %v2811 = vsel %vm1762, %v2809, %v2810
      %v2812 = vrot.slane %v2810, 4
      %v2813 = vrot.slane %v2694, 5
      %v2814 = vsel %vm1762, %v2812, %v2813
      %v2815 = vrot.slane %v2695, 5
      %v2816 = vrot.slane %v2815, 4
      %v2817 = vrot.slane %v2696, 5
      %v2818 = vsel %vm1762, %v2816, %v2817
      %v2819 = vrot.slane %v2817, 4
      %v2820 = vrot.slane %v2697, 5
      %v2821 = vsel %vm1762, %v2819, %v2820
      %v2822 = vrot.slane %v2698, 5
      %v2823 = vrot.slane %v2822, 4
      %v2824 = vrot.slane %v2699, 5
      %v2825 = vsel %vm1762, %v2823, %v2824
      %v2826 = vrot.slane %v2824, 4
      %v2827 = vrot.slane %v2700, 5
      %v2828 = vsel %vm1762, %v2826, %v2827
      %v2829 = vrot.slane %v2701, 5
      %v2830 = vrot.slane %v2829, 4
      %v2831 = vrot.slane %v2702, 5
      %v2832 = vsel %vm1762, %v2830, %v2831
      %v2833 = vrot.slane %v2831, 4
      %v2834 = vrot.slane %v2703, 5
      %v2835 = vsel %vm1762, %v2833, %v2834
      %v2836 = vrot.slane %v2704, 5
      %v2837 = vrot.slane %v2836, 4
      %v2838 = vrot.slane %v2705, 5
      %v2839 = vsel %vm1762, %v2837, %v2838
      %v2840 = vrot.slane %v2838, 4
      %v2841 = vrot.slane %v2706, 5
      %v2842 = vsel %vm1762, %v2840, %v2841
      %v2843 = vrot.slane %v2707, 5
      %v2844 = vrot.slane %v2843, 4
      %v2845 = vrot.slane %v2708, 5
      %v2846 = vsel %vm1762, %v2844, %v2845
      %v2847 = vrot.slane %v2845, 4
      %v2848 = vrot.slane %v2709, 5
      %v2849 = vsel %vm1762, %v2847, %v2848
      %v2850 = vrot.slane %v2710, 5
      %v2851 = vrot.slane %v2850, 4
      %v2852 = vrot.slane %v2711, 5
      %v2853 = vsel %vm1762, %v2851, %v2852
      %v2854 = vrot.slane %v2852, 4
      %v2855 = vrot.slane %v2712, 5
      %v2856 = vsel %vm1762, %v2854, %v2855
      %v2857 = vrot.slane %v2713, 5
      %v2858 = vrot.slane %v2857, 4
      %v2859 = vrot.slane %v2714, 5
      %v2860 = vsel %vm1762, %v2858, %v2859
      %v2861 = vrot.slane %v2859, 4
      %v2862 = vrot.slane %v2715, 5
      %v2863 = vsel %vm1762, %v2861, %v2862
      %v2864 = vrot.slane %v2716, 5
      %v2865 = vrot.slane %v2864, 4
      %v2866 = vrot.slane %v2717, 5
      %v2867 = vsel %vm1762, %v2865, %v2866
      %v2868 = vrot.slane %v2866, 4
      %v2869 = vrot.slane %v2718, 5
      %v2870 = vsel %vm1762, %v2868, %v2869
      %v2871 = vrot.slane %v2719, 5
      %v2872 = vrot.slane %v2871, 4
      %v2873 = vrot.slane %v2720, 5
      %v2874 = vsel %vm1762, %v2872, %v2873
      %v2875 = vrot.slane %v2873, 4
      %v2876 = vrot.slane %v2721, 5
      %v2877 = vsel %vm1762, %v2875, %v2876
      %v2878 = vrot.slane %v2722, 5
      %v2879 = vrot.slane %v2878, 4
      %v2880 = vrot.slane %v2723, 5
      %v2881 = vsel %vm1762, %v2879, %v2880
      %v2882 = vrot.slane %v2880, 4
      %v2883 = vrot.slane %v2724, 5
      %v2884 = vsel %vm1762, %v2882, %v2883
      %v2885 = vunpack.c.l.b16 %v2776
      %v2886 = vunpack.c.l.b16 %v2779
      %v2887 = vunpack.c.l.b16 %v2783
      %v2888 = vunpack.c.l.b16 %v2786
      %v2889 = vunpack.c.l.b16 %v2790
      %v2890 = vunpack.c.l.b16 %v2793
      %v2891 = vunpack.c.l.b16 %v2797
      %v2892 = vunpack.c.l.b16 %v2800
      %v2893 = vunpack.c.l.b16 %v2804
      %v2894 = vunpack.c.l.b16 %v2807
      %v2895 = vunpack.c.l.b16 %v2811
      %v2896 = vunpack.c.l.b16 %v2814
      %v2897 = vunpack.c.l.b16 %v2818
      %v2898 = vunpack.c.l.b16 %v2821
      %v2899 = vunpack.c.l.b16 %v2825
      %v2900 = vunpack.c.l.b16 %v2828
      %v2901 = vunpack.c.l.b16 %v2832
      %v2902 = vunpack.c.l.b16 %v2835
      %v2903 = vunpack.c.l.b16 %v2839
      %v2904 = vunpack.c.l.b16 %v2842
      %v2905 = vunpack.c.l.b16 %v2846
      %v2906 = vunpack.c.l.b16 %v2849
      %v2907 = vunpack.c.l.b16 %v2853
      %v2908 = vunpack.c.l.b16 %v2856
      %v2909 = vunpack.c.l.b16 %v2860
      %v2910 = vunpack.c.l.b16 %v2863
      %v2911 = vunpack.c.l.b16 %v2867
      %v2912 = vunpack.c.l.b16 %v2870
      %v2913 = vunpack.c.l.b16 %v2874
      %v2914 = vunpack.c.l.b16 %v2877
      %v2915 = vunpack.c.l.b16 %v2881
      %v2916 = vunpack.c.l.b16 %v2884
      %v2917 = vpack.c.b16 %v2886, %v2885
      %v2918 = vpack.c.b16 %v2888, %v2887
      %v2919 = vpack.c.b16 %v2890, %v2889
      %v2920 = vpack.c.b16 %v2892, %v2891
      %v2921 = vpack.c.b16 %v2894, %v2893
      %v2922 = vpack.c.b16 %v2896, %v2895
      %v2923 = vpack.c.b16 %v2898, %v2897
      %v2924 = vpack.c.b16 %v2900, %v2899
      %v2925 = vpack.c.b16 %v2902, %v2901
      %v2926 = vpack.c.b16 %v2904, %v2903
      %v2927 = vpack.c.b16 %v2906, %v2905
      %v2928 = vpack.c.b16 %v2908, %v2907
      %v2929 = vpack.c.b16 %v2910, %v2909
      %v2930 = vpack.c.b16 %v2912, %v2911
      %v2931 = vpack.c.b16 %v2914, %v2913
      %v2932 = vpack.c.b16 %v2916, %v2915
      %2933 = vrot.lane.b32.xlu0 %v2917, 32
      %v2934 = vpop.permute.xlu0 %2933
      %2935 = vrot.lane.b32.xlu0 %v2918, 32
      %v2936 = vpop.permute.xlu0 %2935
      %2937 = vrot.lane.b32.xlu0 %v2919, 32
      %v2938 = vpop.permute.xlu0 %2937
      %2939 = vrot.lane.b32.xlu0 %v2920, 32
      %v2940 = vpop.permute.xlu0 %2939
      %2941 = vrot.lane.b32.xlu0 %v2921, 32
      %v2942 = vpop.permute.xlu0 %2941
      %2943 = vrot.lane.b32.xlu0 %v2922, 32
      %v2944 = vpop.permute.xlu0 %2943
      %2945 = vrot.lane.b32.xlu0 %v2923, 32
      %v2946 = vpop.permute.xlu0 %2945
      %2947 = vrot.lane.b32.xlu0 %v2924, 32
      %v2948 = vpop.permute.xlu0 %2947
      %2949 = vrot.lane.b32.xlu0 %v2925, 32
      %v2950 = vpop.permute.xlu0 %2949
      %2951 = vrot.lane.b32.xlu0 %v2926, 32
      %v2952 = vpop.permute.xlu0 %2951
      %2953 = vrot.lane.b32.xlu0 %v2927, 32
      %v2954 = vpop.permute.xlu0 %2953
      %2955 = vrot.lane.b32.xlu0 %v2928, 32
      %v2956 = vpop.permute.xlu0 %2955
      %2957 = vrot.lane.b32.xlu0 %v2929, 32
      %v2958 = vpop.permute.xlu0 %2957
      %2959 = vrot.lane.b32.xlu0 %v2930, 32
      %v2960 = vpop.permute.xlu0 %2959
      %2961 = vrot.lane.b32.xlu0 %v2931, 32
      %v2962 = vpop.permute.xlu0 %2961
      %2963 = vrot.lane.b32.xlu0 %v2932, 32
      %v2964 = vpop.permute.xlu0 %2963
      %2981 = vst.msk [vmem:[#allocation3 + $0x8] sm:$0xff] %vm1647, %v2934
      %2982 = vst.msk [vmem:[#allocation3 + $0x20] sm:$0xff] %vm1647, %v2936
      %2983 = vst.msk [vmem:[#allocation3 + $0x38] sm:$0xff] %vm1647, %v2938
      %2984 = vst.msk [vmem:[#allocation3 + $0x50] sm:$0xff] %vm1647, %v2940
      %2985 = vst.msk [vmem:[#allocation3 + $0x68] sm:$0xff] %vm1647, %v2942
      %2986 = vst.msk [vmem:[#allocation3 + $0x80] sm:$0xff] %vm1647, %v2944
      %2987 = vst.msk [vmem:[#allocation3 + $0x98] sm:$0xff] %vm1647, %v2946
      %2988 = vst.msk [vmem:[#allocation3 + $0xb0] sm:$0xff] %vm1647, %v2948
      %2989 = vst.msk [vmem:[#allocation3 + $0xc8] sm:$0xff] %vm1647, %v2950
      %2990 = vst.msk [vmem:[#allocation3 + $0xe0] sm:$0xff] %vm1647, %v2952
      %2991 = vst.msk [vmem:[#allocation3 + $0xf8] sm:$0xff] %vm1647, %v2954
      %2992 = vst.msk [vmem:[#allocation3 + $0x110] sm:$0xff] %vm1647, %v2956
      %2993 = vst.msk [vmem:[#allocation3 + $0x128] sm:$0xff] %vm1647, %v2958
      %2994 = vst.msk [vmem:[#allocation3 + $0x140] sm:$0xff] %vm1647, %v2960
      %2995 = vst.msk [vmem:[#allocation3 + $0x158] sm:$0xff] %vm1647, %v2962
      %2996 = vst.msk [vmem:[#allocation3 + $0x170] sm:$0xff] %vm1647, %v2964
      %s2997 = scalar_lea.vmem [#allocation2], 24
      %v2998 = vld [vmem:[%s2997] sm:$0xf]
      %v2999 = vld [vmem:[%s2997 + $0x4] sm:$0xf]
      %v3000 = vld [vmem:[%s2997 + $0xc] sm:$0xf]
      %v3001 = vld [vmem:[%s2997 + $0x10] sm:$0xf]
      %v3002 = vld [vmem:[%s2997 + $0x18] sm:$0xf]
      %v3003 = vld [vmem:[%s2997 + $0x1c] sm:$0xf]
      %v3004 = vld [vmem:[%s2997 + $0x24] sm:$0xf]
      %v3005 = vld [vmem:[%s2997 + $0x28] sm:$0xf]
      %v3006 = vld [vmem:[%s2997 + $0x30] sm:$0xf]
      %v3007 = vld [vmem:[%s2997 + $0x34] sm:$0xf]
      %v3008 = vld [vmem:[%s2997 + $0x3c] sm:$0xf]
      %v3009 = vld [vmem:[%s2997 + $0x40] sm:$0xf]
      %v3010 = vld [vmem:[%s2997 + $0x48] sm:$0xf]
      %v3011 = vld [vmem:[%s2997 + $0x4c] sm:$0xf]
      %v3012 = vld [vmem:[%s2997 + $0x54] sm:$0xf]
      %v3013 = vld [vmem:[%s2997 + $0x58] sm:$0xf]
      %v3014 = vld [vmem:[%s2997 + $0x60] sm:$0xf]
      %v3015 = vld [vmem:[%s2997 + $0x64] sm:$0xf]
      %v3016 = vld [vmem:[%s2997 + $0x6c] sm:$0xf]
      %v3017 = vld [vmem:[%s2997 + $0x70] sm:$0xf]
      %v3018 = vld [vmem:[%s2997 + $0x78] sm:$0xf]
      %v3019 = vld [vmem:[%s2997 + $0x7c] sm:$0xf]
      %v3020 = vld [vmem:[%s2997 + $0x84] sm:$0xf]
      %v3021 = vld [vmem:[%s2997 + $0x88] sm:$0xf]
      %v3022 = vld [vmem:[%s2997 + $0x90] sm:$0xf]
      %v3023 = vld [vmem:[%s2997 + $0x94] sm:$0xf]
      %v3024 = vld [vmem:[%s2997 + $0x9c] sm:$0xf]
      %v3025 = vld [vmem:[%s2997 + $0xa0] sm:$0xf]
      %v3026 = vld [vmem:[%s2997 + $0xa8] sm:$0xf]
      %v3027 = vld [vmem:[%s2997 + $0xac] sm:$0xf]
      %v3028 = vld [vmem:[%s2997 + $0xb4] sm:$0xf]
      %v3029 = vld [vmem:[%s2997 + $0xb8] sm:$0xf]
      %v3062 = vunpack.c.l.b16 %v2998
      %v3063 = vunpack.c.l.b16 %v2999
      %v3064 = vunpack.c.l.b16 %v3000
      %v3065 = vunpack.c.l.b16 %v3001
      %v3066 = vunpack.c.l.b16 %v3002
      %v3067 = vunpack.c.l.b16 %v3003
      %v3068 = vunpack.c.l.b16 %v3004
      %v3069 = vunpack.c.l.b16 %v3005
      %v3070 = vunpack.c.l.b16 %v3006
      %v3071 = vunpack.c.l.b16 %v3007
      %v3072 = vunpack.c.l.b16 %v3008
      %v3073 = vunpack.c.l.b16 %v3009
      %v3074 = vunpack.c.l.b16 %v3010
      %v3075 = vunpack.c.l.b16 %v3011
      %v3076 = vunpack.c.l.b16 %v3012
      %v3077 = vunpack.c.l.b16 %v3013
      %v3078 = vunpack.c.l.b16 %v3014
      %v3079 = vunpack.c.l.b16 %v3015
      %v3080 = vunpack.c.l.b16 %v3016
      %v3081 = vunpack.c.l.b16 %v3017
      %v3082 = vunpack.c.l.b16 %v3018
      %v3083 = vunpack.c.l.b16 %v3019
      %v3084 = vunpack.c.l.b16 %v3020
      %v3085 = vunpack.c.l.b16 %v3021
      %v3086 = vunpack.c.l.b16 %v3022
      %v3087 = vunpack.c.l.b16 %v3023
      %v3088 = vunpack.c.l.b16 %v3024
      %v3089 = vunpack.c.l.b16 %v3025
      %v3090 = vunpack.c.l.b16 %v3026
      %v3091 = vunpack.c.l.b16 %v3027
      %v3092 = vunpack.c.l.b16 %v3028
      %v3093 = vunpack.c.l.b16 %v3029
      %v3094 = vpack.c.b16 %v3063, %v3062
      %v3095 = vpack.c.b16 %v3065, %v3064
      %v3096 = vpack.c.b16 %v3067, %v3066
      %v3097 = vpack.c.b16 %v3069, %v3068
      %v3098 = vpack.c.b16 %v3071, %v3070
      %v3099 = vpack.c.b16 %v3073, %v3072
      %v3100 = vpack.c.b16 %v3075, %v3074
      %v3101 = vpack.c.b16 %v3077, %v3076
      %v3102 = vpack.c.b16 %v3079, %v3078
      %v3103 = vpack.c.b16 %v3081, %v3080
      %v3104 = vpack.c.b16 %v3083, %v3082
      %v3105 = vpack.c.b16 %v3085, %v3084
      %v3106 = vpack.c.b16 %v3087, %v3086
      %v3107 = vpack.c.b16 %v3089, %v3088
      %v3108 = vpack.c.b16 %v3091, %v3090
      %v3109 = vpack.c.b16 %v3093, %v3092
      %3110 = vrot.lane.b32.xlu0 %v3094, 64
      %v3111 = vpop.permute.xlu0 %3110
      %3112 = vrot.lane.b32.xlu0 %v3095, 64
      %v3113 = vpop.permute.xlu0 %3112
      %3114 = vrot.lane.b32.xlu0 %v3096, 64
      %v3115 = vpop.permute.xlu0 %3114
      %3116 = vrot.lane.b32.xlu0 %v3097, 64
      %v3117 = vpop.permute.xlu0 %3116
      %3118 = vrot.lane.b32.xlu0 %v3098, 64
      %v3119 = vpop.permute.xlu0 %3118
      %3120 = vrot.lane.b32.xlu0 %v3099, 64
      %v3121 = vpop.permute.xlu0 %3120
      %3122 = vrot.lane.b32.xlu0 %v3100, 64
      %v3123 = vpop.permute.xlu0 %3122
      %3124 = vrot.lane.b32.xlu0 %v3101, 64
      %v3125 = vpop.permute.xlu0 %3124
      %3126 = vrot.lane.b32.xlu0 %v3102, 64
      %v3127 = vpop.permute.xlu0 %3126
      %3128 = vrot.lane.b32.xlu0 %v3103, 64
      %v3129 = vpop.permute.xlu0 %3128
      %3130 = vrot.lane.b32.xlu0 %v3104, 64
      %v3131 = vpop.permute.xlu0 %3130
      %3132 = vrot.lane.b32.xlu0 %v3105, 64
      %v3133 = vpop.permute.xlu0 %3132
      %3134 = vrot.lane.b32.xlu0 %v3106, 64
      %v3135 = vpop.permute.xlu0 %3134
      %3136 = vrot.lane.b32.xlu0 %v3107, 64
      %v3137 = vpop.permute.xlu0 %3136
      %3138 = vrot.lane.b32.xlu0 %v3108, 64
      %v3139 = vpop.permute.xlu0 %3138
      %3140 = vrot.lane.b32.xlu0 %v3109, 64
      %v3141 = vpop.permute.xlu0 %3140
      %3158 = vst.msk [vmem:[#allocation3 + $0x8] sm:$0xff] %vm1971, %v3111
      %3159 = vst.msk [vmem:[#allocation3 + $0x20] sm:$0xff] %vm1971, %v3113
      %3160 = vst.msk [vmem:[#allocation3 + $0x38] sm:$0xff] %vm1971, %v3115
      %3161 = vst.msk [vmem:[#allocation3 + $0x50] sm:$0xff] %vm1971, %v3117
      %3162 = vst.msk [vmem:[#allocation3 + $0x68] sm:$0xff] %vm1971, %v3119
      %3163 = vst.msk [vmem:[#allocation3 + $0x80] sm:$0xff] %vm1971, %v3121
      %3164 = vst.msk [vmem:[#allocation3 + $0x98] sm:$0xff] %vm1971, %v3123
      %3165 = vst.msk [vmem:[#allocation3 + $0xb0] sm:$0xff] %vm1971, %v3125
      %3166 = vst.msk [vmem:[#allocation3 + $0xc8] sm:$0xff] %vm1971, %v3127
      %3167 = vst.msk [vmem:[#allocation3 + $0xe0] sm:$0xff] %vm1971, %v3129
      %3168 = vst.msk [vmem:[#allocation3 + $0xf8] sm:$0xff] %vm1971, %v3131
      %3169 = vst.msk [vmem:[#allocation3 + $0x110] sm:$0xff] %vm1971, %v3133
      %3170 = vst.msk [vmem:[#allocation3 + $0x128] sm:$0xff] %vm1971, %v3135
      %3171 = vst.msk [vmem:[#allocation3 + $0x140] sm:$0xff] %vm1971, %v3137
      %3172 = vst.msk [vmem:[#allocation3 + $0x158] sm:$0xff] %vm1971, %v3139
      %3173 = vst.msk [vmem:[#allocation3 + $0x170] sm:$0xff] %vm1971, %v3141
      %v3174 = vld [vmem:[%s2997] sm:$0xf]
      %v3175 = vld [vmem:[%s2997 + $0x4] sm:$0xf]
      %v3176 = vld [vmem:[%s2997 + $0x8] sm:$0x1]
      %v3177 = vld [vmem:[%s2997 + $0xc] sm:$0xf]
      %v3178 = vld [vmem:[%s2997 + $0x10] sm:$0xf]
      %v3179 = vld [vmem:[%s2997 + $0x14] sm:$0x1]
      %v3180 = vld [vmem:[%s2997 + $0x18] sm:$0xf]
      %v3181 = vld [vmem:[%s2997 + $0x1c] sm:$0xf]
      %v3182 = vld [vmem:[%s2997 + $0x20] sm:$0x1]
      %v3183 = vld [vmem:[%s2997 + $0x24] sm:$0xf]
      %v3184 = vld [vmem:[%s2997 + $0x28] sm:$0xf]
      %v3185 = vld [vmem:[%s2997 + $0x2c] sm:$0x1]
      %v3186 = vld [vmem:[%s2997 + $0x30] sm:$0xf]
      %v3187 = vld [vmem:[%s2997 + $0x34] sm:$0xf]
      %v3188 = vld [vmem:[%s2997 + $0x38] sm:$0x1]
      %v3189 = vld [vmem:[%s2997 + $0x3c] sm:$0xf]
      %v3190 = vld [vmem:[%s2997 + $0x40] sm:$0xf]
      %v3191 = vld [vmem:[%s2997 + $0x44] sm:$0x1]
      %v3192 = vld [vmem:[%s2997 + $0x48] sm:$0xf]
      %v3193 = vld [vmem:[%s2997 + $0x4c] sm:$0xf]
      %v3194 = vld [vmem:[%s2997 + $0x50] sm:$0x1]
      %v3195 = vld [vmem:[%s2997 + $0x54] sm:$0xf]
      %v3196 = vld [vmem:[%s2997 + $0x58] sm:$0xf]
      %v3197 = vld [vmem:[%s2997 + $0x5c] sm:$0x1]
      %v3198 = vld [vmem:[%s2997 + $0x60] sm:$0xf]
      %v3199 = vld [vmem:[%s2997 + $0x64] sm:$0xf]
      %v3200 = vld [vmem:[%s2997 + $0x68] sm:$0x1]
      %v3201 = vld [vmem:[%s2997 + $0x6c] sm:$0xf]
      %v3202 = vld [vmem:[%s2997 + $0x70] sm:$0xf]
      %v3203 = vld [vmem:[%s2997 + $0x74] sm:$0x1]
      %v3204 = vld [vmem:[%s2997 + $0x78] sm:$0xf]
      %v3205 = vld [vmem:[%s2997 + $0x7c] sm:$0xf]
      %v3206 = vld [vmem:[%s2997 + $0x80] sm:$0x1]
      %v3207 = vld [vmem:[%s2997 + $0x84] sm:$0xf]
      %v3208 = vld [vmem:[%s2997 + $0x88] sm:$0xf]
      %v3209 = vld [vmem:[%s2997 + $0x8c] sm:$0x1]
      %v3210 = vld [vmem:[%s2997 + $0x90] sm:$0xf]
      %v3211 = vld [vmem:[%s2997 + $0x94] sm:$0xf]
      %v3212 = vld [vmem:[%s2997 + $0x98] sm:$0x1]
      %v3213 = vld [vmem:[%s2997 + $0x9c] sm:$0xf]
      %v3214 = vld [vmem:[%s2997 + $0xa0] sm:$0xf]
      %v3215 = vld [vmem:[%s2997 + $0xa4] sm:$0x1]
      %v3216 = vld [vmem:[%s2997 + $0xa8] sm:$0xf]
      %v3217 = vld [vmem:[%s2997 + $0xac] sm:$0xf]
      %v3218 = vld [vmem:[%s2997 + $0xb0] sm:$0x1]
      %v3219 = vld [vmem:[%s2997 + $0xb4] sm:$0xf]
      %v3220 = vld [vmem:[%s2997 + $0xb8] sm:$0xf]
      %v3221 = vld [vmem:[%s2997 + $0xbc] sm:$0x1]
      %v3223 = vshrl.u32 %v3174, 16
      %v3225 = vrot.slane %v3223, 4
      %v3226 = vshll.u32 %v3174, 16
      %v3228 = vrot.slane %v3226, 5
      %v3229 = vor.u32 %v3225, %v3228
      %v3230 = vrot.slane %v3229, 4
      %v3232 = vshll.u32 %v3175, 16
      %v3234 = vrot.slane %v3232, 5
      %v3235 = vsel %vm1166, %v3230, %v3234
      %v3236 = vshrl.u32 %v3175, 16
      %v3238 = vrot.slane %v3236, 4
      %v3239 = vor.u32 %v3238, %v3234
      %v3240 = vrot.slane %v3239, 4
      %v3242 = vshll.u32 %v3176, 16
      %v3244 = vrot.slane %v3242, 5
      %v3245 = vsel %vm1166, %v3240, %v3244
      %v3247 = vshrl.u32 %v3177, 16
      %v3249 = vrot.slane %v3247, 4
      %v3250 = vshll.u32 %v3177, 16
      %v3252 = vrot.slane %v3250, 5
      %v3253 = vor.u32 %v3249, %v3252
      %v3254 = vrot.slane %v3253, 4
      %v3256 = vshll.u32 %v3178, 16
      %v3258 = vrot.slane %v3256, 5
      %v3259 = vsel %vm1166, %v3254, %v3258
      %v3260 = vshrl.u32 %v3178, 16
      %v3262 = vrot.slane %v3260, 4
      %v3263 = vor.u32 %v3262, %v3258
      %v3264 = vrot.slane %v3263, 4
      %v3266 = vshll.u32 %v3179, 16
      %v3268 = vrot.slane %v3266, 5
      %v3269 = vsel %vm1166, %v3264, %v3268
      %v3271 = vshrl.u32 %v3180, 16
      %v3273 = vrot.slane %v3271, 4
      %v3274 = vshll.u32 %v3180, 16
      %v3276 = vrot.slane %v3274, 5
      %v3277 = vor.u32 %v3273, %v3276
      %v3278 = vrot.slane %v3277, 4
      %v3280 = vshll.u32 %v3181, 16
      %v3282 = vrot.slane %v3280, 5
      %v3283 = vsel %vm1166, %v3278, %v3282
      %v3284 = vshrl.u32 %v3181, 16
      %v3286 = vrot.slane %v3284, 4
      %v3287 = vor.u32 %v3286, %v3282
      %v3288 = vrot.slane %v3287, 4
      %v3290 = vshll.u32 %v3182, 16
      %v3292 = vrot.slane %v3290, 5
      %v3293 = vsel %vm1166, %v3288, %v3292
      %v3295 = vshrl.u32 %v3183, 16
      %v3297 = vrot.slane %v3295, 4
      %v3298 = vshll.u32 %v3183, 16
      %v3300 = vrot.slane %v3298, 5
      %v3301 = vor.u32 %v3297, %v3300
      %v3302 = vrot.slane %v3301, 4
      %v3304 = vshll.u32 %v3184, 16
      %v3306 = vrot.slane %v3304, 5
      %v3307 = vsel %vm1166, %v3302, %v3306
      %v3308 = vshrl.u32 %v3184, 16
      %v3310 = vrot.slane %v3308, 4
      %v3311 = vor.u32 %v3310, %v3306
      %v3312 = vrot.slane %v3311, 4
      %v3314 = vshll.u32 %v3185, 16
      %v3316 = vrot.slane %v3314, 5
      %v3317 = vsel %vm1166, %v3312, %v3316
      %v3319 = vshrl.u32 %v3186, 16
      %v3321 = vrot.slane %v3319, 4
      %v3322 = vshll.u32 %v3186, 16
      %v3324 = vrot.slane %v3322, 5
      %v3325 = vor.u32 %v3321, %v3324
      %v3326 = vrot.slane %v3325, 4
      %v3328 = vshll.u32 %v3187, 16
      %v3330 = vrot.slane %v3328, 5
      %v3331 = vsel %vm1166, %v3326, %v3330
      %v3332 = vshrl.u32 %v3187, 16
      %v3334 = vrot.slane %v3332, 4
      %v3335 = vor.u32 %v3334, %v3330
      %v3336 = vrot.slane %v3335, 4
      %v3338 = vshll.u32 %v3188, 16
      %v3340 = vrot.slane %v3338, 5
      %v3341 = vsel %vm1166, %v3336, %v3340
      %v3343 = vshrl.u32 %v3189, 16
      %v3345 = vrot.slane %v3343, 4
      %v3346 = vshll.u32 %v3189, 16
      %v3348 = vrot.slane %v3346, 5
      %v3349 = vor.u32 %v3345, %v3348
      %v3350 = vrot.slane %v3349, 4
      %v3352 = vshll.u32 %v3190, 16
      %v3354 = vrot.slane %v3352, 5
      %v3355 = vsel %vm1166, %v3350, %v3354
      %v3356 = vshrl.u32 %v3190, 16
      %v3358 = vrot.slane %v3356, 4
      %v3359 = vor.u32 %v3358, %v3354
      %v3360 = vrot.slane %v3359, 4
      %v3362 = vshll.u32 %v3191, 16
      %v3364 = vrot.slane %v3362, 5
      %v3365 = vsel %vm1166, %v3360, %v3364
      %v3367 = vshrl.u32 %v3192, 16
      %v3369 = vrot.slane %v3367, 4
      %v3370 = vshll.u32 %v3192, 16
      %v3372 = vrot.slane %v3370, 5
      %v3373 = vor.u32 %v3369, %v3372
      %v3374 = vrot.slane %v3373, 4
      %v3376 = vshll.u32 %v3193, 16
      %v3378 = vrot.slane %v3376, 5
      %v3379 = vsel %vm1166, %v3374, %v3378
      %v3380 = vshrl.u32 %v3193, 16
      %v3382 = vrot.slane %v3380, 4
      %v3383 = vor.u32 %v3382, %v3378
      %v3384 = vrot.slane %v3383, 4
      %v3386 = vshll.u32 %v3194, 16
      %v3388 = vrot.slane %v3386, 5
      %v3389 = vsel %vm1166, %v3384, %v3388
      %v3391 = vshrl.u32 %v3195, 16
      %v3393 = vrot.slane %v3391, 4
      %v3394 = vshll.u32 %v3195, 16
      %v3396 = vrot.slane %v3394, 5
      %v3397 = vor.u32 %v3393, %v3396
      %v3398 = vrot.slane %v3397, 4
      %v3400 = vshll.u32 %v3196, 16
      %v3402 = vrot.slane %v3400, 5
      %v3403 = vsel %vm1166, %v3398, %v3402
      %v3404 = vshrl.u32 %v3196, 16
      %v3406 = vrot.slane %v3404, 4
      %v3407 = vor.u32 %v3406, %v3402
      %v3408 = vrot.slane %v3407, 4
      %v3410 = vshll.u32 %v3197, 16
      %v3412 = vrot.slane %v3410, 5
      %v3413 = vsel %vm1166, %v3408, %v3412
      %v3415 = vshrl.u32 %v3198, 16
      %v3417 = vrot.slane %v3415, 4
      %v3418 = vshll.u32 %v3198, 16
      %v3420 = vrot.slane %v3418, 5
      %v3421 = vor.u32 %v3417, %v3420
      %v3422 = vrot.slane %v3421, 4
      %v3424 = vshll.u32 %v3199, 16
      %v3426 = vrot.slane %v3424, 5
      %v3427 = vsel %vm1166, %v3422, %v3426
      %v3428 = vshrl.u32 %v3199, 16
      %v3430 = vrot.slane %v3428, 4
      %v3431 = vor.u32 %v3430, %v3426
      %v3432 = vrot.slane %v3431, 4
      %v3434 = vshll.u32 %v3200, 16
      %v3436 = vrot.slane %v3434, 5
      %v3437 = vsel %vm1166, %v3432, %v3436
      %v3439 = vshrl.u32 %v3201, 16
      %v3441 = vrot.slane %v3439, 4
      %v3442 = vshll.u32 %v3201, 16
      %v3444 = vrot.slane %v3442, 5
      %v3445 = vor.u32 %v3441, %v3444
      %v3446 = vrot.slane %v3445, 4
      %v3448 = vshll.u32 %v3202, 16
      %v3450 = vrot.slane %v3448, 5
      %v3451 = vsel %vm1166, %v3446, %v3450
      %v3452 = vshrl.u32 %v3202, 16
      %v3454 = vrot.slane %v3452, 4
      %v3455 = vor.u32 %v3454, %v3450
      %v3456 = vrot.slane %v3455, 4
      %v3458 = vshll.u32 %v3203, 16
      %v3460 = vrot.slane %v3458, 5
      %v3461 = vsel %vm1166, %v3456, %v3460
      %v3463 = vshrl.u32 %v3204, 16
      %v3465 = vrot.slane %v3463, 4
      %v3466 = vshll.u32 %v3204, 16
      %v3468 = vrot.slane %v3466, 5
      %v3469 = vor.u32 %v3465, %v3468
      %v3470 = vrot.slane %v3469, 4
      %v3472 = vshll.u32 %v3205, 16
      %v3474 = vrot.slane %v3472, 5
      %v3475 = vsel %vm1166, %v3470, %v3474
      %v3476 = vshrl.u32 %v3205, 16
      %v3478 = vrot.slane %v3476, 4
      %v3479 = vor.u32 %v3478, %v3474
      %v3480 = vrot.slane %v3479, 4
      %v3482 = vshll.u32 %v3206, 16
      %v3484 = vrot.slane %v3482, 5
      %v3485 = vsel %vm1166, %v3480, %v3484
      %v3487 = vshrl.u32 %v3207, 16
      %v3489 = vrot.slane %v3487, 4
      %v3490 = vshll.u32 %v3207, 16
      %v3492 = vrot.slane %v3490, 5
      %v3493 = vor.u32 %v3489, %v3492
      %v3494 = vrot.slane %v3493, 4
      %v3496 = vshll.u32 %v3208, 16
      %v3498 = vrot.slane %v3496, 5
      %v3499 = vsel %vm1166, %v3494, %v3498
      %v3500 = vshrl.u32 %v3208, 16
      %v3502 = vrot.slane %v3500, 4
      %v3503 = vor.u32 %v3502, %v3498
      %v3504 = vrot.slane %v3503, 4
      %v3506 = vshll.u32 %v3209, 16
      %v3508 = vrot.slane %v3506, 5
      %v3509 = vsel %vm1166, %v3504, %v3508
      %v3511 = vshrl.u32 %v3210, 16
      %v3513 = vrot.slane %v3511, 4
      %v3514 = vshll.u32 %v3210, 16
      %v3516 = vrot.slane %v3514, 5
      %v3517 = vor.u32 %v3513, %v3516
      %v3518 = vrot.slane %v3517, 4
      %v3520 = vshll.u32 %v3211, 16
      %v3522 = vrot.slane %v3520, 5
      %v3523 = vsel %vm1166, %v3518, %v3522
      %v3524 = vshrl.u32 %v3211, 16
      %v3526 = vrot.slane %v3524, 4
      %v3527 = vor.u32 %v3526, %v3522
      %v3528 = vrot.slane %v3527, 4
      %v3530 = vshll.u32 %v3212, 16
      %v3532 = vrot.slane %v3530, 5
      %v3533 = vsel %vm1166, %v3528, %v3532
      %v3535 = vshrl.u32 %v3213, 16
      %v3537 = vrot.slane %v3535, 4
      %v3538 = vshll.u32 %v3213, 16
      %v3540 = vrot.slane %v3538, 5
      %v3541 = vor.u32 %v3537, %v3540
      %v3542 = vrot.slane %v3541, 4
      %v3544 = vshll.u32 %v3214, 16
      %v3546 = vrot.slane %v3544, 5
      %v3547 = vsel %vm1166, %v3542, %v3546
      %v3548 = vshrl.u32 %v3214, 16
      %v3550 = vrot.slane %v3548, 4
      %v3551 = vor.u32 %v3550, %v3546
      %v3552 = vrot.slane %v3551, 4
      %v3554 = vshll.u32 %v3215, 16
      %v3556 = vrot.slane %v3554, 5
      %v3557 = vsel %vm1166, %v3552, %v3556
      %v3559 = vshrl.u32 %v3216, 16
      %v3561 = vrot.slane %v3559, 4
      %v3562 = vshll.u32 %v3216, 16
      %v3564 = vrot.slane %v3562, 5
      %v3565 = vor.u32 %v3561, %v3564
      %v3566 = vrot.slane %v3565, 4
      %v3568 = vshll.u32 %v3217, 16
      %v3570 = vrot.slane %v3568, 5
      %v3571 = vsel %vm1166, %v3566, %v3570
      %v3572 = vshrl.u32 %v3217, 16
      %v3574 = vrot.slane %v3572, 4
      %v3575 = vor.u32 %v3574, %v3570
      %v3576 = vrot.slane %v3575, 4
      %v3578 = vshll.u32 %v3218, 16
      %v3580 = vrot.slane %v3578, 5
      %v3581 = vsel %vm1166, %v3576, %v3580
      %v3583 = vshrl.u32 %v3219, 16
      %v3585 = vrot.slane %v3583, 4
      %v3586 = vshll.u32 %v3219, 16
      %v3588 = vrot.slane %v3586, 5
      %v3589 = vor.u32 %v3585, %v3588
      %v3590 = vrot.slane %v3589, 4
      %v3592 = vshll.u32 %v3220, 16
      %v3594 = vrot.slane %v3592, 5
      %v3595 = vsel %vm1166, %v3590, %v3594
      %v3596 = vshrl.u32 %v3220, 16
      %v3598 = vrot.slane %v3596, 4
      %v3599 = vor.u32 %v3598, %v3594
      %v3600 = vrot.slane %v3599, 4
      %v3602 = vshll.u32 %v3221, 16
      %v3604 = vrot.slane %v3602, 5
      %v3605 = vsel %vm1166, %v3600, %v3604
      %v3606 = vunpack.c.l.b16 %v3235
      %v3607 = vunpack.c.l.b16 %v3245
      %v3608 = vunpack.c.l.b16 %v3259
      %v3609 = vunpack.c.l.b16 %v3269
      %v3610 = vunpack.c.l.b16 %v3283
      %v3611 = vunpack.c.l.b16 %v3293
      %v3612 = vunpack.c.l.b16 %v3307
      %v3613 = vunpack.c.l.b16 %v3317
      %v3614 = vunpack.c.l.b16 %v3331
      %v3615 = vunpack.c.l.b16 %v3341
      %v3616 = vunpack.c.l.b16 %v3355
      %v3617 = vunpack.c.l.b16 %v3365
      %v3618 = vunpack.c.l.b16 %v3379
      %v3619 = vunpack.c.l.b16 %v3389
      %v3620 = vunpack.c.l.b16 %v3403
      %v3621 = vunpack.c.l.b16 %v3413
      %v3622 = vunpack.c.l.b16 %v3427
      %v3623 = vunpack.c.l.b16 %v3437
      %v3624 = vunpack.c.l.b16 %v3451
      %v3625 = vunpack.c.l.b16 %v3461
      %v3626 = vunpack.c.l.b16 %v3475
      %v3627 = vunpack.c.l.b16 %v3485
      %v3628 = vunpack.c.l.b16 %v3499
      %v3629 = vunpack.c.l.b16 %v3509
      %v3630 = vunpack.c.l.b16 %v3523
      %v3631 = vunpack.c.l.b16 %v3533
      %v3632 = vunpack.c.l.b16 %v3547
      %v3633 = vunpack.c.l.b16 %v3557
      %v3634 = vunpack.c.l.b16 %v3571
      %v3635 = vunpack.c.l.b16 %v3581
      %v3636 = vunpack.c.l.b16 %v3595
      %v3637 = vunpack.c.l.b16 %v3605
      %v3638 = vpack.c.b16 %v3607, %v3606
      %v3639 = vpack.c.b16 %v3609, %v3608
      %v3640 = vpack.c.b16 %v3611, %v3610
      %v3641 = vpack.c.b16 %v3613, %v3612
      %v3642 = vpack.c.b16 %v3615, %v3614
      %v3643 = vpack.c.b16 %v3617, %v3616
      %v3644 = vpack.c.b16 %v3619, %v3618
      %v3645 = vpack.c.b16 %v3621, %v3620
      %v3646 = vpack.c.b16 %v3623, %v3622
      %v3647 = vpack.c.b16 %v3625, %v3624
      %v3648 = vpack.c.b16 %v3627, %v3626
      %v3649 = vpack.c.b16 %v3629, %v3628
      %v3650 = vpack.c.b16 %v3631, %v3630
      %v3651 = vpack.c.b16 %v3633, %v3632
      %v3652 = vpack.c.b16 %v3635, %v3634
      %v3653 = vpack.c.b16 %v3637, %v3636
      %3654 = vrot.lane.b32.xlu0 %v3638, 96
      %v3655 = vpop.permute.xlu0 %3654
      %3656 = vrot.lane.b32.xlu0 %v3639, 96
      %v3657 = vpop.permute.xlu0 %3656
      %3658 = vrot.lane.b32.xlu0 %v3640, 96
      %v3659 = vpop.permute.xlu0 %3658
      %3660 = vrot.lane.b32.xlu0 %v3641, 96
      %v3661 = vpop.permute.xlu0 %3660
      %3662 = vrot.lane.b32.xlu0 %v3642, 96
      %v3663 = vpop.permute.xlu0 %3662
      %3664 = vrot.lane.b32.xlu0 %v3643, 96
      %v3665 = vpop.permute.xlu0 %3664
      %3666 = vrot.lane.b32.xlu0 %v3644, 96
      %v3667 = vpop.permute.xlu0 %3666
      %3668 = vrot.lane.b32.xlu0 %v3645, 96
      %v3669 = vpop.permute.xlu0 %3668
      %3670 = vrot.lane.b32.xlu0 %v3646, 96
      %v3671 = vpop.permute.xlu0 %3670
      %3672 = vrot.lane.b32.xlu0 %v3647, 96
      %v3673 = vpop.permute.xlu0 %3672
      %3674 = vrot.lane.b32.xlu0 %v3648, 96
      %v3675 = vpop.permute.xlu0 %3674
      %3676 = vrot.lane.b32.xlu0 %v3649, 96
      %v3677 = vpop.permute.xlu0 %3676
      %3678 = vrot.lane.b32.xlu0 %v3650, 96
      %v3679 = vpop.permute.xlu0 %3678
      %3680 = vrot.lane.b32.xlu0 %v3651, 96
      %v3681 = vpop.permute.xlu0 %3680
      %3682 = vrot.lane.b32.xlu0 %v3652, 96
      %v3683 = vpop.permute.xlu0 %3682
      %3684 = vrot.lane.b32.xlu0 %v3653, 96
      %v3685 = vpop.permute.xlu0 %3684
      %3702 = vst.msk [vmem:[#allocation3 + $0x8] sm:$0xff] %vm2148, %v3655
      %3703 = vst.msk [vmem:[#allocation3 + $0x20] sm:$0xff] %vm2148, %v3657
      %3704 = vst.msk [vmem:[#allocation3 + $0x38] sm:$0xff] %vm2148, %v3659
      %3705 = vst.msk [vmem:[#allocation3 + $0x50] sm:$0xff] %vm2148, %v3661
      %3706 = vst.msk [vmem:[#allocation3 + $0x68] sm:$0xff] %vm2148, %v3663
      %3707 = vst.msk [vmem:[#allocation3 + $0x80] sm:$0xff] %vm2148, %v3665
      %3708 = vst.msk [vmem:[#allocation3 + $0x98] sm:$0xff] %vm2148, %v3667
      %3709 = vst.msk [vmem:[#allocation3 + $0xb0] sm:$0xff] %vm2148, %v3669
      %3710 = vst.msk [vmem:[#allocation3 + $0xc8] sm:$0xff] %vm2148, %v3671
      %3711 = vst.msk [vmem:[#allocation3 + $0xe0] sm:$0xff] %vm2148, %v3673
      %3712 = vst.msk [vmem:[#allocation3 + $0xf8] sm:$0xff] %vm2148, %v3675
      %3713 = vst.msk [vmem:[#allocation3 + $0x110] sm:$0xff] %vm2148, %v3677
      %3714 = vst.msk [vmem:[#allocation3 + $0x128] sm:$0xff] %vm2148, %v3679
      %3715 = vst.msk [vmem:[#allocation3 + $0x140] sm:$0xff] %vm2148, %v3681
      %3716 = vst.msk [vmem:[#allocation3 + $0x158] sm:$0xff] %vm2148, %v3683
      %3717 = vst.msk [vmem:[#allocation3 + $0x170] sm:$0xff] %vm2148, %v3685
      %v3718 = vld [vmem:[%s2997] sm:$0xe]
      %v3719 = vld [vmem:[%s2997 + $0x4] sm:$0xf]
      %v3720 = vld [vmem:[%s2997 + $0x8] sm:$0x1]
      %v3721 = vld [vmem:[%s2997 + $0xc] sm:$0xe]
      %v3722 = vld [vmem:[%s2997 + $0x10] sm:$0xf]
      %v3723 = vld [vmem:[%s2997 + $0x14] sm:$0x1]
      %v3724 = vld [vmem:[%s2997 + $0x18] sm:$0xe]
      %v3725 = vld [vmem:[%s2997 + $0x1c] sm:$0xf]
      %v3726 = vld [vmem:[%s2997 + $0x20] sm:$0x1]
      %v3727 = vld [vmem:[%s2997 + $0x24] sm:$0xe]
      %v3728 = vld [vmem:[%s2997 + $0x28] sm:$0xf]
      %v3729 = vld [vmem:[%s2997 + $0x2c] sm:$0x1]
      %v3730 = vld [vmem:[%s2997 + $0x30] sm:$0xe]
      %v3731 = vld [vmem:[%s2997 + $0x34] sm:$0xf]
      %v3732 = vld [vmem:[%s2997 + $0x38] sm:$0x1]
      %v3733 = vld [vmem:[%s2997 + $0x3c] sm:$0xe]
      %v3734 = vld [vmem:[%s2997 + $0x40] sm:$0xf]
      %v3735 = vld [vmem:[%s2997 + $0x44] sm:$0x1]
      %v3736 = vld [vmem:[%s2997 + $0x48] sm:$0xe]
      %v3737 = vld [vmem:[%s2997 + $0x4c] sm:$0xf]
      %v3738 = vld [vmem:[%s2997 + $0x50] sm:$0x1]
      %v3739 = vld [vmem:[%s2997 + $0x54] sm:$0xe]
      %v3740 = vld [vmem:[%s2997 + $0x58] sm:$0xf]
      %v3741 = vld [vmem:[%s2997 + $0x5c] sm:$0x1]
      %v3742 = vld [vmem:[%s2997 + $0x60] sm:$0xe]
      %v3743 = vld [vmem:[%s2997 + $0x64] sm:$0xf]
      %v3744 = vld [vmem:[%s2997 + $0x68] sm:$0x1]
      %v3745 = vld [vmem:[%s2997 + $0x6c] sm:$0xe]
      %v3746 = vld [vmem:[%s2997 + $0x70] sm:$0xf]
      %v3747 = vld [vmem:[%s2997 + $0x74] sm:$0x1]
      %v3748 = vld [vmem:[%s2997 + $0x78] sm:$0xe]
      %v3749 = vld [vmem:[%s2997 + $0x7c] sm:$0xf]
      %v3750 = vld [vmem:[%s2997 + $0x80] sm:$0x1]
      %v3751 = vld [vmem:[%s2997 + $0x84] sm:$0xe]
      %v3752 = vld [vmem:[%s2997 + $0x88] sm:$0xf]
      %v3753 = vld [vmem:[%s2997 + $0x8c] sm:$0x1]
      %v3754 = vld [vmem:[%s2997 + $0x90] sm:$0xe]
      %v3755 = vld [vmem:[%s2997 + $0x94] sm:$0xf]
      %v3756 = vld [vmem:[%s2997 + $0x98] sm:$0x1]
      %v3757 = vld [vmem:[%s2997 + $0x9c] sm:$0xe]
      %v3758 = vld [vmem:[%s2997 + $0xa0] sm:$0xf]
      %v3759 = vld [vmem:[%s2997 + $0xa4] sm:$0x1]
      %v3760 = vld [vmem:[%s2997 + $0xa8] sm:$0xe]
      %v3761 = vld [vmem:[%s2997 + $0xac] sm:$0xf]
      %v3762 = vld [vmem:[%s2997 + $0xb0] sm:$0x1]
      %v3763 = vld [vmem:[%s2997 + $0xb4] sm:$0xe]
      %v3764 = vld [vmem:[%s2997 + $0xb8] sm:$0xf]
      %v3765 = vld [vmem:[%s2997 + $0xbc] sm:$0x1]
      %v3814 = vrot.slane %v3718, 5
      %v3815 = vrot.slane %v3814, 4
      %v3816 = vrot.slane %v3719, 5
      %v3817 = vsel %vm1762, %v3815, %v3816
      %v3818 = vrot.slane %v3816, 4
      %v3819 = vrot.slane %v3720, 5
      %v3820 = vsel %vm1762, %v3818, %v3819
      %v3821 = vrot.slane %v3721, 5
      %v3822 = vrot.slane %v3821, 4
      %v3823 = vrot.slane %v3722, 5
      %v3824 = vsel %vm1762, %v3822, %v3823
      %v3825 = vrot.slane %v3823, 4
      %v3826 = vrot.slane %v3723, 5
      %v3827 = vsel %vm1762, %v3825, %v3826
      %v3828 = vrot.slane %v3724, 5
      %v3829 = vrot.slane %v3828, 4
      %v3830 = vrot.slane %v3725, 5
      %v3831 = vsel %vm1762, %v3829, %v3830
      %v3832 = vrot.slane %v3830, 4
      %v3833 = vrot.slane %v3726, 5
      %v3834 = vsel %vm1762, %v3832, %v3833
      %v3835 = vrot.slane %v3727, 5
      %v3836 = vrot.slane %v3835, 4
      %v3837 = vrot.slane %v3728, 5
      %v3838 = vsel %vm1762, %v3836, %v3837
      %v3839 = vrot.slane %v3837, 4
      %v3840 = vrot.slane %v3729, 5
      %v3841 = vsel %vm1762, %v3839, %v3840
      %v3842 = vrot.slane %v3730, 5
      %v3843 = vrot.slane %v3842, 4
      %v3844 = vrot.slane %v3731, 5
      %v3845 = vsel %vm1762, %v3843, %v3844
      %v3846 = vrot.slane %v3844, 4
      %v3847 = vrot.slane %v3732, 5
      %v3848 = vsel %vm1762, %v3846, %v3847
      %v3849 = vrot.slane %v3733, 5
      %v3850 = vrot.slane %v3849, 4
      %v3851 = vrot.slane %v3734, 5
      %v3852 = vsel %vm1762, %v3850, %v3851
      %v3853 = vrot.slane %v3851, 4
      %v3854 = vrot.slane %v3735, 5
      %v3855 = vsel %vm1762, %v3853, %v3854
      %v3856 = vrot.slane %v3736, 5
      %v3857 = vrot.slane %v3856, 4
      %v3858 = vrot.slane %v3737, 5
      %v3859 = vsel %vm1762, %v3857, %v3858
      %v3860 = vrot.slane %v3858, 4
      %v3861 = vrot.slane %v3738, 5
      %v3862 = vsel %vm1762, %v3860, %v3861
      %v3863 = vrot.slane %v3739, 5
      %v3864 = vrot.slane %v3863, 4
      %v3865 = vrot.slane %v3740, 5
      %v3866 = vsel %vm1762, %v3864, %v3865
      %v3867 = vrot.slane %v3865, 4
      %v3868 = vrot.slane %v3741, 5
      %v3869 = vsel %vm1762, %v3867, %v3868
      %v3870 = vrot.slane %v3742, 5
      %v3871 = vrot.slane %v3870, 4
      %v3872 = vrot.slane %v3743, 5
      %v3873 = vsel %vm1762, %v3871, %v3872
      %v3874 = vrot.slane %v3872, 4
      %v3875 = vrot.slane %v3744, 5
      %v3876 = vsel %vm1762, %v3874, %v3875
      %v3877 = vrot.slane %v3745, 5
      %v3878 = vrot.slane %v3877, 4
      %v3879 = vrot.slane %v3746, 5
      %v3880 = vsel %vm1762, %v3878, %v3879
      %v3881 = vrot.slane %v3879, 4
      %v3882 = vrot.slane %v3747, 5
      %v3883 = vsel %vm1762, %v3881, %v3882
      %v3884 = vrot.slane %v3748, 5
      %v3885 = vrot.slane %v3884, 4
      %v3886 = vrot.slane %v3749, 5
      %v3887 = vsel %vm1762, %v3885, %v3886
      %v3888 = vrot.slane %v3886, 4
      %v3889 = vrot.slane %v3750, 5
      %v3890 = vsel %vm1762, %v3888, %v3889
      %v3891 = vrot.slane %v3751, 5
      %v3892 = vrot.slane %v3891, 4
      %v3893 = vrot.slane %v3752, 5
      %v3894 = vsel %vm1762, %v3892, %v3893
      %v3895 = vrot.slane %v3893, 4
      %v3896 = vrot.slane %v3753, 5
      %v3897 = vsel %vm1762, %v3895, %v3896
      %v3898 = vrot.slane %v3754, 5
      %v3899 = vrot.slane %v3898, 4
      %v3900 = vrot.slane %v3755, 5
      %v3901 = vsel %vm1762, %v3899, %v3900
      %v3902 = vrot.slane %v3900, 4
      %v3903 = vrot.slane %v3756, 5
      %v3904 = vsel %vm1762, %v3902, %v3903
      %v3905 = vrot.slane %v3757, 5
      %v3906 = vrot.slane %v3905, 4
      %v3907 = vrot.slane %v3758, 5
      %v3908 = vsel %vm1762, %v3906, %v3907
      %v3909 = vrot.slane %v3907, 4
      %v3910 = vrot.slane %v3759, 5
      %v3911 = vsel %vm1762, %v3909, %v3910
      %v3912 = vrot.slane %v3760, 5
      %v3913 = vrot.slane %v3912, 4
      %v3914 = vrot.slane %v3761, 5
      %v3915 = vsel %vm1762, %v3913, %v3914
      %v3916 = vrot.slane %v3914, 4
      %v3917 = vrot.slane %v3762, 5
      %v3918 = vsel %vm1762, %v3916, %v3917
      %v3919 = vrot.slane %v3763, 5
      %v3920 = vrot.slane %v3919, 4
      %v3921 = vrot.slane %v3764, 5
      %v3922 = vsel %vm1762, %v3920, %v3921
      %v3923 = vrot.slane %v3921, 4
      %v3924 = vrot.slane %v3765, 5
      %v3925 = vsel %vm1762, %v3923, %v3924
      %v3926 = vunpack.c.l.b16 %v3817
      %v3927 = vunpack.c.l.b16 %v3820
      %v3928 = vunpack.c.l.b16 %v3824
      %v3929 = vunpack.c.l.b16 %v3827
      %v3930 = vunpack.c.l.b16 %v3831
      %v3931 = vunpack.c.l.b16 %v3834
      %v3932 = vunpack.c.l.b16 %v3838
      %v3933 = vunpack.c.l.b16 %v3841
      %v3934 = vunpack.c.l.b16 %v3845
      %v3935 = vunpack.c.l.b16 %v3848
      %v3936 = vunpack.c.l.b16 %v3852
      %v3937 = vunpack.c.l.b16 %v3855
      %v3938 = vunpack.c.l.b16 %v3859
      %v3939 = vunpack.c.l.b16 %v3862
      %v3940 = vunpack.c.l.b16 %v3866
      %v3941 = vunpack.c.l.b16 %v3869
      %v3942 = vunpack.c.l.b16 %v3873
      %v3943 = vunpack.c.l.b16 %v3876
      %v3944 = vunpack.c.l.b16 %v3880
      %v3945 = vunpack.c.l.b16 %v3883
      %v3946 = vunpack.c.l.b16 %v3887
      %v3947 = vunpack.c.l.b16 %v3890
      %v3948 = vunpack.c.l.b16 %v3894
      %v3949 = vunpack.c.l.b16 %v3897
      %v3950 = vunpack.c.l.b16 %v3901
      %v3951 = vunpack.c.l.b16 %v3904
      %v3952 = vunpack.c.l.b16 %v3908
      %v3953 = vunpack.c.l.b16 %v3911
      %v3954 = vunpack.c.l.b16 %v3915
      %v3955 = vunpack.c.l.b16 %v3918
      %v3956 = vunpack.c.l.b16 %v3922
      %v3957 = vunpack.c.l.b16 %v3925
      %v3958 = vpack.c.b16 %v3927, %v3926
      %v3959 = vpack.c.b16 %v3929, %v3928
      %v3960 = vpack.c.b16 %v3931, %v3930
      %v3961 = vpack.c.b16 %v3933, %v3932
      %v3962 = vpack.c.b16 %v3935, %v3934
      %v3963 = vpack.c.b16 %v3937, %v3936
      %v3964 = vpack.c.b16 %v3939, %v3938
      %v3965 = vpack.c.b16 %v3941, %v3940
      %v3966 = vpack.c.b16 %v3943, %v3942
      %v3967 = vpack.c.b16 %v3945, %v3944
      %v3968 = vpack.c.b16 %v3947, %v3946
      %v3969 = vpack.c.b16 %v3949, %v3948
      %v3970 = vpack.c.b16 %v3951, %v3950
      %v3971 = vpack.c.b16 %v3953, %v3952
      %v3972 = vpack.c.b16 %v3955, %v3954
      %v3973 = vpack.c.b16 %v3957, %v3956
      %3990 = vst.msk [vmem:[#allocation3 + $0x10] sm:$0xff] %vm1099, %v3958
      %3991 = vst.msk [vmem:[#allocation3 + $0x28] sm:$0xff] %vm1099, %v3959
      %3992 = vst.msk [vmem:[#allocation3 + $0x40] sm:$0xff] %vm1099, %v3960
      %3993 = vst.msk [vmem:[#allocation3 + $0x58] sm:$0xff] %vm1099, %v3961
      %3994 = vst.msk [vmem:[#allocation3 + $0x70] sm:$0xff] %vm1099, %v3962
      %3995 = vst.msk [vmem:[#allocation3 + $0x88] sm:$0xff] %vm1099, %v3963
      %3996 = vst.msk [vmem:[#allocation3 + $0xa0] sm:$0xff] %vm1099, %v3964
      %3997 = vst.msk [vmem:[#allocation3 + $0xb8] sm:$0xff] %vm1099, %v3965
      %3998 = vst.msk [vmem:[#allocation3 + $0xd0] sm:$0xff] %vm1099, %v3966
      %3999 = vst.msk [vmem:[#allocation3 + $0xe8] sm:$0xff] %vm1099, %v3967
      %4000 = vst.msk [vmem:[#allocation3 + $0x100] sm:$0xff] %vm1099, %v3968
      %4001 = vst.msk [vmem:[#allocation3 + $0x118] sm:$0xff] %vm1099, %v3969
      %4002 = vst.msk [vmem:[#allocation3 + $0x130] sm:$0xff] %vm1099, %v3970
      %4003 = vst.msk [vmem:[#allocation3 + $0x148] sm:$0xff] %vm1099, %v3971
      %4004 = vst.msk [vmem:[#allocation3 + $0x160] sm:$0xff] %vm1099, %v3972
      %4005 = vst.msk [vmem:[#allocation3 + $0x178] sm:$0xff] %vm1099, %v3973
      %v4006 = vld [vmem:[#allocation3] sm:$0xff]
      %v4007 = vld [vmem:[#allocation3 + $0x8] sm:$0xff]
      %v4008 = vld [vmem:[#allocation3 + $0x10] sm:$0xff]
      %v4009 = vld [vmem:[#allocation3 + $0x18] sm:$0xff]
      %v4010 = vld [vmem:[#allocation3 + $0x20] sm:$0xff]
      %v4011 = vld [vmem:[#allocation3 + $0x28] sm:$0xff]
      %v4012 = vld [vmem:[#allocation3 + $0x30] sm:$0xff]
      %v4013 = vld [vmem:[#allocation3 + $0x38] sm:$0xff]
      %v4014 = vld [vmem:[#allocation3 + $0x40] sm:$0xff]
      %v4015 = vld [vmem:[#allocation3 + $0x48] sm:$0xff]
      %v4016 = vld [vmem:[#allocation3 + $0x50] sm:$0xff]
      %v4017 = vld [vmem:[#allocation3 + $0x58] sm:$0xff]
      %v4018 = vld [vmem:[#allocation3 + $0x60] sm:$0xff]
      %v4019 = vld [vmem:[#allocation3 + $0x68] sm:$0xff]
      %v4020 = vld [vmem:[#allocation3 + $0x70] sm:$0xff]
      %v4021 = vld [vmem:[#allocation3 + $0x78] sm:$0xff]
      %v4022 = vld [vmem:[#allocation3 + $0x80] sm:$0xff]
      %v4023 = vld [vmem:[#allocation3 + $0x88] sm:$0xff]
      %v4024 = vld [vmem:[#allocation3 + $0x90] sm:$0xff]
      %v4025 = vld [vmem:[#allocation3 + $0x98] sm:$0xff]
      %v4026 = vld [vmem:[#allocation3 + $0xa0] sm:$0xff]
      %v4027 = vld [vmem:[#allocation3 + $0xa8] sm:$0xff]
      %v4028 = vld [vmem:[#allocation3 + $0xb0] sm:$0xff]
      %v4029 = vld [vmem:[#allocation3 + $0xb8] sm:$0xff]
      %v4030 = vld [vmem:[#allocation3 + $0xc0] sm:$0xff]
      %v4031 = vld [vmem:[#allocation3 + $0xc8] sm:$0xff]
      %v4032 = vld [vmem:[#allocation3 + $0xd0] sm:$0xff]
      %v4033 = vld [vmem:[#allocation3 + $0xd8] sm:$0xff]
      %v4034 = vld [vmem:[#allocation3 + $0xe0] sm:$0xff]
      %v4035 = vld [vmem:[#allocation3 + $0xe8] sm:$0xff]
      %v4036 = vld [vmem:[#allocation3 + $0xf0] sm:$0xff]
      %v4037 = vld [vmem:[#allocation3 + $0xf8] sm:$0xff]
      %v4038 = vld [vmem:[#allocation3 + $0x100] sm:$0xff]
      %v4039 = vld [vmem:[#allocation3 + $0x108] sm:$0xff]
      %v4040 = vld [vmem:[#allocation3 + $0x110] sm:$0xff]
      %v4041 = vld [vmem:[#allocation3 + $0x118] sm:$0xff]
      %v4042 = vld [vmem:[#allocation3 + $0x120] sm:$0xff]
      %v4043 = vld [vmem:[#allocation3 + $0x128] sm:$0xff]
      %v4044 = vld [vmem:[#allocation3 + $0x130] sm:$0xff]
      %v4045 = vld [vmem:[#allocation3 + $0x138] sm:$0xff]
      %v4046 = vld [vmem:[#allocation3 + $0x140] sm:$0xff]
      %v4047 = vld [vmem:[#allocation3 + $0x148] sm:$0xff]
      %v4048 = vld [vmem:[#allocation3 + $0x150] sm:$0xff]
      %v4049 = vld [vmem:[#allocation3 + $0x158] sm:$0xff]
      %v4050 = vld [vmem:[#allocation3 + $0x160] sm:$0xff]
      %v4051 = vld [vmem:[#allocation3 + $0x168] sm:$0xff]
      %v4052 = vld [vmem:[#allocation3 + $0x170] sm:$0xff]
      %v4053 = vld [vmem:[#allocation3 + $0x178] sm:$0xff]
      %v4054 = vld [vmem:[%s3] sm:$0xf]
      %v4055 = vld [vmem:[%s3 + $0x4] sm:$0xf]
      %v4056 = vld [vmem:[%s3 + $0x8] sm:$0xf]
      %v4057 = vld [vmem:[%s3 + $0xc] sm:$0xf]
      %v4058 = vld [vmem:[%s3 + $0x10] sm:$0xf]
      %v4059 = vld [vmem:[%s3 + $0x14] sm:$0xf]
      %v4060 = vld [vmem:[%s3 + $0x18] sm:$0xf]
      %v4061 = vld [vmem:[%s3 + $0x1c] sm:$0xf]
      %v4062 = vld [vmem:[%s3 + $0x20] sm:$0xf]
      %v4063 = vld [vmem:[%s3 + $0x24] sm:$0xf]
      %v4064 = vld [vmem:[%s3 + $0x28] sm:$0xf]
      %v4065 = vld [vmem:[%s3 + $0x2c] sm:$0xf]
      %v4066 = vld [vmem:[%s3 + $0x30] sm:$0xf]
      %v4067 = vld [vmem:[%s3 + $0x34] sm:$0xf]
      %v4068 = vld [vmem:[%s3 + $0x38] sm:$0xf]
      %v4069 = vld [vmem:[%s3 + $0x3c] sm:$0xf]
      %v4070 = vld [vmem:[%s3 + $0x40] sm:$0xf]
      %v4071 = vld [vmem:[%s3 + $0x44] sm:$0xf]
      %v4072 = vld [vmem:[%s3 + $0x48] sm:$0xf]
      %v4073 = vld [vmem:[%s3 + $0x4c] sm:$0xf]
      %v4074 = vld [vmem:[%s3 + $0x50] sm:$0xf]
      %v4075 = vld [vmem:[%s3 + $0x54] sm:$0xf]
      %v4076 = vld [vmem:[%s3 + $0x58] sm:$0xf]
      %v4077 = vld [vmem:[%s3 + $0x5c] sm:$0xf]
      %v4078 = vld [vmem:[%s3 + $0x60] sm:$0xf]
      %v4079 = vld [vmem:[%s3 + $0x64] sm:$0xf]
      %v4080 = vld [vmem:[%s3 + $0x68] sm:$0xf]
      %v4081 = vld [vmem:[%s3 + $0x6c] sm:$0xf]
      %v4082 = vld [vmem:[%s3 + $0x70] sm:$0xf]
      %v4083 = vld [vmem:[%s3 + $0x74] sm:$0xf]
      %v4084 = vld [vmem:[%s3 + $0x78] sm:$0xf]
      %v4085 = vld [vmem:[%s3 + $0x7c] sm:$0xf]
      %v4086 = vld [vmem:[%s3 + $0x80] sm:$0xf]
      %v4087 = vld [vmem:[%s3 + $0x84] sm:$0xf]
      %v4088 = vld [vmem:[%s3 + $0x88] sm:$0xf]
      %v4089 = vld [vmem:[%s3 + $0x8c] sm:$0xf]
      %v4126 = vunpack.c.l.b16 %v4054
      %v4127 = vunpack.c.l.b16 %v4055
      %v4128 = vunpack.c.l.b16 %v4056
      %v4129 = vunpack.c.l.b16 %v4057
      %v4130 = vunpack.c.l.b16 %v4058
      %v4131 = vunpack.c.l.b16 %v4059
      %v4132 = vunpack.c.l.b16 %v4060
      %v4133 = vunpack.c.l.b16 %v4061
      %v4134 = vunpack.c.l.b16 %v4062
      %v4135 = vunpack.c.l.b16 %v4063
      %v4136 = vunpack.c.l.b16 %v4064
      %v4137 = vunpack.c.l.b16 %v4065
      %v4138 = vunpack.c.l.b16 %v4066
      %v4139 = vunpack.c.l.b16 %v4067
      %v4140 = vunpack.c.l.b16 %v4068
      %v4141 = vunpack.c.l.b16 %v4069
      %v4142 = vunpack.c.l.b16 %v4070
      %v4143 = vunpack.c.l.b16 %v4071
      %v4144 = vunpack.c.l.b16 %v4072
      %v4145 = vunpack.c.l.b16 %v4073
      %v4146 = vunpack.c.l.b16 %v4074
      %v4147 = vunpack.c.l.b16 %v4075
      %v4148 = vunpack.c.l.b16 %v4076
      %v4149 = vunpack.c.l.b16 %v4077
      %v4150 = vunpack.c.l.b16 %v4078
      %v4151 = vunpack.c.l.b16 %v4079
      %v4152 = vunpack.c.l.b16 %v4080
      %v4153 = vunpack.c.l.b16 %v4081
      %v4154 = vunpack.c.l.b16 %v4082
      %v4155 = vunpack.c.l.b16 %v4083
      %v4156 = vunpack.c.l.b16 %v4084
      %v4157 = vunpack.c.l.b16 %v4085
      %v4158 = vunpack.c.l.b16 %v4086
      %v4159 = vunpack.c.l.b16 %v4087
      %v4160 = vunpack.c.l.b16 %v4088
      %v4161 = vunpack.c.l.b16 %v4089
      %v4162 = vpack.c.b16 %v4127, %v4126
      %v4163 = vpack.c.b16 %v4129, %v4128
      %v4164 = vpack.c.b16 %v4131, %v4130
      %v4165 = vpack.c.b16 %v4133, %v4132
      %v4166 = vpack.c.b16 %v4135, %v4134
      %v4167 = vpack.c.b16 %v4137, %v4136
      %v4168 = vpack.c.b16 %v4139, %v4138
      %v4169 = vpack.c.b16 %v4141, %v4140
      %v4170 = vpack.c.b16 %v4143, %v4142
      %v4171 = vpack.c.b16 %v4145, %v4144
      %v4172 = vpack.c.b16 %v4147, %v4146
      %v4173 = vpack.c.b16 %v4149, %v4148
      %v4174 = vpack.c.b16 %v4151, %v4150
      %v4175 = vpack.c.b16 %v4153, %v4152
      %v4176 = vpack.c.b16 %v4155, %v4154
      %v4177 = vpack.c.b16 %v4157, %v4156
      %v4178 = vpack.c.b16 %v4159, %v4158
      %v4179 = vpack.c.b16 %v4161, %v4160
      %v4199 = vsel %vm1099, %v4008, 0
      %v4202 = vsel %vm1099, %v4011, 0
      %v4205 = vsel %vm1099, %v4014, 0
      %v4208 = vsel %vm1099, %v4017, 0
      %v4211 = vsel %vm1099, %v4020, 0
      %v4214 = vsel %vm1099, %v4023, 0
      %v4217 = vsel %vm1099, %v4026, 0
      %v4220 = vsel %vm1099, %v4029, 0
      %v4223 = vsel %vm1099, %v4032, 0
      %v4226 = vsel %vm1099, %v4035, 0
      %v4229 = vsel %vm1099, %v4038, 0
      %v4232 = vsel %vm1099, %v4041, 0
      %v4235 = vsel %vm1099, %v4044, 0
      %v4238 = vsel %vm1099, %v4047, 0
      %v4241 = vsel %vm1099, %v4050, 0
      %v4244 = vsel %vm1099, %v4053, 0
      %4246 = vmatprep.subr.bf16.mxu0 0
      %4247 = vmatpush1.bf16.msra.mxu0 %v4162
      %4248 = vmatprep.subr.bf16.mxu0 0
      %4249 = vmatpush1.bf16.msra.mxu0 %v4163
      %4250 = vmatprep.subr.bf16.mxu0 0
      %4251 = vmatpush1.bf16.msra.mxu0 %v4164
      %4252 = vmatprep.subr.bf16.mxu0 0
      %4253 = vmatpush1.bf16.msra.mxu0 %v4165
      %4254 = vmatprep.subr.bf16.mxu0 0
      %4255 = vmatpush1.bf16.msra.mxu0 %v4166
      %4256 = vmatprep.subr.bf16.mxu0 0
      %4257 = vmatpush1.bf16.msra.mxu0 %v4167
      %4258 = vmatprep.subr.bf16.mxu0 0
      %4259 = vmatpush1.bf16.msra.mxu0 %v4168
      %4260 = vmatprep.subr.bf16.mxu0 0
      %4261 = vmatpush1.bf16.msra.mxu0 %v4169
      %4262 = vmatprep.subr.bf16.mxu0 0
      %4263 = vmatpush1.bf16.msra.mxu0 %v4170
      %4264 = vmatprep.subr.bf16.mxu0 0
      %4265 = vmatpush1.bf16.msra.mxu0 %v4171
      %4266 = vmatprep.subr.bf16.mxu0 0
      %4267 = vmatpush1.bf16.msra.mxu0 %v4172
      %4268 = vmatprep.subr.bf16.mxu0 0
      %4269 = vmatpush1.bf16.msra.mxu0 %v4173
      %4270 = vmatprep.subr.bf16.mxu0 0
      %4271 = vmatpush1.bf16.msra.mxu0 %v4174
      %4272 = vmatprep.subr.bf16.mxu0 0
      %4273 = vmatpush1.bf16.msra.mxu0 %v4175
      %4274 = vmatprep.subr.bf16.mxu0 0
      %4275 = vmatpush1.bf16.msra.mxu0 %v4176
      %4276 = vmatprep.subr.bf16.mxu0 0
      %4277 = vmatpush1.bf16.msra.mxu0 %v4177
      %4278 = vmatprep.mubr.bf16.mxu0 %v4007
      %4279 = vmatmul.mubr.bf16.gmra.mrb[0].mxu0 %v4006
      %v4280 = vpop.f32.mrb[0].mxu0
      %v4281 = vadd.f32 0.0, %v4280
      %v4282 = vpop.f32.mrb[0].mxu0
      %v4283 = vpop.f32.mrb[0].mxu0
      %v4284 = vadd.f32 0.0, %v4283
      %v4285 = vpop.f32.mrb[0].mxu0
      %4286 = vmatprep.mubr.bf16.mxu0 %v4010
      %4287 = vmatmul.mubr.bf16.gmra.mrb[0].mxu0 %v4009
      %v4288 = vpop.f32.mrb[0].mxu0
      %v4289 = vadd.f32 0.0, %v4288
      %v4290 = vpop.f32.mrb[0].mxu0
      %v4291 = vpop.f32.mrb[0].mxu0
      %v4292 = vadd.f32 0.0, %v4291
      %v4293 = vpop.f32.mrb[0].mxu0
      %4294 = vmatprep.mubr.bf16.mxu0 %v4013
      %4295 = vmatmul.mubr.bf16.gmra.mrb[0].mxu0 %v4012
      %v4296 = vpop.f32.mrb[0].mxu0
      %v4297 = vadd.f32 0.0, %v4296
      %v4298 = vpop.f32.mrb[0].mxu0
      %v4299 = vpop.f32.mrb[0].mxu0
      %v4300 = vadd.f32 0.0, %v4299
      %v4301 = vpop.f32.mrb[0].mxu0
      %4302 = vmatprep.mubr.bf16.mxu0 %v4016
      %4303 = vmatmul.mubr.bf16.gmra.mrb[0].mxu0 %v4015
      %v4304 = vpop.f32.mrb[0].mxu0
      %v4305 = vadd.f32 0.0, %v4304
      %v4306 = vpop.f32.mrb[0].mxu0
      %v4307 = vpop.f32.mrb[0].mxu0
      %v4308 = vadd.f32 0.0, %v4307
      %v4309 = vpop.f32.mrb[0].mxu0
      %4310 = vmatprep.mubr.bf16.mxu0 %v4019
      %4311 = vmatmul.mubr.bf16.gmra.mrb[0].mxu0 %v4018
      %v4312 = vpop.f32.mrb[0].mxu0
      %v4313 = vadd.f32 0.0, %v4312
      %v4314 = vpop.f32.mrb[0].mxu0
      %v4315 = vpop.f32.mrb[0].mxu0
      %v4316 = vadd.f32 0.0, %v4315
      %v4317 = vpop.f32.mrb[0].mxu0
      %4318 = vmatprep.mubr.bf16.mxu0 %v4022
      %4319 = vmatmul.mubr.bf16.gmra.mrb[0].mxu0 %v4021
      %v4320 = vpop.f32.mrb[0].mxu0
      %v4321 = vadd.f32 0.0, %v4320
      %v4322 = vpop.f32.mrb[0].mxu0
      %v4323 = vpop.f32.mrb[0].mxu0
      %v4324 = vadd.f32 0.0, %v4323
      %v4325 = vpop.f32.mrb[0].mxu0
      %4326 = vmatprep.mubr.bf16.mxu0 %v4025
      %4327 = vmatmul.mubr.bf16.gmra.mrb[0].mxu0 %v4024
      %v4328 = vpop.f32.mrb[0].mxu0
      %v4329 = vadd.f32 0.0, %v4328
      %v4330 = vpop.f32.mrb[0].mxu0
      %v4331 = vpop.f32.mrb[0].mxu0
      %v4332 = vadd.f32 0.0, %v4331
      %v4333 = vpop.f32.mrb[0].mxu0
      %4334 = vmatprep.mubr.bf16.mxu0 %v4028
      %4335 = vmatmul.mubr.bf16.gmra.mrb[0].mxu0 %v4027
      %v4336 = vpop.f32.mrb[0].mxu0
      %v4337 = vadd.f32 0.0, %v4336
      %v4338 = vpop.f32.mrb[0].mxu0
      %v4339 = vpop.f32.mrb[0].mxu0
      %v4340 = vadd.f32 0.0, %v4339
      %v4341 = vpop.f32.mrb[0].mxu0
      %4342 = vmatprep.mubr.bf16.mxu0 %v4031
      %4343 = vmatmul.mubr.bf16.gmra.mrb[0].mxu0 %v4030
      %v4344 = vpop.f32.mrb[0].mxu0
      %v4345 = vadd.f32 0.0, %v4344
      %v4346 = vpop.f32.mrb[0].mxu0
      %v4347 = vpop.f32.mrb[0].mxu0
      %v4348 = vadd.f32 0.0, %v4347
      %v4349 = vpop.f32.mrb[0].mxu0
      %4350 = vmatprep.mubr.bf16.mxu0 %v4034
      %4351 = vmatmul.mubr.bf16.gmra.mrb[0].mxu0 %v4033
      %v4352 = vpop.f32.mrb[0].mxu0
      %v4353 = vadd.f32 0.0, %v4352
      %v4354 = vpop.f32.mrb[0].mxu0
      %v4355 = vpop.f32.mrb[0].mxu0
      %v4356 = vadd.f32 0.0, %v4355
      %v4357 = vpop.f32.mrb[0].mxu0
      %4358 = vmatprep.mubr.bf16.mxu0 %v4037
      %4359 = vmatmul.mubr.bf16.gmra.mrb[0].mxu0 %v4036
      %v4360 = vpop.f32.mrb[0].mxu0
      %v4361 = vadd.f32 0.0, %v4360
      %v4362 = vpop.f32.mrb[0].mxu0
      %v4363 = vpop.f32.mrb[0].mxu0
      %v4364 = vadd.f32 0.0, %v4363
      %v4365 = vpop.f32.mrb[0].mxu0
      %4366 = vmatprep.mubr.bf16.mxu0 %v4040
      %4367 = vmatmul.mubr.bf16.gmra.mrb[0].mxu0 %v4039
      %v4368 = vpop.f32.mrb[0].mxu0
      %v4369 = vadd.f32 0.0, %v4368
      %v4370 = vpop.f32.mrb[0].mxu0
      %v4371 = vpop.f32.mrb[0].mxu0
      %v4372 = vadd.f32 0.0, %v4371
      %v4373 = vpop.f32.mrb[0].mxu0
      %4374 = vmatprep.mubr.bf16.mxu0 %v4043
      %4375 = vmatmul.mubr.bf16.gmra.mrb[0].mxu0 %v4042
      %v4376 = vpop.f32.mrb[0].mxu0
      %v4377 = vadd.f32 0.0, %v4376
      %v4378 = vpop.f32.mrb[0].mxu0
      %v4379 = vpop.f32.mrb[0].mxu0
      %v4380 = vadd.f32 0.0, %v4379
      %v4381 = vpop.f32.mrb[0].mxu0
      %4382 = vmatprep.mubr.bf16.mxu0 %v4046
      %4383 = vmatmul.mubr.bf16.gmra.mrb[0].mxu0 %v4045
      %v4384 = vpop.f32.mrb[0].mxu0
      %v4385 = vadd.f32 0.0, %v4384
      %v4386 = vpop.f32.mrb[0].mxu0
      %v4387 = vpop.f32.mrb[0].mxu0
      %v4388 = vadd.f32 0.0, %v4387
      %v4389 = vpop.f32.mrb[0].mxu0
      %4390 = vmatprep.mubr.bf16.mxu0 %v4049
      %4391 = vmatmul.mubr.bf16.gmra.mrb[0].mxu0 %v4048
      %v4392 = vpop.f32.mrb[0].mxu0
      %v4393 = vadd.f32 0.0, %v4392
      %v4394 = vpop.f32.mrb[0].mxu0
      %v4395 = vpop.f32.mrb[0].mxu0
      %v4396 = vadd.f32 0.0, %v4395
      %v4397 = vpop.f32.mrb[0].mxu0
      %4398 = vmatprep.mubr.bf16.mxu0 %v4052
      %4399 = vmatmul.mubr.bf16.gmra.mrb[0].mxu0 %v4051
      %v4400 = vpop.f32.mrb[0].mxu0
      %v4401 = vadd.f32 0.0, %v4400
      %v4402 = vpop.f32.mrb[0].mxu0
      %v4403 = vpop.f32.mrb[0].mxu0
      %v4404 = vadd.f32 0.0, %v4403
      %v4405 = vpop.f32.mrb[0].mxu0
      %4406 = vdwg.mxu0
      %4407 = vmatprep.subr.bf16.mxu0 0
      %4408 = vmatpush1.bf16.msra.mxu0 %v4178
      %4409 = vmatprep.subr.bf16.mxu0 0
      %4410 = vmatpush1.bf16.msra.mxu0 %v4179
      %4411 = vmatprep.subr.bf16.mxu0 0
      %4412 = vmatpush1.bf16.msra.mxu0 0
      %4413 = vmatprep.subr.bf16.mxu0 0
      %4414 = vmatpush1.bf16.msra.mxu0 0
      %4415 = vmatprep.subr.bf16.mxu0 0
      %4416 = vmatpush1.bf16.msra.mxu0 0
      %4417 = vmatprep.subr.bf16.mxu0 0
      %4418 = vmatpush1.bf16.msra.mxu0 0
      %4419 = vmatprep.subr.bf16.mxu0 0
      %4420 = vmatpush1.bf16.msra.mxu0 0
      %4421 = vmatprep.subr.bf16.mxu0 0
      %4422 = vmatpush1.bf16.msra.mxu0 0
      %4423 = vmatprep.subr.bf16.mxu0 0
      %4424 = vmatpush1.bf16.msra.mxu0 0
      %4425 = vmatprep.subr.bf16.mxu0 0
      %4426 = vmatpush1.bf16.msra.mxu0 0
      %4427 = vmatprep.subr.bf16.mxu0 0
      %4428 = vmatpush1.bf16.msra.mxu0 0
      %4429 = vmatprep.subr.bf16.mxu0 0
      %4430 = vmatpush1.bf16.msra.mxu0 0
      %4431 = vmatprep.subr.bf16.mxu0 0
      %4432 = vmatpush1.bf16.msra.mxu0 0
      %4433 = vmatprep.subr.bf16.mxu0 0
      %4434 = vmatpush1.bf16.msra.mxu0 0
      %4435 = vmatprep.subr.bf16.mxu0 0
      %4436 = vmatpush1.bf16.msra.mxu0 0
      %4437 = vmatprep.subr.bf16.mxu0 0
      %4438 = vmatpush1.bf16.msra.mxu0 0
      %4439 = vmatprep.mubr.bf16.mxu0 0
      %4440 = vmatmul.mubr.bf16.gmra.mrb[0].mxu0 %v4199
      %v4441 = vpop.f32.mrb[0].mxu0
      %v4442 = vadd.f32 %v4281, %v4441
      %v4443 = vpop.f32.mrb[0].mxu0
      %v4444 = vpop.f32.mrb[0].mxu0
      %v4445 = vadd.f32 %v4284, %v4444
      %v4446 = vpop.f32.mrb[0].mxu0
      %4447 = vmatprep.mubr.bf16.mxu0 0
      %4448 = vmatmul.mubr.bf16.gmra.mrb[0].mxu0 %v4202
      %v4449 = vpop.f32.mrb[0].mxu0
      %v4450 = vadd.f32 %v4289, %v4449
      %v4451 = vpop.f32.mrb[0].mxu0
      %v4452 = vpop.f32.mrb[0].mxu0
      %v4453 = vadd.f32 %v4292, %v4452
      %v4454 = vpop.f32.mrb[0].mxu0
      %4455 = vmatprep.mubr.bf16.mxu0 0
      %4456 = vmatmul.mubr.bf16.gmra.mrb[0].mxu0 %v4205
      %v4457 = vpop.f32.mrb[0].mxu0
      %v4458 = vadd.f32 %v4297, %v4457
      %v4459 = vpop.f32.mrb[0].mxu0
      %v4460 = vpop.f32.mrb[0].mxu0
      %v4461 = vadd.f32 %v4300, %v4460
      %v4462 = vpop.f32.mrb[0].mxu0
      %4463 = vmatprep.mubr.bf16.mxu0 0
      %4464 = vmatmul.mubr.bf16.gmra.mrb[0].mxu0 %v4208
      %v4465 = vpop.f32.mrb[0].mxu0
      %v4466 = vadd.f32 %v4305, %v4465
      %v4467 = vpop.f32.mrb[0].mxu0
      %v4468 = vpop.f32.mrb[0].mxu0
      %v4469 = vadd.f32 %v4308, %v4468
      %v4470 = vpop.f32.mrb[0].mxu0
      %4471 = vmatprep.mubr.bf16.mxu0 0
      %4472 = vmatmul.mubr.bf16.gmra.mrb[0].mxu0 %v4211
      %v4473 = vpop.f32.mrb[0].mxu0
      %v4474 = vadd.f32 %v4313, %v4473
      %v4475 = vpop.f32.mrb[0].mxu0
      %v4476 = vpop.f32.mrb[0].mxu0
      %v4477 = vadd.f32 %v4316, %v4476
      %v4478 = vpop.f32.mrb[0].mxu0
      %4479 = vmatprep.mubr.bf16.mxu0 0
      %4480 = vmatmul.mubr.bf16.gmra.mrb[0].mxu0 %v4214
      %v4481 = vpop.f32.mrb[0].mxu0
      %v4482 = vadd.f32 %v4321, %v4481
      %v4483 = vpop.f32.mrb[0].mxu0
      %v4484 = vpop.f32.mrb[0].mxu0
      %v4485 = vadd.f32 %v4324, %v4484
      %v4486 = vpop.f32.mrb[0].mxu0
      %4487 = vmatprep.mubr.bf16.mxu0 0
      %4488 = vmatmul.mubr.bf16.gmra.mrb[0].mxu0 %v4217
      %v4489 = vpop.f32.mrb[0].mxu0
      %v4490 = vadd.f32 %v4329, %v4489
      %v4491 = vpop.f32.mrb[0].mxu0
      %v4492 = vpop.f32.mrb[0].mxu0
      %v4493 = vadd.f32 %v4332, %v4492
      %v4494 = vpop.f32.mrb[0].mxu0
      %4495 = vmatprep.mubr.bf16.mxu0 0
      %4496 = vmatmul.mubr.bf16.gmra.mrb[0].mxu0 %v4220
      %v4497 = vpop.f32.mrb[0].mxu0
      %v4498 = vadd.f32 %v4337, %v4497
      %v4499 = vpop.f32.mrb[0].mxu0
      %v4500 = vpop.f32.mrb[0].mxu0
      %v4501 = vadd.f32 %v4340, %v4500
      %v4502 = vpop.f32.mrb[0].mxu0
      %4503 = vmatprep.mubr.bf16.mxu0 0
      %4504 = vmatmul.mubr.bf16.gmra.mrb[0].mxu0 %v4223
      %v4505 = vpop.f32.mrb[0].mxu0
      %v4506 = vadd.f32 %v4345, %v4505
      %v4507 = vpop.f32.mrb[0].mxu0
      %v4508 = vpop.f32.mrb[0].mxu0
      %v4509 = vadd.f32 %v4348, %v4508
      %v4510 = vpop.f32.mrb[0].mxu0
      %4511 = vmatprep.mubr.bf16.mxu0 0
      %4512 = vmatmul.mubr.bf16.gmra.mrb[0].mxu0 %v4226
      %v4513 = vpop.f32.mrb[0].mxu0
      %v4514 = vadd.f32 %v4353, %v4513
      %v4515 = vpop.f32.mrb[0].mxu0
      %v4516 = vpop.f32.mrb[0].mxu0
      %v4517 = vadd.f32 %v4356, %v4516
      %v4518 = vpop.f32.mrb[0].mxu0
      %4519 = vmatprep.mubr.bf16.mxu0 0
      %4520 = vmatmul.mubr.bf16.gmra.mrb[0].mxu0 %v4229
      %v4521 = vpop.f32.mrb[0].mxu0
      %v4522 = vadd.f32 %v4361, %v4521
      %v4523 = vpop.f32.mrb[0].mxu0
      %v4524 = vpop.f32.mrb[0].mxu0
      %v4525 = vadd.f32 %v4364, %v4524
      %v4526 = vpop.f32.mrb[0].mxu0
      %4527 = vmatprep.mubr.bf16.mxu0 0
      %4528 = vmatmul.mubr.bf16.gmra.mrb[0].mxu0 %v4232
      %v4529 = vpop.f32.mrb[0].mxu0
      %v4530 = vadd.f32 %v4369, %v4529
      %v4531 = vpop.f32.mrb[0].mxu0
      %v4532 = vpop.f32.mrb[0].mxu0
      %v4533 = vadd.f32 %v4372, %v4532
      %v4534 = vpop.f32.mrb[0].mxu0
      %4535 = vmatprep.mubr.bf16.mxu0 0
      %4536 = vmatmul.mubr.bf16.gmra.mrb[0].mxu0 %v4235
      %v4537 = vpop.f32.mrb[0].mxu0
      %v4538 = vadd.f32 %v4377, %v4537
      %v4539 = vpop.f32.mrb[0].mxu0
      %v4540 = vpop.f32.mrb[0].mxu0
      %v4541 = vadd.f32 %v4380, %v4540
      %v4542 = vpop.f32.mrb[0].mxu0
      %4543 = vmatprep.mubr.bf16.mxu0 0
      %4544 = vmatmul.mubr.bf16.gmra.mrb[0].mxu0 %v4238
      %v4545 = vpop.f32.mrb[0].mxu0
      %v4546 = vadd.f32 %v4385, %v4545
      %v4547 = vpop.f32.mrb[0].mxu0
      %v4548 = vpop.f32.mrb[0].mxu0
      %v4549 = vadd.f32 %v4388, %v4548
      %v4550 = vpop.f32.mrb[0].mxu0
      %4551 = vmatprep.mubr.bf16.mxu0 0
      %4552 = vmatmul.mubr.bf16.gmra.mrb[0].mxu0 %v4241
      %v4553 = vpop.f32.mrb[0].mxu0
      %v4554 = vadd.f32 %v4393, %v4553
      %v4555 = vpop.f32.mrb[0].mxu0
      %v4556 = vpop.f32.mrb[0].mxu0
      %v4557 = vadd.f32 %v4396, %v4556
      %v4558 = vpop.f32.mrb[0].mxu0
      %4559 = vmatprep.mubr.bf16.mxu0 0
      %4560 = vmatmul.mubr.bf16.gmra.mrb[0].mxu0 %v4244
      %v4561 = vpop.f32.mrb[0].mxu0
      %v4562 = vadd.f32 %v4401, %v4561
      %v4563 = vpop.f32.mrb[0].mxu0
      %v4564 = vpop.f32.mrb[0].mxu0
      %v4565 = vadd.f32 %v4404, %v4564
      %v4566 = vpop.f32.mrb[0].mxu0
      %4567 = vdwg.mxu0
      %v4568 = vpack.c.bf16 %v4445, %v4442
      %v4569 = vpack.c.bf16 %v4453, %v4450
      %v4570 = vpack.c.bf16 %v4461, %v4458
      %v4571 = vpack.c.bf16 %v4469, %v4466
      %v4572 = vpack.c.bf16 %v4477, %v4474
      %v4573 = vpack.c.bf16 %v4485, %v4482
      %v4574 = vpack.c.bf16 %v4493, %v4490
      %v4575 = vpack.c.bf16 %v4501, %v4498
      %v4576 = vpack.c.bf16 %v4509, %v4506
      %v4577 = vpack.c.bf16 %v4517, %v4514
      %v4578 = vpack.c.bf16 %v4525, %v4522
      %v4579 = vpack.c.bf16 %v4533, %v4530
      %v4580 = vpack.c.bf16 %v4541, %v4538
      %v4581 = vpack.c.bf16 %v4549, %v4546
      %v4582 = vpack.c.bf16 %v4557, %v4554
      %v4583 = vpack.c.bf16 %v4565, %v4562
      %v4600 = vunpack.c.l.b16 %v4568
      %v4601 = vunpack.c.h.b16 %v4568
      %v4602 = vunpack.c.l.b16 %v4569
      %v4603 = vunpack.c.h.b16 %v4569
      %v4604 = vunpack.c.l.b16 %v4570
      %v4605 = vunpack.c.h.b16 %v4570
      %v4606 = vunpack.c.l.b16 %v4571
      %v4607 = vunpack.c.h.b16 %v4571
      %v4608 = vunpack.c.l.b16 %v4572
      %v4609 = vunpack.c.h.b16 %v4572
      %v4610 = vunpack.c.l.b16 %v4573
      %v4611 = vunpack.c.h.b16 %v4573
      %v4612 = vunpack.c.l.b16 %v4574
      %v4613 = vunpack.c.h.b16 %v4574
      %v4614 = vunpack.c.l.b16 %v4575
      %v4615 = vunpack.c.h.b16 %v4575
      %v4616 = vunpack.c.l.b16 %v4576
      %v4617 = vunpack.c.h.b16 %v4576
      %v4618 = vunpack.c.l.b16 %v4577
      %v4619 = vunpack.c.h.b16 %v4577
      %v4620 = vunpack.c.l.b16 %v4578
      %v4621 = vunpack.c.h.b16 %v4578
      %v4622 = vunpack.c.l.b16 %v4579
      %v4623 = vunpack.c.h.b16 %v4579
      %v4624 = vunpack.c.l.b16 %v4580
      %v4625 = vunpack.c.h.b16 %v4580
      %v4626 = vunpack.c.l.b16 %v4581
      %v4627 = vunpack.c.h.b16 %v4581
      %v4628 = vunpack.c.l.b16 %v4582
      %v4629 = vunpack.c.h.b16 %v4582
      %v4630 = vunpack.c.l.b16 %v4583
      %v4631 = vunpack.c.h.b16 %v4583
      %v4632 = vpack.c.b16 %v4600, %v4600
      %v4633 = vpack.c.b16 %v4601, %v4601
      %v4634 = vpack.c.b16 %v4602, %v4602
      %v4635 = vpack.c.b16 %v4603, %v4603
      %v4636 = vpack.c.b16 %v4604, %v4604
      %v4637 = vpack.c.b16 %v4605, %v4605
      %v4638 = vpack.c.b16 %v4606, %v4606
      %v4639 = vpack.c.b16 %v4607, %v4607
      %v4640 = vpack.c.b16 %v4608, %v4608
      %v4641 = vpack.c.b16 %v4609, %v4609
      %v4642 = vpack.c.b16 %v4610, %v4610
      %v4643 = vpack.c.b16 %v4611, %v4611
      %v4644 = vpack.c.b16 %v4612, %v4612
      %v4645 = vpack.c.b16 %v4613, %v4613
      %v4646 = vpack.c.b16 %v4614, %v4614
      %v4647 = vpack.c.b16 %v4615, %v4615
      %v4648 = vpack.c.b16 %v4616, %v4616
      %v4649 = vpack.c.b16 %v4617, %v4617
      %v4650 = vpack.c.b16 %v4618, %v4618
      %v4651 = vpack.c.b16 %v4619, %v4619
      %v4652 = vpack.c.b16 %v4620, %v4620
      %v4653 = vpack.c.b16 %v4621, %v4621
      %v4654 = vpack.c.b16 %v4622, %v4622
      %v4655 = vpack.c.b16 %v4623, %v4623
      %v4656 = vpack.c.b16 %v4624, %v4624
      %v4657 = vpack.c.b16 %v4625, %v4625
      %v4658 = vpack.c.b16 %v4626, %v4626
      %v4659 = vpack.c.b16 %v4627, %v4627
      %v4660 = vpack.c.b16 %v4628, %v4628
      %v4661 = vpack.c.b16 %v4629, %v4629
      %v4662 = vpack.c.b16 %v4630, %v4630
      %v4663 = vpack.c.b16 %v4631, %v4631
      %4696 = vst.msk [vmem:[%s262] sm:$0xf] %vm424, %v4632
      %4697 = vst.msk [vmem:[%s262 + $0x4] sm:$0xf] %vm424, %v4633
      %4698 = vst.msk [vmem:[%s262 + $0x8] sm:$0xf] %vm424, %v4634
      %4699 = vst.msk [vmem:[%s262 + $0xc] sm:$0xf] %vm424, %v4635
      %4700 = vst.msk [vmem:[%s262 + $0x10] sm:$0xf] %vm424, %v4636
      %4701 = vst.msk [vmem:[%s262 + $0x14] sm:$0xf] %vm424, %v4637
      %4702 = vst.msk [vmem:[%s262 + $0x18] sm:$0xf] %vm424, %v4638
      %4703 = vst.msk [vmem:[%s262 + $0x1c] sm:$0xf] %vm424, %v4639
      %4704 = vst.msk [vmem:[%s262 + $0x20] sm:$0xf] %vm424, %v4640
      %4705 = vst.msk [vmem:[%s262 + $0x24] sm:$0xf] %vm424, %v4641
      %4706 = vst.msk [vmem:[%s262 + $0x28] sm:$0xf] %vm424, %v4642
      %4707 = vst.msk [vmem:[%s262 + $0x2c] sm:$0xf] %vm424, %v4643
      %4708 = vst.msk [vmem:[%s262 + $0x30] sm:$0xf] %vm424, %v4644
      %4709 = vst.msk [vmem:[%s262 + $0x34] sm:$0xf] %vm424, %v4645
      %4710 = vst.msk [vmem:[%s262 + $0x38] sm:$0xf] %vm424, %v4646
      %4711 = vst.msk [vmem:[%s262 + $0x3c] sm:$0xf] %vm424, %v4647
      %4712 = vst.msk [vmem:[%s262 + $0x40] sm:$0xf] %vm424, %v4648
      %4713 = vst.msk [vmem:[%s262 + $0x44] sm:$0xf] %vm424, %v4649
      %4714 = vst.msk [vmem:[%s262 + $0x48] sm:$0xf] %vm424, %v4650
      %4715 = vst.msk [vmem:[%s262 + $0x4c] sm:$0xf] %vm424, %v4651
      %4716 = vst.msk [vmem:[%s262 + $0x50] sm:$0xf] %vm424, %v4652
      %4717 = vst.msk [vmem:[%s262 + $0x54] sm:$0xf] %vm424, %v4653
      %4718 = vst.msk [vmem:[%s262 + $0x58] sm:$0xf] %vm424, %v4654
      %4719 = vst.msk [vmem:[%s262 + $0x5c] sm:$0xf] %vm424, %v4655
      %4720 = vst.msk [vmem:[%s262 + $0x60] sm:$0xf] %vm424, %v4656
      %4721 = vst.msk [vmem:[%s262 + $0x64] sm:$0xf] %vm424, %v4657
      %4722 = vst.msk [vmem:[%s262 + $0x68] sm:$0xf] %vm424, %v4658
      %4723 = vst.msk [vmem:[%s262 + $0x6c] sm:$0xf] %vm424, %v4659
      %4724 = vst.msk [vmem:[%s262 + $0x70] sm:$0xf] %vm424, %v4660
      %4725 = vst.msk [vmem:[%s262 + $0x74] sm:$0xf] %vm424, %v4661
      %4726 = vst.msk [vmem:[%s262 + $0x78] sm:$0xf] %vm424, %v4662
      %4727 = vst.msk [vmem:[%s262 + $0x7c] sm:$0xf] %vm424, %v4663
      %v4728 = vsel %vm1099, %v4442, 0.0
      %v4729 = vsel %vm1099, %v4445, 0.0
      %v4730 = vadd.f32 %v4728, %v4729
      %v4731 = vsel %vm1099, %v4450, 0.0
      %v4732 = vadd.f32 %v4730, %v4731
      %v4733 = vsel %vm1099, %v4453, 0.0
      %v4734 = vadd.f32 %v4732, %v4733
      %v4735 = vsel %vm1099, %v4458, 0.0
      %v4736 = vadd.f32 %v4734, %v4735
      %v4737 = vsel %vm1099, %v4461, 0.0
      %v4738 = vadd.f32 %v4736, %v4737
      %v4739 = vsel %vm1099, %v4466, 0.0
      %v4740 = vadd.f32 %v4738, %v4739
      %v4741 = vsel %vm1099, %v4469, 0.0
      %v4742 = vadd.f32 %v4740, %v4741
      %v4743 = vsel %vm1099, %v4474, 0.0
      %v4744 = vadd.f32 %v4742, %v4743
      %v4745 = vsel %vm1099, %v4477, 0.0
      %v4746 = vadd.f32 %v4744, %v4745
      %v4747 = vsel %vm1099, %v4482, 0.0
      %v4748 = vadd.f32 %v4746, %v4747
      %v4749 = vsel %vm1099, %v4485, 0.0
      %v4750 = vadd.f32 %v4748, %v4749
      %v4751 = vsel %vm1099, %v4490, 0.0
      %v4752 = vadd.f32 %v4750, %v4751
      %v4753 = vsel %vm1099, %v4493, 0.0
      %v4754 = vadd.f32 %v4752, %v4753
      %v4755 = vsel %vm1099, %v4498, 0.0
      %v4756 = vadd.f32 %v4754, %v4755
      %v4757 = vsel %vm1099, %v4501, 0.0
      %v4758 = vadd.f32 %v4756, %v4757
      %v4759 = vsel %vm1099, %v4506, 0.0
      %v4760 = vadd.f32 %v4758, %v4759
      %v4761 = vsel %vm1099, %v4509, 0.0
      %v4762 = vadd.f32 %v4760, %v4761
      %v4763 = vsel %vm1099, %v4514, 0.0
      %v4764 = vadd.f32 %v4762, %v4763
      %v4765 = vsel %vm1099, %v4517, 0.0
      %v4766 = vadd.f32 %v4764, %v4765
      %v4767 = vsel %vm1099, %v4522, 0.0
      %v4768 = vadd.f32 %v4766, %v4767
      %v4769 = vsel %vm1099, %v4525, 0.0
      %v4770 = vadd.f32 %v4768, %v4769
      %v4771 = vsel %vm1099, %v4530, 0.0
      %v4772 = vadd.f32 %v4770, %v4771
      %v4773 = vsel %vm1099, %v4533, 0.0
      %v4774 = vadd.f32 %v4772, %v4773
      %v4775 = vsel %vm1099, %v4538, 0.0
      %v4776 = vadd.f32 %v4774, %v4775
      %v4777 = vsel %vm1099, %v4541, 0.0
      %v4778 = vadd.f32 %v4776, %v4777
      %v4779 = vsel %vm1099, %v4546, 0.0
      %v4780 = vadd.f32 %v4778, %v4779
      %v4781 = vsel %vm1099, %v4549, 0.0
      %v4782 = vadd.f32 %v4780, %v4781
      %v4783 = vsel %vm1099, %v4554, 0.0
      %v4784 = vadd.f32 %v4782, %v4783
      %v4785 = vsel %vm1099, %v4557, 0.0
      %v4786 = vadd.f32 %v4784, %v4785
      %v4787 = vsel %vm1099, %v4562, 0.0
      %v4788 = vadd.f32 %v4786, %v4787
      %v4789 = vsel %vm1099, %v4565, 0.0
      %v4790 = vadd.f32 %v4788, %v4789
      %v4791 = vrot.slane %v4790, 4
      %v4792 = vadd.f32 %v4790, %v4791
      %v4793 = vrot.slane %v4792, 2
      %v4794 = vadd.f32 %v4792, %v4793
      %v4795 = vrot.slane %v4794, 1
      %v4796 = vadd.f32 %v4794, %v4795
      %4797 = vst.msk [vmem:[%s265] sm:$0x1] %vm427, %v4796
      %v4798 = vmul.f32 %v4442, %v4442
      %v4799 = vmul.f32 %v4445, %v4445
      %v4800 = vmul.f32 %v4450, %v4450
      %v4801 = vmul.f32 %v4453, %v4453
      %v4802 = vmul.f32 %v4458, %v4458
      %v4803 = vmul.f32 %v4461, %v4461
      %v4804 = vmul.f32 %v4466, %v4466
      %v4805 = vmul.f32 %v4469, %v4469
      %v4806 = vmul.f32 %v4474, %v4474
      %v4807 = vmul.f32 %v4477, %v4477
      %v4808 = vmul.f32 %v4482, %v4482
      %v4809 = vmul.f32 %v4485, %v4485
      %v4810 = vmul.f32 %v4490, %v4490
      %v4811 = vmul.f32 %v4493, %v4493
      %v4812 = vmul.f32 %v4498, %v4498
      %v4813 = vmul.f32 %v4501, %v4501
      %v4814 = vmul.f32 %v4506, %v4506
      %v4815 = vmul.f32 %v4509, %v4509
      %v4816 = vmul.f32 %v4514, %v4514
      %v4817 = vmul.f32 %v4517, %v4517
      %v4818 = vmul.f32 %v4522, %v4522
      %v4819 = vmul.f32 %v4525, %v4525
      %v4820 = vmul.f32 %v4530, %v4530
      %v4821 = vmul.f32 %v4533, %v4533
      %v4822 = vmul.f32 %v4538, %v4538
      %v4823 = vmul.f32 %v4541, %v4541
      %v4824 = vmul.f32 %v4546, %v4546
      %v4825 = vmul.f32 %v4549, %v4549
      %v4826 = vmul.f32 %v4554, %v4554
      %v4827 = vmul.f32 %v4557, %v4557
      %v4828 = vmul.f32 %v4562, %v4562
      %v4829 = vmul.f32 %v4565, %v4565
      %v4830 = vsel %vm1099, %v4798, 0.0
      %v4831 = vsel %vm1099, %v4799, 0.0
      %v4832 = vadd.f32 %v4830, %v4831
      %v4833 = vsel %vm1099, %v4800, 0.0
      %v4834 = vadd.f32 %v4832, %v4833
      %v4835 = vsel %vm1099, %v4801, 0.0
      %v4836 = vadd.f32 %v4834, %v4835
      %v4837 = vsel %vm1099, %v4802, 0.0
      %v4838 = vadd.f32 %v4836, %v4837
      %v4839 = vsel %vm1099, %v4803, 0.0
      %v4840 = vadd.f32 %v4838, %v4839
      %v4841 = vsel %vm1099, %v4804, 0.0
      %v4842 = vadd.f32 %v4840, %v4841
      %v4843 = vsel %vm1099, %v4805, 0.0
      %v4844 = vadd.f32 %v4842, %v4843
      %v4845 = vsel %vm1099, %v4806, 0.0
      %v4846 = vadd.f32 %v4844, %v4845
      %v4847 = vsel %vm1099, %v4807, 0.0
      %v4848 = vadd.f32 %v4846, %v4847
      %v4849 = vsel %vm1099, %v4808, 0.0
      %v4850 = vadd.f32 %v4848, %v4849
      %v4851 = vsel %vm1099, %v4809, 0.0
      %v4852 = vadd.f32 %v4850, %v4851
      %v4853 = vsel %vm1099, %v4810, 0.0
      %v4854 = vadd.f32 %v4852, %v4853
      %v4855 = vsel %vm1099, %v4811, 0.0
      %v4856 = vadd.f32 %v4854, %v4855
      %v4857 = vsel %vm1099, %v4812, 0.0
      %v4858 = vadd.f32 %v4856, %v4857
      %v4859 = vsel %vm1099, %v4813, 0.0
      %v4860 = vadd.f32 %v4858, %v4859
      %v4861 = vsel %vm1099, %v4814, 0.0
      %v4862 = vadd.f32 %v4860, %v4861
      %v4863 = vsel %vm1099, %v4815, 0.0
      %v4864 = vadd.f32 %v4862, %v4863
      %v4865 = vsel %vm1099, %v4816, 0.0
      %v4866 = vadd.f32 %v4864, %v4865
      %v4867 = vsel %vm1099, %v4817, 0.0
      %v4868 = vadd.f32 %v4866, %v4867
      %v4869 = vsel %vm1099, %v4818, 0.0
      %v4870 = vadd.f32 %v4868, %v4869
      %v4871 = vsel %vm1099, %v4819, 0.0
      %v4872 = vadd.f32 %v4870, %v4871
      %v4873 = vsel %vm1099, %v4820, 0.0
      %v4874 = vadd.f32 %v4872, %v4873
      %v4875 = vsel %vm1099, %v4821, 0.0
      %v4876 = vadd.f32 %v4874, %v4875
      %v4877 = vsel %vm1099, %v4822, 0.0
      %v4878 = vadd.f32 %v4876, %v4877
      %v4879 = vsel %vm1099, %v4823, 0.0
      %v4880 = vadd.f32 %v4878, %v4879
      %v4881 = vsel %vm1099, %v4824, 0.0
      %v4882 = vadd.f32 %v4880, %v4881
      %v4883 = vsel %vm1099, %v4825, 0.0
      %v4884 = vadd.f32 %v4882, %v4883
      %v4885 = vsel %vm1099, %v4826, 0.0
      %v4886 = vadd.f32 %v4884, %v4885
      %v4887 = vsel %vm1099, %v4827, 0.0
      %v4888 = vadd.f32 %v4886, %v4887
      %v4889 = vsel %vm1099, %v4828, 0.0
      %v4890 = vadd.f32 %v4888, %v4889
      %v4891 = vsel %vm1099, %v4829, 0.0
      %v4892 = vadd.f32 %v4890, %v4891
      %v4893 = vrot.slane %v4892, 4
      %v4894 = vadd.f32 %v4892, %v4893
      %v4895 = vrot.slane %v4894, 2
      %v4896 = vadd.f32 %v4894, %v4895
      %v4897 = vrot.slane %v4896, 1
      %v4898 = vadd.f32 %v4896, %v4897
      %4899 = vst.msk [vmem:[%s268] sm:$0x1] %vm427, %v4898
      %p4900 = scmp.lt.s32.totalorder %s18, 1
      %s4901 = scalar_select %p4900, %s18, 1
      %s4902 = smul.addr %s4901, 32
      %s4903 = smul.addr %s4902, 4
      %s4904 = scalar_lea.vmem %s4, %s4903
      %p4905 = scmp.lt.s32.totalorder %s18, 1
      %s4906 = scalar_select %p4905, %s18, 1
      %s4907 = scalar_lea.vmem %s5, %s4906
      %p4908 = scmp.lt.s32.totalorder %s18, 1
      %s4909 = scalar_select %p4908, %s18, 1
      %s4910 = scalar_lea.vmem %s6, %s4909
      // Predicated region
      $region37: #{double_conv_forward.4} parent=35 // pred_check
        %p4911 = pneg %p125
      $region38: #{double_conv_forward.4} parent=35 // pred_check_branch
        %4913 = sbr.rel (%p4911) target = $region40
      $region39: #{double_conv_forward.4} parent=35 // pred_region
        _
      $region40: #{double_conv_forward.4} parent=35 // pred_fallthru
        _
      // Predicated region
      $region41: #{double_conv_forward.4} parent=35 // pred_check
        %p4914 = pneg %p151
      $region42: #{double_conv_forward.4} parent=35 // pred_check_branch
        %4916 = sbr.rel (%p4914) target = $region44
      $region43: #{double_conv_forward.4} parent=35 // pred_region
        _
      $region44: #{double_conv_forward.4} parent=35 // pred_fallthru
        _
      // Predicated region
      $region45: #{double_conv_forward.4} parent=35 // pred_check
        %p4917 = pneg %p177
      $region46: #{double_conv_forward.4} parent=35 // pred_check_branch
        %4919 = sbr.rel (%p4917) target = $region48
      $region47: #{double_conv_forward.4} parent=35 // pred_region
        _
      $region48: #{double_conv_forward.4} parent=35 // pred_fallthru
        _
    $region36: #{double_conv_forward.4} parent=5 // pred_fallthru
      _
    %p4920 = scmp.le.s32.totalorder 2, %s13
    // Predicated region
    $region49: #{double_conv_forward.4} parent=5 // pred_check
      %p4921 = pneg %p4920
    $region50: #{double_conv_forward.4} parent=5 // pred_check_branch
      %4923 = sbr.rel (%p4921) target = $region52
    $region51: #{double_conv_forward.4} parent=5 // pred_region
      %s4924 = ssub.s32 %s13, 2
      // Predicated region
      $region53: #{double_conv_forward.4} parent=51 // pred_check
        %p4925 = pneg %p131
      $region54: #{double_conv_forward.4} parent=51 // pred_check_branch
        %4927 = sbr.rel (%p4925) target = $region56
      $region55: #{double_conv_forward.4} parent=51 // pred_region
        %p4928 = scmp.lt.s32.totalorder %s19, 1
        %s4929 = scalar_select %p4928, %s19, 1
        %s4930 = smul.addr %s4929, 32
        %s4931 = smul.addr %s4930, 4
        %s4932 = scalar_lea.vmem %s4, %s4931
      $region56: #{double_conv_forward.4} parent=51 // pred_fallthru
        _
      // Predicated region
      $region57: #{double_conv_forward.4} parent=51 // pred_check
        %p4933 = pneg %p157
      $region58: #{double_conv_forward.4} parent=51 // pred_check_branch
        %4935 = sbr.rel (%p4933) target = $region60
      $region59: #{double_conv_forward.4} parent=51 // pred_region
        %p4936 = scmp.lt.s32.totalorder %s19, 1
        %s4937 = scalar_select %p4936, %s19, 1
        %s4938 = scalar_lea.vmem %s5, %s4937
      $region60: #{double_conv_forward.4} parent=51 // pred_fallthru
        _
      // Predicated region
      $region61: #{double_conv_forward.4} parent=51 // pred_check
        %p4939 = pneg %p183
      $region62: #{double_conv_forward.4} parent=51 // pred_check_branch
        %4941 = sbr.rel (%p4939) target = $region64
      $region63: #{double_conv_forward.4} parent=51 // pred_region
        %p4942 = scmp.lt.s32.totalorder %s19, 1
        %s4943 = scalar_select %p4942, %s19, 1
        %s4944 = scalar_lea.vmem %s6, %s4943
      $region64: #{double_conv_forward.4} parent=51 // pred_fallthru
        _
    $region52: #{double_conv_forward.4} parent=5 // pred_fallthru
      _
  $region6: #{double_conv_forward.4} parent=0 // loop_footer
    %s17 = sadd.s32 1, %s13
  $region7: #{double_conv_forward.4} parent=0 // loop_footer_branch
    %12 = sbr.rel target = $region3
  $region8: #{double_conv_forward.4} parent=0 // loop_exit
    _

</llo_original>
